<compile_context>
chip_gen: v7x
topology: tpu7x:2x2x1
jax: 0.10.0
libtpu: 0.0.40
codegen_flags: <defaults>
</compile_context>

<pallas_src>
import random

import jax
import jax.numpy as jnp
from jax.experimental import pallas as pl
from jax.experimental.pallas import tpu as pltpu

# ---------------- sizes ----------------
SRC_LEN, TRG_LEN, BATCH = 8, 6, 4
SRC_VOCAB, TRG_VOCAB = 16, 16
ENC_EMB, DEC_EMB = 8, 8
ENC_HID, DEC_HID = 16, 16
B_PAD = ((BATCH + 7) // 8) * 8            # pad batch to the f32 sublane quantum (=8)


# ================= fully fused encoder + decoder forward =================
def seq2seq_kernel(sel_ref,                                          # scalar prefetch (SMEM)
                   xflat_ref, temb_ref,
                   ewih_ref, ewhh_ref, ebih_ref, ebhh_ref, efcw_ref, efcb_ref,
                   waeb_ref, barep_ref, wahrep_ref, vblk_ref, repm_ref, stkeye_ref,
                   wie_ref, wic_ref, dwhh_ref, dbih_ref, dbhh_ref,
                   woh_ref, woc_ref, woe_ref, bo_ref, demb_ref,
                   pred_ref,
                   enc_scr):
    f32 = jnp.float32
    B = enc_scr.shape[0]
    H2 = ewhh_ref.shape[0]                 # fused encoder hidden width = 2*ENC_HID
    H = H2 // 2
    S = enc_scr.shape[1] // H2
    DH = dwhh_ref.shape[0]
    V = bo_ref.shape[1]
    Tm1 = pred_ref.shape[0]

    # ---------------- encoder: fused fwd+bwd GRU (block-diagonal weights, width 2H) ----------------
    # Input-side projection hoisted out of the recurrence: ONE matmul covers all S timesteps.
    gi_all = jnp.dot(xflat_ref[...], ewih_ref[...], preferred_element_type=f32) + ebih_ref[...]
    whh = ewhh_ref[...]
    bhh = ebhh_ref[...]

    h = jnp.zeros((B, H2), f32)            # [h_fwd | h_bwd]
    for t in range(S):                     # unrolled: only gh = h @ Whh stays on the serial chain
        gi = gi_all[t * B:(t + 1) * B, :]
        gh = jnp.dot(h, whh, preferred_element_type=f32) + bhh
        r = jax.nn.sigmoid(gi[:, 0:H2] + gh[:, 0:H2])
        z = jax.nn.sigmoid(gi[:, H2:2 * H2] + gh[:, H2:2 * H2])
        n = jnp.tanh(gi[:, 2 * H2:3 * H2] + r * gh[:, 2 * H2:3 * H2])
        h = (1.0 - z) * n + z * h
        # lane-flat encoder outputs: block s holds [h_fwd(s) | h_bwd(s)]
        enc_scr[:, t * H2:t * H2 + H] = h[:, 0:H]                      # forward hidden at t
        enc_scr[:, (S - 1 - t) * H2 + H:(S - 1 - t) * H2 + H2] = h[:, H:H2]   # backward at S-1-t

    # decoder initial hidden = tanh(fc([h_fwd_final ; h_bwd_final]))
    dh = jnp.tanh(jnp.dot(h, efcw_ref[...], preferred_element_type=f32) + efcb_ref[...])

    enc_flat = enc_scr[...]                                            # [B, S*2H]
    # loop-invariant encoder-side attention projection: ONE block-diagonal matmul
    eflat = jnp.dot(enc_flat, waeb_ref[...], preferred_element_type=f32) + barep_ref[...]  # [B, S*DH]

    # ---------------- decoder: attention + GRU + output projection, unrolled ----------------
    demb = demb_ref[...]
    iota = jax.lax.broadcasted_iota(jnp.int32, (B, V), 1).astype(f32)
    prev = jnp.zeros((B, V), f32)
    for t in range(Tm1):
        if t == 0:
            emb = temb_ref[0]              # step 0 always feeds trg[0]
        else:
            # argmax(prev) -> one-hot -> embedding (first-maximal-index semantics)
            m = jnp.max(prev, axis=-1, keepdims=True)
            cand = jnp.where(prev >= m, iota, jnp.float32(V))
            first_idx = jnp.min(cand, axis=-1, keepdims=True)
            onehot = jnp.where(iota == first_idx, 1.0, 0.0)
            emb_prev = jnp.dot(onehot, demb, preferred_element_type=f32)
            w_tf = (sel_ref[t] > 0).astype(f32)                        # teacher-forcing flag
            emb = w_tf * temb_ref[t] + (1.0 - w_tf) * emb_prev

        # Bahdanau attention: v . tanh(W_h h + W_e enc_s + b), softmax over src positions
        h_rep = jnp.dot(dh, wahrep_ref[...], preferred_element_type=f32)      # [B, S*DH]
        e = jnp.tanh(eflat + h_rep)
        sc = jnp.dot(e, vblk_ref[...], preferred_element_type=f32)            # [B, S]
        sc = sc - jnp.max(sc, axis=-1, keepdims=True)
        ex = jnp.exp(sc)
        attn = ex / jnp.sum(ex, axis=-1, keepdims=True)

        # context = sum_s attn[:, s] * enc_s  (two small matmuls, no lane broadcasts)
        a_exp = jnp.dot(attn, repm_ref[...], preferred_element_type=f32)      # [B, S*2H]
        context = jnp.dot(a_exp * enc_flat, stkeye_ref[...],
                          preferred_element_type=f32)                         # [B, 2H]

        # GRU cell: separate dots per input branch (no in-kernel lane concat)
        gi = (jnp.dot(emb, wie_ref[...], preferred_element_type=f32)
              + jnp.dot(context, wic_ref[...], preferred_element_type=f32)
              + dbih_ref[...])
        gh = jnp.dot(dh, dwhh_ref[...], preferred_element_type=f32) + dbhh_ref[...]
        r = jax.nn.sigmoid(gi[:, 0:DH] + gh[:, 0:DH])
        z = jax.nn.sigmoid(gi[:, DH:2 * DH] + gh[:, DH:2 * DH])
        n = jnp.tanh(gi[:, 2 * DH:3 * DH] + r * gh[:, 2 * DH:3 * DH])
        dh = (1.0 - z) * n + z * dh

        # prediction = fc_out(cat(output, context, embedded)) as three dots
        pred = (jnp.dot(dh, woh_ref[...], preferred_element_type=f32)
                + jnp.dot(context, woc_ref[...], preferred_element_type=f32)
                + jnp.dot(emb, woe_ref[...], preferred_element_type=f32)
                + bo_ref[...])
        pred_ref[t] = pred                 # VMEM-resident output, written back once at kernel end
        prev = pred


def run_seq2seq(pk, x_flat, teacher_emb, sel_mask):
    S, H = SRC_LEN, ENC_HID
    Tm1, B2, _ = teacher_emb.shape
    V = TRG_VOCAB

    def full(shape):
        nd = len(shape)
        return pl.BlockSpec(shape, lambda i, sel: (0,) * nd)

    inputs = (x_flat, teacher_emb,
              pk['enc_wih'], pk['enc_whh'], pk['enc_bih'], pk['enc_bhh'],
              pk['enc_fc_w'], pk['enc_fc_b'],
              pk['wae_blk'], pk['ba_rep'], pk['wah_rep'], pk['v_blk'],
              pk['rep'], pk['stack_eye'],
              pk['wie'], pk['wic'], pk['dec_whh'], pk['dec_bih'], pk['dec_bhh'],
              pk['woh'], pk['woc'], pk['woe'], pk['bo'], pk['dec_emb'])

    return pl.pallas_call(
        seq2seq_kernel,
        out_shape=jax.ShapeDtypeStruct((Tm1, B2, V), jnp.float32),
        grid_spec=pltpu.PrefetchScalarGridSpec(
            num_scalar_prefetch=1,
            grid=(1,),
            in_specs=[full(a.shape) for a in inputs],
            out_specs=pl.BlockSpec((Tm1, B2, V), lambda i, sel: (0, 0, 0)),
            scratch_shapes=[pltpu.VMEM((B2, S * 2 * H), jnp.float32)],   # lane-flat encoder outputs
        ),
        compiler_params=pltpu.CompilerParams(dimension_semantics=("arbitrary",)),
    )(sel_mask, *inputs)


# ================= parameter init (per-direction, PyTorch-style) and host-side packing =================
def init_params(key):
    ks = iter(jax.random.split(key, 32))

    def u(shape, scale=0.1):
        return jax.random.uniform(next(ks), shape, jnp.float32, -scale, scale)

    p = {}
    p['enc_emb'] = u((SRC_VOCAB, ENC_EMB))
    for d in ('f', 'b'):
        p[f'enc_wih_{d}'] = u((ENC_EMB, 3 * ENC_HID))    # gate order: r, z, n (PyTorch)
        p[f'enc_whh_{d}'] = u((ENC_HID, 3 * ENC_HID))
        p[f'enc_bih_{d}'] = u((1, 3 * ENC_HID))
        p[f'enc_bhh_{d}'] = u((1, 3 * ENC_HID))
    p['enc_fc_wf'] = u((ENC_HID, DEC_HID))
    p['enc_fc_wb'] = u((ENC_HID, DEC_HID))
    p['enc_fc_b'] = u((1, DEC_HID))
    # attention
    p['wah'] = u((DEC_HID, DEC_HID))           # applied to decoder hidden
    p['wae'] = u((2 * ENC_HID, DEC_HID))       # applied to encoder outputs
    p['ba'] = u((1, DEC_HID))
    p['v'] = u((1, DEC_HID))
    # decoder GRU
    p['dec_emb'] = u((TRG_VOCAB, DEC_EMB))
    p['wie'] = u((DEC_EMB, 3 * DEC_HID))
    p['wic'] = u((2 * ENC_HID, 3 * DEC_HID))
    p['whh'] = u((DEC_HID, 3 * DEC_HID))
    p['bih'] = u((1, 3 * DEC_HID))
    p['bhh'] = u((1, 3 * DEC_HID))
    # decoder fc_out (split for cat(output, context, embedded))
    p['woh'] = u((DEC_HID, TRG_VOCAB))
    p['woc'] = u((2 * ENC_HID, TRG_VOCAB))
    p['woe'] = u((DEC_EMB, TRG_VOCAB))
    p['bo'] = u((1, TRG_VOCAB))
    return p


def pack_params(p):
    """One-time host-side fusion of per-direction / per-branch weights into kernel layouts."""
    H, DH, S = ENC_HID, DEC_HID, SRC_LEN
    EH2 = 2 * H

    def blockdiag(a, b):
        za = jnp.zeros((a.shape[0], b.shape[1]), jnp.float32)
        zb = jnp.zeros((b.shape[0], a.shape[1]), jnp.float32)
        return jnp.concatenate([jnp.concatenate([a, za], axis=1),
                                jnp.concatenate([zb, b], axis=1)], axis=0)

    def gate_blockdiag(wf, wb):
        # [Kf,3H],[Kb,3H] -> [Kf+Kb, 3*2H] with per-gate column layout [gate_fwd | gate_bwd]
        return jnp.concatenate(
            [blockdiag(wf[:, g * H:(g + 1) * H], wb[:, g * H:(g + 1) * H]) for g in range(3)],
            axis=1)

    def gate_bias(bf, bb):
        return jnp.concatenate(
            [jnp.concatenate([bf[:, g * H:(g + 1) * H], bb[:, g * H:(g + 1) * H]], axis=1)
             for g in range(3)], axis=1)

    eyeS = jnp.eye(S, dtype=jnp.float32)
    pk = {
        'enc_emb': p['enc_emb'],
        'dec_emb': p['dec_emb'],
        # fused bidirectional encoder GRU (both directions in one cell of width 2H)
        'enc_wih': gate_blockdiag(p['enc_wih_f'], p['enc_wih_b']),                # [2E, 6H]
        'enc_whh': gate_blockdiag(p['enc_whh_f'], p['enc_whh_b']),                # [2H, 6H]
        'enc_bih': gate_bias(p['enc_bih_f'], p['enc_bih_b']),                     # [1, 6H]
        'enc_bhh': gate_bias(p['enc_bhh_f'], p['enc_bhh_b']),                     # [1, 6H]
        'enc_fc_w': jnp.concatenate([p['enc_fc_wf'], p['enc_fc_wb']], axis=0),    # [2H, DH]
        'enc_fc_b': p['enc_fc_b'],
        # attention (lane-flat layouts)
        'wae_blk': jnp.kron(eyeS, p['wae']),                                      # [S*2H, S*DH]
        'ba_rep': jnp.tile(p['ba'], (1, S)),                                      # [1, S*DH]
        'wah_rep': jnp.tile(p['wah'], (1, S)),                                    # [DH, S*DH]
        'v_blk': jnp.kron(eyeS, p['v'].reshape(DH, 1)),                           # [S*DH, S]
        'rep': jnp.kron(eyeS, jnp.ones((1, EH2), jnp.float32)),                   # [S, S*2H]
        'stack_eye': jnp.tile(jnp.eye(EH2, dtype=jnp.float32), (S, 1)),           # [S*2H, 2H]
        # decoder GRU / output projection (separate branch weights, no concat in-kernel)
        'wie': p['wie'], 'wic': p['wic'],
        'dec_whh': p['whh'], 'dec_bih': p['bih'], 'dec_bhh': p['bhh'],
        'woh': p['woh'], 'woc': p['woc'], 'woe': p['woe'], 'bo': p['bo'],
    }
    return pk


# ================= jitted end-to-end forward =================
@jax.jit
def _forward(pk, src, trg, sel_mask):
    B = src.shape[1]
    emb_src = jnp.take(pk['enc_emb'], src, axis=0)                       # [S, B, E]
    emb_src = jnp.pad(emb_src, ((0, 0), (0, B_PAD - B), (0, 0)))         # pad batch to sublane quantum
    x_cat = jnp.concatenate([emb_src, emb_src[::-1]], axis=-1)           # [S, B_PAD, 2E] (fwd | bwd)
    x_flat = x_cat.reshape(SRC_LEN * B_PAD, 2 * ENC_EMB)                 # rows grouped by timestep
    teacher_emb = jnp.take(pk['dec_emb'], trg[:-1], axis=0)              # [T-1, B, DE]
    teacher_emb = jnp.pad(teacher_emb, ((0, 0), (0, B_PAD - B), (0, 0)))
    out = run_seq2seq(pk, x_flat, teacher_emb, sel_mask)                 # [T-1, B_PAD, V]
    return out[:, :B, :]


def seq2seq_forward(pk, src, trg, teacher_forcing_ratio=0.5, py_rng=None):
    # TODO(synk): PyTorch draws random.random() per decode step; reproduced with a seeded host RNG
    # and passed into the jitted program as data (int mask), so it is not baked into the trace.
    tm1 = trg.shape[0] - 1
    decisions = [py_rng.random() < teacher_forcing_ratio for _ in range(tm1)]
    sel = [1] + [int(d) for d in decisions[:-1]]      # step 0 always feeds trg[0]
    sel_mask = jnp.asarray(sel, dtype=jnp.int32)
    return _forward(pk, src, trg, sel_mask)


if __name__ == "__main__":
    key = jax.random.PRNGKey(0)
    kp, ks, kt = jax.random.split(key, 3)
    params = init_params(kp)
    packed = pack_params(params)

    src = jax.random.randint(ks, (SRC_LEN, BATCH), 0, SRC_VOCAB, dtype=jnp.int32)
    trg = jax.random.randint(kt, (TRG_LEN, BATCH), 0, TRG_VOCAB, dtype=jnp.int32)

    py_rng = random.Random(0)
    out = seq2seq_forward(packed, src, trg, teacher_forcing_ratio=0.5, py_rng=py_rng)
    out = jax.block_until_ready(out)

    assert out.shape == (TRG_LEN - 1, BATCH, TRG_VOCAB), out.shape
    assert bool(jnp.all(jnp.isfinite(out)))
    print("KERNEL_OK")
</pallas_src>

<mosaic_0001>
module attributes {stable_mosaic.version = 11 : i64} {
  func.func @seq2seq_kernel(%arg0: i32, %arg1: memref<5xi32, #tpu.memory_space<smem>>, %arg2: memref<64x16xf32, #tpu.memory_space<vmem>>, %arg3: memref<5x8x8xf32, #tpu.memory_space<vmem>>, %arg4: memref<16x96xf32, #tpu.memory_space<vmem>>, %arg5: memref<32x96xf32, #tpu.memory_space<vmem>>, %arg6: memref<1x96xf32, #tpu.memory_space<vmem>>, %arg7: memref<1x96xf32, #tpu.memory_space<vmem>>, %arg8: memref<32x16xf32, #tpu.memory_space<vmem>>, %arg9: memref<1x16xf32, #tpu.memory_space<vmem>>, %arg10: memref<256x128xf32, #tpu.memory_space<vmem>>, %arg11: memref<1x128xf32, #tpu.memory_space<vmem>>, %arg12: memref<16x128xf32, #tpu.memory_space<vmem>>, %arg13: memref<128x8xf32, #tpu.memory_space<vmem>>, %arg14: memref<8x256xf32, #tpu.memory_space<vmem>>, %arg15: memref<256x32xf32, #tpu.memory_space<vmem>>, %arg16: memref<8x48xf32, #tpu.memory_space<vmem>>, %arg17: memref<32x48xf32, #tpu.memory_space<vmem>>, %arg18: memref<16x48xf32, #tpu.memory_space<vmem>>, %arg19: memref<1x48xf32, #tpu.memory_space<vmem>>, %arg20: memref<1x48xf32, #tpu.memory_space<vmem>>, %arg21: memref<16x16xf32, #tpu.memory_space<vmem>>, %arg22: memref<32x16xf32, #tpu.memory_space<vmem>>, %arg23: memref<8x16xf32, #tpu.memory_space<vmem>>, %arg24: memref<1x16xf32, #tpu.memory_space<vmem>>, %arg25: memref<16x8xf32, #tpu.memory_space<vmem>>, %arg26: memref<5x8x16xf32, #tpu.memory_space<vmem>>, %arg27: memref<8x256xf32, #tpu.memory_space<vmem>>) attributes {dimension_semantics = [#tpu.dimension_semantics<arbitrary>], iteration_bounds = array<i64: 1>, scalar_prefetch = 1 : i64, scratch_operands = 1 : i64, tpu.core_type = #tpu.core_type<tc>, window_params = [{pipeline_mode = #tpu.pipeline_mode<synchronous>, transform_indices = @transform_0, window_bounds = array<i64: 64, 16>}, {pipeline_mode = #tpu.pipeline_mode<synchronous>, transform_indices = @transform_1, window_bounds = array<i64: 5, 8, 8>}, {pipeline_mode = #tpu.pipeline_mode<synchronous>, transform_indices = @transform_2, window_bounds = array<i64: 16, 96>}, {pipeline_mode = #tpu.pipeline_mode<synchronous>, transform_indices = @transform_3, window_bounds = array<i64: 32, 96>}, {pipeline_mode = #tpu.pipeline_mode<synchronous>, transform_indices = @transform_4, window_bounds = array<i64: 1, 96>}, {pipeline_mode = #tpu.pipeline_mode<synchronous>, transform_indices = @transform_5, window_bounds = array<i64: 1, 96>}, {pipeline_mode = #tpu.pipeline_mode<synchronous>, transform_indices = @transform_6, window_bounds = array<i64: 32, 16>}, {pipeline_mode = #tpu.pipeline_mode<synchronous>, transform_indices = @transform_7, window_bounds = array<i64: 1, 16>}, {pipeline_mode = #tpu.pipeline_mode<synchronous>, transform_indices = @transform_8, window_bounds = array<i64: 256, 128>}, {pipeline_mode = #tpu.pipeline_mode<synchronous>, transform_indices = @transform_9, window_bounds = array<i64: 1, 128>}, {pipeline_mode = #tpu.pipeline_mode<synchronous>, transform_indices = @transform_10, window_bounds = array<i64: 16, 128>}, {pipeline_mode = #tpu.pipeline_mode<synchronous>, transform_indices = @transform_11, window_bounds = array<i64: 128, 8>}, {pipeline_mode = #tpu.pipeline_mode<synchronous>, transform_indices = @transform_12, window_bounds = array<i64: 8, 256>}, {pipeline_mode = #tpu.pipeline_mode<synchronous>, transform_indices = @transform_13, window_bounds = array<i64: 256, 32>}, {pipeline_mode = #tpu.pipeline_mode<synchronous>, transform_indices = @transform_14, window_bounds = array<i64: 8, 48>}, {pipeline_mode = #tpu.pipeline_mode<synchronous>, transform_indices = @transform_15, window_bounds = array<i64: 32, 48>}, {pipeline_mode = #tpu.pipeline_mode<synchronous>, transform_indices = @transform_16, window_bounds = array<i64: 16, 48>}, {pipeline_mode = #tpu.pipeline_mode<synchronous>, transform_indices = @transform_17, window_bounds = array<i64: 1, 48>}, {pipeline_mode = #tpu.pipeline_mode<synchronous>, transform_indices = @transform_18, window_bounds = array<i64: 1, 48>}, {pipeline_mode = #tpu.pipeline_mode<synchronous>, transform_indices = @transform_19, window_bounds = array<i64: 16, 16>}, {pipeline_mode = #tpu.pipeline_mode<synchronous>, transform_indices = @transform_20, window_bounds = array<i64: 32, 16>}, {pipeline_mode = #tpu.pipeline_mode<synchronous>, transform_indices = @transform_21, window_bounds = array<i64: 8, 16>}, {pipeline_mode = #tpu.pipeline_mode<synchronous>, transform_indices = @transform_22, window_bounds = array<i64: 1, 16>}, {pipeline_mode = #tpu.pipeline_mode<synchronous>, transform_indices = @transform_23, window_bounds = array<i64: 16, 8>}, {pipeline_mode = #tpu.pipeline_mode<synchronous>, transform_indices = @transform_24, window_bounds = array<i64: 5, 8, 16>}]} {
    %c0 = arith.constant 0 : index
    %c0_0 = arith.constant 0 : index
    %0 = vector.load %arg2[%c0, %c0_0] : memref<64x16xf32, #tpu.memory_space<vmem>>, vector<64x16xf32>
    %c0_1 = arith.constant 0 : index
    %c0_2 = arith.constant 0 : index
    %1 = vector.load %arg4[%c0_1, %c0_2] : memref<16x96xf32, #tpu.memory_space<vmem>>, vector<16x96xf32>
    %cst = arith.constant dense<0.000000e+00> : vector<64x96xf32>
    %2 = tpu.matmul %0, %1, %cst {dimension_numbers = #tpu.dot_dimension_numbers<[1], [0], [0], [1], [0, 0, 1, 1], [], []>} : vector<64x16xf32>, vector<16x96xf32>, vector<64x96xf32> -> vector<64x96xf32>
    %c0_3 = arith.constant 0 : index
    %c0_4 = arith.constant 0 : index
    %3 = vector.load %arg6[%c0_3, %c0_4] : memref<1x96xf32, #tpu.memory_space<vmem>>, vector<1x96xf32>
    %4 = vector.broadcast %3 : vector<1x96xf32> to vector<64x96xf32>
    %5 = arith.addf %2, %4 : vector<64x96xf32>
    %c0_5 = arith.constant 0 : index
    %c0_6 = arith.constant 0 : index
    %6 = vector.load %arg5[%c0_5, %c0_6] : memref<32x96xf32, #tpu.memory_space<vmem>>, vector<32x96xf32>
    %c0_7 = arith.constant 0 : index
    %c0_8 = arith.constant 0 : index
    %7 = vector.load %arg7[%c0_7, %c0_8] : memref<1x96xf32, #tpu.memory_space<vmem>>, vector<1x96xf32>
    %cst_9 = arith.constant 0.000000e+00 : f32
    %8 = vector.broadcast %cst_9 : f32 to vector<8x32xf32>
    %9 = vector.extract_strided_slice %5 {offsets = [0, 0], sizes = [8, 96], strides = [1, 1]} : vector<64x96xf32> to vector<8x96xf32>
    %cst_10 = arith.constant dense<0.000000e+00> : vector<8x96xf32>
    %10 = tpu.matmul %8, %6, %cst_10 {dimension_numbers = #tpu.dot_dimension_numbers<[1], [0], [0], [1], [0, 0, 1, 1], [], []>} : vector<8x32xf32>, vector<32x96xf32>, vector<8x96xf32> -> vector<8x96xf32>
    %11 = vector.broadcast %7 : vector<1x96xf32> to vector<8x96xf32>
    %12 = arith.addf %10, %11 : vector<8x96xf32>
    %13 = vector.extract_strided_slice %9 {offsets = [0, 0], sizes = [8, 32], strides = [1, 1]} : vector<8x96xf32> to vector<8x32xf32>
    %14 = vector.extract_strided_slice %12 {offsets = [0, 0], sizes = [8, 32], strides = [1, 1]} : vector<8x96xf32> to vector<8x32xf32>
    %15 = arith.addf %13, %14 : vector<8x32xf32>
    %16 = arith.negf %15 : vector<8x32xf32>
    %17 = math.exp %16 : vector<8x32xf32>
    %cst_11 = arith.constant 1.000000e+00 : f32
    %18 = vector.broadcast %cst_11 : f32 to vector<8x32xf32>
    %19 = arith.addf %18, %17 : vector<8x32xf32>
    %20 = arith.divf %18, %19 : vector<8x32xf32>
    %21 = vector.extract_strided_slice %9 {offsets = [0, 32], sizes = [8, 32], strides = [1, 1]} : vector<8x96xf32> to vector<8x32xf32>
    %22 = vector.extract_strided_slice %12 {offsets = [0, 32], sizes = [8, 32], strides = [1, 1]} : vector<8x96xf32> to vector<8x32xf32>
    %23 = arith.addf %21, %22 : vector<8x32xf32>
    %24 = arith.negf %23 : vector<8x32xf32>
    %25 = math.exp %24 : vector<8x32xf32>
    %cst_12 = arith.constant 1.000000e+00 : f32
    %26 = vector.broadcast %cst_12 : f32 to vector<8x32xf32>
    %27 = arith.addf %26, %25 : vector<8x32xf32>
    %28 = arith.divf %26, %27 : vector<8x32xf32>
    %29 = vector.extract_strided_slice %9 {offsets = [0, 64], sizes = [8, 32], strides = [1, 1]} : vector<8x96xf32> to vector<8x32xf32>
    %30 = vector.extract_strided_slice %12 {offsets = [0, 64], sizes = [8, 32], strides = [1, 1]} : vector<8x96xf32> to vector<8x32xf32>
    %31 = arith.mulf %20, %30 : vector<8x32xf32>
    %32 = arith.addf %29, %31 : vector<8x32xf32>
    %33 = math.tanh %32 : vector<8x32xf32>
    %cst_13 = arith.constant 1.000000e+00 : f32
    %34 = vector.broadcast %cst_13 : f32 to vector<8x32xf32>
    %35 = arith.subf %34, %28 : vector<8x32xf32>
    %36 = arith.mulf %35, %33 : vector<8x32xf32>
    %37 = arith.mulf %28, %8 : vector<8x32xf32>
    %38 = arith.addf %36, %37 : vector<8x32xf32>
    %39 = vector.extract_strided_slice %38 {offsets = [0, 0], sizes = [8, 16], strides = [1, 1]} : vector<8x32xf32> to vector<8x16xf32>
    %c0_14 = arith.constant 0 : index
    %c0_15 = arith.constant 0 : index
    %40 = vector.load %arg27[%c0_14, %c0_15] : memref<8x256xf32, #tpu.memory_space<vmem>>, vector<8x16xf32>
    tpu.vector_store %arg27[%c0_14, %c0_15], %39 {strides = array<i32>} : memref<8x256xf32, #tpu.memory_space<vmem>>, vector<8x16xf32>,
    %41 = vector.extract_strided_slice %38 {offsets = [0, 16], sizes = [8, 16], strides = [1, 1]} : vector<8x32xf32> to vector<8x16xf32>
    %c0_16 = arith.constant 0 : index
    %c240 = arith.constant 240 : index
    %42 = vector.load %arg27[%c0_16, %c240] : memref<8x256xf32, #tpu.memory_space<vmem>>, vector<8x16xf32>
    tpu.vector_store %arg27[%c0_16, %c240], %41 {strides = array<i32>} : memref<8x256xf32, #tpu.memory_space<vmem>>, vector<8x16xf32>,
    %43 = vector.extract_strided_slice %5 {offsets = [8, 0], sizes = [8, 96], strides = [1, 1]} : vector<64x96xf32> to vector<8x96xf32>
    %cst_17 = arith.constant dense<0.000000e+00> : vector<8x96xf32>
    %44 = tpu.matmul %38, %6, %cst_17 {dimension_numbers = #tpu.dot_dimension_numbers<[1], [0], [0], [1], [0, 0, 1, 1], [], []>} : vector<8x32xf32>, vector<32x96xf32>, vector<8x96xf32> -> vector<8x96xf32>
    %45 = vector.broadcast %7 : vector<1x96xf32> to vector<8x96xf32>
    %46 = arith.addf %44, %45 : vector<8x96xf32>
    %47 = vector.extract_strided_slice %43 {offsets = [0, 0], sizes = [8, 32], strides = [1, 1]} : vector<8x96xf32> to vector<8x32xf32>
    %48 = vector.extract_strided_slice %46 {offsets = [0, 0], sizes = [8, 32], strides = [1, 1]} : vector<8x96xf32> to vector<8x32xf32>
    %49 = arith.addf %47, %48 : vector<8x32xf32>
    %50 = arith.negf %49 : vector<8x32xf32>
    %51 = math.exp %50 : vector<8x32xf32>
    %cst_18 = arith.constant 1.000000e+00 : f32
    %52 = vector.broadcast %cst_18 : f32 to vector<8x32xf32>
    %53 = arith.addf %52, %51 : vector<8x32xf32>
    %54 = arith.divf %52, %53 : vector<8x32xf32>
    %55 = vector.extract_strided_slice %43 {offsets = [0, 32], sizes = [8, 32], strides = [1, 1]} : vector<8x96xf32> to vector<8x32xf32>
    %56 = vector.extract_strided_slice %46 {offsets = [0, 32], sizes = [8, 32], strides = [1, 1]} : vector<8x96xf32> to vector<8x32xf32>
    %57 = arith.addf %55, %56 : vector<8x32xf32>
    %58 = arith.negf %57 : vector<8x32xf32>
    %59 = math.exp %58 : vector<8x32xf32>
    %cst_19 = arith.constant 1.000000e+00 : f32
    %60 = vector.broadcast %cst_19 : f32 to vector<8x32xf32>
    %61 = arith.addf %60, %59 : vector<8x32xf32>
    %62 = arith.divf %60, %61 : vector<8x32xf32>
    %63 = vector.extract_strided_slice %43 {offsets = [0, 64], sizes = [8, 32], strides = [1, 1]} : vector<8x96xf32> to vector<8x32xf32>
    %64 = vector.extract_strided_slice %46 {offsets = [0, 64], sizes = [8, 32], strides = [1, 1]} : vector<8x96xf32> to vector<8x32xf32>
    %65 = arith.mulf %54, %64 : vector<8x32xf32>
    %66 = arith.addf %63, %65 : vector<8x32xf32>
    %67 = math.tanh %66 : vector<8x32xf32>
    %cst_20 = arith.constant 1.000000e+00 : f32
    %68 = vector.broadcast %cst_20 : f32 to vector<8x32xf32>
    %69 = arith.subf %68, %62 : vector<8x32xf32>
    %70 = arith.mulf %69, %67 : vector<8x32xf32>
    %71 = arith.mulf %62, %38 : vector<8x32xf32>
    %72 = arith.addf %70, %71 : vector<8x32xf32>
    %73 = vector.extract_strided_slice %72 {offsets = [0, 0], sizes = [8, 16], strides = [1, 1]} : vector<8x32xf32> to vector<8x16xf32>
    %c0_21 = arith.constant 0 : index
    %c32 = arith.constant 32 : index
    %74 = vector.load %arg27[%c0_21, %c32] : memref<8x256xf32, #tpu.memory_space<vmem>>, vector<8x16xf32>
    tpu.vector_store %arg27[%c0_21, %c32], %73 {strides = array<i32>} : memref<8x256xf32, #tpu.memory_space<vmem>>, vector<8x16xf32>,
    %75 = vector.extract_strided_slice %72 {offsets = [0, 16], sizes = [8, 16], strides = [1, 1]} : vector<8x32xf32> to vector<8x16xf32>
    %c0_22 = arith.constant 0 : index
    %c208 = arith.constant 208 : index
    %76 = vector.load %arg27[%c0_22, %c208] : memref<8x256xf32, #tpu.memory_space<vmem>>, vector<8x16xf32>
    tpu.vector_store %arg27[%c0_22, %c208], %75 {strides = array<i32>} : memref<8x256xf32, #tpu.memory_space<vmem>>, vector<8x16xf32>,
    %77 = vector.extract_strided_slice %5 {offsets = [16, 0], sizes = [8, 96], strides = [1, 1]} : vector<64x96xf32> to vector<8x96xf32>
    %cst_23 = arith.constant dense<0.000000e+00> : vector<8x96xf32>
    %78 = tpu.matmul %72, %6, %cst_23 {dimension_numbers = #tpu.dot_dimension_numbers<[1], [0], [0], [1], [0, 0, 1, 1], [], []>} : vector<8x32xf32>, vector<32x96xf32>, vector<8x96xf32> -> vector<8x96xf32>
    %79 = vector.broadcast %7 : vector<1x96xf32> to vector<8x96xf32>
    %80 = arith.addf %78, %79 : vector<8x96xf32>
    %81 = vector.extract_strided_slice %77 {offsets = [0, 0], sizes = [8, 32], strides = [1, 1]} : vector<8x96xf32> to vector<8x32xf32>
    %82 = vector.extract_strided_slice %80 {offsets = [0, 0], sizes = [8, 32], strides = [1, 1]} : vector<8x96xf32> to vector<8x32xf32>
    %83 = arith.addf %81, %82 : vector<8x32xf32>
    %84 = arith.negf %83 : vector<8x32xf32>
    %85 = math.exp %84 : vector<8x32xf32>
    %cst_24 = arith.constant 1.000000e+00 : f32
    %86 = vector.broadcast %cst_24 : f32 to vector<8x32xf32>
    %87 = arith.addf %86, %85 : vector<8x32xf32>
    %88 = arith.divf %86, %87 : vector<8x32xf32>
    %89 = vector.extract_strided_slice %77 {offsets = [0, 32], sizes = [8, 32], strides = [1, 1]} : vector<8x96xf32> to vector<8x32xf32>
    %90 = vector.extract_strided_slice %80 {offsets = [0, 32], sizes = [8, 32], strides = [1, 1]} : vector<8x96xf32> to vector<8x32xf32>
    %91 = arith.addf %89, %90 : vector<8x32xf32>
    %92 = arith.negf %91 : vector<8x32xf32>
    %93 = math.exp %92 : vector<8x32xf32>
    %cst_25 = arith.constant 1.000000e+00 : f32
    %94 = vector.broadcast %cst_25 : f32 to vector<8x32xf32>
    %95 = arith.addf %94, %93 : vector<8x32xf32>
    %96 = arith.divf %94, %95 : vector<8x32xf32>
    %97 = vector.extract_strided_slice %77 {offsets = [0, 64], sizes = [8, 32], strides = [1, 1]} : vector<8x96xf32> to vector<8x32xf32>
    %98 = vector.extract_strided_slice %80 {offsets = [0, 64], sizes = [8, 32], strides = [1, 1]} : vector<8x96xf32> to vector<8x32xf32>
    %99 = arith.mulf %88, %98 : vector<8x32xf32>
    %100 = arith.addf %97, %99 : vector<8x32xf32>
    %101 = math.tanh %100 : vector<8x32xf32>
    %cst_26 = arith.constant 1.000000e+00 : f32
    %102 = vector.broadcast %cst_26 : f32 to vector<8x32xf32>
    %103 = arith.subf %102, %96 : vector<8x32xf32>
    %104 = arith.mulf %103, %101 : vector<8x32xf32>
    %105 = arith.mulf %96, %72 : vector<8x32xf32>
    %106 = arith.addf %104, %105 : vector<8x32xf32>
    %107 = vector.extract_strided_slice %106 {offsets = [0, 0], sizes = [8, 16], strides = [1, 1]} : vector<8x32xf32> to vector<8x16xf32>
    %c0_27 = arith.constant 0 : index
    %c64 = arith.constant 64 : index
    %108 = vector.load %arg27[%c0_27, %c64] : memref<8x256xf32, #tpu.memory_space<vmem>>, vector<8x16xf32>
    tpu.vector_store %arg27[%c0_27, %c64], %107 {strides = array<i32>} : memref<8x256xf32, #tpu.memory_space<vmem>>, vector<8x16xf32>,
    %109 = vector.extract_strided_slice %106 {offsets = [0, 16], sizes = [8, 16], strides = [1, 1]} : vector<8x32xf32> to vector<8x16xf32>
    %c0_28 = arith.constant 0 : index
    %c176 = arith.constant 176 : index
    %110 = vector.load %arg27[%c0_28, %c176] : memref<8x256xf32, #tpu.memory_space<vmem>>, vector<8x16xf32>
    tpu.vector_store %arg27[%c0_28, %c176], %109 {strides = array<i32>} : memref<8x256xf32, #tpu.memory_space<vmem>>, vector<8x16xf32>,
    %111 = vector.extract_strided_slice %5 {offsets = [24, 0], sizes = [8, 96], strides = [1, 1]} : vector<64x96xf32> to vector<8x96xf32>
    %cst_29 = arith.constant dense<0.000000e+00> : vector<8x96xf32>
    %112 = tpu.matmul %106, %6, %cst_29 {dimension_numbers = #tpu.dot_dimension_numbers<[1], [0], [0], [1], [0, 0, 1, 1], [], []>} : vector<8x32xf32>, vector<32x96xf32>, vector<8x96xf32> -> vector<8x96xf32>
    %113 = vector.broadcast %7 : vector<1x96xf32> to vector<8x96xf32>
    %114 = arith.addf %112, %113 : vector<8x96xf32>
    %115 = vector.extract_strided_slice %111 {offsets = [0, 0], sizes = [8, 32], strides = [1, 1]} : vector<8x96xf32> to vector<8x32xf32>
    %116 = vector.extract_strided_slice %114 {offsets = [0, 0], sizes = [8, 32], strides = [1, 1]} : vector<8x96xf32> to vector<8x32xf32>
    %117 = arith.addf %115, %116 : vector<8x32xf32>
    %118 = arith.negf %117 : vector<8x32xf32>
    %119 = math.exp %118 : vector<8x32xf32>
    %cst_30 = arith.constant 1.000000e+00 : f32
    %120 = vector.broadcast %cst_30 : f32 to vector<8x32xf32>
    %121 = arith.addf %120, %119 : vector<8x32xf32>
    %122 = arith.divf %120, %121 : vector<8x32xf32>
    %123 = vector.extract_strided_slice %111 {offsets = [0, 32], sizes = [8, 32], strides = [1, 1]} : vector<8x96xf32> to vector<8x32xf32>
    %124 = vector.extract_strided_slice %114 {offsets = [0, 32], sizes = [8, 32], strides = [1, 1]} : vector<8x96xf32> to vector<8x32xf32>
    %125 = arith.addf %123, %124 : vector<8x32xf32>
    %126 = arith.negf %125 : vector<8x32xf32>
    %127 = math.exp %126 : vector<8x32xf32>
    %cst_31 = arith.constant 1.000000e+00 : f32
    %128 = vector.broadcast %cst_31 : f32 to vector<8x32xf32>
    %129 = arith.addf %128, %127 : vector<8x32xf32>
    %130 = arith.divf %128, %129 : vector<8x32xf32>
    %131 = vector.extract_strided_slice %111 {offsets = [0, 64], sizes = [8, 32], strides = [1, 1]} : vector<8x96xf32> to vector<8x32xf32>
    %132 = vector.extract_strided_slice %114 {offsets = [0, 64], sizes = [8, 32], strides = [1, 1]} : vector<8x96xf32> to vector<8x32xf32>
    %133 = arith.mulf %122, %132 : vector<8x32xf32>
    %134 = arith.addf %131, %133 : vector<8x32xf32>
    %135 = math.tanh %134 : vector<8x32xf32>
    %cst_32 = arith.constant 1.000000e+00 : f32
    %136 = vector.broadcast %cst_32 : f32 to vector<8x32xf32>
    %137 = arith.subf %136, %130 : vector<8x32xf32>
    %138 = arith.mulf %137, %135 : vector<8x32xf32>
    %139 = arith.mulf %130, %106 : vector<8x32xf32>
    %140 = arith.addf %138, %139 : vector<8x32xf32>
    %141 = vector.extract_strided_slice %140 {offsets = [0, 0], sizes = [8, 16], strides = [1, 1]} : vector<8x32xf32> to vector<8x16xf32>
    %c0_33 = arith.constant 0 : index
    %c96 = arith.constant 96 : index
    %142 = vector.load %arg27[%c0_33, %c96] : memref<8x256xf32, #tpu.memory_space<vmem>>, vector<8x16xf32>
    tpu.vector_store %arg27[%c0_33, %c96], %141 {strides = array<i32>} : memref<8x256xf32, #tpu.memory_space<vmem>>, vector<8x16xf32>,
    %143 = vector.extract_strided_slice %140 {offsets = [0, 16], sizes = [8, 16], strides = [1, 1]} : vector<8x32xf32> to vector<8x16xf32>
    %c0_34 = arith.constant 0 : index
    %c144 = arith.constant 144 : index
    %144 = vector.load %arg27[%c0_34, %c144] : memref<8x256xf32, #tpu.memory_space<vmem>>, vector<8x16xf32>
    tpu.vector_store %arg27[%c0_34, %c144], %143 {strides = array<i32>} : memref<8x256xf32, #tpu.memory_space<vmem>>, vector<8x16xf32>,
    %145 = vector.extract_strided_slice %5 {offsets = [32, 0], sizes = [8, 96], strides = [1, 1]} : vector<64x96xf32> to vector<8x96xf32>
    %cst_35 = arith.constant dense<0.000000e+00> : vector<8x96xf32>
    %146 = tpu.matmul %140, %6, %cst_35 {dimension_numbers = #tpu.dot_dimension_numbers<[1], [0], [0], [1], [0, 0, 1, 1], [], []>} : vector<8x32xf32>, vector<32x96xf32>, vector<8x96xf32> -> vector<8x96xf32>
    %147 = vector.broadcast %7 : vector<1x96xf32> to vector<8x96xf32>
    %148 = arith.addf %146, %147 : vector<8x96xf32>
    %149 = vector.extract_strided_slice %145 {offsets = [0, 0], sizes = [8, 32], strides = [1, 1]} : vector<8x96xf32> to vector<8x32xf32>
    %150 = vector.extract_strided_slice %148 {offsets = [0, 0], sizes = [8, 32], strides = [1, 1]} : vector<8x96xf32> to vector<8x32xf32>
    %151 = arith.addf %149, %150 : vector<8x32xf32>
    %152 = arith.negf %151 : vector<8x32xf32>
    %153 = math.exp %152 : vector<8x32xf32>
    %cst_36 = arith.constant 1.000000e+00 : f32
    %154 = vector.broadcast %cst_36 : f32 to vector<8x32xf32>
    %155 = arith.addf %154, %153 : vector<8x32xf32>
    %156 = arith.divf %154, %155 : vector<8x32xf32>
    %157 = vector.extract_strided_slice %145 {offsets = [0, 32], sizes = [8, 32], strides = [1, 1]} : vector<8x96xf32> to vector<8x32xf32>
    %158 = vector.extract_strided_slice %148 {offsets = [0, 32], sizes = [8, 32], strides = [1, 1]} : vector<8x96xf32> to vector<8x32xf32>
    %159 = arith.addf %157, %158 : vector<8x32xf32>
    %160 = arith.negf %159 : vector<8x32xf32>
    %161 = math.exp %160 : vector<8x32xf32>
    %cst_37 = arith.constant 1.000000e+00 : f32
    %162 = vector.broadcast %cst_37 : f32 to vector<8x32xf32>
    %163 = arith.addf %162, %161 : vector<8x32xf32>
    %164 = arith.divf %162, %163 : vector<8x32xf32>
    %165 = vector.extract_strided_slice %145 {offsets = [0, 64], sizes = [8, 32], strides = [1, 1]} : vector<8x96xf32> to vector<8x32xf32>
    %166 = vector.extract_strided_slice %148 {offsets = [0, 64], sizes = [8, 32], strides = [1, 1]} : vector<8x96xf32> to vector<8x32xf32>
    %167 = arith.mulf %156, %166 : vector<8x32xf32>
    %168 = arith.addf %165, %167 : vector<8x32xf32>
    %169 = math.tanh %168 : vector<8x32xf32>
    %cst_38 = arith.constant 1.000000e+00 : f32
    %170 = vector.broadcast %cst_38 : f32 to vector<8x32xf32>
    %171 = arith.subf %170, %164 : vector<8x32xf32>
    %172 = arith.mulf %171, %169 : vector<8x32xf32>
    %173 = arith.mulf %164, %140 : vector<8x32xf32>
    %174 = arith.addf %172, %173 : vector<8x32xf32>
    %175 = vector.extract_strided_slice %174 {offsets = [0, 0], sizes = [8, 16], strides = [1, 1]} : vector<8x32xf32> to vector<8x16xf32>
    %c0_39 = arith.constant 0 : index
    %c128 = arith.constant 128 : index
    %176 = vector.load %arg27[%c0_39, %c128] : memref<8x256xf32, #tpu.memory_space<vmem>>, vector<8x16xf32>
    tpu.vector_store %arg27[%c0_39, %c128], %175 {strides = array<i32>} : memref<8x256xf32, #tpu.memory_space<vmem>>, vector<8x16xf32>,
    %177 = vector.extract_strided_slice %174 {offsets = [0, 16], sizes = [8, 16], strides = [1, 1]} : vector<8x32xf32> to vector<8x16xf32>
    %c0_40 = arith.constant 0 : index
    %c112 = arith.constant 112 : index
    %178 = vector.load %arg27[%c0_40, %c112] : memref<8x256xf32, #tpu.memory_space<vmem>>, vector<8x16xf32>
    tpu.vector_store %arg27[%c0_40, %c112], %177 {strides = array<i32>} : memref<8x256xf32, #tpu.memory_space<vmem>>, vector<8x16xf32>,
    %179 = vector.extract_strided_slice %5 {offsets = [40, 0], sizes = [8, 96], strides = [1, 1]} : vector<64x96xf32> to vector<8x96xf32>
    %cst_41 = arith.constant dense<0.000000e+00> : vector<8x96xf32>
    %180 = tpu.matmul %174, %6, %cst_41 {dimension_numbers = #tpu.dot_dimension_numbers<[1], [0], [0], [1], [0, 0, 1, 1], [], []>} : vector<8x32xf32>, vector<32x96xf32>, vector<8x96xf32> -> vector<8x96xf32>
    %181 = vector.broadcast %7 : vector<1x96xf32> to vector<8x96xf32>
    %182 = arith.addf %180, %181 : vector<8x96xf32>
    %183 = vector.extract_strided_slice %179 {offsets = [0, 0], sizes = [8, 32], strides = [1, 1]} : vector<8x96xf32> to vector<8x32xf32>
    %184 = vector.extract_strided_slice %182 {offsets = [0, 0], sizes = [8, 32], strides = [1, 1]} : vector<8x96xf32> to vector<8x32xf32>
    %185 = arith.addf %183, %184 : vector<8x32xf32>
    %186 = arith.negf %185 : vector<8x32xf32>
    %187 = math.exp %186 : vector<8x32xf32>
    %cst_42 = arith.constant 1.000000e+00 : f32
    %188 = vector.broadcast %cst_42 : f32 to vector<8x32xf32>
    %189 = arith.addf %188, %187 : vector<8x32xf32>
    %190 = arith.divf %188, %189 : vector<8x32xf32>
    %191 = vector.extract_strided_slice %179 {offsets = [0, 32], sizes = [8, 32], strides = [1, 1]} : vector<8x96xf32> to vector<8x32xf32>
    %192 = vector.extract_strided_slice %182 {offsets = [0, 32], sizes = [8, 32], strides = [1, 1]} : vector<8x96xf32> to vector<8x32xf32>
    %193 = arith.addf %191, %192 : vector<8x32xf32>
    %194 = arith.negf %193 : vector<8x32xf32>
    %195 = math.exp %194 : vector<8x32xf32>
    %cst_43 = arith.constant 1.000000e+00 : f32
    %196 = vector.broadcast %cst_43 : f32 to vector<8x32xf32>
    %197 = arith.addf %196, %195 : vector<8x32xf32>
    %198 = arith.divf %196, %197 : vector<8x32xf32>
    %199 = vector.extract_strided_slice %179 {offsets = [0, 64], sizes = [8, 32], strides = [1, 1]} : vector<8x96xf32> to vector<8x32xf32>
    %200 = vector.extract_strided_slice %182 {offsets = [0, 64], sizes = [8, 32], strides = [1, 1]} : vector<8x96xf32> to vector<8x32xf32>
    %201 = arith.mulf %190, %200 : vector<8x32xf32>
    %202 = arith.addf %199, %201 : vector<8x32xf32>
    %203 = math.tanh %202 : vector<8x32xf32>
    %cst_44 = arith.constant 1.000000e+00 : f32
    %204 = vector.broadcast %cst_44 : f32 to vector<8x32xf32>
    %205 = arith.subf %204, %198 : vector<8x32xf32>
    %206 = arith.mulf %205, %203 : vector<8x32xf32>
    %207 = arith.mulf %198, %174 : vector<8x32xf32>
    %208 = arith.addf %206, %207 : vector<8x32xf32>
    %209 = vector.extract_strided_slice %208 {offsets = [0, 0], sizes = [8, 16], strides = [1, 1]} : vector<8x32xf32> to vector<8x16xf32>
    %c0_45 = arith.constant 0 : index
    %c160 = arith.constant 160 : index
    %210 = vector.load %arg27[%c0_45, %c160] : memref<8x256xf32, #tpu.memory_space<vmem>>, vector<8x16xf32>
    tpu.vector_store %arg27[%c0_45, %c160], %209 {strides = array<i32>} : memref<8x256xf32, #tpu.memory_space<vmem>>, vector<8x16xf32>,
    %211 = vector.extract_strided_slice %208 {offsets = [0, 16], sizes = [8, 16], strides = [1, 1]} : vector<8x32xf32> to vector<8x16xf32>
    %c0_46 = arith.constant 0 : index
    %c80 = arith.constant 80 : index
    %212 = vector.load %arg27[%c0_46, %c80] : memref<8x256xf32, #tpu.memory_space<vmem>>, vector<8x16xf32>
    tpu.vector_store %arg27[%c0_46, %c80], %211 {strides = array<i32>} : memref<8x256xf32, #tpu.memory_space<vmem>>, vector<8x16xf32>,
    %213 = vector.extract_strided_slice %5 {offsets = [48, 0], sizes = [8, 96], strides = [1, 1]} : vector<64x96xf32> to vector<8x96xf32>
    %cst_47 = arith.constant dense<0.000000e+00> : vector<8x96xf32>
    %214 = tpu.matmul %208, %6, %cst_47 {dimension_numbers = #tpu.dot_dimension_numbers<[1], [0], [0], [1], [0, 0, 1, 1], [], []>} : vector<8x32xf32>, vector<32x96xf32>, vector<8x96xf32> -> vector<8x96xf32>
    %215 = vector.broadcast %7 : vector<1x96xf32> to vector<8x96xf32>
    %216 = arith.addf %214, %215 : vector<8x96xf32>
    %217 = vector.extract_strided_slice %213 {offsets = [0, 0], sizes = [8, 32], strides = [1, 1]} : vector<8x96xf32> to vector<8x32xf32>
    %218 = vector.extract_strided_slice %216 {offsets = [0, 0], sizes = [8, 32], strides = [1, 1]} : vector<8x96xf32> to vector<8x32xf32>
    %219 = arith.addf %217, %218 : vector<8x32xf32>
    %220 = arith.negf %219 : vector<8x32xf32>
    %221 = math.exp %220 : vector<8x32xf32>
    %cst_48 = arith.constant 1.000000e+00 : f32
    %222 = vector.broadcast %cst_48 : f32 to vector<8x32xf32>
    %223 = arith.addf %222, %221 : vector<8x32xf32>
    %224 = arith.divf %222, %223 : vector<8x32xf32>
    %225 = vector.extract_strided_slice %213 {offsets = [0, 32], sizes = [8, 32], strides = [1, 1]} : vector<8x96xf32> to vector<8x32xf32>
    %226 = vector.extract_strided_slice %216 {offsets = [0, 32], sizes = [8, 32], strides = [1, 1]} : vector<8x96xf32> to vector<8x32xf32>
    %227 = arith.addf %225, %226 : vector<8x32xf32>
    %228 = arith.negf %227 : vector<8x32xf32>
    %229 = math.exp %228 : vector<8x32xf32>
    %cst_49 = arith.constant 1.000000e+00 : f32
    %230 = vector.broadcast %cst_49 : f32 to vector<8x32xf32>
    %231 = arith.addf %230, %229 : vector<8x32xf32>
    %232 = arith.divf %230, %231 : vector<8x32xf32>
    %233 = vector.extract_strided_slice %213 {offsets = [0, 64], sizes = [8, 32], strides = [1, 1]} : vector<8x96xf32> to vector<8x32xf32>
    %234 = vector.extract_strided_slice %216 {offsets = [0, 64], sizes = [8, 32], strides = [1, 1]} : vector<8x96xf32> to vector<8x32xf32>
    %235 = arith.mulf %224, %234 : vector<8x32xf32>
    %236 = arith.addf %233, %235 : vector<8x32xf32>
    %237 = math.tanh %236 : vector<8x32xf32>
    %cst_50 = arith.constant 1.000000e+00 : f32
    %238 = vector.broadcast %cst_50 : f32 to vector<8x32xf32>
    %239 = arith.subf %238, %232 : vector<8x32xf32>
    %240 = arith.mulf %239, %237 : vector<8x32xf32>
    %241 = arith.mulf %232, %208 : vector<8x32xf32>
    %242 = arith.addf %240, %241 : vector<8x32xf32>
    %243 = vector.extract_strided_slice %242 {offsets = [0, 0], sizes = [8, 16], strides = [1, 1]} : vector<8x32xf32> to vector<8x16xf32>
    %c0_51 = arith.constant 0 : index
    %c192 = arith.constant 192 : index
    %244 = vector.load %arg27[%c0_51, %c192] : memref<8x256xf32, #tpu.memory_space<vmem>>, vector<8x16xf32>
    tpu.vector_store %arg27[%c0_51, %c192], %243 {strides = array<i32>} : memref<8x256xf32, #tpu.memory_space<vmem>>, vector<8x16xf32>,
    %245 = vector.extract_strided_slice %242 {offsets = [0, 16], sizes = [8, 16], strides = [1, 1]} : vector<8x32xf32> to vector<8x16xf32>
    %c0_52 = arith.constant 0 : index
    %c48 = arith.constant 48 : index
    %246 = vector.load %arg27[%c0_52, %c48] : memref<8x256xf32, #tpu.memory_space<vmem>>, vector<8x16xf32>
    tpu.vector_store %arg27[%c0_52, %c48], %245 {strides = array<i32>} : memref<8x256xf32, #tpu.memory_space<vmem>>, vector<8x16xf32>,
    %247 = vector.extract_strided_slice %5 {offsets = [56, 0], sizes = [8, 96], strides = [1, 1]} : vector<64x96xf32> to vector<8x96xf32>
    %cst_53 = arith.constant dense<0.000000e+00> : vector<8x96xf32>
    %248 = tpu.matmul %242, %6, %cst_53 {dimension_numbers = #tpu.dot_dimension_numbers<[1], [0], [0], [1], [0, 0, 1, 1], [], []>} : vector<8x32xf32>, vector<32x96xf32>, vector<8x96xf32> -> vector<8x96xf32>
    %249 = vector.broadcast %7 : vector<1x96xf32> to vector<8x96xf32>
    %250 = arith.addf %248, %249 : vector<8x96xf32>
    %251 = vector.extract_strided_slice %247 {offsets = [0, 0], sizes = [8, 32], strides = [1, 1]} : vector<8x96xf32> to vector<8x32xf32>
    %252 = vector.extract_strided_slice %250 {offsets = [0, 0], sizes = [8, 32], strides = [1, 1]} : vector<8x96xf32> to vector<8x32xf32>
    %253 = arith.addf %251, %252 : vector<8x32xf32>
    %254 = arith.negf %253 : vector<8x32xf32>
    %255 = math.exp %254 : vector<8x32xf32>
    %cst_54 = arith.constant 1.000000e+00 : f32
    %256 = vector.broadcast %cst_54 : f32 to vector<8x32xf32>
    %257 = arith.addf %256, %255 : vector<8x32xf32>
    %258 = arith.divf %256, %257 : vector<8x32xf32>
    %259 = vector.extract_strided_slice %247 {offsets = [0, 32], sizes = [8, 32], strides = [1, 1]} : vector<8x96xf32> to vector<8x32xf32>
    %260 = vector.extract_strided_slice %250 {offsets = [0, 32], sizes = [8, 32], strides = [1, 1]} : vector<8x96xf32> to vector<8x32xf32>
    %261 = arith.addf %259, %260 : vector<8x32xf32>
    %262 = arith.negf %261 : vector<8x32xf32>
    %263 = math.exp %262 : vector<8x32xf32>
    %cst_55 = arith.constant 1.000000e+00 : f32
    %264 = vector.broadcast %cst_55 : f32 to vector<8x32xf32>
    %265 = arith.addf %264, %263 : vector<8x32xf32>
    %266 = arith.divf %264, %265 : vector<8x32xf32>
    %267 = vector.extract_strided_slice %247 {offsets = [0, 64], sizes = [8, 32], strides = [1, 1]} : vector<8x96xf32> to vector<8x32xf32>
    %268 = vector.extract_strided_slice %250 {offsets = [0, 64], sizes = [8, 32], strides = [1, 1]} : vector<8x96xf32> to vector<8x32xf32>
    %269 = arith.mulf %258, %268 : vector<8x32xf32>
    %270 = arith.addf %267, %269 : vector<8x32xf32>
    %271 = math.tanh %270 : vector<8x32xf32>
    %cst_56 = arith.constant 1.000000e+00 : f32
    %272 = vector.broadcast %cst_56 : f32 to vector<8x32xf32>
    %273 = arith.subf %272, %266 : vector<8x32xf32>
    %274 = arith.mulf %273, %271 : vector<8x32xf32>
    %275 = arith.mulf %266, %242 : vector<8x32xf32>
    %276 = arith.addf %274, %275 : vector<8x32xf32>
    %277 = vector.extract_strided_slice %276 {offsets = [0, 0], sizes = [8, 16], strides = [1, 1]} : vector<8x32xf32> to vector<8x16xf32>
    %c0_57 = arith.constant 0 : index
    %c224 = arith.constant 224 : index
    %278 = vector.load %arg27[%c0_57, %c224] : memref<8x256xf32, #tpu.memory_space<vmem>>, vector<8x16xf32>
    tpu.vector_store %arg27[%c0_57, %c224], %277 {strides = array<i32>} : memref<8x256xf32, #tpu.memory_space<vmem>>, vector<8x16xf32>,
    %279 = vector.extract_strided_slice %276 {offsets = [0, 16], sizes = [8, 16], strides = [1, 1]} : vector<8x32xf32> to vector<8x16xf32>
    %c0_58 = arith.constant 0 : index
    %c16 = arith.constant 16 : index
    %280 = vector.load %arg27[%c0_58, %c16] : memref<8x256xf32, #tpu.memory_space<vmem>>, vector<8x16xf32>
    tpu.vector_store %arg27[%c0_58, %c16], %279 {strides = array<i32>} : memref<8x256xf32, #tpu.memory_space<vmem>>, vector<8x16xf32>,
    %c0_59 = arith.constant 0 : index
    %c0_60 = arith.constant 0 : index
    %281 = vector.load %arg8[%c0_59, %c0_60] : memref<32x16xf32, #tpu.memory_space<vmem>>, vector<32x16xf32>
    %cst_61 = arith.constant dense<0.000000e+00> : vector<8x16xf32>
    %282 = tpu.matmul %276, %281, %cst_61 {dimension_numbers = #tpu.dot_dimension_numbers<[1], [0], [0], [1], [0, 0, 1, 1], [], []>} : vector<8x32xf32>, vector<32x16xf32>, vector<8x16xf32> -> vector<8x16xf32>
    %c0_62 = arith.constant 0 : index
    %c0_63 = arith.constant 0 : index
    %283 = vector.load %arg9[%c0_62, %c0_63] : memref<1x16xf32, #tpu.memory_space<vmem>>, vector<1x16xf32>
    %284 = vector.broadcast %283 : vector<1x16xf32> to vector<8x16xf32>
    %285 = arith.addf %282, %284 : vector<8x16xf32>
    %286 = math.tanh %285 : vector<8x16xf32>
    %c0_64 = arith.constant 0 : index
    %c0_65 = arith.constant 0 : index
    %287 = vector.load %arg27[%c0_64, %c0_65] : memref<8x256xf32, #tpu.memory_space<vmem>>, vector<8x256xf32>
    %c0_66 = arith.constant 0 : index
    %c0_67 = arith.constant 0 : index
    %288 = vector.load %arg10[%c0_66, %c0_67] : memref<256x128xf32, #tpu.memory_space<vmem>>, vector<256x128xf32>
    %cst_68 = arith.constant dense<0.000000e+00> : vector<8x128xf32>
    %289 = tpu.matmul %287, %288, %cst_68 {dimension_numbers = #tpu.dot_dimension_numbers<[1], [0], [0], [1], [0, 0, 1, 1], [], []>} : vector<8x256xf32>, vector<256x128xf32>, vector<8x128xf32> -> vector<8x128xf32>
    %c0_69 = arith.constant 0 : index
    %c0_70 = arith.constant 0 : index
    %290 = vector.load %arg11[%c0_69, %c0_70] : memref<1x128xf32, #tpu.memory_space<vmem>>, vector<1x128xf32>
    %291 = vector.broadcast %290 : vector<1x128xf32> to vector<8x128xf32>
    %292 = arith.addf %289, %291 : vector<8x128xf32>
    %c0_71 = arith.constant 0 : index
    %c0_72 = arith.constant 0 : index
    %293 = vector.load %arg25[%c0_71, %c0_72] : memref<16x8xf32, #tpu.memory_space<vmem>>, vector<16x8xf32>
    %294 = tpu.iota {dimensions = array<i32: 1>} : vector<8x16xi32>
    %295 = arith.sitofp %294 : vector<8x16xi32> to vector<8x16xf32>
    %c0_73 = arith.constant 0 : index
    %c0_74 = arith.constant 0 : index
    %c0_75 = arith.constant 0 : index
    %296 = vector.load %arg3[%c0_73, %c0_74, %c0_75] : memref<5x8x8xf32, #tpu.memory_space<vmem>>, vector<1x8x8xf32>
    %297 = vector.shape_cast %296 : vector<1x8x8xf32> to vector<8x8xf32>
    %c0_76 = arith.constant 0 : index
    %c0_77 = arith.constant 0 : index
    %298 = vector.load %arg12[%c0_76, %c0_77] : memref<16x128xf32, #tpu.memory_space<vmem>>, vector<16x128xf32>
    %cst_78 = arith.constant dense<0.000000e+00> : vector<8x128xf32>
    %299 = tpu.matmul %286, %298, %cst_78 {dimension_numbers = #tpu.dot_dimension_numbers<[1], [0], [0], [1], [0, 0, 1, 1], [], []>} : vector<8x16xf32>, vector<16x128xf32>, vector<8x128xf32> -> vector<8x128xf32>
    %300 = arith.addf %292, %299 : vector<8x128xf32>
    %301 = math.tanh %300 : vector<8x128xf32>
    %c0_79 = arith.constant 0 : index
    %c0_80 = arith.constant 0 : index
    %302 = vector.load %arg13[%c0_79, %c0_80] : memref<128x8xf32, #tpu.memory_space<vmem>>, vector<128x8xf32>
    %cst_81 = arith.constant dense<0.000000e+00> : vector<8x8xf32>
    %303 = tpu.matmul %301, %302, %cst_81 {dimension_numbers = #tpu.dot_dimension_numbers<[1], [0], [0], [1], [0, 0, 1, 1], [], []>} : vector<8x128xf32>, vector<128x8xf32>, vector<8x8xf32> -> vector<8x8xf32>
    %cst_82 = arith.constant dense<0xFF800000> : vector<8xf32>
    %304 = vector.multi_reduction <maximumf>, %303, %cst_82 [1] : vector<8x8xf32> to vector<8xf32>
    %305 = vector.shape_cast %304 : vector<8xf32> to vector<8x1xf32>
    %306 = vector.broadcast %305 : vector<8x1xf32> to vector<8x8xf32>
    %307 = arith.subf %303, %306 : vector<8x8xf32>
    %308 = math.exp %307 : vector<8x8xf32>
    %cst_83 = arith.constant dense<0.000000e+00> : vector<8xf32>
    %309 = vector.multi_reduction <add>, %308, %cst_83 [1] : vector<8x8xf32> to vector<8xf32>
    %310 = vector.shape_cast %309 : vector<8xf32> to vector<8x1xf32>
    %311 = vector.broadcast %310 : vector<8x1xf32> to vector<8x8xf32>
    %312 = arith.divf %308, %311 : vector<8x8xf32>
    %c0_84 = arith.constant 0 : index
    %c0_85 = arith.constant 0 : index
    %313 = vector.load %arg14[%c0_84, %c0_85] : memref<8x256xf32, #tpu.memory_space<vmem>>, vector<8x256xf32>
    %cst_86 = arith.constant dense<0.000000e+00> : vector<8x256xf32>
    %314 = tpu.matmul %312, %313, %cst_86 {dimension_numbers = #tpu.dot_dimension_numbers<[1], [0], [0], [1], [0, 0, 1, 1], [], []>} : vector<8x8xf32>, vector<8x256xf32>, vector<8x256xf32> -> vector<8x256xf32>
    %315 = arith.mulf %314, %287 : vector<8x256xf32>
    %c0_87 = arith.constant 0 : index
    %c0_88 = arith.constant 0 : index
    %316 = vector.load %arg15[%c0_87, %c0_88] : memref<256x32xf32, #tpu.memory_space<vmem>>, vector<256x32xf32>
    %cst_89 = arith.constant dense<0.000000e+00> : vector<8x32xf32>
    %317 = tpu.matmul %315, %316, %cst_89 {dimension_numbers = #tpu.dot_dimension_numbers<[1], [0], [0], [1], [0, 0, 1, 1], [], []>} : vector<8x256xf32>, vector<256x32xf32>, vector<8x32xf32> -> vector<8x32xf32>
    %c0_90 = arith.constant 0 : index
    %c0_91 = arith.constant 0 : index
    %318 = vector.load %arg16[%c0_90, %c0_91] : memref<8x48xf32, #tpu.memory_space<vmem>>, vector<8x48xf32>
    %cst_92 = arith.constant dense<0.000000e+00> : vector<8x48xf32>
    %319 = tpu.matmul %297, %318, %cst_92 {dimension_numbers = #tpu.dot_dimension_numbers<[1], [0], [0], [1], [0, 0, 1, 1], [], []>} : vector<8x8xf32>, vector<8x48xf32>, vector<8x48xf32> -> vector<8x48xf32>
    %c0_93 = arith.constant 0 : index
    %c0_94 = arith.constant 0 : index
    %320 = vector.load %arg17[%c0_93, %c0_94] : memref<32x48xf32, #tpu.memory_space<vmem>>, vector<32x48xf32>
    %cst_95 = arith.constant dense<0.000000e+00> : vector<8x48xf32>
    %321 = tpu.matmul %317, %320, %cst_95 {dimension_numbers = #tpu.dot_dimension_numbers<[1], [0], [0], [1], [0, 0, 1, 1], [], []>} : vector<8x32xf32>, vector<32x48xf32>, vector<8x48xf32> -> vector<8x48xf32>
    %322 = arith.addf %319, %321 : vector<8x48xf32>
    %c0_96 = arith.constant 0 : index
    %c0_97 = arith.constant 0 : index
    %323 = vector.load %arg19[%c0_96, %c0_97] : memref<1x48xf32, #tpu.memory_space<vmem>>, vector<1x48xf32>
    %324 = vector.broadcast %323 : vector<1x48xf32> to vector<8x48xf32>
    %325 = arith.addf %322, %324 : vector<8x48xf32>
    %c0_98 = arith.constant 0 : index
    %c0_99 = arith.constant 0 : index
    %326 = vector.load %arg18[%c0_98, %c0_99] : memref<16x48xf32, #tpu.memory_space<vmem>>, vector<16x48xf32>
    %cst_100 = arith.constant dense<0.000000e+00> : vector<8x48xf32>
    %327 = tpu.matmul %286, %326, %cst_100 {dimension_numbers = #tpu.dot_dimension_numbers<[1], [0], [0], [1], [0, 0, 1, 1], [], []>} : vector<8x16xf32>, vector<16x48xf32>, vector<8x48xf32> -> vector<8x48xf32>
    %c0_101 = arith.constant 0 : index
    %c0_102 = arith.constant 0 : index
    %328 = vector.load %arg20[%c0_101, %c0_102] : memref<1x48xf32, #tpu.memory_space<vmem>>, vector<1x48xf32>
    %329 = vector.broadcast %328 : vector<1x48xf32> to vector<8x48xf32>
    %330 = arith.addf %327, %329 : vector<8x48xf32>
    %331 = vector.extract_strided_slice %325 {offsets = [0, 0], sizes = [8, 16], strides = [1, 1]} : vector<8x48xf32> to vector<8x16xf32>
    %332 = vector.extract_strided_slice %330 {offsets = [0, 0], sizes = [8, 16], strides = [1, 1]} : vector<8x48xf32> to vector<8x16xf32>
    %333 = arith.addf %331, %332 : vector<8x16xf32>
    %334 = arith.negf %333 : vector<8x16xf32>
    %335 = math.exp %334 : vector<8x16xf32>
    %cst_103 = arith.constant 1.000000e+00 : f32
    %336 = vector.broadcast %cst_103 : f32 to vector<8x16xf32>
    %337 = arith.addf %336, %335 : vector<8x16xf32>
    %338 = arith.divf %336, %337 : vector<8x16xf32>
    %339 = vector.extract_strided_slice %325 {offsets = [0, 16], sizes = [8, 16], strides = [1, 1]} : vector<8x48xf32> to vector<8x16xf32>
    %340 = vector.extract_strided_slice %330 {offsets = [0, 16], sizes = [8, 16], strides = [1, 1]} : vector<8x48xf32> to vector<8x16xf32>
    %341 = arith.addf %339, %340 : vector<8x16xf32>
    %342 = arith.negf %341 : vector<8x16xf32>
    %343 = math.exp %342 : vector<8x16xf32>
    %cst_104 = arith.constant 1.000000e+00 : f32
    %344 = vector.broadcast %cst_104 : f32 to vector<8x16xf32>
    %345 = arith.addf %344, %343 : vector<8x16xf32>
    %346 = arith.divf %344, %345 : vector<8x16xf32>
    %347 = vector.extract_strided_slice %325 {offsets = [0, 32], sizes = [8, 16], strides = [1, 1]} : vector<8x48xf32> to vector<8x16xf32>
    %348 = vector.extract_strided_slice %330 {offsets = [0, 32], sizes = [8, 16], strides = [1, 1]} : vector<8x48xf32> to vector<8x16xf32>
    %349 = arith.mulf %338, %348 : vector<8x16xf32>
    %350 = arith.addf %347, %349 : vector<8x16xf32>
    %351 = math.tanh %350 : vector<8x16xf32>
    %cst_105 = arith.constant 1.000000e+00 : f32
    %352 = vector.broadcast %cst_105 : f32 to vector<8x16xf32>
    %353 = arith.subf %352, %346 : vector<8x16xf32>
    %354 = arith.mulf %353, %351 : vector<8x16xf32>
    %355 = arith.mulf %346, %286 : vector<8x16xf32>
    %356 = arith.addf %354, %355 : vector<8x16xf32>
    %c0_106 = arith.constant 0 : index
    %c0_107 = arith.constant 0 : index
    %357 = vector.load %arg21[%c0_106, %c0_107] : memref<16x16xf32, #tpu.memory_space<vmem>>, vector<16x16xf32>
    %cst_108 = arith.constant dense<0.000000e+00> : vector<8x16xf32>
    %358 = tpu.matmul %356, %357, %cst_108 {dimension_numbers = #tpu.dot_dimension_numbers<[1], [0], [0], [1], [0, 0, 1, 1], [], []>} : vector<8x16xf32>, vector<16x16xf32>, vector<8x16xf32> -> vector<8x16xf32>
    %c0_109 = arith.constant 0 : index
    %c0_110 = arith.constant 0 : index
    %359 = vector.load %arg22[%c0_109, %c0_110] : memref<32x16xf32, #tpu.memory_space<vmem>>, vector<32x16xf32>
    %cst_111 = arith.constant dense<0.000000e+00> : vector<8x16xf32>
    %360 = tpu.matmul %317, %359, %cst_111 {dimension_numbers = #tpu.dot_dimension_numbers<[1], [0], [0], [1], [0, 0, 1, 1], [], []>} : vector<8x32xf32>, vector<32x16xf32>, vector<8x16xf32> -> vector<8x16xf32>
    %361 = arith.addf %358, %360 : vector<8x16xf32>
    %c0_112 = arith.constant 0 : index
    %c0_113 = arith.constant 0 : index
    %362 = vector.load %arg23[%c0_112, %c0_113] : memref<8x16xf32, #tpu.memory_space<vmem>>, vector<8x16xf32>
    %cst_114 = arith.constant dense<0.000000e+00> : vector<8x16xf32>
    %363 = tpu.matmul %297, %362, %cst_114 {dimension_numbers = #tpu.dot_dimension_numbers<[1], [0], [0], [1], [0, 0, 1, 1], [], []>} : vector<8x8xf32>, vector<8x16xf32>, vector<8x16xf32> -> vector<8x16xf32>
    %364 = arith.addf %361, %363 : vector<8x16xf32>
    %c0_115 = arith.constant 0 : index
    %c0_116 = arith.constant 0 : index
    %365 = vector.load %arg24[%c0_115, %c0_116] : memref<1x16xf32, #tpu.memory_space<vmem>>, vector<1x16xf32>
    %366 = vector.broadcast %365 : vector<1x16xf32> to vector<8x16xf32>
    %367 = arith.addf %364, %366 : vector<8x16xf32>
    %c0_117 = arith.constant 0 : index
    %c0_118 = arith.constant 0 : index
    %c0_119 = arith.constant 0 : index
    %368 = vector.load %arg26[%c0_117, %c0_118, %c0_119] : memref<5x8x16xf32, #tpu.memory_space<vmem>>, vector<1x8x16xf32>
    %369 = vector.shape_cast %368 : vector<1x8x16xf32> to vector<8x16xf32>
    %370 = vector.shape_cast %367 : vector<8x16xf32> to vector<1x8x16xf32>
    tpu.vector_store %arg26[%c0_117, %c0_118, %c0_119], %370 {strides = array<i32>} : memref<5x8x16xf32, #tpu.memory_space<vmem>>, vector<1x8x16xf32>,
    %cst_120 = arith.constant dense<0xFF800000> : vector<8xf32>
    %371 = vector.multi_reduction <maximumf>, %367, %cst_120 [1] : vector<8x16xf32> to vector<8xf32>
    %372 = vector.shape_cast %371 : vector<8xf32> to vector<8x1xf32>
    %373 = vector.broadcast %372 : vector<8x1xf32> to vector<8x16xf32>
    %374 = arith.cmpf oge, %367, %373 : vector<8x16xf32>
    %cst_121 = arith.constant 1.600000e+01 : f32
    %375 = vector.broadcast %cst_121 : f32 to vector<8x16xf32>
    %376 = arith.select %374, %295, %375 : vector<8x16xi1>, vector<8x16xf32>
    %cst_122 = arith.constant dense<0x7F800000> : vector<8xf32>
    %377 = vector.multi_reduction <minimumf>, %376, %cst_122 [1] : vector<8x16xf32> to vector<8xf32>
    %378 = vector.shape_cast %377 : vector<8xf32> to vector<8x1xf32>
    %379 = vector.broadcast %378 : vector<8x1xf32> to vector<8x16xf32>
    %380 = arith.cmpf oeq, %295, %379 : vector<8x16xf32>
    %cst_123 = arith.constant 1.000000e+00 : f32
    %cst_124 = arith.constant 0.000000e+00 : f32
    %381 = vector.broadcast %cst_123 : f32 to vector<8x16xf32>
    %382 = vector.broadcast %cst_124 : f32 to vector<8x16xf32>
    %383 = arith.select %380, %381, %382 : vector<8x16xi1>, vector<8x16xf32>
    %cst_125 = arith.constant dense<0.000000e+00> : vector<8x8xf32>
    %384 = tpu.matmul %383, %293, %cst_125 {dimension_numbers = #tpu.dot_dimension_numbers<[1], [0], [0], [1], [0, 0, 1, 1], [], []>} : vector<8x16xf32>, vector<16x8xf32>, vector<8x8xf32> -> vector<8x8xf32>
    %c1 = arith.constant 1 : index
    %385 = memref.load %arg1[%c1] : memref<5xi32, #tpu.memory_space<smem>>
    %c0_i32 = arith.constant 0 : i32
    %386 = arith.cmpi sgt, %385, %c0_i32 : i32
    %387 = arith.extui %386 : i1 to i32
    %388 = arith.sitofp %387 : i32 to f32
    %c1_126 = arith.constant 1 : index
    %c0_127 = arith.constant 0 : index
    %c0_128 = arith.constant 0 : index
    %389 = vector.load %arg3[%c1_126, %c0_127, %c0_128] : memref<5x8x8xf32, #tpu.memory_space<vmem>>, vector<1x8x8xf32>
    %390 = vector.shape_cast %389 : vector<1x8x8xf32> to vector<8x8xf32>
    %391 = vector.broadcast %388 : f32 to vector<8x8xf32>
    %392 = arith.mulf %391, %390 : vector<8x8xf32>
    %cst_129 = arith.constant 1.000000e+00 : f32
    %393 = arith.subf %cst_129, %388 : f32
    %394 = vector.broadcast %393 : f32 to vector<8x8xf32>
    %395 = arith.mulf %394, %384 : vector<8x8xf32>
    %396 = arith.addf %392, %395 : vector<8x8xf32>
    %c0_130 = arith.constant 0 : index
    %c0_131 = arith.constant 0 : index
    %397 = vector.load %arg12[%c0_130, %c0_131] : memref<16x128xf32, #tpu.memory_space<vmem>>, vector<16x128xf32>
    %cst_132 = arith.constant dense<0.000000e+00> : vector<8x128xf32>
    %398 = tpu.matmul %356, %397, %cst_132 {dimension_numbers = #tpu.dot_dimension_numbers<[1], [0], [0], [1], [0, 0, 1, 1], [], []>} : vector<8x16xf32>, vector<16x128xf32>, vector<8x128xf32> -> vector<8x128xf32>
    %399 = arith.addf %292, %398 : vector<8x128xf32>
    %400 = math.tanh %399 : vector<8x128xf32>
    %c0_133 = arith.constant 0 : index
    %c0_134 = arith.constant 0 : index
    %401 = vector.load %arg13[%c0_133, %c0_134] : memref<128x8xf32, #tpu.memory_space<vmem>>, vector<128x8xf32>
    %cst_135 = arith.constant dense<0.000000e+00> : vector<8x8xf32>
    %402 = tpu.matmul %400, %401, %cst_135 {dimension_numbers = #tpu.dot_dimension_numbers<[1], [0], [0], [1], [0, 0, 1, 1], [], []>} : vector<8x128xf32>, vector<128x8xf32>, vector<8x8xf32> -> vector<8x8xf32>
    %cst_136 = arith.constant dense<0xFF800000> : vector<8xf32>
    %403 = vector.multi_reduction <maximumf>, %402, %cst_136 [1] : vector<8x8xf32> to vector<8xf32>
    %404 = vector.shape_cast %403 : vector<8xf32> to vector<8x1xf32>
    %405 = vector.broadcast %404 : vector<8x1xf32> to vector<8x8xf32>
    %406 = arith.subf %402, %405 : vector<8x8xf32>
    %407 = math.exp %406 : vector<8x8xf32>
    %cst_137 = arith.constant dense<0.000000e+00> : vector<8xf32>
    %408 = vector.multi_reduction <add>, %407, %cst_137 [1] : vector<8x8xf32> to vector<8xf32>
    %409 = vector.shape_cast %408 : vector<8xf32> to vector<8x1xf32>
    %410 = vector.broadcast %409 : vector<8x1xf32> to vector<8x8xf32>
    %411 = arith.divf %407, %410 : vector<8x8xf32>
    %c0_138 = arith.constant 0 : index
    %c0_139 = arith.constant 0 : index
    %412 = vector.load %arg14[%c0_138, %c0_139] : memref<8x256xf32, #tpu.memory_space<vmem>>, vector<8x256xf32>
    %cst_140 = arith.constant dense<0.000000e+00> : vector<8x256xf32>
    %413 = tpu.matmul %411, %412, %cst_140 {dimension_numbers = #tpu.dot_dimension_numbers<[1], [0], [0], [1], [0, 0, 1, 1], [], []>} : vector<8x8xf32>, vector<8x256xf32>, vector<8x256xf32> -> vector<8x256xf32>
    %414 = arith.mulf %413, %287 : vector<8x256xf32>
    %c0_141 = arith.constant 0 : index
    %c0_142 = arith.constant 0 : index
    %415 = vector.load %arg15[%c0_141, %c0_142] : memref<256x32xf32, #tpu.memory_space<vmem>>, vector<256x32xf32>
    %cst_143 = arith.constant dense<0.000000e+00> : vector<8x32xf32>
    %416 = tpu.matmul %414, %415, %cst_143 {dimension_numbers = #tpu.dot_dimension_numbers<[1], [0], [0], [1], [0, 0, 1, 1], [], []>} : vector<8x256xf32>, vector<256x32xf32>, vector<8x32xf32> -> vector<8x32xf32>
    %c0_144 = arith.constant 0 : index
    %c0_145 = arith.constant 0 : index
    %417 = vector.load %arg16[%c0_144, %c0_145] : memref<8x48xf32, #tpu.memory_space<vmem>>, vector<8x48xf32>
    %cst_146 = arith.constant dense<0.000000e+00> : vector<8x48xf32>
    %418 = tpu.matmul %396, %417, %cst_146 {dimension_numbers = #tpu.dot_dimension_numbers<[1], [0], [0], [1], [0, 0, 1, 1], [], []>} : vector<8x8xf32>, vector<8x48xf32>, vector<8x48xf32> -> vector<8x48xf32>
    %c0_147 = arith.constant 0 : index
    %c0_148 = arith.constant 0 : index
    %419 = vector.load %arg17[%c0_147, %c0_148] : memref<32x48xf32, #tpu.memory_space<vmem>>, vector<32x48xf32>
    %cst_149 = arith.constant dense<0.000000e+00> : vector<8x48xf32>
    %420 = tpu.matmul %416, %419, %cst_149 {dimension_numbers = #tpu.dot_dimension_numbers<[1], [0], [0], [1], [0, 0, 1, 1], [], []>} : vector<8x32xf32>, vector<32x48xf32>, vector<8x48xf32> -> vector<8x48xf32>
    %421 = arith.addf %418, %420 : vector<8x48xf32>
    %c0_150 = arith.constant 0 : index
    %c0_151 = arith.constant 0 : index
    %422 = vector.load %arg19[%c0_150, %c0_151] : memref<1x48xf32, #tpu.memory_space<vmem>>, vector<1x48xf32>
    %423 = vector.broadcast %422 : vector<1x48xf32> to vector<8x48xf32>
    %424 = arith.addf %421, %423 : vector<8x48xf32>
    %c0_152 = arith.constant 0 : index
    %c0_153 = arith.constant 0 : index
    %425 = vector.load %arg18[%c0_152, %c0_153] : memref<16x48xf32, #tpu.memory_space<vmem>>, vector<16x48xf32>
    %cst_154 = arith.constant dense<0.000000e+00> : vector<8x48xf32>
    %426 = tpu.matmul %356, %425, %cst_154 {dimension_numbers = #tpu.dot_dimension_numbers<[1], [0], [0], [1], [0, 0, 1, 1], [], []>} : vector<8x16xf32>, vector<16x48xf32>, vector<8x48xf32> -> vector<8x48xf32>
    %c0_155 = arith.constant 0 : index
    %c0_156 = arith.constant 0 : index
    %427 = vector.load %arg20[%c0_155, %c0_156] : memref<1x48xf32, #tpu.memory_space<vmem>>, vector<1x48xf32>
    %428 = vector.broadcast %427 : vector<1x48xf32> to vector<8x48xf32>
    %429 = arith.addf %426, %428 : vector<8x48xf32>
    %430 = vector.extract_strided_slice %424 {offsets = [0, 0], sizes = [8, 16], strides = [1, 1]} : vector<8x48xf32> to vector<8x16xf32>
    %431 = vector.extract_strided_slice %429 {offsets = [0, 0], sizes = [8, 16], strides = [1, 1]} : vector<8x48xf32> to vector<8x16xf32>
    %432 = arith.addf %430, %431 : vector<8x16xf32>
    %433 = arith.negf %432 : vector<8x16xf32>
    %434 = math.exp %433 : vector<8x16xf32>
    %cst_157 = arith.constant 1.000000e+00 : f32
    %435 = vector.broadcast %cst_157 : f32 to vector<8x16xf32>
    %436 = arith.addf %435, %434 : vector<8x16xf32>
    %437 = arith.divf %435, %436 : vector<8x16xf32>
    %438 = vector.extract_strided_slice %424 {offsets = [0, 16], sizes = [8, 16], strides = [1, 1]} : vector<8x48xf32> to vector<8x16xf32>
    %439 = vector.extract_strided_slice %429 {offsets = [0, 16], sizes = [8, 16], strides = [1, 1]} : vector<8x48xf32> to vector<8x16xf32>
    %440 = arith.addf %438, %439 : vector<8x16xf32>
    %441 = arith.negf %440 : vector<8x16xf32>
    %442 = math.exp %441 : vector<8x16xf32>
    %cst_158 = arith.constant 1.000000e+00 : f32
    %443 = vector.broadcast %cst_158 : f32 to vector<8x16xf32>
    %444 = arith.addf %443, %442 : vector<8x16xf32>
    %445 = arith.divf %443, %444 : vector<8x16xf32>
    %446 = vector.extract_strided_slice %424 {offsets = [0, 32], sizes = [8, 16], strides = [1, 1]} : vector<8x48xf32> to vector<8x16xf32>
    %447 = vector.extract_strided_slice %429 {offsets = [0, 32], sizes = [8, 16], strides = [1, 1]} : vector<8x48xf32> to vector<8x16xf32>
    %448 = arith.mulf %437, %447 : vector<8x16xf32>
    %449 = arith.addf %446, %448 : vector<8x16xf32>
    %450 = math.tanh %449 : vector<8x16xf32>
    %cst_159 = arith.constant 1.000000e+00 : f32
    %451 = vector.broadcast %cst_159 : f32 to vector<8x16xf32>
    %452 = arith.subf %451, %445 : vector<8x16xf32>
    %453 = arith.mulf %452, %450 : vector<8x16xf32>
    %454 = arith.mulf %445, %356 : vector<8x16xf32>
    %455 = arith.addf %453, %454 : vector<8x16xf32>
    %c0_160 = arith.constant 0 : index
    %c0_161 = arith.constant 0 : index
    %456 = vector.load %arg21[%c0_160, %c0_161] : memref<16x16xf32, #tpu.memory_space<vmem>>, vector<16x16xf32>
    %cst_162 = arith.constant dense<0.000000e+00> : vector<8x16xf32>
    %457 = tpu.matmul %455, %456, %cst_162 {dimension_numbers = #tpu.dot_dimension_numbers<[1], [0], [0], [1], [0, 0, 1, 1], [], []>} : vector<8x16xf32>, vector<16x16xf32>, vector<8x16xf32> -> vector<8x16xf32>
    %c0_163 = arith.constant 0 : index
    %c0_164 = arith.constant 0 : index
    %458 = vector.load %arg22[%c0_163, %c0_164] : memref<32x16xf32, #tpu.memory_space<vmem>>, vector<32x16xf32>
    %cst_165 = arith.constant dense<0.000000e+00> : vector<8x16xf32>
    %459 = tpu.matmul %416, %458, %cst_165 {dimension_numbers = #tpu.dot_dimension_numbers<[1], [0], [0], [1], [0, 0, 1, 1], [], []>} : vector<8x32xf32>, vector<32x16xf32>, vector<8x16xf32> -> vector<8x16xf32>
    %460 = arith.addf %457, %459 : vector<8x16xf32>
    %c0_166 = arith.constant 0 : index
    %c0_167 = arith.constant 0 : index
    %461 = vector.load %arg23[%c0_166, %c0_167] : memref<8x16xf32, #tpu.memory_space<vmem>>, vector<8x16xf32>
    %cst_168 = arith.constant dense<0.000000e+00> : vector<8x16xf32>
    %462 = tpu.matmul %396, %461, %cst_168 {dimension_numbers = #tpu.dot_dimension_numbers<[1], [0], [0], [1], [0, 0, 1, 1], [], []>} : vector<8x8xf32>, vector<8x16xf32>, vector<8x16xf32> -> vector<8x16xf32>
    %463 = arith.addf %460, %462 : vector<8x16xf32>
    %c0_169 = arith.constant 0 : index
    %c0_170 = arith.constant 0 : index
    %464 = vector.load %arg24[%c0_169, %c0_170] : memref<1x16xf32, #tpu.memory_space<vmem>>, vector<1x16xf32>
    %465 = vector.broadcast %464 : vector<1x16xf32> to vector<8x16xf32>
    %466 = arith.addf %463, %465 : vector<8x16xf32>
    %c1_171 = arith.constant 1 : index
    %c0_172 = arith.constant 0 : index
    %c0_173 = arith.constant 0 : index
    %467 = vector.load %arg26[%c1_171, %c0_172, %c0_173] : memref<5x8x16xf32, #tpu.memory_space<vmem>>, vector<1x8x16xf32>
    %468 = vector.shape_cast %467 : vector<1x8x16xf32> to vector<8x16xf32>
    %469 = vector.shape_cast %466 : vector<8x16xf32> to vector<1x8x16xf32>
    tpu.vector_store %arg26[%c1_171, %c0_172, %c0_173], %469 {strides = array<i32>} : memref<5x8x16xf32, #tpu.memory_space<vmem>>, vector<1x8x16xf32>,
    %cst_174 = arith.constant dense<0xFF800000> : vector<8xf32>
    %470 = vector.multi_reduction <maximumf>, %466, %cst_174 [1] : vector<8x16xf32> to vector<8xf32>
    %471 = vector.shape_cast %470 : vector<8xf32> to vector<8x1xf32>
    %472 = vector.broadcast %471 : vector<8x1xf32> to vector<8x16xf32>
    %473 = arith.cmpf oge, %466, %472 : vector<8x16xf32>
    %cst_175 = arith.constant 1.600000e+01 : f32
    %474 = vector.broadcast %cst_175 : f32 to vector<8x16xf32>
    %475 = arith.select %473, %295, %474 : vector<8x16xi1>, vector<8x16xf32>
    %cst_176 = arith.constant dense<0x7F800000> : vector<8xf32>
    %476 = vector.multi_reduction <minimumf>, %475, %cst_176 [1] : vector<8x16xf32> to vector<8xf32>
    %477 = vector.shape_cast %476 : vector<8xf32> to vector<8x1xf32>
    %478 = vector.broadcast %477 : vector<8x1xf32> to vector<8x16xf32>
    %479 = arith.cmpf oeq, %295, %478 : vector<8x16xf32>
    %cst_177 = arith.constant 1.000000e+00 : f32
    %cst_178 = arith.constant 0.000000e+00 : f32
    %480 = vector.broadcast %cst_177 : f32 to vector<8x16xf32>
    %481 = vector.broadcast %cst_178 : f32 to vector<8x16xf32>
    %482 = arith.select %479, %480, %481 : vector<8x16xi1>, vector<8x16xf32>
    %cst_179 = arith.constant dense<0.000000e+00> : vector<8x8xf32>
    %483 = tpu.matmul %482, %293, %cst_179 {dimension_numbers = #tpu.dot_dimension_numbers<[1], [0], [0], [1], [0, 0, 1, 1], [], []>} : vector<8x16xf32>, vector<16x8xf32>, vector<8x8xf32> -> vector<8x8xf32>
    %c2 = arith.constant 2 : index
    %484 = memref.load %arg1[%c2] : memref<5xi32, #tpu.memory_space<smem>>
    %c0_i32_180 = arith.constant 0 : i32
    %485 = arith.cmpi sgt, %484, %c0_i32_180 : i32
    %486 = arith.extui %485 : i1 to i32
    %487 = arith.sitofp %486 : i32 to f32
    %c2_181 = arith.constant 2 : index
    %c0_182 = arith.constant 0 : index
    %c0_183 = arith.constant 0 : index
    %488 = vector.load %arg3[%c2_181, %c0_182, %c0_183] : memref<5x8x8xf32, #tpu.memory_space<vmem>>, vector<1x8x8xf32>
    %489 = vector.shape_cast %488 : vector<1x8x8xf32> to vector<8x8xf32>
    %490 = vector.broadcast %487 : f32 to vector<8x8xf32>
    %491 = arith.mulf %490, %489 : vector<8x8xf32>
    %cst_184 = arith.constant 1.000000e+00 : f32
    %492 = arith.subf %cst_184, %487 : f32
    %493 = vector.broadcast %492 : f32 to vector<8x8xf32>
    %494 = arith.mulf %493, %483 : vector<8x8xf32>
    %495 = arith.addf %491, %494 : vector<8x8xf32>
    %c0_185 = arith.constant 0 : index
    %c0_186 = arith.constant 0 : index
    %496 = vector.load %arg12[%c0_185, %c0_186] : memref<16x128xf32, #tpu.memory_space<vmem>>, vector<16x128xf32>
    %cst_187 = arith.constant dense<0.000000e+00> : vector<8x128xf32>
    %497 = tpu.matmul %455, %496, %cst_187 {dimension_numbers = #tpu.dot_dimension_numbers<[1], [0], [0], [1], [0, 0, 1, 1], [], []>} : vector<8x16xf32>, vector<16x128xf32>, vector<8x128xf32> -> vector<8x128xf32>
    %498 = arith.addf %292, %497 : vector<8x128xf32>
    %499 = math.tanh %498 : vector<8x128xf32>
    %c0_188 = arith.constant 0 : index
    %c0_189 = arith.constant 0 : index
    %500 = vector.load %arg13[%c0_188, %c0_189] : memref<128x8xf32, #tpu.memory_space<vmem>>, vector<128x8xf32>
    %cst_190 = arith.constant dense<0.000000e+00> : vector<8x8xf32>
    %501 = tpu.matmul %499, %500, %cst_190 {dimension_numbers = #tpu.dot_dimension_numbers<[1], [0], [0], [1], [0, 0, 1, 1], [], []>} : vector<8x128xf32>, vector<128x8xf32>, vector<8x8xf32> -> vector<8x8xf32>
    %cst_191 = arith.constant dense<0xFF800000> : vector<8xf32>
    %502 = vector.multi_reduction <maximumf>, %501, %cst_191 [1] : vector<8x8xf32> to vector<8xf32>
    %503 = vector.shape_cast %502 : vector<8xf32> to vector<8x1xf32>
    %504 = vector.broadcast %503 : vector<8x1xf32> to vector<8x8xf32>
    %505 = arith.subf %501, %504 : vector<8x8xf32>
    %506 = math.exp %505 : vector<8x8xf32>
    %cst_192 = arith.constant dense<0.000000e+00> : vector<8xf32>
    %507 = vector.multi_reduction <add>, %506, %cst_192 [1] : vector<8x8xf32> to vector<8xf32>
    %508 = vector.shape_cast %507 : vector<8xf32> to vector<8x1xf32>
    %509 = vector.broadcast %508 : vector<8x1xf32> to vector<8x8xf32>
    %510 = arith.divf %506, %509 : vector<8x8xf32>
    %c0_193 = arith.constant 0 : index
    %c0_194 = arith.constant 0 : index
    %511 = vector.load %arg14[%c0_193, %c0_194] : memref<8x256xf32, #tpu.memory_space<vmem>>, vector<8x256xf32>
    %cst_195 = arith.constant dense<0.000000e+00> : vector<8x256xf32>
    %512 = tpu.matmul %510, %511, %cst_195 {dimension_numbers = #tpu.dot_dimension_numbers<[1], [0], [0], [1], [0, 0, 1, 1], [], []>} : vector<8x8xf32>, vector<8x256xf32>, vector<8x256xf32> -> vector<8x256xf32>
    %513 = arith.mulf %512, %287 : vector<8x256xf32>
    %c0_196 = arith.constant 0 : index
    %c0_197 = arith.constant 0 : index
    %514 = vector.load %arg15[%c0_196, %c0_197] : memref<256x32xf32, #tpu.memory_space<vmem>>, vector<256x32xf32>
    %cst_198 = arith.constant dense<0.000000e+00> : vector<8x32xf32>
    %515 = tpu.matmul %513, %514, %cst_198 {dimension_numbers = #tpu.dot_dimension_numbers<[1], [0], [0], [1], [0, 0, 1, 1], [], []>} : vector<8x256xf32>, vector<256x32xf32>, vector<8x32xf32> -> vector<8x32xf32>
    %c0_199 = arith.constant 0 : index
    %c0_200 = arith.constant 0 : index
    %516 = vector.load %arg16[%c0_199, %c0_200] : memref<8x48xf32, #tpu.memory_space<vmem>>, vector<8x48xf32>
    %cst_201 = arith.constant dense<0.000000e+00> : vector<8x48xf32>
    %517 = tpu.matmul %495, %516, %cst_201 {dimension_numbers = #tpu.dot_dimension_numbers<[1], [0], [0], [1], [0, 0, 1, 1], [], []>} : vector<8x8xf32>, vector<8x48xf32>, vector<8x48xf32> -> vector<8x48xf32>
    %c0_202 = arith.constant 0 : index
    %c0_203 = arith.constant 0 : index
    %518 = vector.load %arg17[%c0_202, %c0_203] : memref<32x48xf32, #tpu.memory_space<vmem>>, vector<32x48xf32>
    %cst_204 = arith.constant dense<0.000000e+00> : vector<8x48xf32>
    %519 = tpu.matmul %515, %518, %cst_204 {dimension_numbers = #tpu.dot_dimension_numbers<[1], [0], [0], [1], [0, 0, 1, 1], [], []>} : vector<8x32xf32>, vector<32x48xf32>, vector<8x48xf32> -> vector<8x48xf32>
    %520 = arith.addf %517, %519 : vector<8x48xf32>
    %c0_205 = arith.constant 0 : index
    %c0_206 = arith.constant 0 : index
    %521 = vector.load %arg19[%c0_205, %c0_206] : memref<1x48xf32, #tpu.memory_space<vmem>>, vector<1x48xf32>
    %522 = vector.broadcast %521 : vector<1x48xf32> to vector<8x48xf32>
    %523 = arith.addf %520, %522 : vector<8x48xf32>
    %c0_207 = arith.constant 0 : index
    %c0_208 = arith.constant 0 : index
    %524 = vector.load %arg18[%c0_207, %c0_208] : memref<16x48xf32, #tpu.memory_space<vmem>>, vector<16x48xf32>
    %cst_209 = arith.constant dense<0.000000e+00> : vector<8x48xf32>
    %525 = tpu.matmul %455, %524, %cst_209 {dimension_numbers = #tpu.dot_dimension_numbers<[1], [0], [0], [1], [0, 0, 1, 1], [], []>} : vector<8x16xf32>, vector<16x48xf32>, vector<8x48xf32> -> vector<8x48xf32>
    %c0_210 = arith.constant 0 : index
    %c0_211 = arith.constant 0 : index
    %526 = vector.load %arg20[%c0_210, %c0_211] : memref<1x48xf32, #tpu.memory_space<vmem>>, vector<1x48xf32>
    %527 = vector.broadcast %526 : vector<1x48xf32> to vector<8x48xf32>
    %528 = arith.addf %525, %527 : vector<8x48xf32>
    %529 = vector.extract_strided_slice %523 {offsets = [0, 0], sizes = [8, 16], strides = [1, 1]} : vector<8x48xf32> to vector<8x16xf32>
    %530 = vector.extract_strided_slice %528 {offsets = [0, 0], sizes = [8, 16], strides = [1, 1]} : vector<8x48xf32> to vector<8x16xf32>
    %531 = arith.addf %529, %530 : vector<8x16xf32>
    %532 = arith.negf %531 : vector<8x16xf32>
    %533 = math.exp %532 : vector<8x16xf32>
    %cst_212 = arith.constant 1.000000e+00 : f32
    %534 = vector.broadcast %cst_212 : f32 to vector<8x16xf32>
    %535 = arith.addf %534, %533 : vector<8x16xf32>
    %536 = arith.divf %534, %535 : vector<8x16xf32>
    %537 = vector.extract_strided_slice %523 {offsets = [0, 16], sizes = [8, 16], strides = [1, 1]} : vector<8x48xf32> to vector<8x16xf32>
    %538 = vector.extract_strided_slice %528 {offsets = [0, 16], sizes = [8, 16], strides = [1, 1]} : vector<8x48xf32> to vector<8x16xf32>
    %539 = arith.addf %537, %538 : vector<8x16xf32>
    %540 = arith.negf %539 : vector<8x16xf32>
    %541 = math.exp %540 : vector<8x16xf32>
    %cst_213 = arith.constant 1.000000e+00 : f32
    %542 = vector.broadcast %cst_213 : f32 to vector<8x16xf32>
    %543 = arith.addf %542, %541 : vector<8x16xf32>
    %544 = arith.divf %542, %543 : vector<8x16xf32>
    %545 = vector.extract_strided_slice %523 {offsets = [0, 32], sizes = [8, 16], strides = [1, 1]} : vector<8x48xf32> to vector<8x16xf32>
    %546 = vector.extract_strided_slice %528 {offsets = [0, 32], sizes = [8, 16], strides = [1, 1]} : vector<8x48xf32> to vector<8x16xf32>
    %547 = arith.mulf %536, %546 : vector<8x16xf32>
    %548 = arith.addf %545, %547 : vector<8x16xf32>
    %549 = math.tanh %548 : vector<8x16xf32>
    %cst_214 = arith.constant 1.000000e+00 : f32
    %550 = vector.broadcast %cst_214 : f32 to vector<8x16xf32>
    %551 = arith.subf %550, %544 : vector<8x16xf32>
    %552 = arith.mulf %551, %549 : vector<8x16xf32>
    %553 = arith.mulf %544, %455 : vector<8x16xf32>
    %554 = arith.addf %552, %553 : vector<8x16xf32>
    %c0_215 = arith.constant 0 : index
    %c0_216 = arith.constant 0 : index
    %555 = vector.load %arg21[%c0_215, %c0_216] : memref<16x16xf32, #tpu.memory_space<vmem>>, vector<16x16xf32>
    %cst_217 = arith.constant dense<0.000000e+00> : vector<8x16xf32>
    %556 = tpu.matmul %554, %555, %cst_217 {dimension_numbers = #tpu.dot_dimension_numbers<[1], [0], [0], [1], [0, 0, 1, 1], [], []>} : vector<8x16xf32>, vector<16x16xf32>, vector<8x16xf32> -> vector<8x16xf32>
    %c0_218 = arith.constant 0 : index
    %c0_219 = arith.constant 0 : index
    %557 = vector.load %arg22[%c0_218, %c0_219] : memref<32x16xf32, #tpu.memory_space<vmem>>, vector<32x16xf32>
    %cst_220 = arith.constant dense<0.000000e+00> : vector<8x16xf32>
    %558 = tpu.matmul %515, %557, %cst_220 {dimension_numbers = #tpu.dot_dimension_numbers<[1], [0], [0], [1], [0, 0, 1, 1], [], []>} : vector<8x32xf32>, vector<32x16xf32>, vector<8x16xf32> -> vector<8x16xf32>
    %559 = arith.addf %556, %558 : vector<8x16xf32>
    %c0_221 = arith.constant 0 : index
    %c0_222 = arith.constant 0 : index
    %560 = vector.load %arg23[%c0_221, %c0_222] : memref<8x16xf32, #tpu.memory_space<vmem>>, vector<8x16xf32>
    %cst_223 = arith.constant dense<0.000000e+00> : vector<8x16xf32>
    %561 = tpu.matmul %495, %560, %cst_223 {dimension_numbers = #tpu.dot_dimension_numbers<[1], [0], [0], [1], [0, 0, 1, 1], [], []>} : vector<8x8xf32>, vector<8x16xf32>, vector<8x16xf32> -> vector<8x16xf32>
    %562 = arith.addf %559, %561 : vector<8x16xf32>
    %c0_224 = arith.constant 0 : index
    %c0_225 = arith.constant 0 : index
    %563 = vector.load %arg24[%c0_224, %c0_225] : memref<1x16xf32, #tpu.memory_space<vmem>>, vector<1x16xf32>
    %564 = vector.broadcast %563 : vector<1x16xf32> to vector<8x16xf32>
    %565 = arith.addf %562, %564 : vector<8x16xf32>
    %c2_226 = arith.constant 2 : index
    %c0_227 = arith.constant 0 : index
    %c0_228 = arith.constant 0 : index
    %566 = vector.load %arg26[%c2_226, %c0_227, %c0_228] : memref<5x8x16xf32, #tpu.memory_space<vmem>>, vector<1x8x16xf32>
    %567 = vector.shape_cast %566 : vector<1x8x16xf32> to vector<8x16xf32>
    %568 = vector.shape_cast %565 : vector<8x16xf32> to vector<1x8x16xf32>
    tpu.vector_store %arg26[%c2_226, %c0_227, %c0_228], %568 {strides = array<i32>} : memref<5x8x16xf32, #tpu.memory_space<vmem>>, vector<1x8x16xf32>,
    %cst_229 = arith.constant dense<0xFF800000> : vector<8xf32>
    %569 = vector.multi_reduction <maximumf>, %565, %cst_229 [1] : vector<8x16xf32> to vector<8xf32>
    %570 = vector.shape_cast %569 : vector<8xf32> to vector<8x1xf32>
    %571 = vector.broadcast %570 : vector<8x1xf32> to vector<8x16xf32>
    %572 = arith.cmpf oge, %565, %571 : vector<8x16xf32>
    %cst_230 = arith.constant 1.600000e+01 : f32
    %573 = vector.broadcast %cst_230 : f32 to vector<8x16xf32>
    %574 = arith.select %572, %295, %573 : vector<8x16xi1>, vector<8x16xf32>
    %cst_231 = arith.constant dense<0x7F800000> : vector<8xf32>
    %575 = vector.multi_reduction <minimumf>, %574, %cst_231 [1] : vector<8x16xf32> to vector<8xf32>
    %576 = vector.shape_cast %575 : vector<8xf32> to vector<8x1xf32>
    %577 = vector.broadcast %576 : vector<8x1xf32> to vector<8x16xf32>
    %578 = arith.cmpf oeq, %295, %577 : vector<8x16xf32>
    %cst_232 = arith.constant 1.000000e+00 : f32
    %cst_233 = arith.constant 0.000000e+00 : f32
    %579 = vector.broadcast %cst_232 : f32 to vector<8x16xf32>
    %580 = vector.broadcast %cst_233 : f32 to vector<8x16xf32>
    %581 = arith.select %578, %579, %580 : vector<8x16xi1>, vector<8x16xf32>
    %cst_234 = arith.constant dense<0.000000e+00> : vector<8x8xf32>
    %582 = tpu.matmul %581, %293, %cst_234 {dimension_numbers = #tpu.dot_dimension_numbers<[1], [0], [0], [1], [0, 0, 1, 1], [], []>} : vector<8x16xf32>, vector<16x8xf32>, vector<8x8xf32> -> vector<8x8xf32>
    %c3 = arith.constant 3 : index
    %583 = memref.load %arg1[%c3] : memref<5xi32, #tpu.memory_space<smem>>
    %c0_i32_235 = arith.constant 0 : i32
    %584 = arith.cmpi sgt, %583, %c0_i32_235 : i32
    %585 = arith.extui %584 : i1 to i32
    %586 = arith.sitofp %585 : i32 to f32
    %c3_236 = arith.constant 3 : index
    %c0_237 = arith.constant 0 : index
    %c0_238 = arith.constant 0 : index
    %587 = vector.load %arg3[%c3_236, %c0_237, %c0_238] : memref<5x8x8xf32, #tpu.memory_space<vmem>>, vector<1x8x8xf32>
    %588 = vector.shape_cast %587 : vector<1x8x8xf32> to vector<8x8xf32>
    %589 = vector.broadcast %586 : f32 to vector<8x8xf32>
    %590 = arith.mulf %589, %588 : vector<8x8xf32>
    %cst_239 = arith.constant 1.000000e+00 : f32
    %591 = arith.subf %cst_239, %586 : f32
    %592 = vector.broadcast %591 : f32 to vector<8x8xf32>
    %593 = arith.mulf %592, %582 : vector<8x8xf32>
    %594 = arith.addf %590, %593 : vector<8x8xf32>
    %c0_240 = arith.constant 0 : index
    %c0_241 = arith.constant 0 : index
    %595 = vector.load %arg12[%c0_240, %c0_241] : memref<16x128xf32, #tpu.memory_space<vmem>>, vector<16x128xf32>
    %cst_242 = arith.constant dense<0.000000e+00> : vector<8x128xf32>
    %596 = tpu.matmul %554, %595, %cst_242 {dimension_numbers = #tpu.dot_dimension_numbers<[1], [0], [0], [1], [0, 0, 1, 1], [], []>} : vector<8x16xf32>, vector<16x128xf32>, vector<8x128xf32> -> vector<8x128xf32>
    %597 = arith.addf %292, %596 : vector<8x128xf32>
    %598 = math.tanh %597 : vector<8x128xf32>
    %c0_243 = arith.constant 0 : index
    %c0_244 = arith.constant 0 : index
    %599 = vector.load %arg13[%c0_243, %c0_244] : memref<128x8xf32, #tpu.memory_space<vmem>>, vector<128x8xf32>
    %cst_245 = arith.constant dense<0.000000e+00> : vector<8x8xf32>
    %600 = tpu.matmul %598, %599, %cst_245 {dimension_numbers = #tpu.dot_dimension_numbers<[1], [0], [0], [1], [0, 0, 1, 1], [], []>} : vector<8x128xf32>, vector<128x8xf32>, vector<8x8xf32> -> vector<8x8xf32>
    %cst_246 = arith.constant dense<0xFF800000> : vector<8xf32>
    %601 = vector.multi_reduction <maximumf>, %600, %cst_246 [1] : vector<8x8xf32> to vector<8xf32>
    %602 = vector.shape_cast %601 : vector<8xf32> to vector<8x1xf32>
    %603 = vector.broadcast %602 : vector<8x1xf32> to vector<8x8xf32>
    %604 = arith.subf %600, %603 : vector<8x8xf32>
    %605 = math.exp %604 : vector<8x8xf32>
    %cst_247 = arith.constant dense<0.000000e+00> : vector<8xf32>
    %606 = vector.multi_reduction <add>, %605, %cst_247 [1] : vector<8x8xf32> to vector<8xf32>
    %607 = vector.shape_cast %606 : vector<8xf32> to vector<8x1xf32>
    %608 = vector.broadcast %607 : vector<8x1xf32> to vector<8x8xf32>
    %609 = arith.divf %605, %608 : vector<8x8xf32>
    %c0_248 = arith.constant 0 : index
    %c0_249 = arith.constant 0 : index
    %610 = vector.load %arg14[%c0_248, %c0_249] : memref<8x256xf32, #tpu.memory_space<vmem>>, vector<8x256xf32>
    %cst_250 = arith.constant dense<0.000000e+00> : vector<8x256xf32>
    %611 = tpu.matmul %609, %610, %cst_250 {dimension_numbers = #tpu.dot_dimension_numbers<[1], [0], [0], [1], [0, 0, 1, 1], [], []>} : vector<8x8xf32>, vector<8x256xf32>, vector<8x256xf32> -> vector<8x256xf32>
    %612 = arith.mulf %611, %287 : vector<8x256xf32>
    %c0_251 = arith.constant 0 : index
    %c0_252 = arith.constant 0 : index
    %613 = vector.load %arg15[%c0_251, %c0_252] : memref<256x32xf32, #tpu.memory_space<vmem>>, vector<256x32xf32>
    %cst_253 = arith.constant dense<0.000000e+00> : vector<8x32xf32>
    %614 = tpu.matmul %612, %613, %cst_253 {dimension_numbers = #tpu.dot_dimension_numbers<[1], [0], [0], [1], [0, 0, 1, 1], [], []>} : vector<8x256xf32>, vector<256x32xf32>, vector<8x32xf32> -> vector<8x32xf32>
    %c0_254 = arith.constant 0 : index
    %c0_255 = arith.constant 0 : index
    %615 = vector.load %arg16[%c0_254, %c0_255] : memref<8x48xf32, #tpu.memory_space<vmem>>, vector<8x48xf32>
    %cst_256 = arith.constant dense<0.000000e+00> : vector<8x48xf32>
    %616 = tpu.matmul %594, %615, %cst_256 {dimension_numbers = #tpu.dot_dimension_numbers<[1], [0], [0], [1], [0, 0, 1, 1], [], []>} : vector<8x8xf32>, vector<8x48xf32>, vector<8x48xf32> -> vector<8x48xf32>
    %c0_257 = arith.constant 0 : index
    %c0_258 = arith.constant 0 : index
    %617 = vector.load %arg17[%c0_257, %c0_258] : memref<32x48xf32, #tpu.memory_space<vmem>>, vector<32x48xf32>
    %cst_259 = arith.constant dense<0.000000e+00> : vector<8x48xf32>
    %618 = tpu.matmul %614, %617, %cst_259 {dimension_numbers = #tpu.dot_dimension_numbers<[1], [0], [0], [1], [0, 0, 1, 1], [], []>} : vector<8x32xf32>, vector<32x48xf32>, vector<8x48xf32> -> vector<8x48xf32>
    %619 = arith.addf %616, %618 : vector<8x48xf32>
    %c0_260 = arith.constant 0 : index
    %c0_261 = arith.constant 0 : index
    %620 = vector.load %arg19[%c0_260, %c0_261] : memref<1x48xf32, #tpu.memory_space<vmem>>, vector<1x48xf32>
    %621 = vector.broadcast %620 : vector<1x48xf32> to vector<8x48xf32>
    %622 = arith.addf %619, %621 : vector<8x48xf32>
    %c0_262 = arith.constant 0 : index
    %c0_263 = arith.constant 0 : index
    %623 = vector.load %arg18[%c0_262, %c0_263] : memref<16x48xf32, #tpu.memory_space<vmem>>, vector<16x48xf32>
    %cst_264 = arith.constant dense<0.000000e+00> : vector<8x48xf32>
    %624 = tpu.matmul %554, %623, %cst_264 {dimension_numbers = #tpu.dot_dimension_numbers<[1], [0], [0], [1], [0, 0, 1, 1], [], []>} : vector<8x16xf32>, vector<16x48xf32>, vector<8x48xf32> -> vector<8x48xf32>
    %c0_265 = arith.constant 0 : index
    %c0_266 = arith.constant 0 : index
    %625 = vector.load %arg20[%c0_265, %c0_266] : memref<1x48xf32, #tpu.memory_space<vmem>>, vector<1x48xf32>
    %626 = vector.broadcast %625 : vector<1x48xf32> to vector<8x48xf32>
    %627 = arith.addf %624, %626 : vector<8x48xf32>
    %628 = vector.extract_strided_slice %622 {offsets = [0, 0], sizes = [8, 16], strides = [1, 1]} : vector<8x48xf32> to vector<8x16xf32>
    %629 = vector.extract_strided_slice %627 {offsets = [0, 0], sizes = [8, 16], strides = [1, 1]} : vector<8x48xf32> to vector<8x16xf32>
    %630 = arith.addf %628, %629 : vector<8x16xf32>
    %631 = arith.negf %630 : vector<8x16xf32>
    %632 = math.exp %631 : vector<8x16xf32>
    %cst_267 = arith.constant 1.000000e+00 : f32
    %633 = vector.broadcast %cst_267 : f32 to vector<8x16xf32>
    %634 = arith.addf %633, %632 : vector<8x16xf32>
    %635 = arith.divf %633, %634 : vector<8x16xf32>
    %636 = vector.extract_strided_slice %622 {offsets = [0, 16], sizes = [8, 16], strides = [1, 1]} : vector<8x48xf32> to vector<8x16xf32>
    %637 = vector.extract_strided_slice %627 {offsets = [0, 16], sizes = [8, 16], strides = [1, 1]} : vector<8x48xf32> to vector<8x16xf32>
    %638 = arith.addf %636, %637 : vector<8x16xf32>
    %639 = arith.negf %638 : vector<8x16xf32>
    %640 = math.exp %639 : vector<8x16xf32>
    %cst_268 = arith.constant 1.000000e+00 : f32
    %641 = vector.broadcast %cst_268 : f32 to vector<8x16xf32>
    %642 = arith.addf %641, %640 : vector<8x16xf32>
    %643 = arith.divf %641, %642 : vector<8x16xf32>
    %644 = vector.extract_strided_slice %622 {offsets = [0, 32], sizes = [8, 16], strides = [1, 1]} : vector<8x48xf32> to vector<8x16xf32>
    %645 = vector.extract_strided_slice %627 {offsets = [0, 32], sizes = [8, 16], strides = [1, 1]} : vector<8x48xf32> to vector<8x16xf32>
    %646 = arith.mulf %635, %645 : vector<8x16xf32>
    %647 = arith.addf %644, %646 : vector<8x16xf32>
    %648 = math.tanh %647 : vector<8x16xf32>
    %cst_269 = arith.constant 1.000000e+00 : f32
    %649 = vector.broadcast %cst_269 : f32 to vector<8x16xf32>
    %650 = arith.subf %649, %643 : vector<8x16xf32>
    %651 = arith.mulf %650, %648 : vector<8x16xf32>
    %652 = arith.mulf %643, %554 : vector<8x16xf32>
    %653 = arith.addf %651, %652 : vector<8x16xf32>
    %c0_270 = arith.constant 0 : index
    %c0_271 = arith.constant 0 : index
    %654 = vector.load %arg21[%c0_270, %c0_271] : memref<16x16xf32, #tpu.memory_space<vmem>>, vector<16x16xf32>
    %cst_272 = arith.constant dense<0.000000e+00> : vector<8x16xf32>
    %655 = tpu.matmul %653, %654, %cst_272 {dimension_numbers = #tpu.dot_dimension_numbers<[1], [0], [0], [1], [0, 0, 1, 1], [], []>} : vector<8x16xf32>, vector<16x16xf32>, vector<8x16xf32> -> vector<8x16xf32>
    %c0_273 = arith.constant 0 : index
    %c0_274 = arith.constant 0 : index
    %656 = vector.load %arg22[%c0_273, %c0_274] : memref<32x16xf32, #tpu.memory_space<vmem>>, vector<32x16xf32>
    %cst_275 = arith.constant dense<0.000000e+00> : vector<8x16xf32>
    %657 = tpu.matmul %614, %656, %cst_275 {dimension_numbers = #tpu.dot_dimension_numbers<[1], [0], [0], [1], [0, 0, 1, 1], [], []>} : vector<8x32xf32>, vector<32x16xf32>, vector<8x16xf32> -> vector<8x16xf32>
    %658 = arith.addf %655, %657 : vector<8x16xf32>
    %c0_276 = arith.constant 0 : index
    %c0_277 = arith.constant 0 : index
    %659 = vector.load %arg23[%c0_276, %c0_277] : memref<8x16xf32, #tpu.memory_space<vmem>>, vector<8x16xf32>
    %cst_278 = arith.constant dense<0.000000e+00> : vector<8x16xf32>
    %660 = tpu.matmul %594, %659, %cst_278 {dimension_numbers = #tpu.dot_dimension_numbers<[1], [0], [0], [1], [0, 0, 1, 1], [], []>} : vector<8x8xf32>, vector<8x16xf32>, vector<8x16xf32> -> vector<8x16xf32>
    %661 = arith.addf %658, %660 : vector<8x16xf32>
    %c0_279 = arith.constant 0 : index
    %c0_280 = arith.constant 0 : index
    %662 = vector.load %arg24[%c0_279, %c0_280] : memref<1x16xf32, #tpu.memory_space<vmem>>, vector<1x16xf32>
    %663 = vector.broadcast %662 : vector<1x16xf32> to vector<8x16xf32>
    %664 = arith.addf %661, %663 : vector<8x16xf32>
    %c3_281 = arith.constant 3 : index
    %c0_282 = arith.constant 0 : index
    %c0_283 = arith.constant 0 : index
    %665 = vector.load %arg26[%c3_281, %c0_282, %c0_283] : memref<5x8x16xf32, #tpu.memory_space<vmem>>, vector<1x8x16xf32>
    %666 = vector.shape_cast %665 : vector<1x8x16xf32> to vector<8x16xf32>
    %667 = vector.shape_cast %664 : vector<8x16xf32> to vector<1x8x16xf32>
    tpu.vector_store %arg26[%c3_281, %c0_282, %c0_283], %667 {strides = array<i32>} : memref<5x8x16xf32, #tpu.memory_space<vmem>>, vector<1x8x16xf32>,
    %cst_284 = arith.constant dense<0xFF800000> : vector<8xf32>
    %668 = vector.multi_reduction <maximumf>, %664, %cst_284 [1] : vector<8x16xf32> to vector<8xf32>
    %669 = vector.shape_cast %668 : vector<8xf32> to vector<8x1xf32>
    %670 = vector.broadcast %669 : vector<8x1xf32> to vector<8x16xf32>
    %671 = arith.cmpf oge, %664, %670 : vector<8x16xf32>
    %cst_285 = arith.constant 1.600000e+01 : f32
    %672 = vector.broadcast %cst_285 : f32 to vector<8x16xf32>
    %673 = arith.select %671, %295, %672 : vector<8x16xi1>, vector<8x16xf32>
    %cst_286 = arith.constant dense<0x7F800000> : vector<8xf32>
    %674 = vector.multi_reduction <minimumf>, %673, %cst_286 [1] : vector<8x16xf32> to vector<8xf32>
    %675 = vector.shape_cast %674 : vector<8xf32> to vector<8x1xf32>
    %676 = vector.broadcast %675 : vector<8x1xf32> to vector<8x16xf32>
    %677 = arith.cmpf oeq, %295, %676 : vector<8x16xf32>
    %cst_287 = arith.constant 1.000000e+00 : f32
    %cst_288 = arith.constant 0.000000e+00 : f32
    %678 = vector.broadcast %cst_287 : f32 to vector<8x16xf32>
    %679 = vector.broadcast %cst_288 : f32 to vector<8x16xf32>
    %680 = arith.select %677, %678, %679 : vector<8x16xi1>, vector<8x16xf32>
    %cst_289 = arith.constant dense<0.000000e+00> : vector<8x8xf32>
    %681 = tpu.matmul %680, %293, %cst_289 {dimension_numbers = #tpu.dot_dimension_numbers<[1], [0], [0], [1], [0, 0, 1, 1], [], []>} : vector<8x16xf32>, vector<16x8xf32>, vector<8x8xf32> -> vector<8x8xf32>
    %c4 = arith.constant 4 : index
    %682 = memref.load %arg1[%c4] : memref<5xi32, #tpu.memory_space<smem>>
    %c0_i32_290 = arith.constant 0 : i32
    %683 = arith.cmpi sgt, %682, %c0_i32_290 : i32
    %684 = arith.extui %683 : i1 to i32
    %685 = arith.sitofp %684 : i32 to f32
    %c4_291 = arith.constant 4 : index
    %c0_292 = arith.constant 0 : index
    %c0_293 = arith.constant 0 : index
    %686 = vector.load %arg3[%c4_291, %c0_292, %c0_293] : memref<5x8x8xf32, #tpu.memory_space<vmem>>, vector<1x8x8xf32>
    %687 = vector.shape_cast %686 : vector<1x8x8xf32> to vector<8x8xf32>
    %688 = vector.broadcast %685 : f32 to vector<8x8xf32>
    %689 = arith.mulf %688, %687 : vector<8x8xf32>
    %cst_294 = arith.constant 1.000000e+00 : f32
    %690 = arith.subf %cst_294, %685 : f32
    %691 = vector.broadcast %690 : f32 to vector<8x8xf32>
    %692 = arith.mulf %691, %681 : vector<8x8xf32>
    %693 = arith.addf %689, %692 : vector<8x8xf32>
    %c0_295 = arith.constant 0 : index
    %c0_296 = arith.constant 0 : index
    %694 = vector.load %arg12[%c0_295, %c0_296] : memref<16x128xf32, #tpu.memory_space<vmem>>, vector<16x128xf32>
    %cst_297 = arith.constant dense<0.000000e+00> : vector<8x128xf32>
    %695 = tpu.matmul %653, %694, %cst_297 {dimension_numbers = #tpu.dot_dimension_numbers<[1], [0], [0], [1], [0, 0, 1, 1], [], []>} : vector<8x16xf32>, vector<16x128xf32>, vector<8x128xf32> -> vector<8x128xf32>
    %696 = arith.addf %292, %695 : vector<8x128xf32>
    %697 = math.tanh %696 : vector<8x128xf32>
    %c0_298 = arith.constant 0 : index
    %c0_299 = arith.constant 0 : index
    %698 = vector.load %arg13[%c0_298, %c0_299] : memref<128x8xf32, #tpu.memory_space<vmem>>, vector<128x8xf32>
    %cst_300 = arith.constant dense<0.000000e+00> : vector<8x8xf32>
    %699 = tpu.matmul %697, %698, %cst_300 {dimension_numbers = #tpu.dot_dimension_numbers<[1], [0], [0], [1], [0, 0, 1, 1], [], []>} : vector<8x128xf32>, vector<128x8xf32>, vector<8x8xf32> -> vector<8x8xf32>
    %cst_301 = arith.constant dense<0xFF800000> : vector<8xf32>
    %700 = vector.multi_reduction <maximumf>, %699, %cst_301 [1] : vector<8x8xf32> to vector<8xf32>
    %701 = vector.shape_cast %700 : vector<8xf32> to vector<8x1xf32>
    %702 = vector.broadcast %701 : vector<8x1xf32> to vector<8x8xf32>
    %703 = arith.subf %699, %702 : vector<8x8xf32>
    %704 = math.exp %703 : vector<8x8xf32>
    %cst_302 = arith.constant dense<0.000000e+00> : vector<8xf32>
    %705 = vector.multi_reduction <add>, %704, %cst_302 [1] : vector<8x8xf32> to vector<8xf32>
    %706 = vector.shape_cast %705 : vector<8xf32> to vector<8x1xf32>
    %707 = vector.broadcast %706 : vector<8x1xf32> to vector<8x8xf32>
    %708 = arith.divf %704, %707 : vector<8x8xf32>
    %c0_303 = arith.constant 0 : index
    %c0_304 = arith.constant 0 : index
    %709 = vector.load %arg14[%c0_303, %c0_304] : memref<8x256xf32, #tpu.memory_space<vmem>>, vector<8x256xf32>
    %cst_305 = arith.constant dense<0.000000e+00> : vector<8x256xf32>
    %710 = tpu.matmul %708, %709, %cst_305 {dimension_numbers = #tpu.dot_dimension_numbers<[1], [0], [0], [1], [0, 0, 1, 1], [], []>} : vector<8x8xf32>, vector<8x256xf32>, vector<8x256xf32> -> vector<8x256xf32>
    %711 = arith.mulf %710, %287 : vector<8x256xf32>
    %c0_306 = arith.constant 0 : index
    %c0_307 = arith.constant 0 : index
    %712 = vector.load %arg15[%c0_306, %c0_307] : memref<256x32xf32, #tpu.memory_space<vmem>>, vector<256x32xf32>
    %cst_308 = arith.constant dense<0.000000e+00> : vector<8x32xf32>
    %713 = tpu.matmul %711, %712, %cst_308 {dimension_numbers = #tpu.dot_dimension_numbers<[1], [0], [0], [1], [0, 0, 1, 1], [], []>} : vector<8x256xf32>, vector<256x32xf32>, vector<8x32xf32> -> vector<8x32xf32>
    %c0_309 = arith.constant 0 : index
    %c0_310 = arith.constant 0 : index
    %714 = vector.load %arg16[%c0_309, %c0_310] : memref<8x48xf32, #tpu.memory_space<vmem>>, vector<8x48xf32>
    %cst_311 = arith.constant dense<0.000000e+00> : vector<8x48xf32>
    %715 = tpu.matmul %693, %714, %cst_311 {dimension_numbers = #tpu.dot_dimension_numbers<[1], [0], [0], [1], [0, 0, 1, 1], [], []>} : vector<8x8xf32>, vector<8x48xf32>, vector<8x48xf32> -> vector<8x48xf32>
    %c0_312 = arith.constant 0 : index
    %c0_313 = arith.constant 0 : index
    %716 = vector.load %arg17[%c0_312, %c0_313] : memref<32x48xf32, #tpu.memory_space<vmem>>, vector<32x48xf32>
    %cst_314 = arith.constant dense<0.000000e+00> : vector<8x48xf32>
    %717 = tpu.matmul %713, %716, %cst_314 {dimension_numbers = #tpu.dot_dimension_numbers<[1], [0], [0], [1], [0, 0, 1, 1], [], []>} : vector<8x32xf32>, vector<32x48xf32>, vector<8x48xf32> -> vector<8x48xf32>
    %718 = arith.addf %715, %717 : vector<8x48xf32>
    %c0_315 = arith.constant 0 : index
    %c0_316 = arith.constant 0 : index
    %719 = vector.load %arg19[%c0_315, %c0_316] : memref<1x48xf32, #tpu.memory_space<vmem>>, vector<1x48xf32>
    %720 = vector.broadcast %719 : vector<1x48xf32> to vector<8x48xf32>
    %721 = arith.addf %718, %720 : vector<8x48xf32>
    %c0_317 = arith.constant 0 : index
    %c0_318 = arith.constant 0 : index
    %722 = vector.load %arg18[%c0_317, %c0_318] : memref<16x48xf32, #tpu.memory_space<vmem>>, vector<16x48xf32>
    %cst_319 = arith.constant dense<0.000000e+00> : vector<8x48xf32>
    %723 = tpu.matmul %653, %722, %cst_319 {dimension_numbers = #tpu.dot_dimension_numbers<[1], [0], [0], [1], [0, 0, 1, 1], [], []>} : vector<8x16xf32>, vector<16x48xf32>, vector<8x48xf32> -> vector<8x48xf32>
    %c0_320 = arith.constant 0 : index
    %c0_321 = arith.constant 0 : index
    %724 = vector.load %arg20[%c0_320, %c0_321] : memref<1x48xf32, #tpu.memory_space<vmem>>, vector<1x48xf32>
    %725 = vector.broadcast %724 : vector<1x48xf32> to vector<8x48xf32>
    %726 = arith.addf %723, %725 : vector<8x48xf32>
    %727 = vector.extract_strided_slice %721 {offsets = [0, 0], sizes = [8, 16], strides = [1, 1]} : vector<8x48xf32> to vector<8x16xf32>
    %728 = vector.extract_strided_slice %726 {offsets = [0, 0], sizes = [8, 16], strides = [1, 1]} : vector<8x48xf32> to vector<8x16xf32>
    %729 = arith.addf %727, %728 : vector<8x16xf32>
    %730 = arith.negf %729 : vector<8x16xf32>
    %731 = math.exp %730 : vector<8x16xf32>
    %cst_322 = arith.constant 1.000000e+00 : f32
    %732 = vector.broadcast %cst_322 : f32 to vector<8x16xf32>
    %733 = arith.addf %732, %731 : vector<8x16xf32>
    %734 = arith.divf %732, %733 : vector<8x16xf32>
    %735 = vector.extract_strided_slice %721 {offsets = [0, 16], sizes = [8, 16], strides = [1, 1]} : vector<8x48xf32> to vector<8x16xf32>
    %736 = vector.extract_strided_slice %726 {offsets = [0, 16], sizes = [8, 16], strides = [1, 1]} : vector<8x48xf32> to vector<8x16xf32>
    %737 = arith.addf %735, %736 : vector<8x16xf32>
    %738 = arith.negf %737 : vector<8x16xf32>
    %739 = math.exp %738 : vector<8x16xf32>
    %cst_323 = arith.constant 1.000000e+00 : f32
    %740 = vector.broadcast %cst_323 : f32 to vector<8x16xf32>
    %741 = arith.addf %740, %739 : vector<8x16xf32>
    %742 = arith.divf %740, %741 : vector<8x16xf32>
    %743 = vector.extract_strided_slice %721 {offsets = [0, 32], sizes = [8, 16], strides = [1, 1]} : vector<8x48xf32> to vector<8x16xf32>
    %744 = vector.extract_strided_slice %726 {offsets = [0, 32], sizes = [8, 16], strides = [1, 1]} : vector<8x48xf32> to vector<8x16xf32>
    %745 = arith.mulf %734, %744 : vector<8x16xf32>
    %746 = arith.addf %743, %745 : vector<8x16xf32>
    %747 = math.tanh %746 : vector<8x16xf32>
    %cst_324 = arith.constant 1.000000e+00 : f32
    %748 = vector.broadcast %cst_324 : f32 to vector<8x16xf32>
    %749 = arith.subf %748, %742 : vector<8x16xf32>
    %750 = arith.mulf %749, %747 : vector<8x16xf32>
    %751 = arith.mulf %742, %653 : vector<8x16xf32>
    %752 = arith.addf %750, %751 : vector<8x16xf32>
    %c0_325 = arith.constant 0 : index
    %c0_326 = arith.constant 0 : index
    %753 = vector.load %arg21[%c0_325, %c0_326] : memref<16x16xf32, #tpu.memory_space<vmem>>, vector<16x16xf32>
    %cst_327 = arith.constant dense<0.000000e+00> : vector<8x16xf32>
    %754 = tpu.matmul %752, %753, %cst_327 {dimension_numbers = #tpu.dot_dimension_numbers<[1], [0], [0], [1], [0, 0, 1, 1], [], []>} : vector<8x16xf32>, vector<16x16xf32>, vector<8x16xf32> -> vector<8x16xf32>
    %c0_328 = arith.constant 0 : index
    %c0_329 = arith.constant 0 : index
    %755 = vector.load %arg22[%c0_328, %c0_329] : memref<32x16xf32, #tpu.memory_space<vmem>>, vector<32x16xf32>
    %cst_330 = arith.constant dense<0.000000e+00> : vector<8x16xf32>
    %756 = tpu.matmul %713, %755, %cst_330 {dimension_numbers = #tpu.dot_dimension_numbers<[1], [0], [0], [1], [0, 0, 1, 1], [], []>} : vector<8x32xf32>, vector<32x16xf32>, vector<8x16xf32> -> vector<8x16xf32>
    %757 = arith.addf %754, %756 : vector<8x16xf32>
    %c0_331 = arith.constant 0 : index
    %c0_332 = arith.constant 0 : index
    %758 = vector.load %arg23[%c0_331, %c0_332] : memref<8x16xf32, #tpu.memory_space<vmem>>, vector<8x16xf32>
    %cst_333 = arith.constant dense<0.000000e+00> : vector<8x16xf32>
    %759 = tpu.matmul %693, %758, %cst_333 {dimension_numbers = #tpu.dot_dimension_numbers<[1], [0], [0], [1], [0, 0, 1, 1], [], []>} : vector<8x8xf32>, vector<8x16xf32>, vector<8x16xf32> -> vector<8x16xf32>
    %760 = arith.addf %757, %759 : vector<8x16xf32>
    %c0_334 = arith.constant 0 : index
    %c0_335 = arith.constant 0 : index
    %761 = vector.load %arg24[%c0_334, %c0_335] : memref<1x16xf32, #tpu.memory_space<vmem>>, vector<1x16xf32>
    %762 = vector.broadcast %761 : vector<1x16xf32> to vector<8x16xf32>
    %763 = arith.addf %760, %762 : vector<8x16xf32>
    %c4_336 = arith.constant 4 : index
    %c0_337 = arith.constant 0 : index
    %c0_338 = arith.constant 0 : index
    %764 = vector.load %arg26[%c4_336, %c0_337, %c0_338] : memref<5x8x16xf32, #tpu.memory_space<vmem>>, vector<1x8x16xf32>
    %765 = vector.shape_cast %764 : vector<1x8x16xf32> to vector<8x16xf32>
    %766 = vector.shape_cast %763 : vector<8x16xf32> to vector<1x8x16xf32>
    tpu.vector_store %arg26[%c4_336, %c0_337, %c0_338], %766 {strides = array<i32>} : memref<5x8x16xf32, #tpu.memory_space<vmem>>, vector<1x8x16xf32>,
    return
  }
  func.func @transform_0(%arg0: i32, %arg1: memref<5xi32, #tpu.memory_space<smem>>) -> (i32, i32) {
    %c0_i32 = arith.constant 0 : i32
    %c0_i32_0 = arith.constant 0 : i32
    %c0_i32_1 = arith.constant 0 : i32
    return %c0_i32, %c0_i32_0 : i32, i32
  }
  func.func @transform_1(%arg0: i32, %arg1: memref<5xi32, #tpu.memory_space<smem>>) -> (i32, i32, i32) {
    %c0_i32 = arith.constant 0 : i32
    %c0_i32_0 = arith.constant 0 : i32
    %c0_i32_1 = arith.constant 0 : i32
    %c0_i32_2 = arith.constant 0 : i32
    return %c0_i32, %c0_i32_0, %c0_i32_1 : i32, i32, i32
  }
  func.func @transform_2(%arg0: i32, %arg1: memref<5xi32, #tpu.memory_space<smem>>) -> (i32, i32) {
    %c0_i32 = arith.constant 0 : i32
    %c0_i32_0 = arith.constant 0 : i32
    %c0_i32_1 = arith.constant 0 : i32
    return %c0_i32, %c0_i32_0 : i32, i32
  }
  func.func @transform_3(%arg0: i32, %arg1: memref<5xi32, #tpu.memory_space<smem>>) -> (i32, i32) {
    %c0_i32 = arith.constant 0 : i32
    %c0_i32_0 = arith.constant 0 : i32
    %c0_i32_1 = arith.constant 0 : i32
    return %c0_i32, %c0_i32_0 : i32, i32
  }
  func.func @transform_4(%arg0: i32, %arg1: memref<5xi32, #tpu.memory_space<smem>>) -> (i32, i32) {
    %c0_i32 = arith.constant 0 : i32
    %c0_i32_0 = arith.constant 0 : i32
    %c0_i32_1 = arith.constant 0 : i32
    return %c0_i32, %c0_i32_0 : i32, i32
  }
  func.func @transform_5(%arg0: i32, %arg1: memref<5xi32, #tpu.memory_space<smem>>) -> (i32, i32) {
    %c0_i32 = arith.constant 0 : i32
    %c0_i32_0 = arith.constant 0 : i32
    %c0_i32_1 = arith.constant 0 : i32
    return %c0_i32, %c0_i32_0 : i32, i32
  }
  func.func @transform_6(%arg0: i32, %arg1: memref<5xi32, #tpu.memory_space<smem>>) -> (i32, i32) {
    %c0_i32 = arith.constant 0 : i32
    %c0_i32_0 = arith.constant 0 : i32
    %c0_i32_1 = arith.constant 0 : i32
    return %c0_i32, %c0_i32_0 : i32, i32
  }
  func.func @transform_7(%arg0: i32, %arg1: memref<5xi32, #tpu.memory_space<smem>>) -> (i32, i32) {
    %c0_i32 = arith.constant 0 : i32
    %c0_i32_0 = arith.constant 0 : i32
    %c0_i32_1 = arith.constant 0 : i32
    return %c0_i32, %c0_i32_0 : i32, i32
  }
  func.func @transform_8(%arg0: i32, %arg1: memref<5xi32, #tpu.memory_space<smem>>) -> (i32, i32) {
    %c0_i32 = arith.constant 0 : i32
    %c0_i32_0 = arith.constant 0 : i32
    %c0_i32_1 = arith.constant 0 : i32
    return %c0_i32, %c0_i32_0 : i32, i32
  }
  func.func @transform_9(%arg0: i32, %arg1: memref<5xi32, #tpu.memory_space<smem>>) -> (i32, i32) {
    %c0_i32 = arith.constant 0 : i32
    %c0_i32_0 = arith.constant 0 : i32
    %c0_i32_1 = arith.constant 0 : i32
    return %c0_i32, %c0_i32_0 : i32, i32
  }
  func.func @transform_10(%arg0: i32, %arg1: memref<5xi32, #tpu.memory_space<smem>>) -> (i32, i32) {
    %c0_i32 = arith.constant 0 : i32
    %c0_i32_0 = arith.constant 0 : i32
    %c0_i32_1 = arith.constant 0 : i32
    return %c0_i32, %c0_i32_0 : i32, i32
  }
  func.func @transform_11(%arg0: i32, %arg1: memref<5xi32, #tpu.memory_space<smem>>) -> (i32, i32) {
    %c0_i32 = arith.constant 0 : i32
    %c0_i32_0 = arith.constant 0 : i32
    %c0_i32_1 = arith.constant 0 : i32
    return %c0_i32, %c0_i32_0 : i32, i32
  }
  func.func @transform_12(%arg0: i32, %arg1: memref<5xi32, #tpu.memory_space<smem>>) -> (i32, i32) {
    %c0_i32 = arith.constant 0 : i32
    %c0_i32_0 = arith.constant 0 : i32
    %c0_i32_1 = arith.constant 0 : i32
    return %c0_i32, %c0_i32_0 : i32, i32
  }
  func.func @transform_13(%arg0: i32, %arg1: memref<5xi32, #tpu.memory_space<smem>>) -> (i32, i32) {
    %c0_i32 = arith.constant 0 : i32
    %c0_i32_0 = arith.constant 0 : i32
    %c0_i32_1 = arith.constant 0 : i32
    return %c0_i32, %c0_i32_0 : i32, i32
  }
  func.func @transform_14(%arg0: i32, %arg1: memref<5xi32, #tpu.memory_space<smem>>) -> (i32, i32) {
    %c0_i32 = arith.constant 0 : i32
    %c0_i32_0 = arith.constant 0 : i32
    %c0_i32_1 = arith.constant 0 : i32
    return %c0_i32, %c0_i32_0 : i32, i32
  }
  func.func @transform_15(%arg0: i32, %arg1: memref<5xi32, #tpu.memory_space<smem>>) -> (i32, i32) {
    %c0_i32 = arith.constant 0 : i32
    %c0_i32_0 = arith.constant 0 : i32
    %c0_i32_1 = arith.constant 0 : i32
    return %c0_i32, %c0_i32_0 : i32, i32
  }
  func.func @transform_16(%arg0: i32, %arg1: memref<5xi32, #tpu.memory_space<smem>>) -> (i32, i32) {
    %c0_i32 = arith.constant 0 : i32
    %c0_i32_0 = arith.constant 0 : i32
    %c0_i32_1 = arith.constant 0 : i32
    return %c0_i32, %c0_i32_0 : i32, i32
  }
  func.func @transform_17(%arg0: i32, %arg1: memref<5xi32, #tpu.memory_space<smem>>) -> (i32, i32) {
    %c0_i32 = arith.constant 0 : i32
    %c0_i32_0 = arith.constant 0 : i32
    %c0_i32_1 = arith.constant 0 : i32
    return %c0_i32, %c0_i32_0 : i32, i32
  }
  func.func @transform_18(%arg0: i32, %arg1: memref<5xi32, #tpu.memory_space<smem>>) -> (i32, i32) {
    %c0_i32 = arith.constant 0 : i32
    %c0_i32_0 = arith.constant 0 : i32
    %c0_i32_1 = arith.constant 0 : i32
    return %c0_i32, %c0_i32_0 : i32, i32
  }
  func.func @transform_19(%arg0: i32, %arg1: memref<5xi32, #tpu.memory_space<smem>>) -> (i32, i32) {
    %c0_i32 = arith.constant 0 : i32
    %c0_i32_0 = arith.constant 0 : i32
    %c0_i32_1 = arith.constant 0 : i32
    return %c0_i32, %c0_i32_0 : i32, i32
  }
  func.func @transform_20(%arg0: i32, %arg1: memref<5xi32, #tpu.memory_space<smem>>) -> (i32, i32) {
    %c0_i32 = arith.constant 0 : i32
    %c0_i32_0 = arith.constant 0 : i32
    %c0_i32_1 = arith.constant 0 : i32
    return %c0_i32, %c0_i32_0 : i32, i32
  }
  func.func @transform_21(%arg0: i32, %arg1: memref<5xi32, #tpu.memory_space<smem>>) -> (i32, i32) {
    %c0_i32 = arith.constant 0 : i32
    %c0_i32_0 = arith.constant 0 : i32
    %c0_i32_1 = arith.constant 0 : i32
    return %c0_i32, %c0_i32_0 : i32, i32
  }
  func.func @transform_22(%arg0: i32, %arg1: memref<5xi32, #tpu.memory_space<smem>>) -> (i32, i32) {
    %c0_i32 = arith.constant 0 : i32
    %c0_i32_0 = arith.constant 0 : i32
    %c0_i32_1 = arith.constant 0 : i32
    return %c0_i32, %c0_i32_0 : i32, i32
  }
  func.func @transform_23(%arg0: i32, %arg1: memref<5xi32, #tpu.memory_space<smem>>) -> (i32, i32) {
    %c0_i32 = arith.constant 0 : i32
    %c0_i32_0 = arith.constant 0 : i32
    %c0_i32_1 = arith.constant 0 : i32
    return %c0_i32, %c0_i32_0 : i32, i32
  }
  func.func @transform_24(%arg0: i32, %arg1: memref<5xi32, #tpu.memory_space<smem>>) -> (i32, i32, i32) {
    %c0_i32 = arith.constant 0 : i32
    %c0_i32_0 = arith.constant 0 : i32
    %c0_i32_1 = arith.constant 0 : i32
    %c0_i32_2 = arith.constant 0 : i32
    return %c0_i32, %c0_i32_0, %c0_i32_1 : i32, i32, i32
  }
}

</mosaic_0001>

<llo_original>
// kernel: _forward.1
$region0: #{_forward.1}
  #allocation0 [shape = 'u32[]', space=smem, size = 0x4, offset = 0x4, fixed_abs, tag = 'smem constant byte address 0x4 - core index']
  #allocation1 [shape = 'u32[144,128]{1,0:T(1,128)}', space=vmem, size = 0x12000, scoped, tag = 'internal scratch']
  #allocation2 [shape = 'f32[8,256]{1,0:T(8,128)}', space=vmem, size = 0x2000, scoped, tag = 'scratch operand']
  #allocation3 [shape = 's32[1]{0}', space=sflag, size = 0x4, scoped, tag = 'scoped memory for _forward.1']
  #allocation4 [shape = 'u8[512]{0}', space=smem, size = 0x200, scoped, tag = 'prefetched SMEM operand 0']
  %s0 = inlined_call_operand.vmem [shape: s32[5], index: 0, kind: input, shape index: {}]
  %s1 = inlined_call_operand.vmem [shape: f32[64,16], index: 1, kind: input, shape index: {}]
  %s2 = inlined_call_operand.vmem [shape: f32[5,8,8], index: 2, kind: input, shape index: {}]
  %s3 = inlined_call_operand.vmem [shape: f32[16,96], index: 3, kind: input, shape index: {}]
  %s4 = inlined_call_operand.vmem [shape: f32[32,96], index: 4, kind: input, shape index: {}]
  %s5 = inlined_call_operand.vmem [shape: f32[1,96], index: 5, kind: input, shape index: {}]
  %s6 = inlined_call_operand.vmem [shape: f32[1,96], index: 6, kind: input, shape index: {}]
  %s7 = inlined_call_operand.vmem [shape: f32[32,16], index: 7, kind: input, shape index: {}]
  %s8 = inlined_call_operand.vmem [shape: f32[1,16], index: 8, kind: input, shape index: {}]
  %s9 = inlined_call_operand.vmem [shape: f32[256,128], index: 9, kind: input, shape index: {}]
  %s10 = inlined_call_operand.vmem [shape: f32[1,128], index: 10, kind: input, shape index: {}]
  %s11 = inlined_call_operand.vmem [shape: f32[16,128], index: 11, kind: input, shape index: {}]
  %s12 = inlined_call_operand.vmem [shape: f32[128,8], index: 12, kind: input, shape index: {}]
  %s13 = inlined_call_operand.vmem [shape: f32[8,256], index: 13, kind: input, shape index: {}]
  %s14 = inlined_call_operand.vmem [shape: f32[256,32], index: 14, kind: input, shape index: {}]
  %s15 = inlined_call_operand.vmem [shape: f32[8,48], index: 15, kind: input, shape index: {}]
  %s16 = inlined_call_operand.vmem [shape: f32[32,48], index: 16, kind: input, shape index: {}]
  %s17 = inlined_call_operand.vmem [shape: f32[16,48], index: 17, kind: input, shape index: {}]
  %s18 = inlined_call_operand.vmem [shape: f32[1,48], index: 18, kind: input, shape index: {}]
  %s19 = inlined_call_operand.vmem [shape: f32[1,48], index: 19, kind: input, shape index: {}]
  %s20 = inlined_call_operand.vmem [shape: f32[16,16], index: 20, kind: input, shape index: {}]
  %s21 = inlined_call_operand.vmem [shape: f32[32,16], index: 21, kind: input, shape index: {}]
  %s22 = inlined_call_operand.vmem [shape: f32[8,16], index: 22, kind: input, shape index: {}]
  %s23 = inlined_call_operand.vmem [shape: f32[1,16], index: 23, kind: input, shape index: {}]
  %s24 = inlined_call_operand.vmem [shape: f32[16,8], index: 24, kind: input, shape index: {}]
  %s25 = inlined_call_operand.vmem [shape: f32[5,8,16], index: 25, kind: output, shape index: {}]
  %s26 = sld [smem:[#allocation0]]
  $region106: #{_forward.1} parent=0
    _
  %s28 = ssub.s32 1, %s26
  %s29 = scalar_select 0, %s28, %s26
  %s30 = sshll.u32 %s0, 4
  %s31 = int_to_ptr.vmem [resolvable:$true] %s30
  %33 = dma.vmem_to_smem %s31, 16, [#allocation4], [#allocation3]
  %34 = dma.done [#allocation3], 16
  %35 = sfence
  // Predicated region
  $region2: #{_forward.1} parent=0 // pred_check
    _
  $region3: #{_forward.1} parent=0 // pred_check_branch
    %37 = sbr.rel (0) target = $region5
  $region4: #{_forward.1} parent=0 // pred_region
    _
  $region5: #{_forward.1} parent=0 // pred_fallthru
    _
  // Predicated region
  $region6: #{_forward.1} parent=0 // pred_check
    _
  $region7: #{_forward.1} parent=0 // pred_check_branch
    %39 = sbr.rel (0) target = $region9
  $region8: #{_forward.1} parent=0 // pred_region
    _
  $region9: #{_forward.1} parent=0 // pred_fallthru
    _
  // Predicated region
  $region10: #{_forward.1} parent=0 // pred_check
    _
  $region11: #{_forward.1} parent=0 // pred_check_branch
    %41 = sbr.rel (0) target = $region13
  $region12: #{_forward.1} parent=0 // pred_region
    _
  $region13: #{_forward.1} parent=0 // pred_fallthru
    _
  // Predicated region
  $region14: #{_forward.1} parent=0 // pred_check
    _
  $region15: #{_forward.1} parent=0 // pred_check_branch
    %43 = sbr.rel (0) target = $region17
  $region16: #{_forward.1} parent=0 // pred_region
    _
  $region17: #{_forward.1} parent=0 // pred_fallthru
    _
  // Predicated region
  $region18: #{_forward.1} parent=0 // pred_check
    _
  $region19: #{_forward.1} parent=0 // pred_check_branch
    %45 = sbr.rel (0) target = $region21
  $region20: #{_forward.1} parent=0 // pred_region
    _
  $region21: #{_forward.1} parent=0 // pred_fallthru
    _
  // Predicated region
  $region22: #{_forward.1} parent=0 // pred_check
    _
  $region23: #{_forward.1} parent=0 // pred_check_branch
    %47 = sbr.rel (0) target = $region25
  $region24: #{_forward.1} parent=0 // pred_region
    _
  $region25: #{_forward.1} parent=0 // pred_fallthru
    _
  // Predicated region
  $region26: #{_forward.1} parent=0 // pred_check
    _
  $region27: #{_forward.1} parent=0 // pred_check_branch
    %49 = sbr.rel (0) target = $region29
  $region28: #{_forward.1} parent=0 // pred_region
    _
  $region29: #{_forward.1} parent=0 // pred_fallthru
    _
  // Predicated region
  $region30: #{_forward.1} parent=0 // pred_check
    _
  $region31: #{_forward.1} parent=0 // pred_check_branch
    %51 = sbr.rel (0) target = $region33
  $region32: #{_forward.1} parent=0 // pred_region
    _
  $region33: #{_forward.1} parent=0 // pred_fallthru
    _
  // Predicated region
  $region34: #{_forward.1} parent=0 // pred_check
    _
  $region35: #{_forward.1} parent=0 // pred_check_branch
    %53 = sbr.rel (0) target = $region37
  $region36: #{_forward.1} parent=0 // pred_region
    _
  $region37: #{_forward.1} parent=0 // pred_fallthru
    _
  // Predicated region
  $region38: #{_forward.1} parent=0 // pred_check
    _
  $region39: #{_forward.1} parent=0 // pred_check_branch
    %55 = sbr.rel (0) target = $region41
  $region40: #{_forward.1} parent=0 // pred_region
    _
  $region41: #{_forward.1} parent=0 // pred_fallthru
    _
  // Predicated region
  $region42: #{_forward.1} parent=0 // pred_check
    _
  $region43: #{_forward.1} parent=0 // pred_check_branch
    %57 = sbr.rel (0) target = $region45
  $region44: #{_forward.1} parent=0 // pred_region
    _
  $region45: #{_forward.1} parent=0 // pred_fallthru
    _
  // Predicated region
  $region46: #{_forward.1} parent=0 // pred_check
    _
  $region47: #{_forward.1} parent=0 // pred_check_branch
    %59 = sbr.rel (0) target = $region49
  $region48: #{_forward.1} parent=0 // pred_region
    _
  $region49: #{_forward.1} parent=0 // pred_fallthru
    _
  // Predicated region
  $region50: #{_forward.1} parent=0 // pred_check
    _
  $region51: #{_forward.1} parent=0 // pred_check_branch
    %61 = sbr.rel (0) target = $region53
  $region52: #{_forward.1} parent=0 // pred_region
    _
  $region53: #{_forward.1} parent=0 // pred_fallthru
    _
  // Predicated region
  $region54: #{_forward.1} parent=0 // pred_check
    _
  $region55: #{_forward.1} parent=0 // pred_check_branch
    %63 = sbr.rel (0) target = $region57
  $region56: #{_forward.1} parent=0 // pred_region
    _
  $region57: #{_forward.1} parent=0 // pred_fallthru
    _
  // Predicated region
  $region58: #{_forward.1} parent=0 // pred_check
    _
  $region59: #{_forward.1} parent=0 // pred_check_branch
    %65 = sbr.rel (0) target = $region61
  $region60: #{_forward.1} parent=0 // pred_region
    _
  $region61: #{_forward.1} parent=0 // pred_fallthru
    _
  // Predicated region
  $region62: #{_forward.1} parent=0 // pred_check
    _
  $region63: #{_forward.1} parent=0 // pred_check_branch
    %67 = sbr.rel (0) target = $region65
  $region64: #{_forward.1} parent=0 // pred_region
    _
  $region65: #{_forward.1} parent=0 // pred_fallthru
    _
  // Predicated region
  $region66: #{_forward.1} parent=0 // pred_check
    _
  $region67: #{_forward.1} parent=0 // pred_check_branch
    %69 = sbr.rel (0) target = $region69
  $region68: #{_forward.1} parent=0 // pred_region
    _
  $region69: #{_forward.1} parent=0 // pred_fallthru
    _
  // Predicated region
  $region70: #{_forward.1} parent=0 // pred_check
    _
  $region71: #{_forward.1} parent=0 // pred_check_branch
    %71 = sbr.rel (0) target = $region73
  $region72: #{_forward.1} parent=0 // pred_region
    _
  $region73: #{_forward.1} parent=0 // pred_fallthru
    _
  // Predicated region
  $region74: #{_forward.1} parent=0 // pred_check
    _
  $region75: #{_forward.1} parent=0 // pred_check_branch
    %73 = sbr.rel (0) target = $region77
  $region76: #{_forward.1} parent=0 // pred_region
    _
  $region77: #{_forward.1} parent=0 // pred_fallthru
    _
  // Predicated region
  $region78: #{_forward.1} parent=0 // pred_check
    _
  $region79: #{_forward.1} parent=0 // pred_check_branch
    %75 = sbr.rel (0) target = $region81
  $region80: #{_forward.1} parent=0 // pred_region
    _
  $region81: #{_forward.1} parent=0 // pred_fallthru
    _
  // Predicated region
  $region82: #{_forward.1} parent=0 // pred_check
    _
  $region83: #{_forward.1} parent=0 // pred_check_branch
    %77 = sbr.rel (0) target = $region85
  $region84: #{_forward.1} parent=0 // pred_region
    _
  $region85: #{_forward.1} parent=0 // pred_fallthru
    _
  // Predicated region
  $region86: #{_forward.1} parent=0 // pred_check
    _
  $region87: #{_forward.1} parent=0 // pred_check_branch
    %79 = sbr.rel (0) target = $region89
  $region88: #{_forward.1} parent=0 // pred_region
    _
  $region89: #{_forward.1} parent=0 // pred_fallthru
    _
  // Predicated region
  $region90: #{_forward.1} parent=0 // pred_check
    _
  $region91: #{_forward.1} parent=0 // pred_check_branch
    %81 = sbr.rel (0) target = $region93
  $region92: #{_forward.1} parent=0 // pred_region
    _
  $region93: #{_forward.1} parent=0 // pred_fallthru
    _
  // Predicated region
  $region94: #{_forward.1} parent=0 // pred_check
    _
  $region95: #{_forward.1} parent=0 // pred_check_branch
    %83 = sbr.rel (0) target = $region97
  $region96: #{_forward.1} parent=0 // pred_region
    _
  $region97: #{_forward.1} parent=0 // pred_fallthru
    _
  %v84 = vld [vmem:[%s1] sm:$0xff]
  %v85 = vld [vmem:[%s1 + $0x8] sm:$0xff]
  %v86 = vld [vmem:[%s1 + $0x10] sm:$0xff]
  %v87 = vld [vmem:[%s1 + $0x18] sm:$0xff]
  %v88 = vld [vmem:[%s1 + $0x20] sm:$0xff]
  %v89 = vld [vmem:[%s1 + $0x28] sm:$0xff]
  %v90 = vld [vmem:[%s1 + $0x30] sm:$0xff]
  %v91 = vld [vmem:[%s1 + $0x38] sm:$0xff]
  %v92 = vld [vmem:[%s3] sm:$0xff]
  %v93 = vld [vmem:[%s3 + $0x8] sm:$0xff]
  %v94 = vld [vmem:[%s5] sm:$0x1]
  %v96 = vlaneseq
  %v97 = vshrl.u32 %v96, 7
  %v98 = vsub.s32 0, %v97
  %v99 = vrot.slane %v94, %v98
  %vm101 = vcmask 130048
  %v103 = vsel %vm101, %v84, 0
  %v106 = vsel %vm101, %v85, 0
  %v109 = vsel %vm101, %v86, 0
  %v112 = vsel %vm101, %v87, 0
  %v115 = vsel %vm101, %v88, 0
  %v118 = vsel %vm101, %v89, 0
  %v121 = vsel %vm101, %v90, 0
  %v124 = vsel %vm101, %v91, 0
  %126 = vmatprep.subr.mxu0 0.0
  %127 = vmatpush1.msra.mxu0 %v92
  %128 = vmatprep.subr.mxu0 0.0
  %129 = vmatpush1.msra.mxu0 %v93
  %130 = vmatprep.subr.mxu0 0.0
  %131 = vmatpush1.msra.mxu0 0.0
  %132 = vmatprep.subr.mxu0 0.0
  %133 = vmatpush1.msra.mxu0 0.0
  %134 = vmatprep.subr.mxu0 0.0
  %135 = vmatpush1.msra.mxu0 0.0
  %136 = vmatprep.subr.mxu0 0.0
  %137 = vmatpush1.msra.mxu0 0.0
  %138 = vmatprep.subr.mxu0 0.0
  %139 = vmatpush1.msra.mxu0 0.0
  %140 = vmatprep.subr.mxu0 0.0
  %141 = vmatpush1.msra.mxu0 0.0
  %142 = vmatprep.subr.mxu0 0.0
  %143 = vmatpush1.msra.mxu0 0.0
  %144 = vmatprep.subr.mxu0 0.0
  %145 = vmatpush1.msra.mxu0 0.0
  %146 = vmatprep.subr.mxu0 0.0
  %147 = vmatpush1.msra.mxu0 0.0
  %148 = vmatprep.subr.mxu0 0.0
  %149 = vmatpush1.msra.mxu0 0.0
  %150 = vmatprep.subr.mxu0 0.0
  %151 = vmatpush1.msra.mxu0 0.0
  %152 = vmatprep.subr.mxu0 0.0
  %153 = vmatpush1.msra.mxu0 0.0
  %154 = vmatprep.subr.mxu0 0.0
  %155 = vmatpush1.msra.mxu0 0.0
  %156 = vmatprep.subr.mxu0 0.0
  %157 = vmatpush1.msra.mxu0 0.0
  %158 = vmatprep.subr.mxu0 0.0
  %159 = vmatpush1.msra.mxu0 0.0
  %160 = vmatprep.subr.mxu0 0.0
  %161 = vmatpush1.msra.mxu0 0.0
  %162 = vmatprep.subr.mxu0 0.0
  %163 = vmatpush1.msra.mxu0 0.0
  %164 = vmatprep.subr.mxu0 0.0
  %165 = vmatpush1.msra.mxu0 0.0
  %166 = vmatprep.subr.mxu0 0.0
  %167 = vmatpush1.msra.mxu0 0.0
  %168 = vmatprep.subr.mxu0 0.0
  %169 = vmatpush1.msra.mxu0 0.0
  %170 = vmatprep.subr.mxu0 0.0
  %171 = vmatpush1.msra.mxu0 0.0
  %172 = vmatprep.subr.mxu0 0.0
  %173 = vmatpush1.msra.mxu0 0.0
  %174 = vmatprep.subr.mxu0 0.0
  %175 = vmatpush1.msra.mxu0 0.0
  %176 = vmatprep.subr.mxu0 0.0
  %177 = vmatpush1.msra.mxu0 0.0
  %178 = vmatprep.subr.mxu0 0.0
  %179 = vmatpush1.msra.mxu0 0.0
  %180 = vmatprep.subr.mxu0 0.0
  %181 = vmatpush1.msra.mxu0 0.0
  %182 = vmatprep.subr.mxu0 0.0
  %183 = vmatpush1.msra.mxu0 0.0
  %184 = vmatprep.subr.mxu0 0.0
  %185 = vmatpush1.msra.mxu0 0.0
  %186 = vmatprep.subr.mxu0 0.0
  %187 = vmatpush1.msra.mxu0 0.0
  %188 = vmatprep.subr.mxu0 0.0
  %189 = vmatpush1.msra.mxu0 0.0
  %190 = vmatprep.mubr.f32.mxu0 0.0
  %191 = vmatmul.mubr.f32.gmra.mrb[0].mxu0 %v103
  %v192 = vpop.f32.mrb[0].mxu0
  %v193 = vadd.f32 %v99, %v192
  %v194 = vpop.f32.mrb[0].mxu0
  %195 = vmatprep.mubr.f32.mxu0 0.0
  %196 = vmatmul.mubr.f32.gmra.mrb[0].mxu0 %v106
  %v197 = vpop.f32.mrb[0].mxu0
  %v198 = vadd.f32 %v99, %v197
  %v199 = vpop.f32.mrb[0].mxu0
  %200 = vmatprep.mubr.f32.mxu0 0.0
  %201 = vmatmul.mubr.f32.gmra.mrb[0].mxu0 %v109
  %v202 = vpop.f32.mrb[0].mxu0
  %v203 = vadd.f32 %v99, %v202
  %v204 = vpop.f32.mrb[0].mxu0
  %205 = vmatprep.mubr.f32.mxu0 0.0
  %206 = vmatmul.mubr.f32.gmra.mrb[0].mxu0 %v112
  %v207 = vpop.f32.mrb[0].mxu0
  %v208 = vadd.f32 %v99, %v207
  %v209 = vpop.f32.mrb[0].mxu0
  %210 = vmatprep.mubr.f32.mxu0 0.0
  %211 = vmatmul.mubr.f32.gmra.mrb[0].mxu0 %v115
  %v212 = vpop.f32.mrb[0].mxu0
  %v213 = vadd.f32 %v99, %v212
  %v214 = vpop.f32.mrb[0].mxu0
  %215 = vmatprep.mubr.f32.mxu0 0.0
  %216 = vmatmul.mubr.f32.gmra.mrb[0].mxu0 %v118
  %v217 = vpop.f32.mrb[0].mxu0
  %v218 = vadd.f32 %v99, %v217
  %v219 = vpop.f32.mrb[0].mxu0
  %220 = vmatprep.mubr.f32.mxu0 0.0
  %221 = vmatmul.mubr.f32.gmra.mrb[0].mxu0 %v121
  %v222 = vpop.f32.mrb[0].mxu0
  %v223 = vadd.f32 %v99, %v222
  %v224 = vpop.f32.mrb[0].mxu0
  %225 = vmatprep.mubr.f32.mxu0 0.0
  %226 = vmatmul.mubr.f32.gmra.mrb[0].mxu0 %v124
  %v227 = vpop.f32.mrb[0].mxu0
  %v228 = vadd.f32 %v99, %v227
  %v229 = vpop.f32.mrb[0].mxu0
  %230 = vdwg.mxu0
  %v231 = vld [vmem:[%s4] sm:$0xff]
  %v232 = vld [vmem:[%s4 + $0x8] sm:$0xff]
  %v233 = vld [vmem:[%s4 + $0x10] sm:$0xff]
  %v234 = vld [vmem:[%s4 + $0x18] sm:$0xff]
  %v235 = vld [vmem:[%s6] sm:$0x1]
  %v237 = vlaneseq
  %v238 = vshrl.u32 %v237, 7
  %v239 = vsub.s32 0, %v238
  %v240 = vrot.slane %v235, %v239
  %vm242 = vcmask 261120
  %v244 = vsel %vm242, 0.0, 0
  %246 = vmatprep.subr.mxu0 0.0
  %247 = vmatpush1.msra.mxu0 %v231
  %248 = vmatprep.subr.mxu0 0.0
  %249 = vmatpush1.msra.mxu0 %v232
  %250 = vmatprep.subr.mxu0 0.0
  %251 = vmatpush1.msra.mxu0 %v233
  %252 = vmatprep.subr.mxu0 0.0
  %253 = vmatpush1.msra.mxu0 %v234
  %254 = vmatprep.subr.mxu0 0.0
  %255 = vmatpush1.msra.mxu0 0.0
  %256 = vmatprep.subr.mxu0 0.0
  %257 = vmatpush1.msra.mxu0 0.0
  %258 = vmatprep.subr.mxu0 0.0
  %259 = vmatpush1.msra.mxu0 0.0
  %260 = vmatprep.subr.mxu0 0.0
  %261 = vmatpush1.msra.mxu0 0.0
  %262 = vmatprep.subr.mxu0 0.0
  %263 = vmatpush1.msra.mxu0 0.0
  %264 = vmatprep.subr.mxu0 0.0
  %265 = vmatpush1.msra.mxu0 0.0
  %266 = vmatprep.subr.mxu0 0.0
  %267 = vmatpush1.msra.mxu0 0.0
  %268 = vmatprep.subr.mxu0 0.0
  %269 = vmatpush1.msra.mxu0 0.0
  %270 = vmatprep.subr.mxu0 0.0
  %271 = vmatpush1.msra.mxu0 0.0
  %272 = vmatprep.subr.mxu0 0.0
  %273 = vmatpush1.msra.mxu0 0.0
  %274 = vmatprep.subr.mxu0 0.0
  %275 = vmatpush1.msra.mxu0 0.0
  %276 = vmatprep.subr.mxu0 0.0
  %277 = vmatpush1.msra.mxu0 0.0
  %278 = vmatprep.subr.mxu0 0.0
  %279 = vmatpush1.msra.mxu0 0.0
  %280 = vmatprep.subr.mxu0 0.0
  %281 = vmatpush1.msra.mxu0 0.0
  %282 = vmatprep.subr.mxu0 0.0
  %283 = vmatpush1.msra.mxu0 0.0
  %284 = vmatprep.subr.mxu0 0.0
  %285 = vmatpush1.msra.mxu0 0.0
  %286 = vmatprep.subr.mxu0 0.0
  %287 = vmatpush1.msra.mxu0 0.0
  %288 = vmatprep.subr.mxu0 0.0
  %289 = vmatpush1.msra.mxu0 0.0
  %290 = vmatprep.subr.mxu0 0.0
  %291 = vmatpush1.msra.mxu0 0.0
  %292 = vmatprep.subr.mxu0 0.0
  %293 = vmatpush1.msra.mxu0 0.0
  %294 = vmatprep.subr.mxu0 0.0
  %295 = vmatpush1.msra.mxu0 0.0
  %296 = vmatprep.subr.mxu0 0.0
  %297 = vmatpush1.msra.mxu0 0.0
  %298 = vmatprep.subr.mxu0 0.0
  %299 = vmatpush1.msra.mxu0 0.0
  %300 = vmatprep.subr.mxu0 0.0
  %301 = vmatpush1.msra.mxu0 0.0
  %302 = vmatprep.subr.mxu0 0.0
  %303 = vmatpush1.msra.mxu0 0.0
  %304 = vmatprep.subr.mxu0 0.0
  %305 = vmatpush1.msra.mxu0 0.0
  %306 = vmatprep.subr.mxu0 0.0
  %307 = vmatpush1.msra.mxu0 0.0
  %308 = vmatprep.subr.mxu0 0.0
  %309 = vmatpush1.msra.mxu0 0.0
  %310 = vmatprep.mubr.f32.mxu0 0.0
  %311 = vmatmul.mubr.f32.gmra.mrb[0].mxu0 %v244
  %v312 = vpop.f32.mrb[0].mxu0
  %v313 = vadd.f32 %v240, %v312
  %v314 = vpop.f32.mrb[0].mxu0
  %315 = vdwg.mxu0
  %v316 = vadd.f32 %v193, %v313
  %v317 = vxor.u32 %v316, 2147483648
  %v318 = vmul.f32 %v317, 1.442695
  %v319 = vpow.pop %v318
  %v320 = vadd.f32 %v319, 1.0
  %v321 = vrcp.pop %v320
  %v322 = vmul.f32 1.0, %v321
  %324 = vrot.lane.b32.xlu0 %v313, 64
  %v325 = vpop.permute.xlu0 %324
  %v327 = vmul.f32 %v322, %v325
  %329 = vrot.lane.b32.xlu0 %v327, 64
  %v330 = vpop.permute.xlu0 %329
  %v332 = vadd.f32 %v193, %v330
  %v333 = vtanh.pop %v332
  %v334 = vsub.f32 1.0, %v322
  %336 = vrot.lane.b32.xlu0 %v333, 96
  %v337 = vpop.permute.xlu0 %336
  %v339 = vmul.f32 %v334, %v337
  %v340 = vmul.f32 %v322, 0.0
  %v341 = vadd.f32 %v339, %v340
  %343 = vrot.lane.b32.xlu0 %v341, 96
  %v344 = vpop.permute.xlu0 %343
  %346 = vst.msk [vmem:[#allocation2] sm:$0xff] %vm101, %v344
  %347 = vrot.lane.b32.xlu0 %v341, 64
  %v348 = vpop.permute.xlu0 %347
  %vm350 = vcmask 1048448
  %351 = vst.msk [vmem:[#allocation2 + $0x8] sm:$0xff] %vm350, %v348
  %v352 = vsel %vm242, %v344, 0
  %354 = vmatprep.subr.mxu0 0.0
  %355 = vmatpush1.msra.mxu0 %v231
  %356 = vmatprep.subr.mxu0 0.0
  %357 = vmatpush1.msra.mxu0 %v232
  %358 = vmatprep.subr.mxu0 0.0
  %359 = vmatpush1.msra.mxu0 %v233
  %360 = vmatprep.subr.mxu0 0.0
  %361 = vmatpush1.msra.mxu0 %v234
  %362 = vmatprep.subr.mxu0 0.0
  %363 = vmatpush1.msra.mxu0 0.0
  %364 = vmatprep.subr.mxu0 0.0
  %365 = vmatpush1.msra.mxu0 0.0
  %366 = vmatprep.subr.mxu0 0.0
  %367 = vmatpush1.msra.mxu0 0.0
  %368 = vmatprep.subr.mxu0 0.0
  %369 = vmatpush1.msra.mxu0 0.0
  %370 = vmatprep.subr.mxu0 0.0
  %371 = vmatpush1.msra.mxu0 0.0
  %372 = vmatprep.subr.mxu0 0.0
  %373 = vmatpush1.msra.mxu0 0.0
  %374 = vmatprep.subr.mxu0 0.0
  %375 = vmatpush1.msra.mxu0 0.0
  %376 = vmatprep.subr.mxu0 0.0
  %377 = vmatpush1.msra.mxu0 0.0
  %378 = vmatprep.subr.mxu0 0.0
  %379 = vmatpush1.msra.mxu0 0.0
  %380 = vmatprep.subr.mxu0 0.0
  %381 = vmatpush1.msra.mxu0 0.0
  %382 = vmatprep.subr.mxu0 0.0
  %383 = vmatpush1.msra.mxu0 0.0
  %384 = vmatprep.subr.mxu0 0.0
  %385 = vmatpush1.msra.mxu0 0.0
  %386 = vmatprep.subr.mxu0 0.0
  %387 = vmatpush1.msra.mxu0 0.0
  %388 = vmatprep.subr.mxu0 0.0
  %389 = vmatpush1.msra.mxu0 0.0
  %390 = vmatprep.subr.mxu0 0.0
  %391 = vmatpush1.msra.mxu0 0.0
  %392 = vmatprep.subr.mxu0 0.0
  %393 = vmatpush1.msra.mxu0 0.0
  %394 = vmatprep.subr.mxu0 0.0
  %395 = vmatpush1.msra.mxu0 0.0
  %396 = vmatprep.subr.mxu0 0.0
  %397 = vmatpush1.msra.mxu0 0.0
  %398 = vmatprep.subr.mxu0 0.0
  %399 = vmatpush1.msra.mxu0 0.0
  %400 = vmatprep.subr.mxu0 0.0
  %401 = vmatpush1.msra.mxu0 0.0
  %402 = vmatprep.subr.mxu0 0.0
  %403 = vmatpush1.msra.mxu0 0.0
  %404 = vmatprep.subr.mxu0 0.0
  %405 = vmatpush1.msra.mxu0 0.0
  %406 = vmatprep.subr.mxu0 0.0
  %407 = vmatpush1.msra.mxu0 0.0
  %408 = vmatprep.subr.mxu0 0.0
  %409 = vmatpush1.msra.mxu0 0.0
  %410 = vmatprep.subr.mxu0 0.0
  %411 = vmatpush1.msra.mxu0 0.0
  %412 = vmatprep.subr.mxu0 0.0
  %413 = vmatpush1.msra.mxu0 0.0
  %414 = vmatprep.subr.mxu0 0.0
  %415 = vmatpush1.msra.mxu0 0.0
  %416 = vmatprep.subr.mxu0 0.0
  %417 = vmatpush1.msra.mxu0 0.0
  %418 = vmatprep.mubr.f32.mxu0 0.0
  %419 = vmatmul.mubr.f32.gmra.mrb[0].mxu0 %v352
  %v420 = vpop.f32.mrb[0].mxu0
  %v421 = vadd.f32 %v240, %v420
  %v422 = vpop.f32.mrb[0].mxu0
  %423 = vdwg.mxu0
  %v424 = vadd.f32 %v198, %v421
  %v425 = vxor.u32 %v424, 2147483648
  %v426 = vmul.f32 %v425, 1.442695
  %v427 = vpow.pop %v426
  %v428 = vadd.f32 %v427, 1.0
  %v429 = vrcp.pop %v428
  %v430 = vmul.f32 1.0, %v429
  %432 = vrot.lane.b32.xlu0 %v421, 64
  %v433 = vpop.permute.xlu0 %432
  %v435 = vmul.f32 %v430, %v433
  %437 = vrot.lane.b32.xlu0 %v435, 64
  %v438 = vpop.permute.xlu0 %437
  %v440 = vadd.f32 %v198, %v438
  %v441 = vtanh.pop %v440
  %v442 = vsub.f32 1.0, %v430
  %444 = vrot.lane.b32.xlu0 %v441, 96
  %v445 = vpop.permute.xlu0 %444
  %v447 = vmul.f32 %v442, %v445
  %v448 = vmul.f32 %v430, %v341
  %v449 = vadd.f32 %v447, %v448
  %vm450 = vcmask 392448
  %451 = vst.msk [vmem:[#allocation2] sm:$0xff] %vm450, %v449
  %453 = vrot.lane.b32.xlu0 %v449, 32
  %v454 = vpop.permute.xlu0 %453
  %vm456 = vcmask 786048
  %457 = vst.msk [vmem:[#allocation2 + $0x8] sm:$0xff] %vm456, %v454
  %458 = vrot.lane.b32.xlu0 %v449, 96
  %v459 = vpop.permute.xlu0 %458
  %v460 = vsel %vm242, %v459, 0
  %462 = vmatprep.subr.mxu0 0.0
  %463 = vmatpush1.msra.mxu0 %v231
  %464 = vmatprep.subr.mxu0 0.0
  %465 = vmatpush1.msra.mxu0 %v232
  %466 = vmatprep.subr.mxu0 0.0
  %467 = vmatpush1.msra.mxu0 %v233
  %468 = vmatprep.subr.mxu0 0.0
  %469 = vmatpush1.msra.mxu0 %v234
  %470 = vmatprep.subr.mxu0 0.0
  %471 = vmatpush1.msra.mxu0 0.0
  %472 = vmatprep.subr.mxu0 0.0
  %473 = vmatpush1.msra.mxu0 0.0
  %474 = vmatprep.subr.mxu0 0.0
  %475 = vmatpush1.msra.mxu0 0.0
  %476 = vmatprep.subr.mxu0 0.0
  %477 = vmatpush1.msra.mxu0 0.0
  %478 = vmatprep.subr.mxu0 0.0
  %479 = vmatpush1.msra.mxu0 0.0
  %480 = vmatprep.subr.mxu0 0.0
  %481 = vmatpush1.msra.mxu0 0.0
  %482 = vmatprep.subr.mxu0 0.0
  %483 = vmatpush1.msra.mxu0 0.0
  %484 = vmatprep.subr.mxu0 0.0
  %485 = vmatpush1.msra.mxu0 0.0
  %486 = vmatprep.subr.mxu0 0.0
  %487 = vmatpush1.msra.mxu0 0.0
  %488 = vmatprep.subr.mxu0 0.0
  %489 = vmatpush1.msra.mxu0 0.0
  %490 = vmatprep.subr.mxu0 0.0
  %491 = vmatpush1.msra.mxu0 0.0
  %492 = vmatprep.subr.mxu0 0.0
  %493 = vmatpush1.msra.mxu0 0.0
  %494 = vmatprep.subr.mxu0 0.0
  %495 = vmatpush1.msra.mxu0 0.0
  %496 = vmatprep.subr.mxu0 0.0
  %497 = vmatpush1.msra.mxu0 0.0
  %498 = vmatprep.subr.mxu0 0.0
  %499 = vmatpush1.msra.mxu0 0.0
  %500 = vmatprep.subr.mxu0 0.0
  %501 = vmatpush1.msra.mxu0 0.0
  %502 = vmatprep.subr.mxu0 0.0
  %503 = vmatpush1.msra.mxu0 0.0
  %504 = vmatprep.subr.mxu0 0.0
  %505 = vmatpush1.msra.mxu0 0.0
  %506 = vmatprep.subr.mxu0 0.0
  %507 = vmatpush1.msra.mxu0 0.0
  %508 = vmatprep.subr.mxu0 0.0
  %509 = vmatpush1.msra.mxu0 0.0
  %510 = vmatprep.subr.mxu0 0.0
  %511 = vmatpush1.msra.mxu0 0.0
  %512 = vmatprep.subr.mxu0 0.0
  %513 = vmatpush1.msra.mxu0 0.0
  %514 = vmatprep.subr.mxu0 0.0
  %515 = vmatpush1.msra.mxu0 0.0
  %516 = vmatprep.subr.mxu0 0.0
  %517 = vmatpush1.msra.mxu0 0.0
  %518 = vmatprep.subr.mxu0 0.0
  %519 = vmatpush1.msra.mxu0 0.0
  %520 = vmatprep.subr.mxu0 0.0
  %521 = vmatpush1.msra.mxu0 0.0
  %522 = vmatprep.subr.mxu0 0.0
  %523 = vmatpush1.msra.mxu0 0.0
  %524 = vmatprep.subr.mxu0 0.0
  %525 = vmatpush1.msra.mxu0 0.0
  %526 = vmatprep.mubr.f32.mxu0 0.0
  %527 = vmatmul.mubr.f32.gmra.mrb[0].mxu0 %v460
  %v528 = vpop.f32.mrb[0].mxu0
  %v529 = vadd.f32 %v240, %v528
  %v530 = vpop.f32.mrb[0].mxu0
  %531 = vdwg.mxu0
  %v532 = vadd.f32 %v203, %v529
  %v533 = vxor.u32 %v532, 2147483648
  %v534 = vmul.f32 %v533, 1.442695
  %v535 = vpow.pop %v534
  %v536 = vadd.f32 %v535, 1.0
  %v537 = vrcp.pop %v536
  %v538 = vmul.f32 1.0, %v537
  %540 = vrot.lane.b32.xlu0 %v529, 64
  %v541 = vpop.permute.xlu0 %540
  %v543 = vmul.f32 %v538, %v541
  %545 = vrot.lane.b32.xlu0 %v543, 64
  %v546 = vpop.permute.xlu0 %545
  %v548 = vadd.f32 %v203, %v546
  %v549 = vtanh.pop %v548
  %v550 = vsub.f32 1.0, %v538
  %552 = vrot.lane.b32.xlu0 %v549, 96
  %v553 = vpop.permute.xlu0 %552
  %v555 = vmul.f32 %v550, %v553
  %v556 = vmul.f32 %v538, %v449
  %v557 = vadd.f32 %v555, %v556
  %559 = vrot.lane.b32.xlu0 %v557, 32
  %v560 = vpop.permute.xlu0 %559
  %vm562 = vcmask 654848
  %563 = vst.msk [vmem:[#allocation2] sm:$0xff] %vm562, %v560
  %vm564 = vcmask 523648
  %565 = vst.msk [vmem:[#allocation2 + $0x8] sm:$0xff] %vm564, %v557
  %566 = vrot.lane.b32.xlu0 %v557, 96
  %v567 = vpop.permute.xlu0 %566
  %v568 = vsel %vm242, %v567, 0
  %570 = vmatprep.subr.mxu0 0.0
  %571 = vmatpush1.msra.mxu0 %v231
  %572 = vmatprep.subr.mxu0 0.0
  %573 = vmatpush1.msra.mxu0 %v232
  %574 = vmatprep.subr.mxu0 0.0
  %575 = vmatpush1.msra.mxu0 %v233
  %576 = vmatprep.subr.mxu0 0.0
  %577 = vmatpush1.msra.mxu0 %v234
  %578 = vmatprep.subr.mxu0 0.0
  %579 = vmatpush1.msra.mxu0 0.0
  %580 = vmatprep.subr.mxu0 0.0
  %581 = vmatpush1.msra.mxu0 0.0
  %582 = vmatprep.subr.mxu0 0.0
  %583 = vmatpush1.msra.mxu0 0.0
  %584 = vmatprep.subr.mxu0 0.0
  %585 = vmatpush1.msra.mxu0 0.0
  %586 = vmatprep.subr.mxu0 0.0
  %587 = vmatpush1.msra.mxu0 0.0
  %588 = vmatprep.subr.mxu0 0.0
  %589 = vmatpush1.msra.mxu0 0.0
  %590 = vmatprep.subr.mxu0 0.0
  %591 = vmatpush1.msra.mxu0 0.0
  %592 = vmatprep.subr.mxu0 0.0
  %593 = vmatpush1.msra.mxu0 0.0
  %594 = vmatprep.subr.mxu0 0.0
  %595 = vmatpush1.msra.mxu0 0.0
  %596 = vmatprep.subr.mxu0 0.0
  %597 = vmatpush1.msra.mxu0 0.0
  %598 = vmatprep.subr.mxu0 0.0
  %599 = vmatpush1.msra.mxu0 0.0
  %600 = vmatprep.subr.mxu0 0.0
  %601 = vmatpush1.msra.mxu0 0.0
  %602 = vmatprep.subr.mxu0 0.0
  %603 = vmatpush1.msra.mxu0 0.0
  %604 = vmatprep.subr.mxu0 0.0
  %605 = vmatpush1.msra.mxu0 0.0
  %606 = vmatprep.subr.mxu0 0.0
  %607 = vmatpush1.msra.mxu0 0.0
  %608 = vmatprep.subr.mxu0 0.0
  %609 = vmatpush1.msra.mxu0 0.0
  %610 = vmatprep.subr.mxu0 0.0
  %611 = vmatpush1.msra.mxu0 0.0
  %612 = vmatprep.subr.mxu0 0.0
  %613 = vmatpush1.msra.mxu0 0.0
  %614 = vmatprep.subr.mxu0 0.0
  %615 = vmatpush1.msra.mxu0 0.0
  %616 = vmatprep.subr.mxu0 0.0
  %617 = vmatpush1.msra.mxu0 0.0
  %618 = vmatprep.subr.mxu0 0.0
  %619 = vmatpush1.msra.mxu0 0.0
  %620 = vmatprep.subr.mxu0 0.0
  %621 = vmatpush1.msra.mxu0 0.0
  %622 = vmatprep.subr.mxu0 0.0
  %623 = vmatpush1.msra.mxu0 0.0
  %624 = vmatprep.subr.mxu0 0.0
  %625 = vmatpush1.msra.mxu0 0.0
  %626 = vmatprep.subr.mxu0 0.0
  %627 = vmatpush1.msra.mxu0 0.0
  %628 = vmatprep.subr.mxu0 0.0
  %629 = vmatpush1.msra.mxu0 0.0
  %630 = vmatprep.subr.mxu0 0.0
  %631 = vmatpush1.msra.mxu0 0.0
  %632 = vmatprep.subr.mxu0 0.0
  %633 = vmatpush1.msra.mxu0 0.0
  %634 = vmatprep.mubr.f32.mxu0 0.0
  %635 = vmatmul.mubr.f32.gmra.mrb[0].mxu0 %v568
  %v636 = vpop.f32.mrb[0].mxu0
  %v637 = vadd.f32 %v240, %v636
  %v638 = vpop.f32.mrb[0].mxu0
  %639 = vdwg.mxu0
  %v640 = vadd.f32 %v208, %v637
  %v641 = vxor.u32 %v640, 2147483648
  %v642 = vmul.f32 %v641, 1.442695
  %v643 = vpow.pop %v642
  %v644 = vadd.f32 %v643, 1.0
  %v645 = vrcp.pop %v644
  %v646 = vmul.f32 1.0, %v645
  %648 = vrot.lane.b32.xlu0 %v637, 64
  %v649 = vpop.permute.xlu0 %648
  %v651 = vmul.f32 %v646, %v649
  %653 = vrot.lane.b32.xlu0 %v651, 64
  %v654 = vpop.permute.xlu0 %653
  %v656 = vadd.f32 %v208, %v654
  %v657 = vtanh.pop %v656
  %v658 = vsub.f32 1.0, %v646
  %660 = vrot.lane.b32.xlu0 %v657, 96
  %v661 = vpop.permute.xlu0 %660
  %v663 = vmul.f32 %v658, %v661
  %v664 = vmul.f32 %v646, %v557
  %v665 = vadd.f32 %v663, %v664
  %667 = vrot.lane.b32.xlu0 %v665, 64
  %v668 = vpop.permute.xlu0 %667
  %vm670 = vcmask 917248
  %671 = vst.msk [vmem:[#allocation2] sm:$0xff] %vm670, %v668
  %672 = vrot.lane.b32.xlu0 %v665, 96
  %v673 = vpop.permute.xlu0 %672
  %vm675 = vcmask 261248
  %676 = vst.msk [vmem:[#allocation2 + $0x8] sm:$0xff] %vm675, %v673
  %v677 = vsel %vm242, %v673, 0
  %679 = vmatprep.subr.mxu0 0.0
  %680 = vmatpush1.msra.mxu0 %v231
  %681 = vmatprep.subr.mxu0 0.0
  %682 = vmatpush1.msra.mxu0 %v232
  %683 = vmatprep.subr.mxu0 0.0
  %684 = vmatpush1.msra.mxu0 %v233
  %685 = vmatprep.subr.mxu0 0.0
  %686 = vmatpush1.msra.mxu0 %v234
  %687 = vmatprep.subr.mxu0 0.0
  %688 = vmatpush1.msra.mxu0 0.0
  %689 = vmatprep.subr.mxu0 0.0
  %690 = vmatpush1.msra.mxu0 0.0
  %691 = vmatprep.subr.mxu0 0.0
  %692 = vmatpush1.msra.mxu0 0.0
  %693 = vmatprep.subr.mxu0 0.0
  %694 = vmatpush1.msra.mxu0 0.0
  %695 = vmatprep.subr.mxu0 0.0
  %696 = vmatpush1.msra.mxu0 0.0
  %697 = vmatprep.subr.mxu0 0.0
  %698 = vmatpush1.msra.mxu0 0.0
  %699 = vmatprep.subr.mxu0 0.0
  %700 = vmatpush1.msra.mxu0 0.0
  %701 = vmatprep.subr.mxu0 0.0
  %702 = vmatpush1.msra.mxu0 0.0
  %703 = vmatprep.subr.mxu0 0.0
  %704 = vmatpush1.msra.mxu0 0.0
  %705 = vmatprep.subr.mxu0 0.0
  %706 = vmatpush1.msra.mxu0 0.0
  %707 = vmatprep.subr.mxu0 0.0
  %708 = vmatpush1.msra.mxu0 0.0
  %709 = vmatprep.subr.mxu0 0.0
  %710 = vmatpush1.msra.mxu0 0.0
  %711 = vmatprep.subr.mxu0 0.0
  %712 = vmatpush1.msra.mxu0 0.0
  %713 = vmatprep.subr.mxu0 0.0
  %714 = vmatpush1.msra.mxu0 0.0
  %715 = vmatprep.subr.mxu0 0.0
  %716 = vmatpush1.msra.mxu0 0.0
  %717 = vmatprep.subr.mxu0 0.0
  %718 = vmatpush1.msra.mxu0 0.0
  %719 = vmatprep.subr.mxu0 0.0
  %720 = vmatpush1.msra.mxu0 0.0
  %721 = vmatprep.subr.mxu0 0.0
  %722 = vmatpush1.msra.mxu0 0.0
  %723 = vmatprep.subr.mxu0 0.0
  %724 = vmatpush1.msra.mxu0 0.0
  %725 = vmatprep.subr.mxu0 0.0
  %726 = vmatpush1.msra.mxu0 0.0
  %727 = vmatprep.subr.mxu0 0.0
  %728 = vmatpush1.msra.mxu0 0.0
  %729 = vmatprep.subr.mxu0 0.0
  %730 = vmatpush1.msra.mxu0 0.0
  %731 = vmatprep.subr.mxu0 0.0
  %732 = vmatpush1.msra.mxu0 0.0
  %733 = vmatprep.subr.mxu0 0.0
  %734 = vmatpush1.msra.mxu0 0.0
  %735 = vmatprep.subr.mxu0 0.0
  %736 = vmatpush1.msra.mxu0 0.0
  %737 = vmatprep.subr.mxu0 0.0
  %738 = vmatpush1.msra.mxu0 0.0
  %739 = vmatprep.subr.mxu0 0.0
  %740 = vmatpush1.msra.mxu0 0.0
  %741 = vmatprep.subr.mxu0 0.0
  %742 = vmatpush1.msra.mxu0 0.0
  %743 = vmatprep.mubr.f32.mxu0 0.0
  %744 = vmatmul.mubr.f32.gmra.mrb[0].mxu0 %v677
  %v745 = vpop.f32.mrb[0].mxu0
  %v746 = vadd.f32 %v240, %v745
  %v747 = vpop.f32.mrb[0].mxu0
  %748 = vdwg.mxu0
  %v749 = vadd.f32 %v213, %v746
  %v750 = vxor.u32 %v749, 2147483648
  %v751 = vmul.f32 %v750, 1.442695
  %v752 = vpow.pop %v751
  %v753 = vadd.f32 %v752, 1.0
  %v754 = vrcp.pop %v753
  %v755 = vmul.f32 1.0, %v754
  %757 = vrot.lane.b32.xlu0 %v746, 64
  %v758 = vpop.permute.xlu0 %757
  %v760 = vmul.f32 %v755, %v758
  %762 = vrot.lane.b32.xlu0 %v760, 64
  %v763 = vpop.permute.xlu0 %762
  %v765 = vadd.f32 %v213, %v763
  %v766 = vtanh.pop %v765
  %v767 = vsub.f32 1.0, %v755
  %769 = vrot.lane.b32.xlu0 %v766, 96
  %v770 = vpop.permute.xlu0 %769
  %v772 = vmul.f32 %v767, %v770
  %v773 = vmul.f32 %v755, %v665
  %v774 = vadd.f32 %v772, %v773
  %776 = vrot.lane.b32.xlu0 %v774, 96
  %v777 = vpop.permute.xlu0 %776
  %779 = vst.msk [vmem:[#allocation2 + $0x8] sm:$0xff] %vm101, %v777
  %780 = vrot.lane.b32.xlu0 %v774, 64
  %v781 = vpop.permute.xlu0 %780
  %783 = vst.msk [vmem:[#allocation2] sm:$0xff] %vm350, %v781
  %v784 = vsel %vm242, %v777, 0
  %786 = vmatprep.subr.mxu0 0.0
  %787 = vmatpush1.msra.mxu0 %v231
  %788 = vmatprep.subr.mxu0 0.0
  %789 = vmatpush1.msra.mxu0 %v232
  %790 = vmatprep.subr.mxu0 0.0
  %791 = vmatpush1.msra.mxu0 %v233
  %792 = vmatprep.subr.mxu0 0.0
  %793 = vmatpush1.msra.mxu0 %v234
  %794 = vmatprep.subr.mxu0 0.0
  %795 = vmatpush1.msra.mxu0 0.0
  %796 = vmatprep.subr.mxu0 0.0
  %797 = vmatpush1.msra.mxu0 0.0
  %798 = vmatprep.subr.mxu0 0.0
  %799 = vmatpush1.msra.mxu0 0.0
  %800 = vmatprep.subr.mxu0 0.0
  %801 = vmatpush1.msra.mxu0 0.0
  %802 = vmatprep.subr.mxu0 0.0
  %803 = vmatpush1.msra.mxu0 0.0
  %804 = vmatprep.subr.mxu0 0.0
  %805 = vmatpush1.msra.mxu0 0.0
  %806 = vmatprep.subr.mxu0 0.0
  %807 = vmatpush1.msra.mxu0 0.0
  %808 = vmatprep.subr.mxu0 0.0
  %809 = vmatpush1.msra.mxu0 0.0
  %810 = vmatprep.subr.mxu0 0.0
  %811 = vmatpush1.msra.mxu0 0.0
  %812 = vmatprep.subr.mxu0 0.0
  %813 = vmatpush1.msra.mxu0 0.0
  %814 = vmatprep.subr.mxu0 0.0
  %815 = vmatpush1.msra.mxu0 0.0
  %816 = vmatprep.subr.mxu0 0.0
  %817 = vmatpush1.msra.mxu0 0.0
  %818 = vmatprep.subr.mxu0 0.0
  %819 = vmatpush1.msra.mxu0 0.0
  %820 = vmatprep.subr.mxu0 0.0
  %821 = vmatpush1.msra.mxu0 0.0
  %822 = vmatprep.subr.mxu0 0.0
  %823 = vmatpush1.msra.mxu0 0.0
  %824 = vmatprep.subr.mxu0 0.0
  %825 = vmatpush1.msra.mxu0 0.0
  %826 = vmatprep.subr.mxu0 0.0
  %827 = vmatpush1.msra.mxu0 0.0
  %828 = vmatprep.subr.mxu0 0.0
  %829 = vmatpush1.msra.mxu0 0.0
  %830 = vmatprep.subr.mxu0 0.0
  %831 = vmatpush1.msra.mxu0 0.0
  %832 = vmatprep.subr.mxu0 0.0
  %833 = vmatpush1.msra.mxu0 0.0
  %834 = vmatprep.subr.mxu0 0.0
  %835 = vmatpush1.msra.mxu0 0.0
  %836 = vmatprep.subr.mxu0 0.0
  %837 = vmatpush1.msra.mxu0 0.0
  %838 = vmatprep.subr.mxu0 0.0
  %839 = vmatpush1.msra.mxu0 0.0
  %840 = vmatprep.subr.mxu0 0.0
  %841 = vmatpush1.msra.mxu0 0.0
  %842 = vmatprep.subr.mxu0 0.0
  %843 = vmatpush1.msra.mxu0 0.0
  %844 = vmatprep.subr.mxu0 0.0
  %845 = vmatpush1.msra.mxu0 0.0
  %846 = vmatprep.subr.mxu0 0.0
  %847 = vmatpush1.msra.mxu0 0.0
  %848 = vmatprep.subr.mxu0 0.0
  %849 = vmatpush1.msra.mxu0 0.0
  %850 = vmatprep.mubr.f32.mxu0 0.0
  %851 = vmatmul.mubr.f32.gmra.mrb[0].mxu0 %v784
  %v852 = vpop.f32.mrb[0].mxu0
  %v853 = vadd.f32 %v240, %v852
  %v854 = vpop.f32.mrb[0].mxu0
  %855 = vdwg.mxu0
  %v856 = vadd.f32 %v218, %v853
  %v857 = vxor.u32 %v856, 2147483648
  %v858 = vmul.f32 %v857, 1.442695
  %v859 = vpow.pop %v858
  %v860 = vadd.f32 %v859, 1.0
  %v861 = vrcp.pop %v860
  %v862 = vmul.f32 1.0, %v861
  %864 = vrot.lane.b32.xlu0 %v853, 64
  %v865 = vpop.permute.xlu0 %864
  %v867 = vmul.f32 %v862, %v865
  %869 = vrot.lane.b32.xlu0 %v867, 64
  %v870 = vpop.permute.xlu0 %869
  %v872 = vadd.f32 %v218, %v870
  %v873 = vtanh.pop %v872
  %v874 = vsub.f32 1.0, %v862
  %876 = vrot.lane.b32.xlu0 %v873, 96
  %v877 = vpop.permute.xlu0 %876
  %v879 = vmul.f32 %v874, %v877
  %v880 = vmul.f32 %v862, %v774
  %v881 = vadd.f32 %v879, %v880
  %882 = vst.msk [vmem:[#allocation2 + $0x8] sm:$0xff] %vm450, %v881
  %884 = vrot.lane.b32.xlu0 %v881, 32
  %v885 = vpop.permute.xlu0 %884
  %887 = vst.msk [vmem:[#allocation2] sm:$0xff] %vm456, %v885
  %888 = vrot.lane.b32.xlu0 %v881, 96
  %v889 = vpop.permute.xlu0 %888
  %v890 = vsel %vm242, %v889, 0
  %892 = vmatprep.subr.mxu0 0.0
  %893 = vmatpush1.msra.mxu0 %v231
  %894 = vmatprep.subr.mxu0 0.0
  %895 = vmatpush1.msra.mxu0 %v232
  %896 = vmatprep.subr.mxu0 0.0
  %897 = vmatpush1.msra.mxu0 %v233
  %898 = vmatprep.subr.mxu0 0.0
  %899 = vmatpush1.msra.mxu0 %v234
  %900 = vmatprep.subr.mxu0 0.0
  %901 = vmatpush1.msra.mxu0 0.0
  %902 = vmatprep.subr.mxu0 0.0
  %903 = vmatpush1.msra.mxu0 0.0
  %904 = vmatprep.subr.mxu0 0.0
  %905 = vmatpush1.msra.mxu0 0.0
  %906 = vmatprep.subr.mxu0 0.0
  %907 = vmatpush1.msra.mxu0 0.0
  %908 = vmatprep.subr.mxu0 0.0
  %909 = vmatpush1.msra.mxu0 0.0
  %910 = vmatprep.subr.mxu0 0.0
  %911 = vmatpush1.msra.mxu0 0.0
  %912 = vmatprep.subr.mxu0 0.0
  %913 = vmatpush1.msra.mxu0 0.0
  %914 = vmatprep.subr.mxu0 0.0
  %915 = vmatpush1.msra.mxu0 0.0
  %916 = vmatprep.subr.mxu0 0.0
  %917 = vmatpush1.msra.mxu0 0.0
  %918 = vmatprep.subr.mxu0 0.0
  %919 = vmatpush1.msra.mxu0 0.0
  %920 = vmatprep.subr.mxu0 0.0
  %921 = vmatpush1.msra.mxu0 0.0
  %922 = vmatprep.subr.mxu0 0.0
  %923 = vmatpush1.msra.mxu0 0.0
  %924 = vmatprep.subr.mxu0 0.0
  %925 = vmatpush1.msra.mxu0 0.0
  %926 = vmatprep.subr.mxu0 0.0
  %927 = vmatpush1.msra.mxu0 0.0
  %928 = vmatprep.subr.mxu0 0.0
  %929 = vmatpush1.msra.mxu0 0.0
  %930 = vmatprep.subr.mxu0 0.0
  %931 = vmatpush1.msra.mxu0 0.0
  %932 = vmatprep.subr.mxu0 0.0
  %933 = vmatpush1.msra.mxu0 0.0
  %934 = vmatprep.subr.mxu0 0.0
  %935 = vmatpush1.msra.mxu0 0.0
  %936 = vmatprep.subr.mxu0 0.0
  %937 = vmatpush1.msra.mxu0 0.0
  %938 = vmatprep.subr.mxu0 0.0
  %939 = vmatpush1.msra.mxu0 0.0
  %940 = vmatprep.subr.mxu0 0.0
  %941 = vmatpush1.msra.mxu0 0.0
  %942 = vmatprep.subr.mxu0 0.0
  %943 = vmatpush1.msra.mxu0 0.0
  %944 = vmatprep.subr.mxu0 0.0
  %945 = vmatpush1.msra.mxu0 0.0
  %946 = vmatprep.subr.mxu0 0.0
  %947 = vmatpush1.msra.mxu0 0.0
  %948 = vmatprep.subr.mxu0 0.0
  %949 = vmatpush1.msra.mxu0 0.0
  %950 = vmatprep.subr.mxu0 0.0
  %951 = vmatpush1.msra.mxu0 0.0
  %952 = vmatprep.subr.mxu0 0.0
  %953 = vmatpush1.msra.mxu0 0.0
  %954 = vmatprep.subr.mxu0 0.0
  %955 = vmatpush1.msra.mxu0 0.0
  %956 = vmatprep.mubr.f32.mxu0 0.0
  %957 = vmatmul.mubr.f32.gmra.mrb[0].mxu0 %v890
  %v958 = vpop.f32.mrb[0].mxu0
  %v959 = vadd.f32 %v240, %v958
  %v960 = vpop.f32.mrb[0].mxu0
  %961 = vdwg.mxu0
  %v962 = vadd.f32 %v223, %v959
  %v963 = vxor.u32 %v962, 2147483648
  %v964 = vmul.f32 %v963, 1.442695
  %v965 = vpow.pop %v964
  %v966 = vadd.f32 %v965, 1.0
  %v967 = vrcp.pop %v966
  %v968 = vmul.f32 1.0, %v967
  %970 = vrot.lane.b32.xlu0 %v959, 64
  %v971 = vpop.permute.xlu0 %970
  %v973 = vmul.f32 %v968, %v971
  %975 = vrot.lane.b32.xlu0 %v973, 64
  %v976 = vpop.permute.xlu0 %975
  %v978 = vadd.f32 %v223, %v976
  %v979 = vtanh.pop %v978
  %v980 = vsub.f32 1.0, %v968
  %982 = vrot.lane.b32.xlu0 %v979, 96
  %v983 = vpop.permute.xlu0 %982
  %v985 = vmul.f32 %v980, %v983
  %v986 = vmul.f32 %v968, %v881
  %v987 = vadd.f32 %v985, %v986
  %989 = vrot.lane.b32.xlu0 %v987, 32
  %v990 = vpop.permute.xlu0 %989
  %992 = vst.msk [vmem:[#allocation2 + $0x8] sm:$0xff] %vm562, %v990
  %993 = vst.msk [vmem:[#allocation2] sm:$0xff] %vm564, %v987
  %994 = vrot.lane.b32.xlu0 %v987, 96
  %v995 = vpop.permute.xlu0 %994
  %v996 = vsel %vm242, %v995, 0
  %998 = vmatprep.subr.mxu0 0.0
  %999 = vmatpush1.msra.mxu0 %v231
  %1000 = vmatprep.subr.mxu0 0.0
  %1001 = vmatpush1.msra.mxu0 %v232
  %1002 = vmatprep.subr.mxu0 0.0
  %1003 = vmatpush1.msra.mxu0 %v233
  %1004 = vmatprep.subr.mxu0 0.0
  %1005 = vmatpush1.msra.mxu0 %v234
  %1006 = vmatprep.subr.mxu0 0.0
  %1007 = vmatpush1.msra.mxu0 0.0
  %1008 = vmatprep.subr.mxu0 0.0
  %1009 = vmatpush1.msra.mxu0 0.0
  %1010 = vmatprep.subr.mxu0 0.0
  %1011 = vmatpush1.msra.mxu0 0.0
  %1012 = vmatprep.subr.mxu0 0.0
  %1013 = vmatpush1.msra.mxu0 0.0
  %1014 = vmatprep.subr.mxu0 0.0
  %1015 = vmatpush1.msra.mxu0 0.0
  %1016 = vmatprep.subr.mxu0 0.0
  %1017 = vmatpush1.msra.mxu0 0.0
  %1018 = vmatprep.subr.mxu0 0.0
  %1019 = vmatpush1.msra.mxu0 0.0
  %1020 = vmatprep.subr.mxu0 0.0
  %1021 = vmatpush1.msra.mxu0 0.0
  %1022 = vmatprep.subr.mxu0 0.0
  %1023 = vmatpush1.msra.mxu0 0.0
  %1024 = vmatprep.subr.mxu0 0.0
  %1025 = vmatpush1.msra.mxu0 0.0
  %1026 = vmatprep.subr.mxu0 0.0
  %1027 = vmatpush1.msra.mxu0 0.0
  %1028 = vmatprep.subr.mxu0 0.0
  %1029 = vmatpush1.msra.mxu0 0.0
  %1030 = vmatprep.subr.mxu0 0.0
  %1031 = vmatpush1.msra.mxu0 0.0
  %1032 = vmatprep.subr.mxu0 0.0
  %1033 = vmatpush1.msra.mxu0 0.0
  %1034 = vmatprep.subr.mxu0 0.0
  %1035 = vmatpush1.msra.mxu0 0.0
  %1036 = vmatprep.subr.mxu0 0.0
  %1037 = vmatpush1.msra.mxu0 0.0
  %1038 = vmatprep.subr.mxu0 0.0
  %1039 = vmatpush1.msra.mxu0 0.0
  %1040 = vmatprep.subr.mxu0 0.0
  %1041 = vmatpush1.msra.mxu0 0.0
  %1042 = vmatprep.subr.mxu0 0.0
  %1043 = vmatpush1.msra.mxu0 0.0
  %1044 = vmatprep.subr.mxu0 0.0
  %1045 = vmatpush1.msra.mxu0 0.0
  %1046 = vmatprep.subr.mxu0 0.0
  %1047 = vmatpush1.msra.mxu0 0.0
  %1048 = vmatprep.subr.mxu0 0.0
  %1049 = vmatpush1.msra.mxu0 0.0
  %1050 = vmatprep.subr.mxu0 0.0
  %1051 = vmatpush1.msra.mxu0 0.0
  %1052 = vmatprep.subr.mxu0 0.0
  %1053 = vmatpush1.msra.mxu0 0.0
  %1054 = vmatprep.subr.mxu0 0.0
  %1055 = vmatpush1.msra.mxu0 0.0
  %1056 = vmatprep.subr.mxu0 0.0
  %1057 = vmatpush1.msra.mxu0 0.0
  %1058 = vmatprep.subr.mxu0 0.0
  %1059 = vmatpush1.msra.mxu0 0.0
  %1060 = vmatprep.subr.mxu0 0.0
  %1061 = vmatpush1.msra.mxu0 0.0
  %1062 = vmatprep.mubr.f32.mxu0 0.0
  %1063 = vmatmul.mubr.f32.gmra.mrb[0].mxu0 %v996
  %v1064 = vpop.f32.mrb[0].mxu0
  %v1065 = vadd.f32 %v240, %v1064
  %v1066 = vpop.f32.mrb[0].mxu0
  %1067 = vdwg.mxu0
  %v1068 = vadd.f32 %v228, %v1065
  %v1069 = vxor.u32 %v1068, 2147483648
  %v1070 = vmul.f32 %v1069, 1.442695
  %v1071 = vpow.pop %v1070
  %v1072 = vadd.f32 %v1071, 1.0
  %v1073 = vrcp.pop %v1072
  %v1074 = vmul.f32 1.0, %v1073
  %1076 = vrot.lane.b32.xlu0 %v1065, 64
  %v1077 = vpop.permute.xlu0 %1076
  %v1079 = vmul.f32 %v1074, %v1077
  %1081 = vrot.lane.b32.xlu0 %v1079, 64
  %v1082 = vpop.permute.xlu0 %1081
  %v1084 = vadd.f32 %v228, %v1082
  %v1085 = vtanh.pop %v1084
  %v1086 = vsub.f32 1.0, %v1074
  %1088 = vrot.lane.b32.xlu0 %v1085, 96
  %v1089 = vpop.permute.xlu0 %1088
  %v1091 = vmul.f32 %v1086, %v1089
  %v1092 = vmul.f32 %v1074, %v987
  %v1093 = vadd.f32 %v1091, %v1092
  %1095 = vrot.lane.b32.xlu0 %v1093, 64
  %v1096 = vpop.permute.xlu0 %1095
  %1098 = vst.msk [vmem:[#allocation2 + $0x8] sm:$0xff] %vm670, %v1096
  %1099 = vrot.lane.b32.xlu0 %v1093, 96
  %v1100 = vpop.permute.xlu0 %1099
  %1102 = vst.msk [vmem:[#allocation2] sm:$0xff] %vm675, %v1100
  %v1103 = vld [vmem:[%s7] sm:$0xff]
  %v1104 = vld [vmem:[%s7 + $0x8] sm:$0xff]
  %v1105 = vld [vmem:[%s7 + $0x10] sm:$0xff]
  %v1106 = vld [vmem:[%s7 + $0x18] sm:$0xff]
  %v1107 = vld [vmem:[%s8] sm:$0x1]
  %v1109 = vlaneseq
  %v1110 = vshrl.u32 %v1109, 7
  %v1111 = vsub.s32 0, %v1110
  %v1112 = vrot.slane %v1107, %v1111
  %v1114 = vsel %vm242, %v1100, 0
  %1116 = vmatprep.subr.mxu0 0.0
  %1117 = vmatpush1.msra.mxu0 %v1103
  %1118 = vmatprep.subr.mxu0 0.0
  %1119 = vmatpush1.msra.mxu0 %v1104
  %1120 = vmatprep.subr.mxu0 0.0
  %1121 = vmatpush1.msra.mxu0 %v1105
  %1122 = vmatprep.subr.mxu0 0.0
  %1123 = vmatpush1.msra.mxu0 %v1106
  %1124 = vmatprep.subr.mxu0 0.0
  %1125 = vmatpush1.msra.mxu0 0.0
  %1126 = vmatprep.subr.mxu0 0.0
  %1127 = vmatpush1.msra.mxu0 0.0
  %1128 = vmatprep.subr.mxu0 0.0
  %1129 = vmatpush1.msra.mxu0 0.0
  %1130 = vmatprep.subr.mxu0 0.0
  %1131 = vmatpush1.msra.mxu0 0.0
  %1132 = vmatprep.subr.mxu0 0.0
  %1133 = vmatpush1.msra.mxu0 0.0
  %1134 = vmatprep.subr.mxu0 0.0
  %1135 = vmatpush1.msra.mxu0 0.0
  %1136 = vmatprep.subr.mxu0 0.0
  %1137 = vmatpush1.msra.mxu0 0.0
  %1138 = vmatprep.subr.mxu0 0.0
  %1139 = vmatpush1.msra.mxu0 0.0
  %1140 = vmatprep.subr.mxu0 0.0
  %1141 = vmatpush1.msra.mxu0 0.0
  %1142 = vmatprep.subr.mxu0 0.0
  %1143 = vmatpush1.msra.mxu0 0.0
  %1144 = vmatprep.subr.mxu0 0.0
  %1145 = vmatpush1.msra.mxu0 0.0
  %1146 = vmatprep.subr.mxu0 0.0
  %1147 = vmatpush1.msra.mxu0 0.0
  %1148 = vmatprep.subr.mxu0 0.0
  %1149 = vmatpush1.msra.mxu0 0.0
  %1150 = vmatprep.subr.mxu0 0.0
  %1151 = vmatpush1.msra.mxu0 0.0
  %1152 = vmatprep.subr.mxu0 0.0
  %1153 = vmatpush1.msra.mxu0 0.0
  %1154 = vmatprep.subr.mxu0 0.0
  %1155 = vmatpush1.msra.mxu0 0.0
  %1156 = vmatprep.subr.mxu0 0.0
  %1157 = vmatpush1.msra.mxu0 0.0
  %1158 = vmatprep.subr.mxu0 0.0
  %1159 = vmatpush1.msra.mxu0 0.0
  %1160 = vmatprep.subr.mxu0 0.0
  %1161 = vmatpush1.msra.mxu0 0.0
  %1162 = vmatprep.subr.mxu0 0.0
  %1163 = vmatpush1.msra.mxu0 0.0
  %1164 = vmatprep.subr.mxu0 0.0
  %1165 = vmatpush1.msra.mxu0 0.0
  %1166 = vmatprep.subr.mxu0 0.0
  %1167 = vmatpush1.msra.mxu0 0.0
  %1168 = vmatprep.subr.mxu0 0.0
  %1169 = vmatpush1.msra.mxu0 0.0
  %1170 = vmatprep.subr.mxu0 0.0
  %1171 = vmatpush1.msra.mxu0 0.0
  %1172 = vmatprep.subr.mxu0 0.0
  %1173 = vmatpush1.msra.mxu0 0.0
  %1174 = vmatprep.subr.mxu0 0.0
  %1175 = vmatpush1.msra.mxu0 0.0
  %1176 = vmatprep.subr.mxu0 0.0
  %1177 = vmatpush1.msra.mxu0 0.0
  %1178 = vmatprep.subr.mxu0 0.0
  %1179 = vmatpush1.msra.mxu0 0.0
  %1180 = vmatprep.mubr.f32.mxu0 0.0
  %1181 = vmatmul.mubr.f32.gmra.mrb[0].mxu0 %v1114
  %v1182 = vpop.f32.mrb[0].mxu0
  %v1183 = vadd.f32 %v1112, %v1182
  %v1184 = vpop.f32.mrb[0].mxu0
  %1185 = vdwg.mxu0
  %v1186 = vtanh.pop %v1183
  %v1187 = vld [vmem:[#allocation2] sm:$0xff]
  %v1188 = vld [vmem:[#allocation2 + $0x8] sm:$0xff]
  %v1189 = vld [vmem:[%s9] sm:$0xff]
  %v1190 = vld [vmem:[%s9 + $0x8] sm:$0xff]
  %v1191 = vld [vmem:[%s9 + $0x10] sm:$0xff]
  %v1192 = vld [vmem:[%s9 + $0x18] sm:$0xff]
  %v1193 = vld [vmem:[%s9 + $0x20] sm:$0xff]
  %v1194 = vld [vmem:[%s9 + $0x28] sm:$0xff]
  %v1195 = vld [vmem:[%s9 + $0x30] sm:$0xff]
  %v1196 = vld [vmem:[%s9 + $0x38] sm:$0xff]
  %v1197 = vld [vmem:[%s9 + $0x40] sm:$0xff]
  %v1198 = vld [vmem:[%s9 + $0x48] sm:$0xff]
  %v1199 = vld [vmem:[%s9 + $0x50] sm:$0xff]
  %v1200 = vld [vmem:[%s9 + $0x58] sm:$0xff]
  %v1201 = vld [vmem:[%s9 + $0x60] sm:$0xff]
  %v1202 = vld [vmem:[%s9 + $0x68] sm:$0xff]
  %v1203 = vld [vmem:[%s9 + $0x70] sm:$0xff]
  %v1204 = vld [vmem:[%s9 + $0x78] sm:$0xff]
  %v1205 = vld [vmem:[%s9 + $0x80] sm:$0xff]
  %v1206 = vld [vmem:[%s9 + $0x88] sm:$0xff]
  %v1207 = vld [vmem:[%s9 + $0x90] sm:$0xff]
  %v1208 = vld [vmem:[%s9 + $0x98] sm:$0xff]
  %v1209 = vld [vmem:[%s9 + $0xa0] sm:$0xff]
  %v1210 = vld [vmem:[%s9 + $0xa8] sm:$0xff]
  %v1211 = vld [vmem:[%s9 + $0xb0] sm:$0xff]
  %v1212 = vld [vmem:[%s9 + $0xb8] sm:$0xff]
  %v1213 = vld [vmem:[%s9 + $0xc0] sm:$0xff]
  %v1214 = vld [vmem:[%s9 + $0xc8] sm:$0xff]
  %v1215 = vld [vmem:[%s9 + $0xd0] sm:$0xff]
  %v1216 = vld [vmem:[%s9 + $0xd8] sm:$0xff]
  %v1217 = vld [vmem:[%s9 + $0xe0] sm:$0xff]
  %v1218 = vld [vmem:[%s9 + $0xe8] sm:$0xff]
  %v1219 = vld [vmem:[%s9 + $0xf0] sm:$0xff]
  %v1220 = vld [vmem:[%s9 + $0xf8] sm:$0xff]
  %v1221 = vld [vmem:[%s10] sm:$0x1]
  %v1223 = vlaneseq
  %v1224 = vshrl.u32 %v1223, 7
  %v1225 = vsub.s32 0, %v1224
  %v1226 = vrot.slane %v1221, %v1225
  %1228 = vmatprep.subr.mxu0 0.0
  %1229 = vmatpush1.msra.mxu0 %v1189
  %1230 = vmatprep.subr.mxu0 0.0
  %1231 = vmatpush1.msra.mxu0 %v1190
  %1232 = vmatprep.subr.mxu0 0.0
  %1233 = vmatpush1.msra.mxu0 %v1191
  %1234 = vmatprep.subr.mxu0 0.0
  %1235 = vmatpush1.msra.mxu0 %v1192
  %1236 = vmatprep.subr.mxu0 0.0
  %1237 = vmatpush1.msra.mxu0 %v1193
  %1238 = vmatprep.subr.mxu0 0.0
  %1239 = vmatpush1.msra.mxu0 %v1194
  %1240 = vmatprep.subr.mxu0 0.0
  %1241 = vmatpush1.msra.mxu0 %v1195
  %1242 = vmatprep.subr.mxu0 0.0
  %1243 = vmatpush1.msra.mxu0 %v1196
  %1244 = vmatprep.subr.mxu0 0.0
  %1245 = vmatpush1.msra.mxu0 %v1197
  %1246 = vmatprep.subr.mxu0 0.0
  %1247 = vmatpush1.msra.mxu0 %v1198
  %1248 = vmatprep.subr.mxu0 0.0
  %1249 = vmatpush1.msra.mxu0 %v1199
  %1250 = vmatprep.subr.mxu0 0.0
  %1251 = vmatpush1.msra.mxu0 %v1200
  %1252 = vmatprep.subr.mxu0 0.0
  %1253 = vmatpush1.msra.mxu0 %v1201
  %1254 = vmatprep.subr.mxu0 0.0
  %1255 = vmatpush1.msra.mxu0 %v1202
  %1256 = vmatprep.subr.mxu0 0.0
  %1257 = vmatpush1.msra.mxu0 %v1203
  %1258 = vmatprep.subr.mxu0 0.0
  %1259 = vmatpush1.msra.mxu0 %v1204
  %1260 = vmatprep.subr.mxu0 0.0
  %1261 = vmatpush1.msra.mxu0 %v1205
  %1262 = vmatprep.subr.mxu0 0.0
  %1263 = vmatpush1.msra.mxu0 %v1206
  %1264 = vmatprep.subr.mxu0 0.0
  %1265 = vmatpush1.msra.mxu0 %v1207
  %1266 = vmatprep.subr.mxu0 0.0
  %1267 = vmatpush1.msra.mxu0 %v1208
  %1268 = vmatprep.subr.mxu0 0.0
  %1269 = vmatpush1.msra.mxu0 %v1209
  %1270 = vmatprep.subr.mxu0 0.0
  %1271 = vmatpush1.msra.mxu0 %v1210
  %1272 = vmatprep.subr.mxu0 0.0
  %1273 = vmatpush1.msra.mxu0 %v1211
  %1274 = vmatprep.subr.mxu0 0.0
  %1275 = vmatpush1.msra.mxu0 %v1212
  %1276 = vmatprep.subr.mxu0 0.0
  %1277 = vmatpush1.msra.mxu0 %v1213
  %1278 = vmatprep.subr.mxu0 0.0
  %1279 = vmatpush1.msra.mxu0 %v1214
  %1280 = vmatprep.subr.mxu0 0.0
  %1281 = vmatpush1.msra.mxu0 %v1215
  %1282 = vmatprep.subr.mxu0 0.0
  %1283 = vmatpush1.msra.mxu0 %v1216
  %1284 = vmatprep.subr.mxu0 0.0
  %1285 = vmatpush1.msra.mxu0 %v1217
  %1286 = vmatprep.subr.mxu0 0.0
  %1287 = vmatpush1.msra.mxu0 %v1218
  %1288 = vmatprep.subr.mxu0 0.0
  %1289 = vmatpush1.msra.mxu0 %v1219
  %1290 = vmatprep.subr.mxu0 0.0
  %1291 = vmatpush1.msra.mxu0 %v1220
  %1292 = vmatprep.mubr.f32.mxu0 %v1188
  %1293 = vmatmul.mubr.f32.gmra.mrb[0].mxu0 %v1187
  %v1294 = vpop.f32.mrb[0].mxu0
  %v1295 = vadd.f32 %v1226, %v1294
  %v1296 = vpop.f32.mrb[0].mxu0
  %1297 = vdwg.mxu0
  %v1298 = vld [vmem:[%s24] sm:$0xff]
  %v1299 = vld [vmem:[%s24 + $0x8] sm:$0xff]
  %v1300 = vlaneseq
  %v1301 = vand.u32 %v1300, 127
  %v1302 = vcvt.s32.f32 %v1301
  %v1303 = vld [vmem:[%s2] sm:$0xff]
  %v1304 = vld [vmem:[%s11] sm:$0xff]
  %v1305 = vld [vmem:[%s11 + $0x8] sm:$0xff]
  %v1307 = vsel %vm101, %v1186, 0
  %1309 = vmatprep.subr.mxu0 0.0
  %1310 = vmatpush1.msra.mxu0 %v1304
  %1311 = vmatprep.subr.mxu0 0.0
  %1312 = vmatpush1.msra.mxu0 %v1305
  %1313 = vmatprep.subr.mxu0 0.0
  %1314 = vmatpush1.msra.mxu0 0.0
  %1315 = vmatprep.subr.mxu0 0.0
  %1316 = vmatpush1.msra.mxu0 0.0
  %1317 = vmatprep.subr.mxu0 0.0
  %1318 = vmatpush1.msra.mxu0 0.0
  %1319 = vmatprep.subr.mxu0 0.0
  %1320 = vmatpush1.msra.mxu0 0.0
  %1321 = vmatprep.subr.mxu0 0.0
  %1322 = vmatpush1.msra.mxu0 0.0
  %1323 = vmatprep.subr.mxu0 0.0
  %1324 = vmatpush1.msra.mxu0 0.0
  %1325 = vmatprep.subr.mxu0 0.0
  %1326 = vmatpush1.msra.mxu0 0.0
  %1327 = vmatprep.subr.mxu0 0.0
  %1328 = vmatpush1.msra.mxu0 0.0
  %1329 = vmatprep.subr.mxu0 0.0
  %1330 = vmatpush1.msra.mxu0 0.0
  %1331 = vmatprep.subr.mxu0 0.0
  %1332 = vmatpush1.msra.mxu0 0.0
  %1333 = vmatprep.subr.mxu0 0.0
  %1334 = vmatpush1.msra.mxu0 0.0
  %1335 = vmatprep.subr.mxu0 0.0
  %1336 = vmatpush1.msra.mxu0 0.0
  %1337 = vmatprep.subr.mxu0 0.0
  %1338 = vmatpush1.msra.mxu0 0.0
  %1339 = vmatprep.subr.mxu0 0.0
  %1340 = vmatpush1.msra.mxu0 0.0
  %1341 = vmatprep.subr.mxu0 0.0
  %1342 = vmatpush1.msra.mxu0 0.0
  %1343 = vmatprep.subr.mxu0 0.0
  %1344 = vmatpush1.msra.mxu0 0.0
  %1345 = vmatprep.subr.mxu0 0.0
  %1346 = vmatpush1.msra.mxu0 0.0
  %1347 = vmatprep.subr.mxu0 0.0
  %1348 = vmatpush1.msra.mxu0 0.0
  %1349 = vmatprep.subr.mxu0 0.0
  %1350 = vmatpush1.msra.mxu0 0.0
  %1351 = vmatprep.subr.mxu0 0.0
  %1352 = vmatpush1.msra.mxu0 0.0
  %1353 = vmatprep.subr.mxu0 0.0
  %1354 = vmatpush1.msra.mxu0 0.0
  %1355 = vmatprep.subr.mxu0 0.0
  %1356 = vmatpush1.msra.mxu0 0.0
  %1357 = vmatprep.subr.mxu0 0.0
  %1358 = vmatpush1.msra.mxu0 0.0
  %1359 = vmatprep.subr.mxu0 0.0
  %1360 = vmatpush1.msra.mxu0 0.0
  %1361 = vmatprep.subr.mxu0 0.0
  %1362 = vmatpush1.msra.mxu0 0.0
  %1363 = vmatprep.subr.mxu0 0.0
  %1364 = vmatpush1.msra.mxu0 0.0
  %1365 = vmatprep.subr.mxu0 0.0
  %1366 = vmatpush1.msra.mxu0 0.0
  %1367 = vmatprep.subr.mxu0 0.0
  %1368 = vmatpush1.msra.mxu0 0.0
  %1369 = vmatprep.subr.mxu0 0.0
  %1370 = vmatpush1.msra.mxu0 0.0
  %1371 = vmatprep.subr.mxu0 0.0
  %1372 = vmatpush1.msra.mxu0 0.0
  %1373 = vmatprep.mubr.f32.mxu0 0.0
  %1374 = vmatmul.mubr.f32.gmra.mrb[0].mxu0 %v1307
  %v1375 = vpop.f32.mrb[0].mxu0
  %v1376 = vadd.f32 0.0, %v1375
  %v1377 = vpop.f32.mrb[0].mxu0
  %1378 = vdwg.mxu0
  %v1379 = vadd.f32 %v1295, %v1376
  %v1380 = vtanh.pop %v1379
  %v1381 = vld [vmem:[%s12] sm:$0xff]
  %v1382 = vld [vmem:[%s12 + $0x8] sm:$0xff]
  %v1383 = vld [vmem:[%s12 + $0x10] sm:$0xff]
  %v1384 = vld [vmem:[%s12 + $0x18] sm:$0xff]
  %v1385 = vld [vmem:[%s12 + $0x20] sm:$0xff]
  %v1386 = vld [vmem:[%s12 + $0x28] sm:$0xff]
  %v1387 = vld [vmem:[%s12 + $0x30] sm:$0xff]
  %v1388 = vld [vmem:[%s12 + $0x38] sm:$0xff]
  %v1389 = vld [vmem:[%s12 + $0x40] sm:$0xff]
  %v1390 = vld [vmem:[%s12 + $0x48] sm:$0xff]
  %v1391 = vld [vmem:[%s12 + $0x50] sm:$0xff]
  %v1392 = vld [vmem:[%s12 + $0x58] sm:$0xff]
  %v1393 = vld [vmem:[%s12 + $0x60] sm:$0xff]
  %v1394 = vld [vmem:[%s12 + $0x68] sm:$0xff]
  %v1395 = vld [vmem:[%s12 + $0x70] sm:$0xff]
  %v1396 = vld [vmem:[%s12 + $0x78] sm:$0xff]
  %1397 = vmatprep.subr.mxu0 0.0
  %1398 = vmatpush1.msra.mxu0 %v1381
  %1399 = vmatprep.subr.mxu0 0.0
  %1400 = vmatpush1.msra.mxu0 %v1382
  %1401 = vmatprep.subr.mxu0 0.0
  %1402 = vmatpush1.msra.mxu0 %v1383
  %1403 = vmatprep.subr.mxu0 0.0
  %1404 = vmatpush1.msra.mxu0 %v1384
  %1405 = vmatprep.subr.mxu0 0.0
  %1406 = vmatpush1.msra.mxu0 %v1385
  %1407 = vmatprep.subr.mxu0 0.0
  %1408 = vmatpush1.msra.mxu0 %v1386
  %1409 = vmatprep.subr.mxu0 0.0
  %1410 = vmatpush1.msra.mxu0 %v1387
  %1411 = vmatprep.subr.mxu0 0.0
  %1412 = vmatpush1.msra.mxu0 %v1388
  %1413 = vmatprep.subr.mxu0 0.0
  %1414 = vmatpush1.msra.mxu0 %v1389
  %1415 = vmatprep.subr.mxu0 0.0
  %1416 = vmatpush1.msra.mxu0 %v1390
  %1417 = vmatprep.subr.mxu0 0.0
  %1418 = vmatpush1.msra.mxu0 %v1391
  %1419 = vmatprep.subr.mxu0 0.0
  %1420 = vmatpush1.msra.mxu0 %v1392
  %1421 = vmatprep.subr.mxu0 0.0
  %1422 = vmatpush1.msra.mxu0 %v1393
  %1423 = vmatprep.subr.mxu0 0.0
  %1424 = vmatpush1.msra.mxu0 %v1394
  %1425 = vmatprep.subr.mxu0 0.0
  %1426 = vmatpush1.msra.mxu0 %v1395
  %1427 = vmatprep.subr.mxu0 0.0
  %1428 = vmatpush1.msra.mxu0 %v1396
  %1429 = vmatprep.subr.mxu0 0.0
  %1430 = vmatpush1.msra.mxu0 0.0
  %1431 = vmatprep.subr.mxu0 0.0
  %1432 = vmatpush1.msra.mxu0 0.0
  %1433 = vmatprep.subr.mxu0 0.0
  %1434 = vmatpush1.msra.mxu0 0.0
  %1435 = vmatprep.subr.mxu0 0.0
  %1436 = vmatpush1.msra.mxu0 0.0
  %1437 = vmatprep.subr.mxu0 0.0
  %1438 = vmatpush1.msra.mxu0 0.0
  %1439 = vmatprep.subr.mxu0 0.0
  %1440 = vmatpush1.msra.mxu0 0.0
  %1441 = vmatprep.subr.mxu0 0.0
  %1442 = vmatpush1.msra.mxu0 0.0
  %1443 = vmatprep.subr.mxu0 0.0
  %1444 = vmatpush1.msra.mxu0 0.0
  %1445 = vmatprep.subr.mxu0 0.0
  %1446 = vmatpush1.msra.mxu0 0.0
  %1447 = vmatprep.subr.mxu0 0.0
  %1448 = vmatpush1.msra.mxu0 0.0
  %1449 = vmatprep.subr.mxu0 0.0
  %1450 = vmatpush1.msra.mxu0 0.0
  %1451 = vmatprep.subr.mxu0 0.0
  %1452 = vmatpush1.msra.mxu0 0.0
  %1453 = vmatprep.subr.mxu0 0.0
  %1454 = vmatpush1.msra.mxu0 0.0
  %1455 = vmatprep.subr.mxu0 0.0
  %1456 = vmatpush1.msra.mxu0 0.0
  %1457 = vmatprep.subr.mxu0 0.0
  %1458 = vmatpush1.msra.mxu0 0.0
  %1459 = vmatprep.subr.mxu0 0.0
  %1460 = vmatpush1.msra.mxu0 0.0
  %1461 = vmatprep.mubr.f32.mxu0 0.0
  %1462 = vmatmul.mubr.f32.gmra.mrb[0].mxu0 %v1380
  %v1463 = vpop.f32.mrb[0].mxu0
  %v1464 = vadd.f32 0.0, %v1463
  %v1465 = vpop.f32.mrb[0].mxu0
  %1466 = vdwg.mxu0
  %vm1467 = vcmask 64512
  %v1468 = vsel %vm1467, %v1464, -inf
  %1469 = vmax.xlane.f32.xlu0 %v1468
  %v1470 = vpop.xlane.xlu0 %1469
  %v1471 = vsub.f32 %v1464, %v1470
  %v1472 = vmul.f32 %v1471, 1.442695
  %v1473 = vpow.pop %v1472
  %v1474 = vsel %vm1467, %v1473, 0.0
  %1475 = vadd.xlane.f32.xlu0 %v1474
  %v1476 = vpop.xlane.xlu0 %1475
  %v1477 = vrcp.pop %v1476
  %v1478 = vmul.f32 %v1473, %v1477
  %v1479 = vld [vmem:[%s13] sm:$0xff]
  %v1480 = vld [vmem:[%s13 + $0x8] sm:$0xff]
  %v1482 = vsel %vm1467, %v1478, 0
  %1484 = vmatprep.subr.mxu0 %v1480
  %1485 = vmatpush1.msra.mxu0 %v1479
  %1486 = vmatprep.subr.mxu0 0.0
  %1487 = vmatpush1.msra.mxu0 0.0
  %1488 = vmatprep.subr.mxu0 0.0
  %1489 = vmatpush1.msra.mxu0 0.0
  %1490 = vmatprep.subr.mxu0 0.0
  %1491 = vmatpush1.msra.mxu0 0.0
  %1492 = vmatprep.subr.mxu0 0.0
  %1493 = vmatpush1.msra.mxu0 0.0
  %1494 = vmatprep.subr.mxu0 0.0
  %1495 = vmatpush1.msra.mxu0 0.0
  %1496 = vmatprep.subr.mxu0 0.0
  %1497 = vmatpush1.msra.mxu0 0.0
  %1498 = vmatprep.subr.mxu0 0.0
  %1499 = vmatpush1.msra.mxu0 0.0
  %1500 = vmatprep.subr.mxu0 0.0
  %1501 = vmatpush1.msra.mxu0 0.0
  %1502 = vmatprep.subr.mxu0 0.0
  %1503 = vmatpush1.msra.mxu0 0.0
  %1504 = vmatprep.subr.mxu0 0.0
  %1505 = vmatpush1.msra.mxu0 0.0
  %1506 = vmatprep.subr.mxu0 0.0
  %1507 = vmatpush1.msra.mxu0 0.0
  %1508 = vmatprep.subr.mxu0 0.0
  %1509 = vmatpush1.msra.mxu0 0.0
  %1510 = vmatprep.subr.mxu0 0.0
  %1511 = vmatpush1.msra.mxu0 0.0
  %1512 = vmatprep.subr.mxu0 0.0
  %1513 = vmatpush1.msra.mxu0 0.0
  %1514 = vmatprep.subr.mxu0 0.0
  %1515 = vmatpush1.msra.mxu0 0.0
  %1516 = vmatprep.subr.mxu0 0.0
  %1517 = vmatpush1.msra.mxu0 0.0
  %1518 = vmatprep.subr.mxu0 0.0
  %1519 = vmatpush1.msra.mxu0 0.0
  %1520 = vmatprep.subr.mxu0 0.0
  %1521 = vmatpush1.msra.mxu0 0.0
  %1522 = vmatprep.subr.mxu0 0.0
  %1523 = vmatpush1.msra.mxu0 0.0
  %1524 = vmatprep.subr.mxu0 0.0
  %1525 = vmatpush1.msra.mxu0 0.0
  %1526 = vmatprep.subr.mxu0 0.0
  %1527 = vmatpush1.msra.mxu0 0.0
  %1528 = vmatprep.subr.mxu0 0.0
  %1529 = vmatpush1.msra.mxu0 0.0
  %1530 = vmatprep.subr.mxu0 0.0
  %1531 = vmatpush1.msra.mxu0 0.0
  %1532 = vmatprep.subr.mxu0 0.0
  %1533 = vmatpush1.msra.mxu0 0.0
  %1534 = vmatprep.subr.mxu0 0.0
  %1535 = vmatpush1.msra.mxu0 0.0
  %1536 = vmatprep.subr.mxu0 0.0
  %1537 = vmatpush1.msra.mxu0 0.0
  %1538 = vmatprep.subr.mxu0 0.0
  %1539 = vmatpush1.msra.mxu0 0.0
  %1540 = vmatprep.subr.mxu0 0.0
  %1541 = vmatpush1.msra.mxu0 0.0
  %1542 = vmatprep.subr.mxu0 0.0
  %1543 = vmatpush1.msra.mxu0 0.0
  %1544 = vmatprep.subr.mxu0 0.0
  %1545 = vmatpush1.msra.mxu0 0.0
  %1546 = vmatprep.subr.mxu0 0.0
  %1547 = vmatpush1.msra.mxu0 0.0
  %1548 = vmatprep.mubr.f32.mxu0 0.0
  %1549 = vmatmul.mubr.f32.gmra.mrb[0].mxu0 %v1482
  %v1550 = vpop.f32.mrb[0].mxu0
  %v1551 = vadd.f32 0.0, %v1550
  %v1552 = vpop.f32.mrb[0].mxu0
  %v1553 = vadd.f32 0.0, %v1552
  %1554 = vdwg.mxu0
  %v1555 = vmul.f32 %v1551, %v1187
  %v1556 = vmul.f32 %v1553, %v1188
  %v1557 = vld [vmem:[%s14] sm:$0xff]
  %v1558 = vld [vmem:[%s14 + $0x8] sm:$0xff]
  %v1559 = vld [vmem:[%s14 + $0x10] sm:$0xff]
  %v1560 = vld [vmem:[%s14 + $0x18] sm:$0xff]
  %v1561 = vld [vmem:[%s14 + $0x20] sm:$0xff]
  %v1562 = vld [vmem:[%s14 + $0x28] sm:$0xff]
  %v1563 = vld [vmem:[%s14 + $0x30] sm:$0xff]
  %v1564 = vld [vmem:[%s14 + $0x38] sm:$0xff]
  %v1565 = vld [vmem:[%s14 + $0x40] sm:$0xff]
  %v1566 = vld [vmem:[%s14 + $0x48] sm:$0xff]
  %v1567 = vld [vmem:[%s14 + $0x50] sm:$0xff]
  %v1568 = vld [vmem:[%s14 + $0x58] sm:$0xff]
  %v1569 = vld [vmem:[%s14 + $0x60] sm:$0xff]
  %v1570 = vld [vmem:[%s14 + $0x68] sm:$0xff]
  %v1571 = vld [vmem:[%s14 + $0x70] sm:$0xff]
  %v1572 = vld [vmem:[%s14 + $0x78] sm:$0xff]
  %v1573 = vld [vmem:[%s14 + $0x80] sm:$0xff]
  %v1574 = vld [vmem:[%s14 + $0x88] sm:$0xff]
  %v1575 = vld [vmem:[%s14 + $0x90] sm:$0xff]
  %v1576 = vld [vmem:[%s14 + $0x98] sm:$0xff]
  %v1577 = vld [vmem:[%s14 + $0xa0] sm:$0xff]
  %v1578 = vld [vmem:[%s14 + $0xa8] sm:$0xff]
  %v1579 = vld [vmem:[%s14 + $0xb0] sm:$0xff]
  %v1580 = vld [vmem:[%s14 + $0xb8] sm:$0xff]
  %v1581 = vld [vmem:[%s14 + $0xc0] sm:$0xff]
  %v1582 = vld [vmem:[%s14 + $0xc8] sm:$0xff]
  %v1583 = vld [vmem:[%s14 + $0xd0] sm:$0xff]
  %v1584 = vld [vmem:[%s14 + $0xd8] sm:$0xff]
  %v1585 = vld [vmem:[%s14 + $0xe0] sm:$0xff]
  %v1586 = vld [vmem:[%s14 + $0xe8] sm:$0xff]
  %v1587 = vld [vmem:[%s14 + $0xf0] sm:$0xff]
  %v1588 = vld [vmem:[%s14 + $0xf8] sm:$0xff]
  %1589 = vmatprep.subr.mxu0 0.0
  %1590 = vmatpush1.msra.mxu0 %v1557
  %1591 = vmatprep.subr.mxu0 0.0
  %1592 = vmatpush1.msra.mxu0 %v1558
  %1593 = vmatprep.subr.mxu0 0.0
  %1594 = vmatpush1.msra.mxu0 %v1559
  %1595 = vmatprep.subr.mxu0 0.0
  %1596 = vmatpush1.msra.mxu0 %v1560
  %1597 = vmatprep.subr.mxu0 0.0
  %1598 = vmatpush1.msra.mxu0 %v1561
  %1599 = vmatprep.subr.mxu0 0.0
  %1600 = vmatpush1.msra.mxu0 %v1562
  %1601 = vmatprep.subr.mxu0 0.0
  %1602 = vmatpush1.msra.mxu0 %v1563
  %1603 = vmatprep.subr.mxu0 0.0
  %1604 = vmatpush1.msra.mxu0 %v1564
  %1605 = vmatprep.subr.mxu0 0.0
  %1606 = vmatpush1.msra.mxu0 %v1565
  %1607 = vmatprep.subr.mxu0 0.0
  %1608 = vmatpush1.msra.mxu0 %v1566
  %1609 = vmatprep.subr.mxu0 0.0
  %1610 = vmatpush1.msra.mxu0 %v1567
  %1611 = vmatprep.subr.mxu0 0.0
  %1612 = vmatpush1.msra.mxu0 %v1568
  %1613 = vmatprep.subr.mxu0 0.0
  %1614 = vmatpush1.msra.mxu0 %v1569
  %1615 = vmatprep.subr.mxu0 0.0
  %1616 = vmatpush1.msra.mxu0 %v1570
  %1617 = vmatprep.subr.mxu0 0.0
  %1618 = vmatpush1.msra.mxu0 %v1571
  %1619 = vmatprep.subr.mxu0 0.0
  %1620 = vmatpush1.msra.mxu0 %v1572
  %1621 = vmatprep.subr.mxu0 0.0
  %1622 = vmatpush1.msra.mxu0 %v1573
  %1623 = vmatprep.subr.mxu0 0.0
  %1624 = vmatpush1.msra.mxu0 %v1574
  %1625 = vmatprep.subr.mxu0 0.0
  %1626 = vmatpush1.msra.mxu0 %v1575
  %1627 = vmatprep.subr.mxu0 0.0
  %1628 = vmatpush1.msra.mxu0 %v1576
  %1629 = vmatprep.subr.mxu0 0.0
  %1630 = vmatpush1.msra.mxu0 %v1577
  %1631 = vmatprep.subr.mxu0 0.0
  %1632 = vmatpush1.msra.mxu0 %v1578
  %1633 = vmatprep.subr.mxu0 0.0
  %1634 = vmatpush1.msra.mxu0 %v1579
  %1635 = vmatprep.subr.mxu0 0.0
  %1636 = vmatpush1.msra.mxu0 %v1580
  %1637 = vmatprep.subr.mxu0 0.0
  %1638 = vmatpush1.msra.mxu0 %v1581
  %1639 = vmatprep.subr.mxu0 0.0
  %1640 = vmatpush1.msra.mxu0 %v1582
  %1641 = vmatprep.subr.mxu0 0.0
  %1642 = vmatpush1.msra.mxu0 %v1583
  %1643 = vmatprep.subr.mxu0 0.0
  %1644 = vmatpush1.msra.mxu0 %v1584
  %1645 = vmatprep.subr.mxu0 0.0
  %1646 = vmatpush1.msra.mxu0 %v1585
  %1647 = vmatprep.subr.mxu0 0.0
  %1648 = vmatpush1.msra.mxu0 %v1586
  %1649 = vmatprep.subr.mxu0 0.0
  %1650 = vmatpush1.msra.mxu0 %v1587
  %1651 = vmatprep.subr.mxu0 0.0
  %1652 = vmatpush1.msra.mxu0 %v1588
  %1653 = vmatprep.mubr.f32.mxu0 %v1556
  %1654 = vmatmul.mubr.f32.gmra.mrb[0].mxu0 %v1555
  %v1655 = vpop.f32.mrb[0].mxu0
  %v1656 = vadd.f32 0.0, %v1655
  %v1657 = vpop.f32.mrb[0].mxu0
  %1658 = vdwg.mxu0
  %v1659 = vld [vmem:[%s15] sm:$0xff]
  %v1660 = vld [vmem:[%s16] sm:$0xff]
  %v1661 = vld [vmem:[%s16 + $0x8] sm:$0xff]
  %v1662 = vld [vmem:[%s16 + $0x10] sm:$0xff]
  %v1663 = vld [vmem:[%s16 + $0x18] sm:$0xff]
  %v1665 = vsel %vm242, %v1656, 0
  %1667 = vmatprep.subr.mxu0 0.0
  %1668 = vmatpush1.msra.mxu0 %v1660
  %1669 = vmatprep.subr.mxu0 0.0
  %1670 = vmatpush1.msra.mxu0 %v1661
  %1671 = vmatprep.subr.mxu0 0.0
  %1672 = vmatpush1.msra.mxu0 %v1662
  %1673 = vmatprep.subr.mxu0 0.0
  %1674 = vmatpush1.msra.mxu0 %v1663
  %1675 = vmatprep.subr.mxu0 0.0
  %1676 = vmatpush1.msra.mxu0 0.0
  %1677 = vmatprep.subr.mxu0 0.0
  %1678 = vmatpush1.msra.mxu0 0.0
  %1679 = vmatprep.subr.mxu0 0.0
  %1680 = vmatpush1.msra.mxu0 0.0
  %1681 = vmatprep.subr.mxu0 0.0
  %1682 = vmatpush1.msra.mxu0 0.0
  %1683 = vmatprep.subr.mxu0 0.0
  %1684 = vmatpush1.msra.mxu0 0.0
  %1685 = vmatprep.subr.mxu0 0.0
  %1686 = vmatpush1.msra.mxu0 0.0
  %1687 = vmatprep.subr.mxu0 0.0
  %1688 = vmatpush1.msra.mxu0 0.0
  %1689 = vmatprep.subr.mxu0 0.0
  %1690 = vmatpush1.msra.mxu0 0.0
  %1691 = vmatprep.subr.mxu0 0.0
  %1692 = vmatpush1.msra.mxu0 0.0
  %1693 = vmatprep.subr.mxu0 0.0
  %1694 = vmatpush1.msra.mxu0 0.0
  %1695 = vmatprep.subr.mxu0 0.0
  %1696 = vmatpush1.msra.mxu0 0.0
  %1697 = vmatprep.subr.mxu0 0.0
  %1698 = vmatpush1.msra.mxu0 0.0
  %1699 = vmatprep.subr.mxu0 0.0
  %1700 = vmatpush1.msra.mxu0 0.0
  %1701 = vmatprep.subr.mxu0 0.0
  %1702 = vmatpush1.msra.mxu0 0.0
  %1703 = vmatprep.subr.mxu0 0.0
  %1704 = vmatpush1.msra.mxu0 0.0
  %1705 = vmatprep.subr.mxu0 0.0
  %1706 = vmatpush1.msra.mxu0 0.0
  %1707 = vmatprep.subr.mxu0 0.0
  %1708 = vmatpush1.msra.mxu0 0.0
  %1709 = vmatprep.subr.mxu0 0.0
  %1710 = vmatpush1.msra.mxu0 0.0
  %1711 = vmatprep.subr.mxu0 0.0
  %1712 = vmatpush1.msra.mxu0 0.0
  %1713 = vmatprep.subr.mxu0 0.0
  %1714 = vmatpush1.msra.mxu0 0.0
  %1715 = vmatprep.subr.mxu0 0.0
  %1716 = vmatpush1.msra.mxu0 0.0
  %1717 = vmatprep.subr.mxu0 0.0
  %1718 = vmatpush1.msra.mxu0 0.0
  %1719 = vmatprep.subr.mxu0 0.0
  %1720 = vmatpush1.msra.mxu0 0.0
  %1721 = vmatprep.subr.mxu0 0.0
  %1722 = vmatpush1.msra.mxu0 0.0
  %1723 = vmatprep.subr.mxu0 0.0
  %1724 = vmatpush1.msra.mxu0 0.0
  %1725 = vmatprep.subr.mxu0 0.0
  %1726 = vmatpush1.msra.mxu0 0.0
  %1727 = vmatprep.subr.mxu0 0.0
  %1728 = vmatpush1.msra.mxu0 0.0
  %1729 = vmatprep.subr.mxu0 0.0
  %1730 = vmatpush1.msra.mxu0 0.0
  %1731 = vmatprep.mubr.f32.mxu0 0.0
  %1732 = vmatmul.mubr.f32.gmra.mrb[0].mxu0 %v1665
  %v1733 = vpop.f32.mrb[0].mxu0
  %v1734 = vadd.f32 0.0, %v1733
  %v1735 = vpop.f32.mrb[0].mxu0
  %1736 = vdwg.mxu0
  %v1738 = vsel %vm1467, %v1303, 0
  %1740 = vmatprep.subr.mxu0 0.0
  %1741 = vmatpush1.msra.mxu0 %v1659
  %1742 = vmatprep.subr.mxu0 0.0
  %1743 = vmatpush1.msra.mxu0 0.0
  %1744 = vmatprep.subr.mxu0 0.0
  %1745 = vmatpush1.msra.mxu0 0.0
  %1746 = vmatprep.subr.mxu0 0.0
  %1747 = vmatpush1.msra.mxu0 0.0
  %1748 = vmatprep.subr.mxu0 0.0
  %1749 = vmatpush1.msra.mxu0 0.0
  %1750 = vmatprep.subr.mxu0 0.0
  %1751 = vmatpush1.msra.mxu0 0.0
  %1752 = vmatprep.subr.mxu0 0.0
  %1753 = vmatpush1.msra.mxu0 0.0
  %1754 = vmatprep.subr.mxu0 0.0
  %1755 = vmatpush1.msra.mxu0 0.0
  %1756 = vmatprep.subr.mxu0 0.0
  %1757 = vmatpush1.msra.mxu0 0.0
  %1758 = vmatprep.subr.mxu0 0.0
  %1759 = vmatpush1.msra.mxu0 0.0
  %1760 = vmatprep.subr.mxu0 0.0
  %1761 = vmatpush1.msra.mxu0 0.0
  %1762 = vmatprep.subr.mxu0 0.0
  %1763 = vmatpush1.msra.mxu0 0.0
  %1764 = vmatprep.subr.mxu0 0.0
  %1765 = vmatpush1.msra.mxu0 0.0
  %1766 = vmatprep.subr.mxu0 0.0
  %1767 = vmatpush1.msra.mxu0 0.0
  %1768 = vmatprep.subr.mxu0 0.0
  %1769 = vmatpush1.msra.mxu0 0.0
  %1770 = vmatprep.subr.mxu0 0.0
  %1771 = vmatpush1.msra.mxu0 0.0
  %1772 = vmatprep.subr.mxu0 0.0
  %1773 = vmatpush1.msra.mxu0 0.0
  %1774 = vmatprep.subr.mxu0 0.0
  %1775 = vmatpush1.msra.mxu0 0.0
  %1776 = vmatprep.subr.mxu0 0.0
  %1777 = vmatpush1.msra.mxu0 0.0
  %1778 = vmatprep.subr.mxu0 0.0
  %1779 = vmatpush1.msra.mxu0 0.0
  %1780 = vmatprep.subr.mxu0 0.0
  %1781 = vmatpush1.msra.mxu0 0.0
  %1782 = vmatprep.subr.mxu0 0.0
  %1783 = vmatpush1.msra.mxu0 0.0
  %1784 = vmatprep.subr.mxu0 0.0
  %1785 = vmatpush1.msra.mxu0 0.0
  %1786 = vmatprep.subr.mxu0 0.0
  %1787 = vmatpush1.msra.mxu0 0.0
  %1788 = vmatprep.subr.mxu0 0.0
  %1789 = vmatpush1.msra.mxu0 0.0
  %1790 = vmatprep.subr.mxu0 0.0
  %1791 = vmatpush1.msra.mxu0 0.0
  %1792 = vmatprep.subr.mxu0 0.0
  %1793 = vmatpush1.msra.mxu0 0.0
  %1794 = vmatprep.subr.mxu0 0.0
  %1795 = vmatpush1.msra.mxu0 0.0
  %1796 = vmatprep.subr.mxu0 0.0
  %1797 = vmatpush1.msra.mxu0 0.0
  %1798 = vmatprep.subr.mxu0 0.0
  %1799 = vmatpush1.msra.mxu0 0.0
  %1800 = vmatprep.subr.mxu0 0.0
  %1801 = vmatpush1.msra.mxu0 0.0
  %1802 = vmatprep.subr.mxu0 0.0
  %1803 = vmatpush1.msra.mxu0 0.0
  %1804 = vmatprep.mubr.f32.mxu0 0.0
  %1805 = vmatmul.mubr.f32.gmra.mrb[0].mxu0 %v1738
  %v1806 = vpop.f32.mrb[0].mxu0
  %v1807 = vadd.f32 %v1734, %v1806
  %v1808 = vpop.f32.mrb[0].mxu0
  %1809 = vdwg.mxu0
  %v1810 = vld [vmem:[%s18] sm:$0x1]
  %v1812 = vlaneseq
  %v1813 = vshrl.u32 %v1812, 7
  %v1814 = vsub.s32 0, %v1813
  %v1815 = vrot.slane %v1810, %v1814
  %v1817 = vadd.f32 %v1807, %v1815
  %v1818 = vld [vmem:[%s17] sm:$0xff]
  %v1819 = vld [vmem:[%s17 + $0x8] sm:$0xff]
  %v1820 = vld [vmem:[%s19] sm:$0x1]
  %v1822 = vlaneseq
  %v1823 = vshrl.u32 %v1822, 7
  %v1824 = vsub.s32 0, %v1823
  %v1825 = vrot.slane %v1820, %v1824
  %1827 = vmatprep.subr.mxu0 0.0
  %1828 = vmatpush1.msra.mxu0 %v1818
  %1829 = vmatprep.subr.mxu0 0.0
  %1830 = vmatpush1.msra.mxu0 %v1819
  %1831 = vmatprep.subr.mxu0 0.0
  %1832 = vmatpush1.msra.mxu0 0.0
  %1833 = vmatprep.subr.mxu0 0.0
  %1834 = vmatpush1.msra.mxu0 0.0
  %1835 = vmatprep.subr.mxu0 0.0
  %1836 = vmatpush1.msra.mxu0 0.0
  %1837 = vmatprep.subr.mxu0 0.0
  %1838 = vmatpush1.msra.mxu0 0.0
  %1839 = vmatprep.subr.mxu0 0.0
  %1840 = vmatpush1.msra.mxu0 0.0
  %1841 = vmatprep.subr.mxu0 0.0
  %1842 = vmatpush1.msra.mxu0 0.0
  %1843 = vmatprep.subr.mxu0 0.0
  %1844 = vmatpush1.msra.mxu0 0.0
  %1845 = vmatprep.subr.mxu0 0.0
  %1846 = vmatpush1.msra.mxu0 0.0
  %1847 = vmatprep.subr.mxu0 0.0
  %1848 = vmatpush1.msra.mxu0 0.0
  %1849 = vmatprep.subr.mxu0 0.0
  %1850 = vmatpush1.msra.mxu0 0.0
  %1851 = vmatprep.subr.mxu0 0.0
  %1852 = vmatpush1.msra.mxu0 0.0
  %1853 = vmatprep.subr.mxu0 0.0
  %1854 = vmatpush1.msra.mxu0 0.0
  %1855 = vmatprep.subr.mxu0 0.0
  %1856 = vmatpush1.msra.mxu0 0.0
  %1857 = vmatprep.subr.mxu0 0.0
  %1858 = vmatpush1.msra.mxu0 0.0
  %1859 = vmatprep.subr.mxu0 0.0
  %1860 = vmatpush1.msra.mxu0 0.0
  %1861 = vmatprep.subr.mxu0 0.0
  %1862 = vmatpush1.msra.mxu0 0.0
  %1863 = vmatprep.subr.mxu0 0.0
  %1864 = vmatpush1.msra.mxu0 0.0
  %1865 = vmatprep.subr.mxu0 0.0
  %1866 = vmatpush1.msra.mxu0 0.0
  %1867 = vmatprep.subr.mxu0 0.0
  %1868 = vmatpush1.msra.mxu0 0.0
  %1869 = vmatprep.subr.mxu0 0.0
  %1870 = vmatpush1.msra.mxu0 0.0
  %1871 = vmatprep.subr.mxu0 0.0
  %1872 = vmatpush1.msra.mxu0 0.0
  %1873 = vmatprep.subr.mxu0 0.0
  %1874 = vmatpush1.msra.mxu0 0.0
  %1875 = vmatprep.subr.mxu0 0.0
  %1876 = vmatpush1.msra.mxu0 0.0
  %1877 = vmatprep.subr.mxu0 0.0
  %1878 = vmatpush1.msra.mxu0 0.0
  %1879 = vmatprep.subr.mxu0 0.0
  %1880 = vmatpush1.msra.mxu0 0.0
  %1881 = vmatprep.subr.mxu0 0.0
  %1882 = vmatpush1.msra.mxu0 0.0
  %1883 = vmatprep.subr.mxu0 0.0
  %1884 = vmatpush1.msra.mxu0 0.0
  %1885 = vmatprep.subr.mxu0 0.0
  %1886 = vmatpush1.msra.mxu0 0.0
  %1887 = vmatprep.subr.mxu0 0.0
  %1888 = vmatpush1.msra.mxu0 0.0
  %1889 = vmatprep.subr.mxu0 0.0
  %1890 = vmatpush1.msra.mxu0 0.0
  %1891 = vmatprep.mubr.f32.mxu0 0.0
  %1892 = vmatmul.mubr.f32.gmra.mrb[0].mxu0 %v1307
  %v1893 = vpop.f32.mrb[0].mxu0
  %v1894 = vadd.f32 %v1825, %v1893
  %v1895 = vpop.f32.mrb[0].mxu0
  %1896 = vdwg.mxu0
  %v1897 = vadd.f32 %v1817, %v1894
  %v1898 = vxor.u32 %v1897, 2147483648
  %v1899 = vmul.f32 %v1898, 1.442695
  %v1900 = vpow.pop %v1899
  %v1901 = vadd.f32 %v1900, 1.0
  %v1902 = vrcp.pop %v1901
  %v1903 = vmul.f32 1.0, %v1902
  %1905 = vrot.lane.b32.xlu0 %v1894, 96
  %v1906 = vpop.permute.xlu0 %1905
  %v1908 = vmul.f32 %v1903, %v1906
  %1910 = vrot.lane.b32.xlu0 %v1908, 32
  %v1911 = vpop.permute.xlu0 %1910
  %v1913 = vadd.f32 %v1817, %v1911
  %v1914 = vtanh.pop %v1913
  %v1915 = vsub.f32 1.0, %v1903
  %1917 = vrot.lane.b32.xlu0 %v1914, 112
  %v1918 = vpop.permute.xlu0 %1917
  %v1920 = vmul.f32 %v1915, %v1918
  %1921 = vrot.lane.b32.xlu0 %v1186, 16
  %v1922 = vpop.permute.xlu0 %1921
  %v1924 = vmul.f32 %v1903, %v1922
  %v1925 = vadd.f32 %v1920, %v1924
  %v1926 = vld [vmem:[%s20] sm:$0xff]
  %v1927 = vld [vmem:[%s20 + $0x8] sm:$0xff]
  %v1928 = vld [vmem:[%s21] sm:$0xff]
  %v1929 = vld [vmem:[%s21 + $0x8] sm:$0xff]
  %v1930 = vld [vmem:[%s21 + $0x10] sm:$0xff]
  %v1931 = vld [vmem:[%s21 + $0x18] sm:$0xff]
  %1932 = vmatprep.subr.mxu0 0.0
  %1933 = vmatpush1.msra.mxu0 %v1928
  %1934 = vmatprep.subr.mxu0 0.0
  %1935 = vmatpush1.msra.mxu0 %v1929
  %1936 = vmatprep.subr.mxu0 0.0
  %1937 = vmatpush1.msra.mxu0 %v1930
  %1938 = vmatprep.subr.mxu0 0.0
  %1939 = vmatpush1.msra.mxu0 %v1931
  %1940 = vmatprep.subr.mxu0 0.0
  %1941 = vmatpush1.msra.mxu0 0.0
  %1942 = vmatprep.subr.mxu0 0.0
  %1943 = vmatpush1.msra.mxu0 0.0
  %1944 = vmatprep.subr.mxu0 0.0
  %1945 = vmatpush1.msra.mxu0 0.0
  %1946 = vmatprep.subr.mxu0 0.0
  %1947 = vmatpush1.msra.mxu0 0.0
  %1948 = vmatprep.subr.mxu0 0.0
  %1949 = vmatpush1.msra.mxu0 0.0
  %1950 = vmatprep.subr.mxu0 0.0
  %1951 = vmatpush1.msra.mxu0 0.0
  %1952 = vmatprep.subr.mxu0 0.0
  %1953 = vmatpush1.msra.mxu0 0.0
  %1954 = vmatprep.subr.mxu0 0.0
  %1955 = vmatpush1.msra.mxu0 0.0
  %1956 = vmatprep.subr.mxu0 0.0
  %1957 = vmatpush1.msra.mxu0 0.0
  %1958 = vmatprep.subr.mxu0 0.0
  %1959 = vmatpush1.msra.mxu0 0.0
  %1960 = vmatprep.subr.mxu0 0.0
  %1961 = vmatpush1.msra.mxu0 0.0
  %1962 = vmatprep.subr.mxu0 0.0
  %1963 = vmatpush1.msra.mxu0 0.0
  %1964 = vmatprep.subr.mxu0 0.0
  %1965 = vmatpush1.msra.mxu0 0.0
  %1966 = vmatprep.subr.mxu0 0.0
  %1967 = vmatpush1.msra.mxu0 0.0
  %1968 = vmatprep.subr.mxu0 0.0
  %1969 = vmatpush1.msra.mxu0 0.0
  %1970 = vmatprep.subr.mxu0 0.0
  %1971 = vmatpush1.msra.mxu0 0.0
  %1972 = vmatprep.subr.mxu0 0.0
  %1973 = vmatpush1.msra.mxu0 0.0
  %1974 = vmatprep.subr.mxu0 0.0
  %1975 = vmatpush1.msra.mxu0 0.0
  %1976 = vmatprep.subr.mxu0 0.0
  %1977 = vmatpush1.msra.mxu0 0.0
  %1978 = vmatprep.subr.mxu0 0.0
  %1979 = vmatpush1.msra.mxu0 0.0
  %1980 = vmatprep.subr.mxu0 0.0
  %1981 = vmatpush1.msra.mxu0 0.0
  %1982 = vmatprep.subr.mxu0 0.0
  %1983 = vmatpush1.msra.mxu0 0.0
  %1984 = vmatprep.subr.mxu0 0.0
  %1985 = vmatpush1.msra.mxu0 0.0
  %1986 = vmatprep.subr.mxu0 0.0
  %1987 = vmatpush1.msra.mxu0 0.0
  %1988 = vmatprep.subr.mxu0 0.0
  %1989 = vmatpush1.msra.mxu0 0.0
  %1990 = vmatprep.subr.mxu0 0.0
  %1991 = vmatpush1.msra.mxu0 0.0
  %1992 = vmatprep.subr.mxu0 0.0
  %1993 = vmatpush1.msra.mxu0 0.0
  %1994 = vmatprep.subr.mxu0 0.0
  %1995 = vmatpush1.msra.mxu0 0.0
  %1996 = vmatprep.mubr.f32.mxu0 0.0
  %1997 = vmatmul.mubr.f32.gmra.mrb[0].mxu0 %v1665
  %v1998 = vpop.f32.mrb[0].mxu0
  %v1999 = vadd.f32 0.0, %v1998
  %v2000 = vpop.f32.mrb[0].mxu0
  %2001 = vdwg.mxu0
  %2003 = vrot.lane.b32.xlu0 %v1925, 112
  %v2004 = vpop.permute.xlu0 %2003
  %v2005 = vsel %vm101, %v2004, 0
  %2007 = vmatprep.subr.mxu0 0.0
  %2008 = vmatpush1.msra.mxu0 %v1926
  %2009 = vmatprep.subr.mxu0 0.0
  %2010 = vmatpush1.msra.mxu0 %v1927
  %2011 = vmatprep.subr.mxu0 0.0
  %2012 = vmatpush1.msra.mxu0 0.0
  %2013 = vmatprep.subr.mxu0 0.0
  %2014 = vmatpush1.msra.mxu0 0.0
  %2015 = vmatprep.subr.mxu0 0.0
  %2016 = vmatpush1.msra.mxu0 0.0
  %2017 = vmatprep.subr.mxu0 0.0
  %2018 = vmatpush1.msra.mxu0 0.0
  %2019 = vmatprep.subr.mxu0 0.0
  %2020 = vmatpush1.msra.mxu0 0.0
  %2021 = vmatprep.subr.mxu0 0.0
  %2022 = vmatpush1.msra.mxu0 0.0
  %2023 = vmatprep.subr.mxu0 0.0
  %2024 = vmatpush1.msra.mxu0 0.0
  %2025 = vmatprep.subr.mxu0 0.0
  %2026 = vmatpush1.msra.mxu0 0.0
  %2027 = vmatprep.subr.mxu0 0.0
  %2028 = vmatpush1.msra.mxu0 0.0
  %2029 = vmatprep.subr.mxu0 0.0
  %2030 = vmatpush1.msra.mxu0 0.0
  %2031 = vmatprep.subr.mxu0 0.0
  %2032 = vmatpush1.msra.mxu0 0.0
  %2033 = vmatprep.subr.mxu0 0.0
  %2034 = vmatpush1.msra.mxu0 0.0
  %2035 = vmatprep.subr.mxu0 0.0
  %2036 = vmatpush1.msra.mxu0 0.0
  %2037 = vmatprep.subr.mxu0 0.0
  %2038 = vmatpush1.msra.mxu0 0.0
  %2039 = vmatprep.subr.mxu0 0.0
  %2040 = vmatpush1.msra.mxu0 0.0
  %2041 = vmatprep.subr.mxu0 0.0
  %2042 = vmatpush1.msra.mxu0 0.0
  %2043 = vmatprep.subr.mxu0 0.0
  %2044 = vmatpush1.msra.mxu0 0.0
  %2045 = vmatprep.subr.mxu0 0.0
  %2046 = vmatpush1.msra.mxu0 0.0
  %2047 = vmatprep.subr.mxu0 0.0
  %2048 = vmatpush1.msra.mxu0 0.0
  %2049 = vmatprep.subr.mxu0 0.0
  %2050 = vmatpush1.msra.mxu0 0.0
  %2051 = vmatprep.subr.mxu0 0.0
  %2052 = vmatpush1.msra.mxu0 0.0
  %2053 = vmatprep.subr.mxu0 0.0
  %2054 = vmatpush1.msra.mxu0 0.0
  %2055 = vmatprep.subr.mxu0 0.0
  %2056 = vmatpush1.msra.mxu0 0.0
  %2057 = vmatprep.subr.mxu0 0.0
  %2058 = vmatpush1.msra.mxu0 0.0
  %2059 = vmatprep.subr.mxu0 0.0
  %2060 = vmatpush1.msra.mxu0 0.0
  %2061 = vmatprep.subr.mxu0 0.0
  %2062 = vmatpush1.msra.mxu0 0.0
  %2063 = vmatprep.subr.mxu0 0.0
  %2064 = vmatpush1.msra.mxu0 0.0
  %2065 = vmatprep.subr.mxu0 0.0
  %2066 = vmatpush1.msra.mxu0 0.0
  %2067 = vmatprep.subr.mxu0 0.0
  %2068 = vmatpush1.msra.mxu0 0.0
  %2069 = vmatprep.subr.mxu0 0.0
  %2070 = vmatpush1.msra.mxu0 0.0
  %2071 = vmatprep.mubr.f32.mxu0 0.0
  %2072 = vmatmul.mubr.f32.gmra.mrb[0].mxu0 %v2005
  %v2073 = vpop.f32.mrb[0].mxu0
  %v2074 = vadd.f32 %v1999, %v2073
  %v2075 = vpop.f32.mrb[0].mxu0
  %2076 = vdwg.mxu0
  %v2077 = vld [vmem:[%s22] sm:$0xff]
  %2078 = vmatprep.subr.mxu0 0.0
  %2079 = vmatpush1.msra.mxu0 %v2077
  %2080 = vmatprep.subr.mxu0 0.0
  %2081 = vmatpush1.msra.mxu0 0.0
  %2082 = vmatprep.subr.mxu0 0.0
  %2083 = vmatpush1.msra.mxu0 0.0
  %2084 = vmatprep.subr.mxu0 0.0
  %2085 = vmatpush1.msra.mxu0 0.0
  %2086 = vmatprep.subr.mxu0 0.0
  %2087 = vmatpush1.msra.mxu0 0.0
  %2088 = vmatprep.subr.mxu0 0.0
  %2089 = vmatpush1.msra.mxu0 0.0
  %2090 = vmatprep.subr.mxu0 0.0
  %2091 = vmatpush1.msra.mxu0 0.0
  %2092 = vmatprep.subr.mxu0 0.0
  %2093 = vmatpush1.msra.mxu0 0.0
  %2094 = vmatprep.subr.mxu0 0.0
  %2095 = vmatpush1.msra.mxu0 0.0
  %2096 = vmatprep.subr.mxu0 0.0
  %2097 = vmatpush1.msra.mxu0 0.0
  %2098 = vmatprep.subr.mxu0 0.0
  %2099 = vmatpush1.msra.mxu0 0.0
  %2100 = vmatprep.subr.mxu0 0.0
  %2101 = vmatpush1.msra.mxu0 0.0
  %2102 = vmatprep.subr.mxu0 0.0
  %2103 = vmatpush1.msra.mxu0 0.0
  %2104 = vmatprep.subr.mxu0 0.0
  %2105 = vmatpush1.msra.mxu0 0.0
  %2106 = vmatprep.subr.mxu0 0.0
  %2107 = vmatpush1.msra.mxu0 0.0
  %2108 = vmatprep.subr.mxu0 0.0
  %2109 = vmatpush1.msra.mxu0 0.0
  %2110 = vmatprep.subr.mxu0 0.0
  %2111 = vmatpush1.msra.mxu0 0.0
  %2112 = vmatprep.subr.mxu0 0.0
  %2113 = vmatpush1.msra.mxu0 0.0
  %2114 = vmatprep.subr.mxu0 0.0
  %2115 = vmatpush1.msra.mxu0 0.0
  %2116 = vmatprep.subr.mxu0 0.0
  %2117 = vmatpush1.msra.mxu0 0.0
  %2118 = vmatprep.subr.mxu0 0.0
  %2119 = vmatpush1.msra.mxu0 0.0
  %2120 = vmatprep.subr.mxu0 0.0
  %2121 = vmatpush1.msra.mxu0 0.0
  %2122 = vmatprep.subr.mxu0 0.0
  %2123 = vmatpush1.msra.mxu0 0.0
  %2124 = vmatprep.subr.mxu0 0.0
  %2125 = vmatpush1.msra.mxu0 0.0
  %2126 = vmatprep.subr.mxu0 0.0
  %2127 = vmatpush1.msra.mxu0 0.0
  %2128 = vmatprep.subr.mxu0 0.0
  %2129 = vmatpush1.msra.mxu0 0.0
  %2130 = vmatprep.subr.mxu0 0.0
  %2131 = vmatpush1.msra.mxu0 0.0
  %2132 = vmatprep.subr.mxu0 0.0
  %2133 = vmatpush1.msra.mxu0 0.0
  %2134 = vmatprep.subr.mxu0 0.0
  %2135 = vmatpush1.msra.mxu0 0.0
  %2136 = vmatprep.subr.mxu0 0.0
  %2137 = vmatpush1.msra.mxu0 0.0
  %2138 = vmatprep.subr.mxu0 0.0
  %2139 = vmatpush1.msra.mxu0 0.0
  %2140 = vmatprep.subr.mxu0 0.0
  %2141 = vmatpush1.msra.mxu0 0.0
  %2142 = vmatprep.mubr.f32.mxu0 0.0
  %2143 = vmatmul.mubr.f32.gmra.mrb[0].mxu0 %v1738
  %v2144 = vpop.f32.mrb[0].mxu0
  %v2145 = vadd.f32 0.0, %v2144
  %v2146 = vpop.f32.mrb[0].mxu0
  %2147 = vdwg.mxu0
  %v2148 = vadd.f32 %v2074, %v2145
  %v2149 = vld [vmem:[%s23] sm:$0x1]
  %v2151 = vlaneseq
  %v2152 = vshrl.u32 %v2151, 7
  %v2153 = vsub.s32 0, %v2152
  %v2154 = vrot.slane %v2149, %v2153
  %v2156 = vadd.f32 %v2148, %v2154
  %2157 = vst.msk [vmem:[%s25] sm:$0xff] %vm101, %v2156
  %v2158 = vsel %vm101, %v2156, -inf
  %2159 = vmax.xlane.f32.xlu0 %v2158
  %v2160 = vpop.xlane.xlu0 %2159
  %vm2161 = vcmp.ge.f32.partialorder %v2156, %v2160
  %v2162 = vsel %vm2161, %v1302, 16.0
  %v2163 = vsel %vm101, %v2162, inf
  %2164 = vmin.xlane.f32.xlu0 %v2163
  %v2165 = vpop.xlane.xlu0 %2164
  %vm2166 = vcmp.eq.f32.partialorder %v1302, %v2165
  %v2167 = vsel %vm2166, 1.0, 0.0
  %v2169 = vsel %vm101, %v2167, 0
  %2171 = vmatprep.subr.mxu0 0.0
  %2172 = vmatpush1.msra.mxu0 %v1298
  %2173 = vmatprep.subr.mxu0 0.0
  %2174 = vmatpush1.msra.mxu0 %v1299
  %2175 = vmatprep.subr.mxu0 0.0
  %2176 = vmatpush1.msra.mxu0 0.0
  %2177 = vmatprep.subr.mxu0 0.0
  %2178 = vmatpush1.msra.mxu0 0.0
  %2179 = vmatprep.subr.mxu0 0.0
  %2180 = vmatpush1.msra.mxu0 0.0
  %2181 = vmatprep.subr.mxu0 0.0
  %2182 = vmatpush1.msra.mxu0 0.0
  %2183 = vmatprep.subr.mxu0 0.0
  %2184 = vmatpush1.msra.mxu0 0.0
  %2185 = vmatprep.subr.mxu0 0.0
  %2186 = vmatpush1.msra.mxu0 0.0
  %2187 = vmatprep.subr.mxu0 0.0
  %2188 = vmatpush1.msra.mxu0 0.0
  %2189 = vmatprep.subr.mxu0 0.0
  %2190 = vmatpush1.msra.mxu0 0.0
  %2191 = vmatprep.subr.mxu0 0.0
  %2192 = vmatpush1.msra.mxu0 0.0
  %2193 = vmatprep.subr.mxu0 0.0
  %2194 = vmatpush1.msra.mxu0 0.0
  %2195 = vmatprep.subr.mxu0 0.0
  %2196 = vmatpush1.msra.mxu0 0.0
  %2197 = vmatprep.subr.mxu0 0.0
  %2198 = vmatpush1.msra.mxu0 0.0
  %2199 = vmatprep.subr.mxu0 0.0
  %2200 = vmatpush1.msra.mxu0 0.0
  %2201 = vmatprep.subr.mxu0 0.0
  %2202 = vmatpush1.msra.mxu0 0.0
  %2203 = vmatprep.subr.mxu0 0.0
  %2204 = vmatpush1.msra.mxu0 0.0
  %2205 = vmatprep.subr.mxu0 0.0
  %2206 = vmatpush1.msra.mxu0 0.0
  %2207 = vmatprep.subr.mxu0 0.0
  %2208 = vmatpush1.msra.mxu0 0.0
  %2209 = vmatprep.subr.mxu0 0.0
  %2210 = vmatpush1.msra.mxu0 0.0
  %2211 = vmatprep.subr.mxu0 0.0
  %2212 = vmatpush1.msra.mxu0 0.0
  %2213 = vmatprep.subr.mxu0 0.0
  %2214 = vmatpush1.msra.mxu0 0.0
  %2215 = vmatprep.subr.mxu0 0.0
  %2216 = vmatpush1.msra.mxu0 0.0
  %2217 = vmatprep.subr.mxu0 0.0
  %2218 = vmatpush1.msra.mxu0 0.0
  %2219 = vmatprep.subr.mxu0 0.0
  %2220 = vmatpush1.msra.mxu0 0.0
  %2221 = vmatprep.subr.mxu0 0.0
  %2222 = vmatpush1.msra.mxu0 0.0
  %2223 = vmatprep.subr.mxu0 0.0
  %2224 = vmatpush1.msra.mxu0 0.0
  %2225 = vmatprep.subr.mxu0 0.0
  %2226 = vmatpush1.msra.mxu0 0.0
  %2227 = vmatprep.subr.mxu0 0.0
  %2228 = vmatpush1.msra.mxu0 0.0
  %2229 = vmatprep.subr.mxu0 0.0
  %2230 = vmatpush1.msra.mxu0 0.0
  %2231 = vmatprep.subr.mxu0 0.0
  %2232 = vmatpush1.msra.mxu0 0.0
  %2233 = vmatprep.subr.mxu0 0.0
  %2234 = vmatpush1.msra.mxu0 0.0
  %2235 = vmatprep.mubr.f32.mxu0 0.0
  %2236 = vmatmul.mubr.f32.gmra.mrb[0].mxu0 %v2169
  %v2237 = vpop.f32.mrb[0].mxu0
  %v2238 = vadd.f32 0.0, %v2237
  %v2239 = vpop.f32.mrb[0].mxu0
  %2240 = vdwg.mxu0
  %s2241 = sld [smem:[#allocation4 + $0x1]]
  %p2242 = scmp.gt.s32.totalorder %s2241, 0
  %s2243 = scalar_select %p2242, 1, 0
  %s2244 = scvt.s32.f32 %s2243
  %s2245 = scalar_lea.vmem %s2, 8
  %v2246 = vld [vmem:[%s2245] sm:$0xff]
  %v2247 = vstv %s2244
  %v2248 = vmul.f32 %v2247, %v2246
  %s2249 = ssub.f32 1.0, %s2244
  %v2250 = vstv %s2249
  %v2251 = vmul.f32 %v2250, %v2238
  %v2252 = vadd.f32 %v2248, %v2251
  %v2253 = vld [vmem:[%s11] sm:$0xff]
  %v2254 = vld [vmem:[%s11 + $0x8] sm:$0xff]
  %2255 = vmatprep.subr.mxu0 0.0
  %2256 = vmatpush1.msra.mxu0 %v2253
  %2257 = vmatprep.subr.mxu0 0.0
  %2258 = vmatpush1.msra.mxu0 %v2254
  %2259 = vmatprep.subr.mxu0 0.0
  %2260 = vmatpush1.msra.mxu0 0.0
  %2261 = vmatprep.subr.mxu0 0.0
  %2262 = vmatpush1.msra.mxu0 0.0
  %2263 = vmatprep.subr.mxu0 0.0
  %2264 = vmatpush1.msra.mxu0 0.0
  %2265 = vmatprep.subr.mxu0 0.0
  %2266 = vmatpush1.msra.mxu0 0.0
  %2267 = vmatprep.subr.mxu0 0.0
  %2268 = vmatpush1.msra.mxu0 0.0
  %2269 = vmatprep.subr.mxu0 0.0
  %2270 = vmatpush1.msra.mxu0 0.0
  %2271 = vmatprep.subr.mxu0 0.0
  %2272 = vmatpush1.msra.mxu0 0.0
  %2273 = vmatprep.subr.mxu0 0.0
  %2274 = vmatpush1.msra.mxu0 0.0
  %2275 = vmatprep.subr.mxu0 0.0
  %2276 = vmatpush1.msra.mxu0 0.0
  %2277 = vmatprep.subr.mxu0 0.0
  %2278 = vmatpush1.msra.mxu0 0.0
  %2279 = vmatprep.subr.mxu0 0.0
  %2280 = vmatpush1.msra.mxu0 0.0
  %2281 = vmatprep.subr.mxu0 0.0
  %2282 = vmatpush1.msra.mxu0 0.0
  %2283 = vmatprep.subr.mxu0 0.0
  %2284 = vmatpush1.msra.mxu0 0.0
  %2285 = vmatprep.subr.mxu0 0.0
  %2286 = vmatpush1.msra.mxu0 0.0
  %2287 = vmatprep.subr.mxu0 0.0
  %2288 = vmatpush1.msra.mxu0 0.0
  %2289 = vmatprep.subr.mxu0 0.0
  %2290 = vmatpush1.msra.mxu0 0.0
  %2291 = vmatprep.subr.mxu0 0.0
  %2292 = vmatpush1.msra.mxu0 0.0
  %2293 = vmatprep.subr.mxu0 0.0
  %2294 = vmatpush1.msra.mxu0 0.0
  %2295 = vmatprep.subr.mxu0 0.0
  %2296 = vmatpush1.msra.mxu0 0.0
  %2297 = vmatprep.subr.mxu0 0.0
  %2298 = vmatpush1.msra.mxu0 0.0
  %2299 = vmatprep.subr.mxu0 0.0
  %2300 = vmatpush1.msra.mxu0 0.0
  %2301 = vmatprep.subr.mxu0 0.0
  %2302 = vmatpush1.msra.mxu0 0.0
  %2303 = vmatprep.subr.mxu0 0.0
  %2304 = vmatpush1.msra.mxu0 0.0
  %2305 = vmatprep.subr.mxu0 0.0
  %2306 = vmatpush1.msra.mxu0 0.0
  %2307 = vmatprep.subr.mxu0 0.0
  %2308 = vmatpush1.msra.mxu0 0.0
  %2309 = vmatprep.subr.mxu0 0.0
  %2310 = vmatpush1.msra.mxu0 0.0
  %2311 = vmatprep.subr.mxu0 0.0
  %2312 = vmatpush1.msra.mxu0 0.0
  %2313 = vmatprep.subr.mxu0 0.0
  %2314 = vmatpush1.msra.mxu0 0.0
  %2315 = vmatprep.subr.mxu0 0.0
  %2316 = vmatpush1.msra.mxu0 0.0
  %2317 = vmatprep.subr.mxu0 0.0
  %2318 = vmatpush1.msra.mxu0 0.0
  %2319 = vmatprep.mubr.f32.mxu0 0.0
  %2320 = vmatmul.mubr.f32.gmra.mrb[0].mxu0 %v2005
  %v2321 = vpop.f32.mrb[0].mxu0
  %v2322 = vadd.f32 0.0, %v2321
  %v2323 = vpop.f32.mrb[0].mxu0
  %2324 = vdwg.mxu0
  %v2325 = vadd.f32 %v1295, %v2322
  %v2326 = vtanh.pop %v2325
  %v2327 = vld [vmem:[%s12] sm:$0xff]
  %v2328 = vld [vmem:[%s12 + $0x8] sm:$0xff]
  %v2329 = vld [vmem:[%s12 + $0x10] sm:$0xff]
  %v2330 = vld [vmem:[%s12 + $0x18] sm:$0xff]
  %v2331 = vld [vmem:[%s12 + $0x20] sm:$0xff]
  %v2332 = vld [vmem:[%s12 + $0x28] sm:$0xff]
  %v2333 = vld [vmem:[%s12 + $0x30] sm:$0xff]
  %v2334 = vld [vmem:[%s12 + $0x38] sm:$0xff]
  %v2335 = vld [vmem:[%s12 + $0x40] sm:$0xff]
  %v2336 = vld [vmem:[%s12 + $0x48] sm:$0xff]
  %v2337 = vld [vmem:[%s12 + $0x50] sm:$0xff]
  %v2338 = vld [vmem:[%s12 + $0x58] sm:$0xff]
  %v2339 = vld [vmem:[%s12 + $0x60] sm:$0xff]
  %v2340 = vld [vmem:[%s12 + $0x68] sm:$0xff]
  %v2341 = vld [vmem:[%s12 + $0x70] sm:$0xff]
  %v2342 = vld [vmem:[%s12 + $0x78] sm:$0xff]
  %2343 = vmatprep.subr.mxu0 0.0
  %2344 = vmatpush1.msra.mxu0 %v2327
  %2345 = vmatprep.subr.mxu0 0.0
  %2346 = vmatpush1.msra.mxu0 %v2328
  %2347 = vmatprep.subr.mxu0 0.0
  %2348 = vmatpush1.msra.mxu0 %v2329
  %2349 = vmatprep.subr.mxu0 0.0
  %2350 = vmatpush1.msra.mxu0 %v2330
  %2351 = vmatprep.subr.mxu0 0.0
  %2352 = vmatpush1.msra.mxu0 %v2331
  %2353 = vmatprep.subr.mxu0 0.0
  %2354 = vmatpush1.msra.mxu0 %v2332
  %2355 = vmatprep.subr.mxu0 0.0
  %2356 = vmatpush1.msra.mxu0 %v2333
  %2357 = vmatprep.subr.mxu0 0.0
  %2358 = vmatpush1.msra.mxu0 %v2334
  %2359 = vmatprep.subr.mxu0 0.0
  %2360 = vmatpush1.msra.mxu0 %v2335
  %2361 = vmatprep.subr.mxu0 0.0
  %2362 = vmatpush1.msra.mxu0 %v2336
  %2363 = vmatprep.subr.mxu0 0.0
  %2364 = vmatpush1.msra.mxu0 %v2337
  %2365 = vmatprep.subr.mxu0 0.0
  %2366 = vmatpush1.msra.mxu0 %v2338
  %2367 = vmatprep.subr.mxu0 0.0
  %2368 = vmatpush1.msra.mxu0 %v2339
  %2369 = vmatprep.subr.mxu0 0.0
  %2370 = vmatpush1.msra.mxu0 %v2340
  %2371 = vmatprep.subr.mxu0 0.0
  %2372 = vmatpush1.msra.mxu0 %v2341
  %2373 = vmatprep.subr.mxu0 0.0
  %2374 = vmatpush1.msra.mxu0 %v2342
  %2375 = vmatprep.subr.mxu0 0.0
  %2376 = vmatpush1.msra.mxu0 0.0
  %2377 = vmatprep.subr.mxu0 0.0
  %2378 = vmatpush1.msra.mxu0 0.0
  %2379 = vmatprep.subr.mxu0 0.0
  %2380 = vmatpush1.msra.mxu0 0.0
  %2381 = vmatprep.subr.mxu0 0.0
  %2382 = vmatpush1.msra.mxu0 0.0
  %2383 = vmatprep.subr.mxu0 0.0
  %2384 = vmatpush1.msra.mxu0 0.0
  %2385 = vmatprep.subr.mxu0 0.0
  %2386 = vmatpush1.msra.mxu0 0.0
  %2387 = vmatprep.subr.mxu0 0.0
  %2388 = vmatpush1.msra.mxu0 0.0
  %2389 = vmatprep.subr.mxu0 0.0
  %2390 = vmatpush1.msra.mxu0 0.0
  %2391 = vmatprep.subr.mxu0 0.0
  %2392 = vmatpush1.msra.mxu0 0.0
  %2393 = vmatprep.subr.mxu0 0.0
  %2394 = vmatpush1.msra.mxu0 0.0
  %2395 = vmatprep.subr.mxu0 0.0
  %2396 = vmatpush1.msra.mxu0 0.0
  %2397 = vmatprep.subr.mxu0 0.0
  %2398 = vmatpush1.msra.mxu0 0.0
  %2399 = vmatprep.subr.mxu0 0.0
  %2400 = vmatpush1.msra.mxu0 0.0
  %2401 = vmatprep.subr.mxu0 0.0
  %2402 = vmatpush1.msra.mxu0 0.0
  %2403 = vmatprep.subr.mxu0 0.0
  %2404 = vmatpush1.msra.mxu0 0.0
  %2405 = vmatprep.subr.mxu0 0.0
  %2406 = vmatpush1.msra.mxu0 0.0
  %2407 = vmatprep.mubr.f32.mxu0 0.0
  %2408 = vmatmul.mubr.f32.gmra.mrb[0].mxu0 %v2326
  %v2409 = vpop.f32.mrb[0].mxu0
  %v2410 = vadd.f32 0.0, %v2409
  %v2411 = vpop.f32.mrb[0].mxu0
  %2412 = vdwg.mxu0
  %v2413 = vsel %vm1467, %v2410, -inf
  %2414 = vmax.xlane.f32.xlu0 %v2413
  %v2415 = vpop.xlane.xlu0 %2414
  %v2416 = vsub.f32 %v2410, %v2415
  %v2417 = vmul.f32 %v2416, 1.442695
  %v2418 = vpow.pop %v2417
  %v2419 = vsel %vm1467, %v2418, 0.0
  %2420 = vadd.xlane.f32.xlu0 %v2419
  %v2421 = vpop.xlane.xlu0 %2420
  %v2422 = vrcp.pop %v2421
  %v2423 = vmul.f32 %v2418, %v2422
  %v2424 = vld [vmem:[%s13] sm:$0xff]
  %v2425 = vld [vmem:[%s13 + $0x8] sm:$0xff]
  %v2427 = vsel %vm1467, %v2423, 0
  %2429 = vmatprep.subr.mxu0 %v2425
  %2430 = vmatpush1.msra.mxu0 %v2424
  %2431 = vmatprep.subr.mxu0 0.0
  %2432 = vmatpush1.msra.mxu0 0.0
  %2433 = vmatprep.subr.mxu0 0.0
  %2434 = vmatpush1.msra.mxu0 0.0
  %2435 = vmatprep.subr.mxu0 0.0
  %2436 = vmatpush1.msra.mxu0 0.0
  %2437 = vmatprep.subr.mxu0 0.0
  %2438 = vmatpush1.msra.mxu0 0.0
  %2439 = vmatprep.subr.mxu0 0.0
  %2440 = vmatpush1.msra.mxu0 0.0
  %2441 = vmatprep.subr.mxu0 0.0
  %2442 = vmatpush1.msra.mxu0 0.0
  %2443 = vmatprep.subr.mxu0 0.0
  %2444 = vmatpush1.msra.mxu0 0.0
  %2445 = vmatprep.subr.mxu0 0.0
  %2446 = vmatpush1.msra.mxu0 0.0
  %2447 = vmatprep.subr.mxu0 0.0
  %2448 = vmatpush1.msra.mxu0 0.0
  %2449 = vmatprep.subr.mxu0 0.0
  %2450 = vmatpush1.msra.mxu0 0.0
  %2451 = vmatprep.subr.mxu0 0.0
  %2452 = vmatpush1.msra.mxu0 0.0
  %2453 = vmatprep.subr.mxu0 0.0
  %2454 = vmatpush1.msra.mxu0 0.0
  %2455 = vmatprep.subr.mxu0 0.0
  %2456 = vmatpush1.msra.mxu0 0.0
  %2457 = vmatprep.subr.mxu0 0.0
  %2458 = vmatpush1.msra.mxu0 0.0
  %2459 = vmatprep.subr.mxu0 0.0
  %2460 = vmatpush1.msra.mxu0 0.0
  %2461 = vmatprep.subr.mxu0 0.0
  %2462 = vmatpush1.msra.mxu0 0.0
  %2463 = vmatprep.subr.mxu0 0.0
  %2464 = vmatpush1.msra.mxu0 0.0
  %2465 = vmatprep.subr.mxu0 0.0
  %2466 = vmatpush1.msra.mxu0 0.0
  %2467 = vmatprep.subr.mxu0 0.0
  %2468 = vmatpush1.msra.mxu0 0.0
  %2469 = vmatprep.subr.mxu0 0.0
  %2470 = vmatpush1.msra.mxu0 0.0
  %2471 = vmatprep.subr.mxu0 0.0
  %2472 = vmatpush1.msra.mxu0 0.0
  %2473 = vmatprep.subr.mxu0 0.0
  %2474 = vmatpush1.msra.mxu0 0.0
  %2475 = vmatprep.subr.mxu0 0.0
  %2476 = vmatpush1.msra.mxu0 0.0
  %2477 = vmatprep.subr.mxu0 0.0
  %2478 = vmatpush1.msra.mxu0 0.0
  %2479 = vmatprep.subr.mxu0 0.0
  %2480 = vmatpush1.msra.mxu0 0.0
  %2481 = vmatprep.subr.mxu0 0.0
  %2482 = vmatpush1.msra.mxu0 0.0
  %2483 = vmatprep.subr.mxu0 0.0
  %2484 = vmatpush1.msra.mxu0 0.0
  %2485 = vmatprep.subr.mxu0 0.0
  %2486 = vmatpush1.msra.mxu0 0.0
  %2487 = vmatprep.subr.mxu0 0.0
  %2488 = vmatpush1.msra.mxu0 0.0
  %2489 = vmatprep.subr.mxu0 0.0
  %2490 = vmatpush1.msra.mxu0 0.0
  %2491 = vmatprep.subr.mxu0 0.0
  %2492 = vmatpush1.msra.mxu0 0.0
  %2493 = vmatprep.mubr.f32.mxu0 0.0
  %2494 = vmatmul.mubr.f32.gmra.mrb[0].mxu0 %v2427
  %v2495 = vpop.f32.mrb[0].mxu0
  %v2496 = vadd.f32 0.0, %v2495
  %v2497 = vpop.f32.mrb[0].mxu0
  %v2498 = vadd.f32 0.0, %v2497
  %2499 = vdwg.mxu0
  %v2500 = vmul.f32 %v2496, %v1187
  %v2501 = vmul.f32 %v2498, %v1188
  %v2502 = vld [vmem:[%s14] sm:$0xff]
  %v2503 = vld [vmem:[%s14 + $0x8] sm:$0xff]
  %v2504 = vld [vmem:[%s14 + $0x10] sm:$0xff]
  %v2505 = vld [vmem:[%s14 + $0x18] sm:$0xff]
  %v2506 = vld [vmem:[%s14 + $0x20] sm:$0xff]
  %v2507 = vld [vmem:[%s14 + $0x28] sm:$0xff]
  %v2508 = vld [vmem:[%s14 + $0x30] sm:$0xff]
  %v2509 = vld [vmem:[%s14 + $0x38] sm:$0xff]
  %v2510 = vld [vmem:[%s14 + $0x40] sm:$0xff]
  %v2511 = vld [vmem:[%s14 + $0x48] sm:$0xff]
  %v2512 = vld [vmem:[%s14 + $0x50] sm:$0xff]
  %v2513 = vld [vmem:[%s14 + $0x58] sm:$0xff]
  %v2514 = vld [vmem:[%s14 + $0x60] sm:$0xff]
  %v2515 = vld [vmem:[%s14 + $0x68] sm:$0xff]
  %v2516 = vld [vmem:[%s14 + $0x70] sm:$0xff]
  %v2517 = vld [vmem:[%s14 + $0x78] sm:$0xff]
  %v2518 = vld [vmem:[%s14 + $0x80] sm:$0xff]
  %v2519 = vld [vmem:[%s14 + $0x88] sm:$0xff]
  %v2520 = vld [vmem:[%s14 + $0x90] sm:$0xff]
  %v2521 = vld [vmem:[%s14 + $0x98] sm:$0xff]
  %v2522 = vld [vmem:[%s14 + $0xa0] sm:$0xff]
  %v2523 = vld [vmem:[%s14 + $0xa8] sm:$0xff]
  %v2524 = vld [vmem:[%s14 + $0xb0] sm:$0xff]
  %v2525 = vld [vmem:[%s14 + $0xb8] sm:$0xff]
  %v2526 = vld [vmem:[%s14 + $0xc0] sm:$0xff]
  %v2527 = vld [vmem:[%s14 + $0xc8] sm:$0xff]
  %v2528 = vld [vmem:[%s14 + $0xd0] sm:$0xff]
  %v2529 = vld [vmem:[%s14 + $0xd8] sm:$0xff]
  %v2530 = vld [vmem:[%s14 + $0xe0] sm:$0xff]
  %v2531 = vld [vmem:[%s14 + $0xe8] sm:$0xff]
  %v2532 = vld [vmem:[%s14 + $0xf0] sm:$0xff]
  %v2533 = vld [vmem:[%s14 + $0xf8] sm:$0xff]
  %2534 = vmatprep.subr.mxu0 0.0
  %2535 = vmatpush1.msra.mxu0 %v2502
  %2536 = vmatprep.subr.mxu0 0.0
  %2537 = vmatpush1.msra.mxu0 %v2503
  %2538 = vmatprep.subr.mxu0 0.0
  %2539 = vmatpush1.msra.mxu0 %v2504
  %2540 = vmatprep.subr.mxu0 0.0
  %2541 = vmatpush1.msra.mxu0 %v2505
  %2542 = vmatprep.subr.mxu0 0.0
  %2543 = vmatpush1.msra.mxu0 %v2506
  %2544 = vmatprep.subr.mxu0 0.0
  %2545 = vmatpush1.msra.mxu0 %v2507
  %2546 = vmatprep.subr.mxu0 0.0
  %2547 = vmatpush1.msra.mxu0 %v2508
  %2548 = vmatprep.subr.mxu0 0.0
  %2549 = vmatpush1.msra.mxu0 %v2509
  %2550 = vmatprep.subr.mxu0 0.0
  %2551 = vmatpush1.msra.mxu0 %v2510
  %2552 = vmatprep.subr.mxu0 0.0
  %2553 = vmatpush1.msra.mxu0 %v2511
  %2554 = vmatprep.subr.mxu0 0.0
  %2555 = vmatpush1.msra.mxu0 %v2512
  %2556 = vmatprep.subr.mxu0 0.0
  %2557 = vmatpush1.msra.mxu0 %v2513
  %2558 = vmatprep.subr.mxu0 0.0
  %2559 = vmatpush1.msra.mxu0 %v2514
  %2560 = vmatprep.subr.mxu0 0.0
  %2561 = vmatpush1.msra.mxu0 %v2515
  %2562 = vmatprep.subr.mxu0 0.0
  %2563 = vmatpush1.msra.mxu0 %v2516
  %2564 = vmatprep.subr.mxu0 0.0
  %2565 = vmatpush1.msra.mxu0 %v2517
  %2566 = vmatprep.subr.mxu0 0.0
  %2567 = vmatpush1.msra.mxu0 %v2518
  %2568 = vmatprep.subr.mxu0 0.0
  %2569 = vmatpush1.msra.mxu0 %v2519
  %2570 = vmatprep.subr.mxu0 0.0
  %2571 = vmatpush1.msra.mxu0 %v2520
  %2572 = vmatprep.subr.mxu0 0.0
  %2573 = vmatpush1.msra.mxu0 %v2521
  %2574 = vmatprep.subr.mxu0 0.0
  %2575 = vmatpush1.msra.mxu0 %v2522
  %2576 = vmatprep.subr.mxu0 0.0
  %2577 = vmatpush1.msra.mxu0 %v2523
  %2578 = vmatprep.subr.mxu0 0.0
  %2579 = vmatpush1.msra.mxu0 %v2524
  %2580 = vmatprep.subr.mxu0 0.0
  %2581 = vmatpush1.msra.mxu0 %v2525
  %2582 = vmatprep.subr.mxu0 0.0
  %2583 = vmatpush1.msra.mxu0 %v2526
  %2584 = vmatprep.subr.mxu0 0.0
  %2585 = vmatpush1.msra.mxu0 %v2527
  %2586 = vmatprep.subr.mxu0 0.0
  %2587 = vmatpush1.msra.mxu0 %v2528
  %2588 = vmatprep.subr.mxu0 0.0
  %2589 = vmatpush1.msra.mxu0 %v2529
  %2590 = vmatprep.subr.mxu0 0.0
  %2591 = vmatpush1.msra.mxu0 %v2530
  %2592 = vmatprep.subr.mxu0 0.0
  %2593 = vmatpush1.msra.mxu0 %v2531
  %2594 = vmatprep.subr.mxu0 0.0
  %2595 = vmatpush1.msra.mxu0 %v2532
  %2596 = vmatprep.subr.mxu0 0.0
  %2597 = vmatpush1.msra.mxu0 %v2533
  %2598 = vmatprep.mubr.f32.mxu0 %v2501
  %2599 = vmatmul.mubr.f32.gmra.mrb[0].mxu0 %v2500
  %v2600 = vpop.f32.mrb[0].mxu0
  %v2601 = vadd.f32 0.0, %v2600
  %v2602 = vpop.f32.mrb[0].mxu0
  %2603 = vdwg.mxu0
  %v2604 = vld [vmem:[%s15] sm:$0xff]
  %v2605 = vld [vmem:[%s16] sm:$0xff]
  %v2606 = vld [vmem:[%s16 + $0x8] sm:$0xff]
  %v2607 = vld [vmem:[%s16 + $0x10] sm:$0xff]
  %v2608 = vld [vmem:[%s16 + $0x18] sm:$0xff]
  %v2610 = vsel %vm242, %v2601, 0
  %2612 = vmatprep.subr.mxu0 0.0
  %2613 = vmatpush1.msra.mxu0 %v2605
  %2614 = vmatprep.subr.mxu0 0.0
  %2615 = vmatpush1.msra.mxu0 %v2606
  %2616 = vmatprep.subr.mxu0 0.0
  %2617 = vmatpush1.msra.mxu0 %v2607
  %2618 = vmatprep.subr.mxu0 0.0
  %2619 = vmatpush1.msra.mxu0 %v2608
  %2620 = vmatprep.subr.mxu0 0.0
  %2621 = vmatpush1.msra.mxu0 0.0
  %2622 = vmatprep.subr.mxu0 0.0
  %2623 = vmatpush1.msra.mxu0 0.0
  %2624 = vmatprep.subr.mxu0 0.0
  %2625 = vmatpush1.msra.mxu0 0.0
  %2626 = vmatprep.subr.mxu0 0.0
  %2627 = vmatpush1.msra.mxu0 0.0
  %2628 = vmatprep.subr.mxu0 0.0
  %2629 = vmatpush1.msra.mxu0 0.0
  %2630 = vmatprep.subr.mxu0 0.0
  %2631 = vmatpush1.msra.mxu0 0.0
  %2632 = vmatprep.subr.mxu0 0.0
  %2633 = vmatpush1.msra.mxu0 0.0
  %2634 = vmatprep.subr.mxu0 0.0
  %2635 = vmatpush1.msra.mxu0 0.0
  %2636 = vmatprep.subr.mxu0 0.0
  %2637 = vmatpush1.msra.mxu0 0.0
  %2638 = vmatprep.subr.mxu0 0.0
  %2639 = vmatpush1.msra.mxu0 0.0
  %2640 = vmatprep.subr.mxu0 0.0
  %2641 = vmatpush1.msra.mxu0 0.0
  %2642 = vmatprep.subr.mxu0 0.0
  %2643 = vmatpush1.msra.mxu0 0.0
  %2644 = vmatprep.subr.mxu0 0.0
  %2645 = vmatpush1.msra.mxu0 0.0
  %2646 = vmatprep.subr.mxu0 0.0
  %2647 = vmatpush1.msra.mxu0 0.0
  %2648 = vmatprep.subr.mxu0 0.0
  %2649 = vmatpush1.msra.mxu0 0.0
  %2650 = vmatprep.subr.mxu0 0.0
  %2651 = vmatpush1.msra.mxu0 0.0
  %2652 = vmatprep.subr.mxu0 0.0
  %2653 = vmatpush1.msra.mxu0 0.0
  %2654 = vmatprep.subr.mxu0 0.0
  %2655 = vmatpush1.msra.mxu0 0.0
  %2656 = vmatprep.subr.mxu0 0.0
  %2657 = vmatpush1.msra.mxu0 0.0
  %2658 = vmatprep.subr.mxu0 0.0
  %2659 = vmatpush1.msra.mxu0 0.0
  %2660 = vmatprep.subr.mxu0 0.0
  %2661 = vmatpush1.msra.mxu0 0.0
  %2662 = vmatprep.subr.mxu0 0.0
  %2663 = vmatpush1.msra.mxu0 0.0
  %2664 = vmatprep.subr.mxu0 0.0
  %2665 = vmatpush1.msra.mxu0 0.0
  %2666 = vmatprep.subr.mxu0 0.0
  %2667 = vmatpush1.msra.mxu0 0.0
  %2668 = vmatprep.subr.mxu0 0.0
  %2669 = vmatpush1.msra.mxu0 0.0
  %2670 = vmatprep.subr.mxu0 0.0
  %2671 = vmatpush1.msra.mxu0 0.0
  %2672 = vmatprep.subr.mxu0 0.0
  %2673 = vmatpush1.msra.mxu0 0.0
  %2674 = vmatprep.subr.mxu0 0.0
  %2675 = vmatpush1.msra.mxu0 0.0
  %2676 = vmatprep.mubr.f32.mxu0 0.0
  %2677 = vmatmul.mubr.f32.gmra.mrb[0].mxu0 %v2610
  %v2678 = vpop.f32.mrb[0].mxu0
  %v2679 = vadd.f32 0.0, %v2678
  %v2680 = vpop.f32.mrb[0].mxu0
  %2681 = vdwg.mxu0
  %v2683 = vsel %vm1467, %v2252, 0
  %2685 = vmatprep.subr.mxu0 0.0
  %2686 = vmatpush1.msra.mxu0 %v2604
  %2687 = vmatprep.subr.mxu0 0.0
  %2688 = vmatpush1.msra.mxu0 0.0
  %2689 = vmatprep.subr.mxu0 0.0
  %2690 = vmatpush1.msra.mxu0 0.0
  %2691 = vmatprep.subr.mxu0 0.0
  %2692 = vmatpush1.msra.mxu0 0.0
  %2693 = vmatprep.subr.mxu0 0.0
  %2694 = vmatpush1.msra.mxu0 0.0
  %2695 = vmatprep.subr.mxu0 0.0
  %2696 = vmatpush1.msra.mxu0 0.0
  %2697 = vmatprep.subr.mxu0 0.0
  %2698 = vmatpush1.msra.mxu0 0.0
  %2699 = vmatprep.subr.mxu0 0.0
  %2700 = vmatpush1.msra.mxu0 0.0
  %2701 = vmatprep.subr.mxu0 0.0
  %2702 = vmatpush1.msra.mxu0 0.0
  %2703 = vmatprep.subr.mxu0 0.0
  %2704 = vmatpush1.msra.mxu0 0.0
  %2705 = vmatprep.subr.mxu0 0.0
  %2706 = vmatpush1.msra.mxu0 0.0
  %2707 = vmatprep.subr.mxu0 0.0
  %2708 = vmatpush1.msra.mxu0 0.0
  %2709 = vmatprep.subr.mxu0 0.0
  %2710 = vmatpush1.msra.mxu0 0.0
  %2711 = vmatprep.subr.mxu0 0.0
  %2712 = vmatpush1.msra.mxu0 0.0
  %2713 = vmatprep.subr.mxu0 0.0
  %2714 = vmatpush1.msra.mxu0 0.0
  %2715 = vmatprep.subr.mxu0 0.0
  %2716 = vmatpush1.msra.mxu0 0.0
  %2717 = vmatprep.subr.mxu0 0.0
  %2718 = vmatpush1.msra.mxu0 0.0
  %2719 = vmatprep.subr.mxu0 0.0
  %2720 = vmatpush1.msra.mxu0 0.0
  %2721 = vmatprep.subr.mxu0 0.0
  %2722 = vmatpush1.msra.mxu0 0.0
  %2723 = vmatprep.subr.mxu0 0.0
  %2724 = vmatpush1.msra.mxu0 0.0
  %2725 = vmatprep.subr.mxu0 0.0
  %2726 = vmatpush1.msra.mxu0 0.0
  %2727 = vmatprep.subr.mxu0 0.0
  %2728 = vmatpush1.msra.mxu0 0.0
  %2729 = vmatprep.subr.mxu0 0.0
  %2730 = vmatpush1.msra.mxu0 0.0
  %2731 = vmatprep.subr.mxu0 0.0
  %2732 = vmatpush1.msra.mxu0 0.0
  %2733 = vmatprep.subr.mxu0 0.0
  %2734 = vmatpush1.msra.mxu0 0.0
  %2735 = vmatprep.subr.mxu0 0.0
  %2736 = vmatpush1.msra.mxu0 0.0
  %2737 = vmatprep.subr.mxu0 0.0
  %2738 = vmatpush1.msra.mxu0 0.0
  %2739 = vmatprep.subr.mxu0 0.0
  %2740 = vmatpush1.msra.mxu0 0.0
  %2741 = vmatprep.subr.mxu0 0.0
  %2742 = vmatpush1.msra.mxu0 0.0
  %2743 = vmatprep.subr.mxu0 0.0
  %2744 = vmatpush1.msra.mxu0 0.0
  %2745 = vmatprep.subr.mxu0 0.0
  %2746 = vmatpush1.msra.mxu0 0.0
  %2747 = vmatprep.subr.mxu0 0.0
  %2748 = vmatpush1.msra.mxu0 0.0
  %2749 = vmatprep.mubr.f32.mxu0 0.0
  %2750 = vmatmul.mubr.f32.gmra.mrb[0].mxu0 %v2683
  %v2751 = vpop.f32.mrb[0].mxu0
  %v2752 = vadd.f32 %v2679, %v2751
  %v2753 = vpop.f32.mrb[0].mxu0
  %2754 = vdwg.mxu0
  %v2755 = vld [vmem:[%s18] sm:$0x1]
  %v2757 = vlaneseq
  %v2758 = vshrl.u32 %v2757, 7
  %v2759 = vsub.s32 0, %v2758
  %v2760 = vrot.slane %v2755, %v2759
  %v2762 = vadd.f32 %v2752, %v2760
  %v2763 = vld [vmem:[%s17] sm:$0xff]
  %v2764 = vld [vmem:[%s17 + $0x8] sm:$0xff]
  %v2765 = vld [vmem:[%s19] sm:$0x1]
  %v2767 = vlaneseq
  %v2768 = vshrl.u32 %v2767, 7
  %v2769 = vsub.s32 0, %v2768
  %v2770 = vrot.slane %v2765, %v2769
  %2772 = vmatprep.subr.mxu0 0.0
  %2773 = vmatpush1.msra.mxu0 %v2763
  %2774 = vmatprep.subr.mxu0 0.0
  %2775 = vmatpush1.msra.mxu0 %v2764
  %2776 = vmatprep.subr.mxu0 0.0
  %2777 = vmatpush1.msra.mxu0 0.0
  %2778 = vmatprep.subr.mxu0 0.0
  %2779 = vmatpush1.msra.mxu0 0.0
  %2780 = vmatprep.subr.mxu0 0.0
  %2781 = vmatpush1.msra.mxu0 0.0
  %2782 = vmatprep.subr.mxu0 0.0
  %2783 = vmatpush1.msra.mxu0 0.0
  %2784 = vmatprep.subr.mxu0 0.0
  %2785 = vmatpush1.msra.mxu0 0.0
  %2786 = vmatprep.subr.mxu0 0.0
  %2787 = vmatpush1.msra.mxu0 0.0
  %2788 = vmatprep.subr.mxu0 0.0
  %2789 = vmatpush1.msra.mxu0 0.0
  %2790 = vmatprep.subr.mxu0 0.0
  %2791 = vmatpush1.msra.mxu0 0.0
  %2792 = vmatprep.subr.mxu0 0.0
  %2793 = vmatpush1.msra.mxu0 0.0
  %2794 = vmatprep.subr.mxu0 0.0
  %2795 = vmatpush1.msra.mxu0 0.0
  %2796 = vmatprep.subr.mxu0 0.0
  %2797 = vmatpush1.msra.mxu0 0.0
  %2798 = vmatprep.subr.mxu0 0.0
  %2799 = vmatpush1.msra.mxu0 0.0
  %2800 = vmatprep.subr.mxu0 0.0
  %2801 = vmatpush1.msra.mxu0 0.0
  %2802 = vmatprep.subr.mxu0 0.0
  %2803 = vmatpush1.msra.mxu0 0.0
  %2804 = vmatprep.subr.mxu0 0.0
  %2805 = vmatpush1.msra.mxu0 0.0
  %2806 = vmatprep.subr.mxu0 0.0
  %2807 = vmatpush1.msra.mxu0 0.0
  %2808 = vmatprep.subr.mxu0 0.0
  %2809 = vmatpush1.msra.mxu0 0.0
  %2810 = vmatprep.subr.mxu0 0.0
  %2811 = vmatpush1.msra.mxu0 0.0
  %2812 = vmatprep.subr.mxu0 0.0
  %2813 = vmatpush1.msra.mxu0 0.0
  %2814 = vmatprep.subr.mxu0 0.0
  %2815 = vmatpush1.msra.mxu0 0.0
  %2816 = vmatprep.subr.mxu0 0.0
  %2817 = vmatpush1.msra.mxu0 0.0
  %2818 = vmatprep.subr.mxu0 0.0
  %2819 = vmatpush1.msra.mxu0 0.0
  %2820 = vmatprep.subr.mxu0 0.0
  %2821 = vmatpush1.msra.mxu0 0.0
  %2822 = vmatprep.subr.mxu0 0.0
  %2823 = vmatpush1.msra.mxu0 0.0
  %2824 = vmatprep.subr.mxu0 0.0
  %2825 = vmatpush1.msra.mxu0 0.0
  %2826 = vmatprep.subr.mxu0 0.0
  %2827 = vmatpush1.msra.mxu0 0.0
  %2828 = vmatprep.subr.mxu0 0.0
  %2829 = vmatpush1.msra.mxu0 0.0
  %2830 = vmatprep.subr.mxu0 0.0
  %2831 = vmatpush1.msra.mxu0 0.0
  %2832 = vmatprep.subr.mxu0 0.0
  %2833 = vmatpush1.msra.mxu0 0.0
  %2834 = vmatprep.subr.mxu0 0.0
  %2835 = vmatpush1.msra.mxu0 0.0
  %2836 = vmatprep.mubr.f32.mxu0 0.0
  %2837 = vmatmul.mubr.f32.gmra.mrb[0].mxu0 %v2005
  %v2838 = vpop.f32.mrb[0].mxu0
  %v2839 = vadd.f32 %v2770, %v2838
  %v2840 = vpop.f32.mrb[0].mxu0
  %2841 = vdwg.mxu0
  %v2842 = vadd.f32 %v2762, %v2839
  %v2843 = vxor.u32 %v2842, 2147483648
  %v2844 = vmul.f32 %v2843, 1.442695
  %v2845 = vpow.pop %v2844
  %v2846 = vadd.f32 %v2845, 1.0
  %v2847 = vrcp.pop %v2846
  %v2848 = vmul.f32 1.0, %v2847
  %2850 = vrot.lane.b32.xlu0 %v2839, 96
  %v2851 = vpop.permute.xlu0 %2850
  %v2853 = vmul.f32 %v2848, %v2851
  %2855 = vrot.lane.b32.xlu0 %v2853, 32
  %v2856 = vpop.permute.xlu0 %2855
  %v2858 = vadd.f32 %v2762, %v2856
  %v2859 = vtanh.pop %v2858
  %v2860 = vsub.f32 1.0, %v2848
  %2862 = vrot.lane.b32.xlu0 %v2859, 112
  %v2863 = vpop.permute.xlu0 %2862
  %v2865 = vmul.f32 %v2860, %v2863
  %v2866 = vmul.f32 %v2848, %v1925
  %v2867 = vadd.f32 %v2865, %v2866
  %v2868 = vld [vmem:[%s20] sm:$0xff]
  %v2869 = vld [vmem:[%s20 + $0x8] sm:$0xff]
  %v2870 = vld [vmem:[%s21] sm:$0xff]
  %v2871 = vld [vmem:[%s21 + $0x8] sm:$0xff]
  %v2872 = vld [vmem:[%s21 + $0x10] sm:$0xff]
  %v2873 = vld [vmem:[%s21 + $0x18] sm:$0xff]
  %2874 = vmatprep.subr.mxu0 0.0
  %2875 = vmatpush1.msra.mxu0 %v2870
  %2876 = vmatprep.subr.mxu0 0.0
  %2877 = vmatpush1.msra.mxu0 %v2871
  %2878 = vmatprep.subr.mxu0 0.0
  %2879 = vmatpush1.msra.mxu0 %v2872
  %2880 = vmatprep.subr.mxu0 0.0
  %2881 = vmatpush1.msra.mxu0 %v2873
  %2882 = vmatprep.subr.mxu0 0.0
  %2883 = vmatpush1.msra.mxu0 0.0
  %2884 = vmatprep.subr.mxu0 0.0
  %2885 = vmatpush1.msra.mxu0 0.0
  %2886 = vmatprep.subr.mxu0 0.0
  %2887 = vmatpush1.msra.mxu0 0.0
  %2888 = vmatprep.subr.mxu0 0.0
  %2889 = vmatpush1.msra.mxu0 0.0
  %2890 = vmatprep.subr.mxu0 0.0
  %2891 = vmatpush1.msra.mxu0 0.0
  %2892 = vmatprep.subr.mxu0 0.0
  %2893 = vmatpush1.msra.mxu0 0.0
  %2894 = vmatprep.subr.mxu0 0.0
  %2895 = vmatpush1.msra.mxu0 0.0
  %2896 = vmatprep.subr.mxu0 0.0
  %2897 = vmatpush1.msra.mxu0 0.0
  %2898 = vmatprep.subr.mxu0 0.0
  %2899 = vmatpush1.msra.mxu0 0.0
  %2900 = vmatprep.subr.mxu0 0.0
  %2901 = vmatpush1.msra.mxu0 0.0
  %2902 = vmatprep.subr.mxu0 0.0
  %2903 = vmatpush1.msra.mxu0 0.0
  %2904 = vmatprep.subr.mxu0 0.0
  %2905 = vmatpush1.msra.mxu0 0.0
  %2906 = vmatprep.subr.mxu0 0.0
  %2907 = vmatpush1.msra.mxu0 0.0
  %2908 = vmatprep.subr.mxu0 0.0
  %2909 = vmatpush1.msra.mxu0 0.0
  %2910 = vmatprep.subr.mxu0 0.0
  %2911 = vmatpush1.msra.mxu0 0.0
  %2912 = vmatprep.subr.mxu0 0.0
  %2913 = vmatpush1.msra.mxu0 0.0
  %2914 = vmatprep.subr.mxu0 0.0
  %2915 = vmatpush1.msra.mxu0 0.0
  %2916 = vmatprep.subr.mxu0 0.0
  %2917 = vmatpush1.msra.mxu0 0.0
  %2918 = vmatprep.subr.mxu0 0.0
  %2919 = vmatpush1.msra.mxu0 0.0
  %2920 = vmatprep.subr.mxu0 0.0
  %2921 = vmatpush1.msra.mxu0 0.0
  %2922 = vmatprep.subr.mxu0 0.0
  %2923 = vmatpush1.msra.mxu0 0.0
  %2924 = vmatprep.subr.mxu0 0.0
  %2925 = vmatpush1.msra.mxu0 0.0
  %2926 = vmatprep.subr.mxu0 0.0
  %2927 = vmatpush1.msra.mxu0 0.0
  %2928 = vmatprep.subr.mxu0 0.0
  %2929 = vmatpush1.msra.mxu0 0.0
  %2930 = vmatprep.subr.mxu0 0.0
  %2931 = vmatpush1.msra.mxu0 0.0
  %2932 = vmatprep.subr.mxu0 0.0
  %2933 = vmatpush1.msra.mxu0 0.0
  %2934 = vmatprep.subr.mxu0 0.0
  %2935 = vmatpush1.msra.mxu0 0.0
  %2936 = vmatprep.subr.mxu0 0.0
  %2937 = vmatpush1.msra.mxu0 0.0
  %2938 = vmatprep.mubr.f32.mxu0 0.0
  %2939 = vmatmul.mubr.f32.gmra.mrb[0].mxu0 %v2610
  %v2940 = vpop.f32.mrb[0].mxu0
  %v2941 = vadd.f32 0.0, %v2940
  %v2942 = vpop.f32.mrb[0].mxu0
  %2943 = vdwg.mxu0
  %2945 = vrot.lane.b32.xlu0 %v2867, 112
  %v2946 = vpop.permute.xlu0 %2945
  %v2947 = vsel %vm101, %v2946, 0
  %2949 = vmatprep.subr.mxu0 0.0
  %2950 = vmatpush1.msra.mxu0 %v2868
  %2951 = vmatprep.subr.mxu0 0.0
  %2952 = vmatpush1.msra.mxu0 %v2869
  %2953 = vmatprep.subr.mxu0 0.0
  %2954 = vmatpush1.msra.mxu0 0.0
  %2955 = vmatprep.subr.mxu0 0.0
  %2956 = vmatpush1.msra.mxu0 0.0
  %2957 = vmatprep.subr.mxu0 0.0
  %2958 = vmatpush1.msra.mxu0 0.0
  %2959 = vmatprep.subr.mxu0 0.0
  %2960 = vmatpush1.msra.mxu0 0.0
  %2961 = vmatprep.subr.mxu0 0.0
  %2962 = vmatpush1.msra.mxu0 0.0
  %2963 = vmatprep.subr.mxu0 0.0
  %2964 = vmatpush1.msra.mxu0 0.0
  %2965 = vmatprep.subr.mxu0 0.0
  %2966 = vmatpush1.msra.mxu0 0.0
  %2967 = vmatprep.subr.mxu0 0.0
  %2968 = vmatpush1.msra.mxu0 0.0
  %2969 = vmatprep.subr.mxu0 0.0
  %2970 = vmatpush1.msra.mxu0 0.0
  %2971 = vmatprep.subr.mxu0 0.0
  %2972 = vmatpush1.msra.mxu0 0.0
  %2973 = vmatprep.subr.mxu0 0.0
  %2974 = vmatpush1.msra.mxu0 0.0
  %2975 = vmatprep.subr.mxu0 0.0
  %2976 = vmatpush1.msra.mxu0 0.0
  %2977 = vmatprep.subr.mxu0 0.0
  %2978 = vmatpush1.msra.mxu0 0.0
  %2979 = vmatprep.subr.mxu0 0.0
  %2980 = vmatpush1.msra.mxu0 0.0
  %2981 = vmatprep.subr.mxu0 0.0
  %2982 = vmatpush1.msra.mxu0 0.0
  %2983 = vmatprep.subr.mxu0 0.0
  %2984 = vmatpush1.msra.mxu0 0.0
  %2985 = vmatprep.subr.mxu0 0.0
  %2986 = vmatpush1.msra.mxu0 0.0
  %2987 = vmatprep.subr.mxu0 0.0
  %2988 = vmatpush1.msra.mxu0 0.0
  %2989 = vmatprep.subr.mxu0 0.0
  %2990 = vmatpush1.msra.mxu0 0.0
  %2991 = vmatprep.subr.mxu0 0.0
  %2992 = vmatpush1.msra.mxu0 0.0
  %2993 = vmatprep.subr.mxu0 0.0
  %2994 = vmatpush1.msra.mxu0 0.0
  %2995 = vmatprep.subr.mxu0 0.0
  %2996 = vmatpush1.msra.mxu0 0.0
  %2997 = vmatprep.subr.mxu0 0.0
  %2998 = vmatpush1.msra.mxu0 0.0
  %2999 = vmatprep.subr.mxu0 0.0
  %3000 = vmatpush1.msra.mxu0 0.0
  %3001 = vmatprep.subr.mxu0 0.0
  %3002 = vmatpush1.msra.mxu0 0.0
  %3003 = vmatprep.subr.mxu0 0.0
  %3004 = vmatpush1.msra.mxu0 0.0
  %3005 = vmatprep.subr.mxu0 0.0
  %3006 = vmatpush1.msra.mxu0 0.0
  %3007 = vmatprep.subr.mxu0 0.0
  %3008 = vmatpush1.msra.mxu0 0.0
  %3009 = vmatprep.subr.mxu0 0.0
  %3010 = vmatpush1.msra.mxu0 0.0
  %3011 = vmatprep.subr.mxu0 0.0
  %3012 = vmatpush1.msra.mxu0 0.0
  %3013 = vmatprep.mubr.f32.mxu0 0.0
  %3014 = vmatmul.mubr.f32.gmra.mrb[0].mxu0 %v2947
  %v3015 = vpop.f32.mrb[0].mxu0
  %v3016 = vadd.f32 %v2941, %v3015
  %v3017 = vpop.f32.mrb[0].mxu0
  %3018 = vdwg.mxu0
  %v3019 = vld [vmem:[%s22] sm:$0xff]
  %3020 = vmatprep.subr.mxu0 0.0
  %3021 = vmatpush1.msra.mxu0 %v3019
  %3022 = vmatprep.subr.mxu0 0.0
  %3023 = vmatpush1.msra.mxu0 0.0
  %3024 = vmatprep.subr.mxu0 0.0
  %3025 = vmatpush1.msra.mxu0 0.0
  %3026 = vmatprep.subr.mxu0 0.0
  %3027 = vmatpush1.msra.mxu0 0.0
  %3028 = vmatprep.subr.mxu0 0.0
  %3029 = vmatpush1.msra.mxu0 0.0
  %3030 = vmatprep.subr.mxu0 0.0
  %3031 = vmatpush1.msra.mxu0 0.0
  %3032 = vmatprep.subr.mxu0 0.0
  %3033 = vmatpush1.msra.mxu0 0.0
  %3034 = vmatprep.subr.mxu0 0.0
  %3035 = vmatpush1.msra.mxu0 0.0
  %3036 = vmatprep.subr.mxu0 0.0
  %3037 = vmatpush1.msra.mxu0 0.0
  %3038 = vmatprep.subr.mxu0 0.0
  %3039 = vmatpush1.msra.mxu0 0.0
  %3040 = vmatprep.subr.mxu0 0.0
  %3041 = vmatpush1.msra.mxu0 0.0
  %3042 = vmatprep.subr.mxu0 0.0
  %3043 = vmatpush1.msra.mxu0 0.0
  %3044 = vmatprep.subr.mxu0 0.0
  %3045 = vmatpush1.msra.mxu0 0.0
  %3046 = vmatprep.subr.mxu0 0.0
  %3047 = vmatpush1.msra.mxu0 0.0
  %3048 = vmatprep.subr.mxu0 0.0
  %3049 = vmatpush1.msra.mxu0 0.0
  %3050 = vmatprep.subr.mxu0 0.0
  %3051 = vmatpush1.msra.mxu0 0.0
  %3052 = vmatprep.subr.mxu0 0.0
  %3053 = vmatpush1.msra.mxu0 0.0
  %3054 = vmatprep.subr.mxu0 0.0
  %3055 = vmatpush1.msra.mxu0 0.0
  %3056 = vmatprep.subr.mxu0 0.0
  %3057 = vmatpush1.msra.mxu0 0.0
  %3058 = vmatprep.subr.mxu0 0.0
  %3059 = vmatpush1.msra.mxu0 0.0
  %3060 = vmatprep.subr.mxu0 0.0
  %3061 = vmatpush1.msra.mxu0 0.0
  %3062 = vmatprep.subr.mxu0 0.0
  %3063 = vmatpush1.msra.mxu0 0.0
  %3064 = vmatprep.subr.mxu0 0.0
  %3065 = vmatpush1.msra.mxu0 0.0
  %3066 = vmatprep.subr.mxu0 0.0
  %3067 = vmatpush1.msra.mxu0 0.0
  %3068 = vmatprep.subr.mxu0 0.0
  %3069 = vmatpush1.msra.mxu0 0.0
  %3070 = vmatprep.subr.mxu0 0.0
  %3071 = vmatpush1.msra.mxu0 0.0
  %3072 = vmatprep.subr.mxu0 0.0
  %3073 = vmatpush1.msra.mxu0 0.0
  %3074 = vmatprep.subr.mxu0 0.0
  %3075 = vmatpush1.msra.mxu0 0.0
  %3076 = vmatprep.subr.mxu0 0.0
  %3077 = vmatpush1.msra.mxu0 0.0
  %3078 = vmatprep.subr.mxu0 0.0
  %3079 = vmatpush1.msra.mxu0 0.0
  %3080 = vmatprep.subr.mxu0 0.0
  %3081 = vmatpush1.msra.mxu0 0.0
  %3082 = vmatprep.subr.mxu0 0.0
  %3083 = vmatpush1.msra.mxu0 0.0
  %3084 = vmatprep.mubr.f32.mxu0 0.0
  %3085 = vmatmul.mubr.f32.gmra.mrb[0].mxu0 %v2683
  %v3086 = vpop.f32.mrb[0].mxu0
  %v3087 = vadd.f32 0.0, %v3086
  %v3088 = vpop.f32.mrb[0].mxu0
  %3089 = vdwg.mxu0
  %v3090 = vadd.f32 %v3016, %v3087
  %v3091 = vld [vmem:[%s23] sm:$0x1]
  %v3093 = vlaneseq
  %v3094 = vshrl.u32 %v3093, 7
  %v3095 = vsub.s32 0, %v3094
  %v3096 = vrot.slane %v3091, %v3095
  %v3098 = vadd.f32 %v3090, %v3096
  %s3099 = scalar_lea.vmem %s25, 8
  %3100 = vst.msk [vmem:[%s3099] sm:$0xff] %vm101, %v3098
  %v3101 = vsel %vm101, %v3098, -inf
  %3102 = vmax.xlane.f32.xlu0 %v3101
  %v3103 = vpop.xlane.xlu0 %3102
  %vm3104 = vcmp.ge.f32.partialorder %v3098, %v3103
  %v3105 = vsel %vm3104, %v1302, 16.0
  %v3106 = vsel %vm101, %v3105, inf
  %3107 = vmin.xlane.f32.xlu0 %v3106
  %v3108 = vpop.xlane.xlu0 %3107
  %vm3109 = vcmp.eq.f32.partialorder %v1302, %v3108
  %v3110 = vsel %vm3109, 1.0, 0.0
  %v3112 = vsel %vm101, %v3110, 0
  %3114 = vmatprep.subr.mxu0 0.0
  %3115 = vmatpush1.msra.mxu0 %v1298
  %3116 = vmatprep.subr.mxu0 0.0
  %3117 = vmatpush1.msra.mxu0 %v1299
  %3118 = vmatprep.subr.mxu0 0.0
  %3119 = vmatpush1.msra.mxu0 0.0
  %3120 = vmatprep.subr.mxu0 0.0
  %3121 = vmatpush1.msra.mxu0 0.0
  %3122 = vmatprep.subr.mxu0 0.0
  %3123 = vmatpush1.msra.mxu0 0.0
  %3124 = vmatprep.subr.mxu0 0.0
  %3125 = vmatpush1.msra.mxu0 0.0
  %3126 = vmatprep.subr.mxu0 0.0
  %3127 = vmatpush1.msra.mxu0 0.0
  %3128 = vmatprep.subr.mxu0 0.0
  %3129 = vmatpush1.msra.mxu0 0.0
  %3130 = vmatprep.subr.mxu0 0.0
  %3131 = vmatpush1.msra.mxu0 0.0
  %3132 = vmatprep.subr.mxu0 0.0
  %3133 = vmatpush1.msra.mxu0 0.0
  %3134 = vmatprep.subr.mxu0 0.0
  %3135 = vmatpush1.msra.mxu0 0.0
  %3136 = vmatprep.subr.mxu0 0.0
  %3137 = vmatpush1.msra.mxu0 0.0
  %3138 = vmatprep.subr.mxu0 0.0
  %3139 = vmatpush1.msra.mxu0 0.0
  %3140 = vmatprep.subr.mxu0 0.0
  %3141 = vmatpush1.msra.mxu0 0.0
  %3142 = vmatprep.subr.mxu0 0.0
  %3143 = vmatpush1.msra.mxu0 0.0
  %3144 = vmatprep.subr.mxu0 0.0
  %3145 = vmatpush1.msra.mxu0 0.0
  %3146 = vmatprep.subr.mxu0 0.0
  %3147 = vmatpush1.msra.mxu0 0.0
  %3148 = vmatprep.subr.mxu0 0.0
  %3149 = vmatpush1.msra.mxu0 0.0
  %3150 = vmatprep.subr.mxu0 0.0
  %3151 = vmatpush1.msra.mxu0 0.0
  %3152 = vmatprep.subr.mxu0 0.0
  %3153 = vmatpush1.msra.mxu0 0.0
  %3154 = vmatprep.subr.mxu0 0.0
  %3155 = vmatpush1.msra.mxu0 0.0
  %3156 = vmatprep.subr.mxu0 0.0
  %3157 = vmatpush1.msra.mxu0 0.0
  %3158 = vmatprep.subr.mxu0 0.0
  %3159 = vmatpush1.msra.mxu0 0.0
  %3160 = vmatprep.subr.mxu0 0.0
  %3161 = vmatpush1.msra.mxu0 0.0
  %3162 = vmatprep.subr.mxu0 0.0
  %3163 = vmatpush1.msra.mxu0 0.0
  %3164 = vmatprep.subr.mxu0 0.0
  %3165 = vmatpush1.msra.mxu0 0.0
  %3166 = vmatprep.subr.mxu0 0.0
  %3167 = vmatpush1.msra.mxu0 0.0
  %3168 = vmatprep.subr.mxu0 0.0
  %3169 = vmatpush1.msra.mxu0 0.0
  %3170 = vmatprep.subr.mxu0 0.0
  %3171 = vmatpush1.msra.mxu0 0.0
  %3172 = vmatprep.subr.mxu0 0.0
  %3173 = vmatpush1.msra.mxu0 0.0
  %3174 = vmatprep.subr.mxu0 0.0
  %3175 = vmatpush1.msra.mxu0 0.0
  %3176 = vmatprep.subr.mxu0 0.0
  %3177 = vmatpush1.msra.mxu0 0.0
  %3178 = vmatprep.mubr.f32.mxu0 0.0
  %3179 = vmatmul.mubr.f32.gmra.mrb[0].mxu0 %v3112
  %v3180 = vpop.f32.mrb[0].mxu0
  %v3181 = vadd.f32 0.0, %v3180
  %v3182 = vpop.f32.mrb[0].mxu0
  %3183 = vdwg.mxu0
  %s3184 = sld [smem:[#allocation4 + $0x2]]
  %p3185 = scmp.gt.s32.totalorder %s3184, 0
  %s3186 = scalar_select %p3185, 1, 0
  %s3187 = scvt.s32.f32 %s3186
  %s3188 = scalar_lea.vmem %s2, 16
  %v3189 = vld [vmem:[%s3188] sm:$0xff]
  %v3190 = vstv %s3187
  %v3191 = vmul.f32 %v3190, %v3189
  %s3192 = ssub.f32 1.0, %s3187
  %v3193 = vstv %s3192
  %v3194 = vmul.f32 %v3193, %v3181
  %v3195 = vadd.f32 %v3191, %v3194
  %v3196 = vld [vmem:[%s11] sm:$0xff]
  %v3197 = vld [vmem:[%s11 + $0x8] sm:$0xff]
  %3198 = vmatprep.subr.mxu0 0.0
  %3199 = vmatpush1.msra.mxu0 %v3196
  %3200 = vmatprep.subr.mxu0 0.0
  %3201 = vmatpush1.msra.mxu0 %v3197
  %3202 = vmatprep.subr.mxu0 0.0
  %3203 = vmatpush1.msra.mxu0 0.0
  %3204 = vmatprep.subr.mxu0 0.0
  %3205 = vmatpush1.msra.mxu0 0.0
  %3206 = vmatprep.subr.mxu0 0.0
  %3207 = vmatpush1.msra.mxu0 0.0
  %3208 = vmatprep.subr.mxu0 0.0
  %3209 = vmatpush1.msra.mxu0 0.0
  %3210 = vmatprep.subr.mxu0 0.0
  %3211 = vmatpush1.msra.mxu0 0.0
  %3212 = vmatprep.subr.mxu0 0.0
  %3213 = vmatpush1.msra.mxu0 0.0
  %3214 = vmatprep.subr.mxu0 0.0
  %3215 = vmatpush1.msra.mxu0 0.0
  %3216 = vmatprep.subr.mxu0 0.0
  %3217 = vmatpush1.msra.mxu0 0.0
  %3218 = vmatprep.subr.mxu0 0.0
  %3219 = vmatpush1.msra.mxu0 0.0
  %3220 = vmatprep.subr.mxu0 0.0
  %3221 = vmatpush1.msra.mxu0 0.0
  %3222 = vmatprep.subr.mxu0 0.0
  %3223 = vmatpush1.msra.mxu0 0.0
  %3224 = vmatprep.subr.mxu0 0.0
  %3225 = vmatpush1.msra.mxu0 0.0
  %3226 = vmatprep.subr.mxu0 0.0
  %3227 = vmatpush1.msra.mxu0 0.0
  %3228 = vmatprep.subr.mxu0 0.0
  %3229 = vmatpush1.msra.mxu0 0.0
  %3230 = vmatprep.subr.mxu0 0.0
  %3231 = vmatpush1.msra.mxu0 0.0
  %3232 = vmatprep.subr.mxu0 0.0
  %3233 = vmatpush1.msra.mxu0 0.0
  %3234 = vmatprep.subr.mxu0 0.0
  %3235 = vmatpush1.msra.mxu0 0.0
  %3236 = vmatprep.subr.mxu0 0.0
  %3237 = vmatpush1.msra.mxu0 0.0
  %3238 = vmatprep.subr.mxu0 0.0
  %3239 = vmatpush1.msra.mxu0 0.0
  %3240 = vmatprep.subr.mxu0 0.0
  %3241 = vmatpush1.msra.mxu0 0.0
  %3242 = vmatprep.subr.mxu0 0.0
  %3243 = vmatpush1.msra.mxu0 0.0
  %3244 = vmatprep.subr.mxu0 0.0
  %3245 = vmatpush1.msra.mxu0 0.0
  %3246 = vmatprep.subr.mxu0 0.0
  %3247 = vmatpush1.msra.mxu0 0.0
  %3248 = vmatprep.subr.mxu0 0.0
  %3249 = vmatpush1.msra.mxu0 0.0
  %3250 = vmatprep.subr.mxu0 0.0
  %3251 = vmatpush1.msra.mxu0 0.0
  %3252 = vmatprep.subr.mxu0 0.0
  %3253 = vmatpush1.msra.mxu0 0.0
  %3254 = vmatprep.subr.mxu0 0.0
  %3255 = vmatpush1.msra.mxu0 0.0
  %3256 = vmatprep.subr.mxu0 0.0
  %3257 = vmatpush1.msra.mxu0 0.0
  %3258 = vmatprep.subr.mxu0 0.0
  %3259 = vmatpush1.msra.mxu0 0.0
  %3260 = vmatprep.subr.mxu0 0.0
  %3261 = vmatpush1.msra.mxu0 0.0
  %3262 = vmatprep.mubr.f32.mxu0 0.0
  %3263 = vmatmul.mubr.f32.gmra.mrb[0].mxu0 %v2947
  %v3264 = vpop.f32.mrb[0].mxu0
  %v3265 = vadd.f32 0.0, %v3264
  %v3266 = vpop.f32.mrb[0].mxu0
  %3267 = vdwg.mxu0
  %v3268 = vadd.f32 %v1295, %v3265
  %v3269 = vtanh.pop %v3268
  %v3270 = vld [vmem:[%s12] sm:$0xff]
  %v3271 = vld [vmem:[%s12 + $0x8] sm:$0xff]
  %v3272 = vld [vmem:[%s12 + $0x10] sm:$0xff]
  %v3273 = vld [vmem:[%s12 + $0x18] sm:$0xff]
  %v3274 = vld [vmem:[%s12 + $0x20] sm:$0xff]
  %v3275 = vld [vmem:[%s12 + $0x28] sm:$0xff]
  %v3276 = vld [vmem:[%s12 + $0x30] sm:$0xff]
  %v3277 = vld [vmem:[%s12 + $0x38] sm:$0xff]
  %v3278 = vld [vmem:[%s12 + $0x40] sm:$0xff]
  %v3279 = vld [vmem:[%s12 + $0x48] sm:$0xff]
  %v3280 = vld [vmem:[%s12 + $0x50] sm:$0xff]
  %v3281 = vld [vmem:[%s12 + $0x58] sm:$0xff]
  %v3282 = vld [vmem:[%s12 + $0x60] sm:$0xff]
  %v3283 = vld [vmem:[%s12 + $0x68] sm:$0xff]
  %v3284 = vld [vmem:[%s12 + $0x70] sm:$0xff]
  %v3285 = vld [vmem:[%s12 + $0x78] sm:$0xff]
  %3286 = vmatprep.subr.mxu0 0.0
  %3287 = vmatpush1.msra.mxu0 %v3270
  %3288 = vmatprep.subr.mxu0 0.0
  %3289 = vmatpush1.msra.mxu0 %v3271
  %3290 = vmatprep.subr.mxu0 0.0
  %3291 = vmatpush1.msra.mxu0 %v3272
  %3292 = vmatprep.subr.mxu0 0.0
  %3293 = vmatpush1.msra.mxu0 %v3273
  %3294 = vmatprep.subr.mxu0 0.0
  %3295 = vmatpush1.msra.mxu0 %v3274
  %3296 = vmatprep.subr.mxu0 0.0
  %3297 = vmatpush1.msra.mxu0 %v3275
  %3298 = vmatprep.subr.mxu0 0.0
  %3299 = vmatpush1.msra.mxu0 %v3276
  %3300 = vmatprep.subr.mxu0 0.0
  %3301 = vmatpush1.msra.mxu0 %v3277
  %3302 = vmatprep.subr.mxu0 0.0
  %3303 = vmatpush1.msra.mxu0 %v3278
  %3304 = vmatprep.subr.mxu0 0.0
  %3305 = vmatpush1.msra.mxu0 %v3279
  %3306 = vmatprep.subr.mxu0 0.0
  %3307 = vmatpush1.msra.mxu0 %v3280
  %3308 = vmatprep.subr.mxu0 0.0
  %3309 = vmatpush1.msra.mxu0 %v3281
  %3310 = vmatprep.subr.mxu0 0.0
  %3311 = vmatpush1.msra.mxu0 %v3282
  %3312 = vmatprep.subr.mxu0 0.0
  %3313 = vmatpush1.msra.mxu0 %v3283
  %3314 = vmatprep.subr.mxu0 0.0
  %3315 = vmatpush1.msra.mxu0 %v3284
  %3316 = vmatprep.subr.mxu0 0.0
  %3317 = vmatpush1.msra.mxu0 %v3285
  %3318 = vmatprep.subr.mxu0 0.0
  %3319 = vmatpush1.msra.mxu0 0.0
  %3320 = vmatprep.subr.mxu0 0.0
  %3321 = vmatpush1.msra.mxu0 0.0
  %3322 = vmatprep.subr.mxu0 0.0
  %3323 = vmatpush1.msra.mxu0 0.0
  %3324 = vmatprep.subr.mxu0 0.0
  %3325 = vmatpush1.msra.mxu0 0.0
  %3326 = vmatprep.subr.mxu0 0.0
  %3327 = vmatpush1.msra.mxu0 0.0
  %3328 = vmatprep.subr.mxu0 0.0
  %3329 = vmatpush1.msra.mxu0 0.0
  %3330 = vmatprep.subr.mxu0 0.0
  %3331 = vmatpush1.msra.mxu0 0.0
  %3332 = vmatprep.subr.mxu0 0.0
  %3333 = vmatpush1.msra.mxu0 0.0
  %3334 = vmatprep.subr.mxu0 0.0
  %3335 = vmatpush1.msra.mxu0 0.0
  %3336 = vmatprep.subr.mxu0 0.0
  %3337 = vmatpush1.msra.mxu0 0.0
  %3338 = vmatprep.subr.mxu0 0.0
  %3339 = vmatpush1.msra.mxu0 0.0
  %3340 = vmatprep.subr.mxu0 0.0
  %3341 = vmatpush1.msra.mxu0 0.0
  %3342 = vmatprep.subr.mxu0 0.0
  %3343 = vmatpush1.msra.mxu0 0.0
  %3344 = vmatprep.subr.mxu0 0.0
  %3345 = vmatpush1.msra.mxu0 0.0
  %3346 = vmatprep.subr.mxu0 0.0
  %3347 = vmatpush1.msra.mxu0 0.0
  %3348 = vmatprep.subr.mxu0 0.0
  %3349 = vmatpush1.msra.mxu0 0.0
  %3350 = vmatprep.mubr.f32.mxu0 0.0
  %3351 = vmatmul.mubr.f32.gmra.mrb[0].mxu0 %v3269
  %v3352 = vpop.f32.mrb[0].mxu0
  %v3353 = vadd.f32 0.0, %v3352
  %v3354 = vpop.f32.mrb[0].mxu0
  %3355 = vdwg.mxu0
  %v3356 = vsel %vm1467, %v3353, -inf
  %3357 = vmax.xlane.f32.xlu0 %v3356
  %v3358 = vpop.xlane.xlu0 %3357
  %v3359 = vsub.f32 %v3353, %v3358
  %v3360 = vmul.f32 %v3359, 1.442695
  %v3361 = vpow.pop %v3360
  %v3362 = vsel %vm1467, %v3361, 0.0
  %3363 = vadd.xlane.f32.xlu0 %v3362
  %v3364 = vpop.xlane.xlu0 %3363
  %v3365 = vrcp.pop %v3364
  %v3366 = vmul.f32 %v3361, %v3365
  %v3367 = vld [vmem:[%s13] sm:$0xff]
  %v3368 = vld [vmem:[%s13 + $0x8] sm:$0xff]
  %v3370 = vsel %vm1467, %v3366, 0
  %3372 = vmatprep.subr.mxu0 %v3368
  %3373 = vmatpush1.msra.mxu0 %v3367
  %3374 = vmatprep.subr.mxu0 0.0
  %3375 = vmatpush1.msra.mxu0 0.0
  %3376 = vmatprep.subr.mxu0 0.0
  %3377 = vmatpush1.msra.mxu0 0.0
  %3378 = vmatprep.subr.mxu0 0.0
  %3379 = vmatpush1.msra.mxu0 0.0
  %3380 = vmatprep.subr.mxu0 0.0
  %3381 = vmatpush1.msra.mxu0 0.0
  %3382 = vmatprep.subr.mxu0 0.0
  %3383 = vmatpush1.msra.mxu0 0.0
  %3384 = vmatprep.subr.mxu0 0.0
  %3385 = vmatpush1.msra.mxu0 0.0
  %3386 = vmatprep.subr.mxu0 0.0
  %3387 = vmatpush1.msra.mxu0 0.0
  %3388 = vmatprep.subr.mxu0 0.0
  %3389 = vmatpush1.msra.mxu0 0.0
  %3390 = vmatprep.subr.mxu0 0.0
  %3391 = vmatpush1.msra.mxu0 0.0
  %3392 = vmatprep.subr.mxu0 0.0
  %3393 = vmatpush1.msra.mxu0 0.0
  %3394 = vmatprep.subr.mxu0 0.0
  %3395 = vmatpush1.msra.mxu0 0.0
  %3396 = vmatprep.subr.mxu0 0.0
  %3397 = vmatpush1.msra.mxu0 0.0
  %3398 = vmatprep.subr.mxu0 0.0
  %3399 = vmatpush1.msra.mxu0 0.0
  %3400 = vmatprep.subr.mxu0 0.0
  %3401 = vmatpush1.msra.mxu0 0.0
  %3402 = vmatprep.subr.mxu0 0.0
  %3403 = vmatpush1.msra.mxu0 0.0
  %3404 = vmatprep.subr.mxu0 0.0
  %3405 = vmatpush1.msra.mxu0 0.0
  %3406 = vmatprep.subr.mxu0 0.0
  %3407 = vmatpush1.msra.mxu0 0.0
  %3408 = vmatprep.subr.mxu0 0.0
  %3409 = vmatpush1.msra.mxu0 0.0
  %3410 = vmatprep.subr.mxu0 0.0
  %3411 = vmatpush1.msra.mxu0 0.0
  %3412 = vmatprep.subr.mxu0 0.0
  %3413 = vmatpush1.msra.mxu0 0.0
  %3414 = vmatprep.subr.mxu0 0.0
  %3415 = vmatpush1.msra.mxu0 0.0
  %3416 = vmatprep.subr.mxu0 0.0
  %3417 = vmatpush1.msra.mxu0 0.0
  %3418 = vmatprep.subr.mxu0 0.0
  %3419 = vmatpush1.msra.mxu0 0.0
  %3420 = vmatprep.subr.mxu0 0.0
  %3421 = vmatpush1.msra.mxu0 0.0
  %3422 = vmatprep.subr.mxu0 0.0
  %3423 = vmatpush1.msra.mxu0 0.0
  %3424 = vmatprep.subr.mxu0 0.0
  %3425 = vmatpush1.msra.mxu0 0.0
  %3426 = vmatprep.subr.mxu0 0.0
  %3427 = vmatpush1.msra.mxu0 0.0
  %3428 = vmatprep.subr.mxu0 0.0
  %3429 = vmatpush1.msra.mxu0 0.0
  %3430 = vmatprep.subr.mxu0 0.0
  %3431 = vmatpush1.msra.mxu0 0.0
  %3432 = vmatprep.subr.mxu0 0.0
  %3433 = vmatpush1.msra.mxu0 0.0
  %3434 = vmatprep.subr.mxu0 0.0
  %3435 = vmatpush1.msra.mxu0 0.0
  %3436 = vmatprep.mubr.f32.mxu0 0.0
  %3437 = vmatmul.mubr.f32.gmra.mrb[0].mxu0 %v3370
  %v3438 = vpop.f32.mrb[0].mxu0
  %v3439 = vadd.f32 0.0, %v3438
  %v3440 = vpop.f32.mrb[0].mxu0
  %v3441 = vadd.f32 0.0, %v3440
  %3442 = vdwg.mxu0
  %v3443 = vmul.f32 %v3439, %v1187
  %v3444 = vmul.f32 %v3441, %v1188
  %v3445 = vld [vmem:[%s14] sm:$0xff]
  %v3446 = vld [vmem:[%s14 + $0x8] sm:$0xff]
  %v3447 = vld [vmem:[%s14 + $0x10] sm:$0xff]
  %v3448 = vld [vmem:[%s14 + $0x18] sm:$0xff]
  %v3449 = vld [vmem:[%s14 + $0x20] sm:$0xff]
  %v3450 = vld [vmem:[%s14 + $0x28] sm:$0xff]
  %v3451 = vld [vmem:[%s14 + $0x30] sm:$0xff]
  %v3452 = vld [vmem:[%s14 + $0x38] sm:$0xff]
  %v3453 = vld [vmem:[%s14 + $0x40] sm:$0xff]
  %v3454 = vld [vmem:[%s14 + $0x48] sm:$0xff]
  %v3455 = vld [vmem:[%s14 + $0x50] sm:$0xff]
  %v3456 = vld [vmem:[%s14 + $0x58] sm:$0xff]
  %v3457 = vld [vmem:[%s14 + $0x60] sm:$0xff]
  %v3458 = vld [vmem:[%s14 + $0x68] sm:$0xff]
  %v3459 = vld [vmem:[%s14 + $0x70] sm:$0xff]
  %v3460 = vld [vmem:[%s14 + $0x78] sm:$0xff]
  %v3461 = vld [vmem:[%s14 + $0x80] sm:$0xff]
  %v3462 = vld [vmem:[%s14 + $0x88] sm:$0xff]
  %v3463 = vld [vmem:[%s14 + $0x90] sm:$0xff]
  %v3464 = vld [vmem:[%s14 + $0x98] sm:$0xff]
  %v3465 = vld [vmem:[%s14 + $0xa0] sm:$0xff]
  %v3466 = vld [vmem:[%s14 + $0xa8] sm:$0xff]
  %v3467 = vld [vmem:[%s14 + $0xb0] sm:$0xff]
  %v3468 = vld [vmem:[%s14 + $0xb8] sm:$0xff]
  %v3469 = vld [vmem:[%s14 + $0xc0] sm:$0xff]
  %v3470 = vld [vmem:[%s14 + $0xc8] sm:$0xff]
  %v3471 = vld [vmem:[%s14 + $0xd0] sm:$0xff]
  %v3472 = vld [vmem:[%s14 + $0xd8] sm:$0xff]
  %v3473 = vld [vmem:[%s14 + $0xe0] sm:$0xff]
  %v3474 = vld [vmem:[%s14 + $0xe8] sm:$0xff]
  %v3475 = vld [vmem:[%s14 + $0xf0] sm:$0xff]
  %v3476 = vld [vmem:[%s14 + $0xf8] sm:$0xff]
  %3477 = vmatprep.subr.mxu0 0.0
  %3478 = vmatpush1.msra.mxu0 %v3445
  %3479 = vmatprep.subr.mxu0 0.0
  %3480 = vmatpush1.msra.mxu0 %v3446
  %3481 = vmatprep.subr.mxu0 0.0
  %3482 = vmatpush1.msra.mxu0 %v3447
  %3483 = vmatprep.subr.mxu0 0.0
  %3484 = vmatpush1.msra.mxu0 %v3448
  %3485 = vmatprep.subr.mxu0 0.0
  %3486 = vmatpush1.msra.mxu0 %v3449
  %3487 = vmatprep.subr.mxu0 0.0
  %3488 = vmatpush1.msra.mxu0 %v3450
  %3489 = vmatprep.subr.mxu0 0.0
  %3490 = vmatpush1.msra.mxu0 %v3451
  %3491 = vmatprep.subr.mxu0 0.0
  %3492 = vmatpush1.msra.mxu0 %v3452
  %3493 = vmatprep.subr.mxu0 0.0
  %3494 = vmatpush1.msra.mxu0 %v3453
  %3495 = vmatprep.subr.mxu0 0.0
  %3496 = vmatpush1.msra.mxu0 %v3454
  %3497 = vmatprep.subr.mxu0 0.0
  %3498 = vmatpush1.msra.mxu0 %v3455
  %3499 = vmatprep.subr.mxu0 0.0
  %3500 = vmatpush1.msra.mxu0 %v3456
  %3501 = vmatprep.subr.mxu0 0.0
  %3502 = vmatpush1.msra.mxu0 %v3457
  %3503 = vmatprep.subr.mxu0 0.0
  %3504 = vmatpush1.msra.mxu0 %v3458
  %3505 = vmatprep.subr.mxu0 0.0
  %3506 = vmatpush1.msra.mxu0 %v3459
  %3507 = vmatprep.subr.mxu0 0.0
  %3508 = vmatpush1.msra.mxu0 %v3460
  %3509 = vmatprep.subr.mxu0 0.0
  %3510 = vmatpush1.msra.mxu0 %v3461
  %3511 = vmatprep.subr.mxu0 0.0
  %3512 = vmatpush1.msra.mxu0 %v3462
  %3513 = vmatprep.subr.mxu0 0.0
  %3514 = vmatpush1.msra.mxu0 %v3463
  %3515 = vmatprep.subr.mxu0 0.0
  %3516 = vmatpush1.msra.mxu0 %v3464
  %3517 = vmatprep.subr.mxu0 0.0
  %3518 = vmatpush1.msra.mxu0 %v3465
  %3519 = vmatprep.subr.mxu0 0.0
  %3520 = vmatpush1.msra.mxu0 %v3466
  %3521 = vmatprep.subr.mxu0 0.0
  %3522 = vmatpush1.msra.mxu0 %v3467
  %3523 = vmatprep.subr.mxu0 0.0
  %3524 = vmatpush1.msra.mxu0 %v3468
  %3525 = vmatprep.subr.mxu0 0.0
  %3526 = vmatpush1.msra.mxu0 %v3469
  %3527 = vmatprep.subr.mxu0 0.0
  %3528 = vmatpush1.msra.mxu0 %v3470
  %3529 = vmatprep.subr.mxu0 0.0
  %3530 = vmatpush1.msra.mxu0 %v3471
  %3531 = vmatprep.subr.mxu0 0.0
  %3532 = vmatpush1.msra.mxu0 %v3472
  %3533 = vmatprep.subr.mxu0 0.0
  %3534 = vmatpush1.msra.mxu0 %v3473
  %3535 = vmatprep.subr.mxu0 0.0
  %3536 = vmatpush1.msra.mxu0 %v3474
  %3537 = vmatprep.subr.mxu0 0.0
  %3538 = vmatpush1.msra.mxu0 %v3475
  %3539 = vmatprep.subr.mxu0 0.0
  %3540 = vmatpush1.msra.mxu0 %v3476
  %3541 = vmatprep.mubr.f32.mxu0 %v3444
  %3542 = vmatmul.mubr.f32.gmra.mrb[0].mxu0 %v3443
  %v3543 = vpop.f32.mrb[0].mxu0
  %v3544 = vadd.f32 0.0, %v3543
  %v3545 = vpop.f32.mrb[0].mxu0
  %3546 = vdwg.mxu0
  %v3547 = vld [vmem:[%s15] sm:$0xff]
  %v3548 = vld [vmem:[%s16] sm:$0xff]
  %v3549 = vld [vmem:[%s16 + $0x8] sm:$0xff]
  %v3550 = vld [vmem:[%s16 + $0x10] sm:$0xff]
  %v3551 = vld [vmem:[%s16 + $0x18] sm:$0xff]
  %v3553 = vsel %vm242, %v3544, 0
  %3555 = vmatprep.subr.mxu0 0.0
  %3556 = vmatpush1.msra.mxu0 %v3548
  %3557 = vmatprep.subr.mxu0 0.0
  %3558 = vmatpush1.msra.mxu0 %v3549
  %3559 = vmatprep.subr.mxu0 0.0
  %3560 = vmatpush1.msra.mxu0 %v3550
  %3561 = vmatprep.subr.mxu0 0.0
  %3562 = vmatpush1.msra.mxu0 %v3551
  %3563 = vmatprep.subr.mxu0 0.0
  %3564 = vmatpush1.msra.mxu0 0.0
  %3565 = vmatprep.subr.mxu0 0.0
  %3566 = vmatpush1.msra.mxu0 0.0
  %3567 = vmatprep.subr.mxu0 0.0
  %3568 = vmatpush1.msra.mxu0 0.0
  %3569 = vmatprep.subr.mxu0 0.0
  %3570 = vmatpush1.msra.mxu0 0.0
  %3571 = vmatprep.subr.mxu0 0.0
  %3572 = vmatpush1.msra.mxu0 0.0
  %3573 = vmatprep.subr.mxu0 0.0
  %3574 = vmatpush1.msra.mxu0 0.0
  %3575 = vmatprep.subr.mxu0 0.0
  %3576 = vmatpush1.msra.mxu0 0.0
  %3577 = vmatprep.subr.mxu0 0.0
  %3578 = vmatpush1.msra.mxu0 0.0
  %3579 = vmatprep.subr.mxu0 0.0
  %3580 = vmatpush1.msra.mxu0 0.0
  %3581 = vmatprep.subr.mxu0 0.0
  %3582 = vmatpush1.msra.mxu0 0.0
  %3583 = vmatprep.subr.mxu0 0.0
  %3584 = vmatpush1.msra.mxu0 0.0
  %3585 = vmatprep.subr.mxu0 0.0
  %3586 = vmatpush1.msra.mxu0 0.0
  %3587 = vmatprep.subr.mxu0 0.0
  %3588 = vmatpush1.msra.mxu0 0.0
  %3589 = vmatprep.subr.mxu0 0.0
  %3590 = vmatpush1.msra.mxu0 0.0
  %3591 = vmatprep.subr.mxu0 0.0
  %3592 = vmatpush1.msra.mxu0 0.0
  %3593 = vmatprep.subr.mxu0 0.0
  %3594 = vmatpush1.msra.mxu0 0.0
  %3595 = vmatprep.subr.mxu0 0.0
  %3596 = vmatpush1.msra.mxu0 0.0
  %3597 = vmatprep.subr.mxu0 0.0
  %3598 = vmatpush1.msra.mxu0 0.0
  %3599 = vmatprep.subr.mxu0 0.0
  %3600 = vmatpush1.msra.mxu0 0.0
  %3601 = vmatprep.subr.mxu0 0.0
  %3602 = vmatpush1.msra.mxu0 0.0
  %3603 = vmatprep.subr.mxu0 0.0
  %3604 = vmatpush1.msra.mxu0 0.0
  %3605 = vmatprep.subr.mxu0 0.0
  %3606 = vmatpush1.msra.mxu0 0.0
  %3607 = vmatprep.subr.mxu0 0.0
  %3608 = vmatpush1.msra.mxu0 0.0
  %3609 = vmatprep.subr.mxu0 0.0
  %3610 = vmatpush1.msra.mxu0 0.0
  %3611 = vmatprep.subr.mxu0 0.0
  %3612 = vmatpush1.msra.mxu0 0.0
  %3613 = vmatprep.subr.mxu0 0.0
  %3614 = vmatpush1.msra.mxu0 0.0
  %3615 = vmatprep.subr.mxu0 0.0
  %3616 = vmatpush1.msra.mxu0 0.0
  %3617 = vmatprep.subr.mxu0 0.0
  %3618 = vmatpush1.msra.mxu0 0.0
  %3619 = vmatprep.mubr.f32.mxu0 0.0
  %3620 = vmatmul.mubr.f32.gmra.mrb[0].mxu0 %v3553
  %v3621 = vpop.f32.mrb[0].mxu0
  %v3622 = vadd.f32 0.0, %v3621
  %v3623 = vpop.f32.mrb[0].mxu0
  %3624 = vdwg.mxu0
  %v3626 = vsel %vm1467, %v3195, 0
  %3628 = vmatprep.subr.mxu0 0.0
  %3629 = vmatpush1.msra.mxu0 %v3547
  %3630 = vmatprep.subr.mxu0 0.0
  %3631 = vmatpush1.msra.mxu0 0.0
  %3632 = vmatprep.subr.mxu0 0.0
  %3633 = vmatpush1.msra.mxu0 0.0
  %3634 = vmatprep.subr.mxu0 0.0
  %3635 = vmatpush1.msra.mxu0 0.0
  %3636 = vmatprep.subr.mxu0 0.0
  %3637 = vmatpush1.msra.mxu0 0.0
  %3638 = vmatprep.subr.mxu0 0.0
  %3639 = vmatpush1.msra.mxu0 0.0
  %3640 = vmatprep.subr.mxu0 0.0
  %3641 = vmatpush1.msra.mxu0 0.0
  %3642 = vmatprep.subr.mxu0 0.0
  %3643 = vmatpush1.msra.mxu0 0.0
  %3644 = vmatprep.subr.mxu0 0.0
  %3645 = vmatpush1.msra.mxu0 0.0
  %3646 = vmatprep.subr.mxu0 0.0
  %3647 = vmatpush1.msra.mxu0 0.0
  %3648 = vmatprep.subr.mxu0 0.0
  %3649 = vmatpush1.msra.mxu0 0.0
  %3650 = vmatprep.subr.mxu0 0.0
  %3651 = vmatpush1.msra.mxu0 0.0
  %3652 = vmatprep.subr.mxu0 0.0
  %3653 = vmatpush1.msra.mxu0 0.0
  %3654 = vmatprep.subr.mxu0 0.0
  %3655 = vmatpush1.msra.mxu0 0.0
  %3656 = vmatprep.subr.mxu0 0.0
  %3657 = vmatpush1.msra.mxu0 0.0
  %3658 = vmatprep.subr.mxu0 0.0
  %3659 = vmatpush1.msra.mxu0 0.0
  %3660 = vmatprep.subr.mxu0 0.0
  %3661 = vmatpush1.msra.mxu0 0.0
  %3662 = vmatprep.subr.mxu0 0.0
  %3663 = vmatpush1.msra.mxu0 0.0
  %3664 = vmatprep.subr.mxu0 0.0
  %3665 = vmatpush1.msra.mxu0 0.0
  %3666 = vmatprep.subr.mxu0 0.0
  %3667 = vmatpush1.msra.mxu0 0.0
  %3668 = vmatprep.subr.mxu0 0.0
  %3669 = vmatpush1.msra.mxu0 0.0
  %3670 = vmatprep.subr.mxu0 0.0
  %3671 = vmatpush1.msra.mxu0 0.0
  %3672 = vmatprep.subr.mxu0 0.0
  %3673 = vmatpush1.msra.mxu0 0.0
  %3674 = vmatprep.subr.mxu0 0.0
  %3675 = vmatpush1.msra.mxu0 0.0
  %3676 = vmatprep.subr.mxu0 0.0
  %3677 = vmatpush1.msra.mxu0 0.0
  %3678 = vmatprep.subr.mxu0 0.0
  %3679 = vmatpush1.msra.mxu0 0.0
  %3680 = vmatprep.subr.mxu0 0.0
  %3681 = vmatpush1.msra.mxu0 0.0
  %3682 = vmatprep.subr.mxu0 0.0
  %3683 = vmatpush1.msra.mxu0 0.0
  %3684 = vmatprep.subr.mxu0 0.0
  %3685 = vmatpush1.msra.mxu0 0.0
  %3686 = vmatprep.subr.mxu0 0.0
  %3687 = vmatpush1.msra.mxu0 0.0
  %3688 = vmatprep.subr.mxu0 0.0
  %3689 = vmatpush1.msra.mxu0 0.0
  %3690 = vmatprep.subr.mxu0 0.0
  %3691 = vmatpush1.msra.mxu0 0.0
  %3692 = vmatprep.mubr.f32.mxu0 0.0
  %3693 = vmatmul.mubr.f32.gmra.mrb[0].mxu0 %v3626
  %v3694 = vpop.f32.mrb[0].mxu0
  %v3695 = vadd.f32 %v3622, %v3694
  %v3696 = vpop.f32.mrb[0].mxu0
  %3697 = vdwg.mxu0
  %v3698 = vld [vmem:[%s18] sm:$0x1]
  %v3700 = vlaneseq
  %v3701 = vshrl.u32 %v3700, 7
  %v3702 = vsub.s32 0, %v3701
  %v3703 = vrot.slane %v3698, %v3702
  %v3705 = vadd.f32 %v3695, %v3703
  %v3706 = vld [vmem:[%s17] sm:$0xff]
  %v3707 = vld [vmem:[%s17 + $0x8] sm:$0xff]
  %v3708 = vld [vmem:[%s19] sm:$0x1]
  %v3710 = vlaneseq
  %v3711 = vshrl.u32 %v3710, 7
  %v3712 = vsub.s32 0, %v3711
  %v3713 = vrot.slane %v3708, %v3712
  %3715 = vmatprep.subr.mxu0 0.0
  %3716 = vmatpush1.msra.mxu0 %v3706
  %3717 = vmatprep.subr.mxu0 0.0
  %3718 = vmatpush1.msra.mxu0 %v3707
  %3719 = vmatprep.subr.mxu0 0.0
  %3720 = vmatpush1.msra.mxu0 0.0
  %3721 = vmatprep.subr.mxu0 0.0
  %3722 = vmatpush1.msra.mxu0 0.0
  %3723 = vmatprep.subr.mxu0 0.0
  %3724 = vmatpush1.msra.mxu0 0.0
  %3725 = vmatprep.subr.mxu0 0.0
  %3726 = vmatpush1.msra.mxu0 0.0
  %3727 = vmatprep.subr.mxu0 0.0
  %3728 = vmatpush1.msra.mxu0 0.0
  %3729 = vmatprep.subr.mxu0 0.0
  %3730 = vmatpush1.msra.mxu0 0.0
  %3731 = vmatprep.subr.mxu0 0.0
  %3732 = vmatpush1.msra.mxu0 0.0
  %3733 = vmatprep.subr.mxu0 0.0
  %3734 = vmatpush1.msra.mxu0 0.0
  %3735 = vmatprep.subr.mxu0 0.0
  %3736 = vmatpush1.msra.mxu0 0.0
  %3737 = vmatprep.subr.mxu0 0.0
  %3738 = vmatpush1.msra.mxu0 0.0
  %3739 = vmatprep.subr.mxu0 0.0
  %3740 = vmatpush1.msra.mxu0 0.0
  %3741 = vmatprep.subr.mxu0 0.0
  %3742 = vmatpush1.msra.mxu0 0.0
  %3743 = vmatprep.subr.mxu0 0.0
  %3744 = vmatpush1.msra.mxu0 0.0
  %3745 = vmatprep.subr.mxu0 0.0
  %3746 = vmatpush1.msra.mxu0 0.0
  %3747 = vmatprep.subr.mxu0 0.0
  %3748 = vmatpush1.msra.mxu0 0.0
  %3749 = vmatprep.subr.mxu0 0.0
  %3750 = vmatpush1.msra.mxu0 0.0
  %3751 = vmatprep.subr.mxu0 0.0
  %3752 = vmatpush1.msra.mxu0 0.0
  %3753 = vmatprep.subr.mxu0 0.0
  %3754 = vmatpush1.msra.mxu0 0.0
  %3755 = vmatprep.subr.mxu0 0.0
  %3756 = vmatpush1.msra.mxu0 0.0
  %3757 = vmatprep.subr.mxu0 0.0
  %3758 = vmatpush1.msra.mxu0 0.0
  %3759 = vmatprep.subr.mxu0 0.0
  %3760 = vmatpush1.msra.mxu0 0.0
  %3761 = vmatprep.subr.mxu0 0.0
  %3762 = vmatpush1.msra.mxu0 0.0
  %3763 = vmatprep.subr.mxu0 0.0
  %3764 = vmatpush1.msra.mxu0 0.0
  %3765 = vmatprep.subr.mxu0 0.0
  %3766 = vmatpush1.msra.mxu0 0.0
  %3767 = vmatprep.subr.mxu0 0.0
  %3768 = vmatpush1.msra.mxu0 0.0
  %3769 = vmatprep.subr.mxu0 0.0
  %3770 = vmatpush1.msra.mxu0 0.0
  %3771 = vmatprep.subr.mxu0 0.0
  %3772 = vmatpush1.msra.mxu0 0.0
  %3773 = vmatprep.subr.mxu0 0.0
  %3774 = vmatpush1.msra.mxu0 0.0
  %3775 = vmatprep.subr.mxu0 0.0
  %3776 = vmatpush1.msra.mxu0 0.0
  %3777 = vmatprep.subr.mxu0 0.0
  %3778 = vmatpush1.msra.mxu0 0.0
  %3779 = vmatprep.mubr.f32.mxu0 0.0
  %3780 = vmatmul.mubr.f32.gmra.mrb[0].mxu0 %v2947
  %v3781 = vpop.f32.mrb[0].mxu0
  %v3782 = vadd.f32 %v3713, %v3781
  %v3783 = vpop.f32.mrb[0].mxu0
  %3784 = vdwg.mxu0
  %v3785 = vadd.f32 %v3705, %v3782
  %v3786 = vxor.u32 %v3785, 2147483648
  %v3787 = vmul.f32 %v3786, 1.442695
  %v3788 = vpow.pop %v3787
  %v3789 = vadd.f32 %v3788, 1.0
  %v3790 = vrcp.pop %v3789
  %v3791 = vmul.f32 1.0, %v3790
  %3793 = vrot.lane.b32.xlu0 %v3782, 96
  %v3794 = vpop.permute.xlu0 %3793
  %v3796 = vmul.f32 %v3791, %v3794
  %3798 = vrot.lane.b32.xlu0 %v3796, 32
  %v3799 = vpop.permute.xlu0 %3798
  %v3801 = vadd.f32 %v3705, %v3799
  %v3802 = vtanh.pop %v3801
  %v3803 = vsub.f32 1.0, %v3791
  %3805 = vrot.lane.b32.xlu0 %v3802, 112
  %v3806 = vpop.permute.xlu0 %3805
  %v3808 = vmul.f32 %v3803, %v3806
  %v3809 = vmul.f32 %v3791, %v2867
  %v3810 = vadd.f32 %v3808, %v3809
  %v3811 = vld [vmem:[%s20] sm:$0xff]
  %v3812 = vld [vmem:[%s20 + $0x8] sm:$0xff]
  %v3813 = vld [vmem:[%s21] sm:$0xff]
  %v3814 = vld [vmem:[%s21 + $0x8] sm:$0xff]
  %v3815 = vld [vmem:[%s21 + $0x10] sm:$0xff]
  %v3816 = vld [vmem:[%s21 + $0x18] sm:$0xff]
  %3817 = vmatprep.subr.mxu0 0.0
  %3818 = vmatpush1.msra.mxu0 %v3813
  %3819 = vmatprep.subr.mxu0 0.0
  %3820 = vmatpush1.msra.mxu0 %v3814
  %3821 = vmatprep.subr.mxu0 0.0
  %3822 = vmatpush1.msra.mxu0 %v3815
  %3823 = vmatprep.subr.mxu0 0.0
  %3824 = vmatpush1.msra.mxu0 %v3816
  %3825 = vmatprep.subr.mxu0 0.0
  %3826 = vmatpush1.msra.mxu0 0.0
  %3827 = vmatprep.subr.mxu0 0.0
  %3828 = vmatpush1.msra.mxu0 0.0
  %3829 = vmatprep.subr.mxu0 0.0
  %3830 = vmatpush1.msra.mxu0 0.0
  %3831 = vmatprep.subr.mxu0 0.0
  %3832 = vmatpush1.msra.mxu0 0.0
  %3833 = vmatprep.subr.mxu0 0.0
  %3834 = vmatpush1.msra.mxu0 0.0
  %3835 = vmatprep.subr.mxu0 0.0
  %3836 = vmatpush1.msra.mxu0 0.0
  %3837 = vmatprep.subr.mxu0 0.0
  %3838 = vmatpush1.msra.mxu0 0.0
  %3839 = vmatprep.subr.mxu0 0.0
  %3840 = vmatpush1.msra.mxu0 0.0
  %3841 = vmatprep.subr.mxu0 0.0
  %3842 = vmatpush1.msra.mxu0 0.0
  %3843 = vmatprep.subr.mxu0 0.0
  %3844 = vmatpush1.msra.mxu0 0.0
  %3845 = vmatprep.subr.mxu0 0.0
  %3846 = vmatpush1.msra.mxu0 0.0
  %3847 = vmatprep.subr.mxu0 0.0
  %3848 = vmatpush1.msra.mxu0 0.0
  %3849 = vmatprep.subr.mxu0 0.0
  %3850 = vmatpush1.msra.mxu0 0.0
  %3851 = vmatprep.subr.mxu0 0.0
  %3852 = vmatpush1.msra.mxu0 0.0
  %3853 = vmatprep.subr.mxu0 0.0
  %3854 = vmatpush1.msra.mxu0 0.0
  %3855 = vmatprep.subr.mxu0 0.0
  %3856 = vmatpush1.msra.mxu0 0.0
  %3857 = vmatprep.subr.mxu0 0.0
  %3858 = vmatpush1.msra.mxu0 0.0
  %3859 = vmatprep.subr.mxu0 0.0
  %3860 = vmatpush1.msra.mxu0 0.0
  %3861 = vmatprep.subr.mxu0 0.0
  %3862 = vmatpush1.msra.mxu0 0.0
  %3863 = vmatprep.subr.mxu0 0.0
  %3864 = vmatpush1.msra.mxu0 0.0
  %3865 = vmatprep.subr.mxu0 0.0
  %3866 = vmatpush1.msra.mxu0 0.0
  %3867 = vmatprep.subr.mxu0 0.0
  %3868 = vmatpush1.msra.mxu0 0.0
  %3869 = vmatprep.subr.mxu0 0.0
  %3870 = vmatpush1.msra.mxu0 0.0
  %3871 = vmatprep.subr.mxu0 0.0
  %3872 = vmatpush1.msra.mxu0 0.0
  %3873 = vmatprep.subr.mxu0 0.0
  %3874 = vmatpush1.msra.mxu0 0.0
  %3875 = vmatprep.subr.mxu0 0.0
  %3876 = vmatpush1.msra.mxu0 0.0
  %3877 = vmatprep.subr.mxu0 0.0
  %3878 = vmatpush1.msra.mxu0 0.0
  %3879 = vmatprep.subr.mxu0 0.0
  %3880 = vmatpush1.msra.mxu0 0.0
  %3881 = vmatprep.mubr.f32.mxu0 0.0
  %3882 = vmatmul.mubr.f32.gmra.mrb[0].mxu0 %v3553
  %v3883 = vpop.f32.mrb[0].mxu0
  %v3884 = vadd.f32 0.0, %v3883
  %v3885 = vpop.f32.mrb[0].mxu0
  %3886 = vdwg.mxu0
  %3888 = vrot.lane.b32.xlu0 %v3810, 112
  %v3889 = vpop.permute.xlu0 %3888
  %v3890 = vsel %vm101, %v3889, 0
  %3892 = vmatprep.subr.mxu0 0.0
  %3893 = vmatpush1.msra.mxu0 %v3811
  %3894 = vmatprep.subr.mxu0 0.0
  %3895 = vmatpush1.msra.mxu0 %v3812
  %3896 = vmatprep.subr.mxu0 0.0
  %3897 = vmatpush1.msra.mxu0 0.0
  %3898 = vmatprep.subr.mxu0 0.0
  %3899 = vmatpush1.msra.mxu0 0.0
  %3900 = vmatprep.subr.mxu0 0.0
  %3901 = vmatpush1.msra.mxu0 0.0
  %3902 = vmatprep.subr.mxu0 0.0
  %3903 = vmatpush1.msra.mxu0 0.0
  %3904 = vmatprep.subr.mxu0 0.0
  %3905 = vmatpush1.msra.mxu0 0.0
  %3906 = vmatprep.subr.mxu0 0.0
  %3907 = vmatpush1.msra.mxu0 0.0
  %3908 = vmatprep.subr.mxu0 0.0
  %3909 = vmatpush1.msra.mxu0 0.0
  %3910 = vmatprep.subr.mxu0 0.0
  %3911 = vmatpush1.msra.mxu0 0.0
  %3912 = vmatprep.subr.mxu0 0.0
  %3913 = vmatpush1.msra.mxu0 0.0
  %3914 = vmatprep.subr.mxu0 0.0
  %3915 = vmatpush1.msra.mxu0 0.0
  %3916 = vmatprep.subr.mxu0 0.0
  %3917 = vmatpush1.msra.mxu0 0.0
  %3918 = vmatprep.subr.mxu0 0.0
  %3919 = vmatpush1.msra.mxu0 0.0
  %3920 = vmatprep.subr.mxu0 0.0
  %3921 = vmatpush1.msra.mxu0 0.0
  %3922 = vmatprep.subr.mxu0 0.0
  %3923 = vmatpush1.msra.mxu0 0.0
  %3924 = vmatprep.subr.mxu0 0.0
  %3925 = vmatpush1.msra.mxu0 0.0
  %3926 = vmatprep.subr.mxu0 0.0
  %3927 = vmatpush1.msra.mxu0 0.0
  %3928 = vmatprep.subr.mxu0 0.0
  %3929 = vmatpush1.msra.mxu0 0.0
  %3930 = vmatprep.subr.mxu0 0.0
  %3931 = vmatpush1.msra.mxu0 0.0
  %3932 = vmatprep.subr.mxu0 0.0
  %3933 = vmatpush1.msra.mxu0 0.0
  %3934 = vmatprep.subr.mxu0 0.0
  %3935 = vmatpush1.msra.mxu0 0.0
  %3936 = vmatprep.subr.mxu0 0.0
  %3937 = vmatpush1.msra.mxu0 0.0
  %3938 = vmatprep.subr.mxu0 0.0
  %3939 = vmatpush1.msra.mxu0 0.0
  %3940 = vmatprep.subr.mxu0 0.0
  %3941 = vmatpush1.msra.mxu0 0.0
  %3942 = vmatprep.subr.mxu0 0.0
  %3943 = vmatpush1.msra.mxu0 0.0
  %3944 = vmatprep.subr.mxu0 0.0
  %3945 = vmatpush1.msra.mxu0 0.0
  %3946 = vmatprep.subr.mxu0 0.0
  %3947 = vmatpush1.msra.mxu0 0.0
  %3948 = vmatprep.subr.mxu0 0.0
  %3949 = vmatpush1.msra.mxu0 0.0
  %3950 = vmatprep.subr.mxu0 0.0
  %3951 = vmatpush1.msra.mxu0 0.0
  %3952 = vmatprep.subr.mxu0 0.0
  %3953 = vmatpush1.msra.mxu0 0.0
  %3954 = vmatprep.subr.mxu0 0.0
  %3955 = vmatpush1.msra.mxu0 0.0
  %3956 = vmatprep.mubr.f32.mxu0 0.0
  %3957 = vmatmul.mubr.f32.gmra.mrb[0].mxu0 %v3890
  %v3958 = vpop.f32.mrb[0].mxu0
  %v3959 = vadd.f32 %v3884, %v3958
  %v3960 = vpop.f32.mrb[0].mxu0
  %3961 = vdwg.mxu0
  %v3962 = vld [vmem:[%s22] sm:$0xff]
  %3963 = vmatprep.subr.mxu0 0.0
  %3964 = vmatpush1.msra.mxu0 %v3962
  %3965 = vmatprep.subr.mxu0 0.0
  %3966 = vmatpush1.msra.mxu0 0.0
  %3967 = vmatprep.subr.mxu0 0.0
  %3968 = vmatpush1.msra.mxu0 0.0
  %3969 = vmatprep.subr.mxu0 0.0
  %3970 = vmatpush1.msra.mxu0 0.0
  %3971 = vmatprep.subr.mxu0 0.0
  %3972 = vmatpush1.msra.mxu0 0.0
  %3973 = vmatprep.subr.mxu0 0.0
  %3974 = vmatpush1.msra.mxu0 0.0
  %3975 = vmatprep.subr.mxu0 0.0
  %3976 = vmatpush1.msra.mxu0 0.0
  %3977 = vmatprep.subr.mxu0 0.0
  %3978 = vmatpush1.msra.mxu0 0.0
  %3979 = vmatprep.subr.mxu0 0.0
  %3980 = vmatpush1.msra.mxu0 0.0
  %3981 = vmatprep.subr.mxu0 0.0
  %3982 = vmatpush1.msra.mxu0 0.0
  %3983 = vmatprep.subr.mxu0 0.0
  %3984 = vmatpush1.msra.mxu0 0.0
  %3985 = vmatprep.subr.mxu0 0.0
  %3986 = vmatpush1.msra.mxu0 0.0
  %3987 = vmatprep.subr.mxu0 0.0
  %3988 = vmatpush1.msra.mxu0 0.0
  %3989 = vmatprep.subr.mxu0 0.0
  %3990 = vmatpush1.msra.mxu0 0.0
  %3991 = vmatprep.subr.mxu0 0.0
  %3992 = vmatpush1.msra.mxu0 0.0
  %3993 = vmatprep.subr.mxu0 0.0
  %3994 = vmatpush1.msra.mxu0 0.0
  %3995 = vmatprep.subr.mxu0 0.0
  %3996 = vmatpush1.msra.mxu0 0.0
  %3997 = vmatprep.subr.mxu0 0.0
  %3998 = vmatpush1.msra.mxu0 0.0
  %3999 = vmatprep.subr.mxu0 0.0
  %4000 = vmatpush1.msra.mxu0 0.0
  %4001 = vmatprep.subr.mxu0 0.0
  %4002 = vmatpush1.msra.mxu0 0.0
  %4003 = vmatprep.subr.mxu0 0.0
  %4004 = vmatpush1.msra.mxu0 0.0
  %4005 = vmatprep.subr.mxu0 0.0
  %4006 = vmatpush1.msra.mxu0 0.0
  %4007 = vmatprep.subr.mxu0 0.0
  %4008 = vmatpush1.msra.mxu0 0.0
  %4009 = vmatprep.subr.mxu0 0.0
  %4010 = vmatpush1.msra.mxu0 0.0
  %4011 = vmatprep.subr.mxu0 0.0
  %4012 = vmatpush1.msra.mxu0 0.0
  %4013 = vmatprep.subr.mxu0 0.0
  %4014 = vmatpush1.msra.mxu0 0.0
  %4015 = vmatprep.subr.mxu0 0.0
  %4016 = vmatpush1.msra.mxu0 0.0
  %4017 = vmatprep.subr.mxu0 0.0
  %4018 = vmatpush1.msra.mxu0 0.0
  %4019 = vmatprep.subr.mxu0 0.0
  %4020 = vmatpush1.msra.mxu0 0.0
  %4021 = vmatprep.subr.mxu0 0.0
  %4022 = vmatpush1.msra.mxu0 0.0
  %4023 = vmatprep.subr.mxu0 0.0
  %4024 = vmatpush1.msra.mxu0 0.0
  %4025 = vmatprep.subr.mxu0 0.0
  %4026 = vmatpush1.msra.mxu0 0.0
  %4027 = vmatprep.mubr.f32.mxu0 0.0
  %4028 = vmatmul.mubr.f32.gmra.mrb[0].mxu0 %v3626
  %v4029 = vpop.f32.mrb[0].mxu0
  %v4030 = vadd.f32 0.0, %v4029
  %v4031 = vpop.f32.mrb[0].mxu0
  %4032 = vdwg.mxu0
  %v4033 = vadd.f32 %v3959, %v4030
  %v4034 = vld [vmem:[%s23] sm:$0x1]
  %v4036 = vlaneseq
  %v4037 = vshrl.u32 %v4036, 7
  %v4038 = vsub.s32 0, %v4037
  %v4039 = vrot.slane %v4034, %v4038
  %v4041 = vadd.f32 %v4033, %v4039
  %s4042 = scalar_lea.vmem %s25, 16
  %4043 = vst.msk [vmem:[%s4042] sm:$0xff] %vm101, %v4041
  %v4044 = vsel %vm101, %v4041, -inf
  %4045 = vmax.xlane.f32.xlu0 %v4044
  %v4046 = vpop.xlane.xlu0 %4045
  %vm4047 = vcmp.ge.f32.partialorder %v4041, %v4046
  %v4048 = vsel %vm4047, %v1302, 16.0
  %v4049 = vsel %vm101, %v4048, inf
  %4050 = vmin.xlane.f32.xlu0 %v4049
  %v4051 = vpop.xlane.xlu0 %4050
  %vm4052 = vcmp.eq.f32.partialorder %v1302, %v4051
  %v4053 = vsel %vm4052, 1.0, 0.0
  %v4055 = vsel %vm101, %v4053, 0
  %4057 = vmatprep.subr.mxu0 0.0
  %4058 = vmatpush1.msra.mxu0 %v1298
  %4059 = vmatprep.subr.mxu0 0.0
  %4060 = vmatpush1.msra.mxu0 %v1299
  %4061 = vmatprep.subr.mxu0 0.0
  %4062 = vmatpush1.msra.mxu0 0.0
  %4063 = vmatprep.subr.mxu0 0.0
  %4064 = vmatpush1.msra.mxu0 0.0
  %4065 = vmatprep.subr.mxu0 0.0
  %4066 = vmatpush1.msra.mxu0 0.0
  %4067 = vmatprep.subr.mxu0 0.0
  %4068 = vmatpush1.msra.mxu0 0.0
  %4069 = vmatprep.subr.mxu0 0.0
  %4070 = vmatpush1.msra.mxu0 0.0
  %4071 = vmatprep.subr.mxu0 0.0
  %4072 = vmatpush1.msra.mxu0 0.0
  %4073 = vmatprep.subr.mxu0 0.0
  %4074 = vmatpush1.msra.mxu0 0.0
  %4075 = vmatprep.subr.mxu0 0.0
  %4076 = vmatpush1.msra.mxu0 0.0
  %4077 = vmatprep.subr.mxu0 0.0
  %4078 = vmatpush1.msra.mxu0 0.0
  %4079 = vmatprep.subr.mxu0 0.0
  %4080 = vmatpush1.msra.mxu0 0.0
  %4081 = vmatprep.subr.mxu0 0.0
  %4082 = vmatpush1.msra.mxu0 0.0
  %4083 = vmatprep.subr.mxu0 0.0
  %4084 = vmatpush1.msra.mxu0 0.0
  %4085 = vmatprep.subr.mxu0 0.0
  %4086 = vmatpush1.msra.mxu0 0.0
  %4087 = vmatprep.subr.mxu0 0.0
  %4088 = vmatpush1.msra.mxu0 0.0
  %4089 = vmatprep.subr.mxu0 0.0
  %4090 = vmatpush1.msra.mxu0 0.0
  %4091 = vmatprep.subr.mxu0 0.0
  %4092 = vmatpush1.msra.mxu0 0.0
  %4093 = vmatprep.subr.mxu0 0.0
  %4094 = vmatpush1.msra.mxu0 0.0
  %4095 = vmatprep.subr.mxu0 0.0
  %4096 = vmatpush1.msra.mxu0 0.0
  %4097 = vmatprep.subr.mxu0 0.0
  %4098 = vmatpush1.msra.mxu0 0.0
  %4099 = vmatprep.subr.mxu0 0.0
  %4100 = vmatpush1.msra.mxu0 0.0
  %4101 = vmatprep.subr.mxu0 0.0
  %4102 = vmatpush1.msra.mxu0 0.0
  %4103 = vmatprep.subr.mxu0 0.0
  %4104 = vmatpush1.msra.mxu0 0.0
  %4105 = vmatprep.subr.mxu0 0.0
  %4106 = vmatpush1.msra.mxu0 0.0
  %4107 = vmatprep.subr.mxu0 0.0
  %4108 = vmatpush1.msra.mxu0 0.0
  %4109 = vmatprep.subr.mxu0 0.0
  %4110 = vmatpush1.msra.mxu0 0.0
  %4111 = vmatprep.subr.mxu0 0.0
  %4112 = vmatpush1.msra.mxu0 0.0
  %4113 = vmatprep.subr.mxu0 0.0
  %4114 = vmatpush1.msra.mxu0 0.0
  %4115 = vmatprep.subr.mxu0 0.0
  %4116 = vmatpush1.msra.mxu0 0.0
  %4117 = vmatprep.subr.mxu0 0.0
  %4118 = vmatpush1.msra.mxu0 0.0
  %4119 = vmatprep.subr.mxu0 0.0
  %4120 = vmatpush1.msra.mxu0 0.0
  %4121 = vmatprep.mubr.f32.mxu0 0.0
  %4122 = vmatmul.mubr.f32.gmra.mrb[0].mxu0 %v4055
  %v4123 = vpop.f32.mrb[0].mxu0
  %v4124 = vadd.f32 0.0, %v4123
  %v4125 = vpop.f32.mrb[0].mxu0
  %4126 = vdwg.mxu0
  %s4127 = sld [smem:[#allocation4 + $0x3]]
  %p4128 = scmp.gt.s32.totalorder %s4127, 0
  %s4129 = scalar_select %p4128, 1, 0
  %s4130 = scvt.s32.f32 %s4129
  %s4131 = scalar_lea.vmem %s2, 24
  %v4132 = vld [vmem:[%s4131] sm:$0xff]
  %v4133 = vstv %s4130
  %v4134 = vmul.f32 %v4133, %v4132
  %s4135 = ssub.f32 1.0, %s4130
  %v4136 = vstv %s4135
  %v4137 = vmul.f32 %v4136, %v4124
  %v4138 = vadd.f32 %v4134, %v4137
  %v4139 = vld [vmem:[%s11] sm:$0xff]
  %v4140 = vld [vmem:[%s11 + $0x8] sm:$0xff]
  %4141 = vmatprep.subr.mxu0 0.0
  %4142 = vmatpush1.msra.mxu0 %v4139
  %4143 = vmatprep.subr.mxu0 0.0
  %4144 = vmatpush1.msra.mxu0 %v4140
  %4145 = vmatprep.subr.mxu0 0.0
  %4146 = vmatpush1.msra.mxu0 0.0
  %4147 = vmatprep.subr.mxu0 0.0
  %4148 = vmatpush1.msra.mxu0 0.0
  %4149 = vmatprep.subr.mxu0 0.0
  %4150 = vmatpush1.msra.mxu0 0.0
  %4151 = vmatprep.subr.mxu0 0.0
  %4152 = vmatpush1.msra.mxu0 0.0
  %4153 = vmatprep.subr.mxu0 0.0
  %4154 = vmatpush1.msra.mxu0 0.0
  %4155 = vmatprep.subr.mxu0 0.0
  %4156 = vmatpush1.msra.mxu0 0.0
  %4157 = vmatprep.subr.mxu0 0.0
  %4158 = vmatpush1.msra.mxu0 0.0
  %4159 = vmatprep.subr.mxu0 0.0
  %4160 = vmatpush1.msra.mxu0 0.0
  %4161 = vmatprep.subr.mxu0 0.0
  %4162 = vmatpush1.msra.mxu0 0.0
  %4163 = vmatprep.subr.mxu0 0.0
  %4164 = vmatpush1.msra.mxu0 0.0
  %4165 = vmatprep.subr.mxu0 0.0
  %4166 = vmatpush1.msra.mxu0 0.0
  %4167 = vmatprep.subr.mxu0 0.0
  %4168 = vmatpush1.msra.mxu0 0.0
  %4169 = vmatprep.subr.mxu0 0.0
  %4170 = vmatpush1.msra.mxu0 0.0
  %4171 = vmatprep.subr.mxu0 0.0
  %4172 = vmatpush1.msra.mxu0 0.0
  %4173 = vmatprep.subr.mxu0 0.0
  %4174 = vmatpush1.msra.mxu0 0.0
  %4175 = vmatprep.subr.mxu0 0.0
  %4176 = vmatpush1.msra.mxu0 0.0
  %4177 = vmatprep.subr.mxu0 0.0
  %4178 = vmatpush1.msra.mxu0 0.0
  %4179 = vmatprep.subr.mxu0 0.0
  %4180 = vmatpush1.msra.mxu0 0.0
  %4181 = vmatprep.subr.mxu0 0.0
  %4182 = vmatpush1.msra.mxu0 0.0
  %4183 = vmatprep.subr.mxu0 0.0
  %4184 = vmatpush1.msra.mxu0 0.0
  %4185 = vmatprep.subr.mxu0 0.0
  %4186 = vmatpush1.msra.mxu0 0.0
  %4187 = vmatprep.subr.mxu0 0.0
  %4188 = vmatpush1.msra.mxu0 0.0
  %4189 = vmatprep.subr.mxu0 0.0
  %4190 = vmatpush1.msra.mxu0 0.0
  %4191 = vmatprep.subr.mxu0 0.0
  %4192 = vmatpush1.msra.mxu0 0.0
  %4193 = vmatprep.subr.mxu0 0.0
  %4194 = vmatpush1.msra.mxu0 0.0
  %4195 = vmatprep.subr.mxu0 0.0
  %4196 = vmatpush1.msra.mxu0 0.0
  %4197 = vmatprep.subr.mxu0 0.0
  %4198 = vmatpush1.msra.mxu0 0.0
  %4199 = vmatprep.subr.mxu0 0.0
  %4200 = vmatpush1.msra.mxu0 0.0
  %4201 = vmatprep.subr.mxu0 0.0
  %4202 = vmatpush1.msra.mxu0 0.0
  %4203 = vmatprep.subr.mxu0 0.0
  %4204 = vmatpush1.msra.mxu0 0.0
  %4205 = vmatprep.mubr.f32.mxu0 0.0
  %4206 = vmatmul.mubr.f32.gmra.mrb[0].mxu0 %v3890
  %v4207 = vpop.f32.mrb[0].mxu0
  %v4208 = vadd.f32 0.0, %v4207
  %v4209 = vpop.f32.mrb[0].mxu0
  %4210 = vdwg.mxu0
  %v4211 = vadd.f32 %v1295, %v4208
  %v4212 = vtanh.pop %v4211
  %v4213 = vld [vmem:[%s12] sm:$0xff]
  %v4214 = vld [vmem:[%s12 + $0x8] sm:$0xff]
  %v4215 = vld [vmem:[%s12 + $0x10] sm:$0xff]
  %v4216 = vld [vmem:[%s12 + $0x18] sm:$0xff]
  %v4217 = vld [vmem:[%s12 + $0x20] sm:$0xff]
  %v4218 = vld [vmem:[%s12 + $0x28] sm:$0xff]
  %v4219 = vld [vmem:[%s12 + $0x30] sm:$0xff]
  %v4220 = vld [vmem:[%s12 + $0x38] sm:$0xff]
  %v4221 = vld [vmem:[%s12 + $0x40] sm:$0xff]
  %v4222 = vld [vmem:[%s12 + $0x48] sm:$0xff]
  %v4223 = vld [vmem:[%s12 + $0x50] sm:$0xff]
  %v4224 = vld [vmem:[%s12 + $0x58] sm:$0xff]
  %v4225 = vld [vmem:[%s12 + $0x60] sm:$0xff]
  %v4226 = vld [vmem:[%s12 + $0x68] sm:$0xff]
  %v4227 = vld [vmem:[%s12 + $0x70] sm:$0xff]
  %v4228 = vld [vmem:[%s12 + $0x78] sm:$0xff]
  %4229 = vmatprep.subr.mxu0 0.0
  %4230 = vmatpush1.msra.mxu0 %v4213
  %4231 = vmatprep.subr.mxu0 0.0
  %4232 = vmatpush1.msra.mxu0 %v4214
  %4233 = vmatprep.subr.mxu0 0.0
  %4234 = vmatpush1.msra.mxu0 %v4215
  %4235 = vmatprep.subr.mxu0 0.0
  %4236 = vmatpush1.msra.mxu0 %v4216
  %4237 = vmatprep.subr.mxu0 0.0
  %4238 = vmatpush1.msra.mxu0 %v4217
  %4239 = vmatprep.subr.mxu0 0.0
  %4240 = vmatpush1.msra.mxu0 %v4218
  %4241 = vmatprep.subr.mxu0 0.0
  %4242 = vmatpush1.msra.mxu0 %v4219
  %4243 = vmatprep.subr.mxu0 0.0
  %4244 = vmatpush1.msra.mxu0 %v4220
  %4245 = vmatprep.subr.mxu0 0.0
  %4246 = vmatpush1.msra.mxu0 %v4221
  %4247 = vmatprep.subr.mxu0 0.0
  %4248 = vmatpush1.msra.mxu0 %v4222
  %4249 = vmatprep.subr.mxu0 0.0
  %4250 = vmatpush1.msra.mxu0 %v4223
  %4251 = vmatprep.subr.mxu0 0.0
  %4252 = vmatpush1.msra.mxu0 %v4224
  %4253 = vmatprep.subr.mxu0 0.0
  %4254 = vmatpush1.msra.mxu0 %v4225
  %4255 = vmatprep.subr.mxu0 0.0
  %4256 = vmatpush1.msra.mxu0 %v4226
  %4257 = vmatprep.subr.mxu0 0.0
  %4258 = vmatpush1.msra.mxu0 %v4227
  %4259 = vmatprep.subr.mxu0 0.0
  %4260 = vmatpush1.msra.mxu0 %v4228
  %4261 = vmatprep.subr.mxu0 0.0
  %4262 = vmatpush1.msra.mxu0 0.0
  %4263 = vmatprep.subr.mxu0 0.0
  %4264 = vmatpush1.msra.mxu0 0.0
  %4265 = vmatprep.subr.mxu0 0.0
  %4266 = vmatpush1.msra.mxu0 0.0
  %4267 = vmatprep.subr.mxu0 0.0
  %4268 = vmatpush1.msra.mxu0 0.0
  %4269 = vmatprep.subr.mxu0 0.0
  %4270 = vmatpush1.msra.mxu0 0.0
  %4271 = vmatprep.subr.mxu0 0.0
  %4272 = vmatpush1.msra.mxu0 0.0
  %4273 = vmatprep.subr.mxu0 0.0
  %4274 = vmatpush1.msra.mxu0 0.0
  %4275 = vmatprep.subr.mxu0 0.0
  %4276 = vmatpush1.msra.mxu0 0.0
  %4277 = vmatprep.subr.mxu0 0.0
  %4278 = vmatpush1.msra.mxu0 0.0
  %4279 = vmatprep.subr.mxu0 0.0
  %4280 = vmatpush1.msra.mxu0 0.0
  %4281 = vmatprep.subr.mxu0 0.0
  %4282 = vmatpush1.msra.mxu0 0.0
  %4283 = vmatprep.subr.mxu0 0.0
  %4284 = vmatpush1.msra.mxu0 0.0
  %4285 = vmatprep.subr.mxu0 0.0
  %4286 = vmatpush1.msra.mxu0 0.0
  %4287 = vmatprep.subr.mxu0 0.0
  %4288 = vmatpush1.msra.mxu0 0.0
  %4289 = vmatprep.subr.mxu0 0.0
  %4290 = vmatpush1.msra.mxu0 0.0
  %4291 = vmatprep.subr.mxu0 0.0
  %4292 = vmatpush1.msra.mxu0 0.0
  %4293 = vmatprep.mubr.f32.mxu0 0.0
  %4294 = vmatmul.mubr.f32.gmra.mrb[0].mxu0 %v4212
  %v4295 = vpop.f32.mrb[0].mxu0
  %v4296 = vadd.f32 0.0, %v4295
  %v4297 = vpop.f32.mrb[0].mxu0
  %4298 = vdwg.mxu0
  %v4299 = vsel %vm1467, %v4296, -inf
  %4300 = vmax.xlane.f32.xlu0 %v4299
  %v4301 = vpop.xlane.xlu0 %4300
  %v4302 = vsub.f32 %v4296, %v4301
  %v4303 = vmul.f32 %v4302, 1.442695
  %v4304 = vpow.pop %v4303
  %v4305 = vsel %vm1467, %v4304, 0.0
  %4306 = vadd.xlane.f32.xlu0 %v4305
  %v4307 = vpop.xlane.xlu0 %4306
  %v4308 = vrcp.pop %v4307
  %v4309 = vmul.f32 %v4304, %v4308
  %v4310 = vld [vmem:[%s13] sm:$0xff]
  %v4311 = vld [vmem:[%s13 + $0x8] sm:$0xff]
  %v4313 = vsel %vm1467, %v4309, 0
  %4315 = vmatprep.subr.mxu0 %v4311
  %4316 = vmatpush1.msra.mxu0 %v4310
  %4317 = vmatprep.subr.mxu0 0.0
  %4318 = vmatpush1.msra.mxu0 0.0
  %4319 = vmatprep.subr.mxu0 0.0
  %4320 = vmatpush1.msra.mxu0 0.0
  %4321 = vmatprep.subr.mxu0 0.0
  %4322 = vmatpush1.msra.mxu0 0.0
  %4323 = vmatprep.subr.mxu0 0.0
  %4324 = vmatpush1.msra.mxu0 0.0
  %4325 = vmatprep.subr.mxu0 0.0
  %4326 = vmatpush1.msra.mxu0 0.0
  %4327 = vmatprep.subr.mxu0 0.0
  %4328 = vmatpush1.msra.mxu0 0.0
  %4329 = vmatprep.subr.mxu0 0.0
  %4330 = vmatpush1.msra.mxu0 0.0
  %4331 = vmatprep.subr.mxu0 0.0
  %4332 = vmatpush1.msra.mxu0 0.0
  %4333 = vmatprep.subr.mxu0 0.0
  %4334 = vmatpush1.msra.mxu0 0.0
  %4335 = vmatprep.subr.mxu0 0.0
  %4336 = vmatpush1.msra.mxu0 0.0
  %4337 = vmatprep.subr.mxu0 0.0
  %4338 = vmatpush1.msra.mxu0 0.0
  %4339 = vmatprep.subr.mxu0 0.0
  %4340 = vmatpush1.msra.mxu0 0.0
  %4341 = vmatprep.subr.mxu0 0.0
  %4342 = vmatpush1.msra.mxu0 0.0
  %4343 = vmatprep.subr.mxu0 0.0
  %4344 = vmatpush1.msra.mxu0 0.0
  %4345 = vmatprep.subr.mxu0 0.0
  %4346 = vmatpush1.msra.mxu0 0.0
  %4347 = vmatprep.subr.mxu0 0.0
  %4348 = vmatpush1.msra.mxu0 0.0
  %4349 = vmatprep.subr.mxu0 0.0
  %4350 = vmatpush1.msra.mxu0 0.0
  %4351 = vmatprep.subr.mxu0 0.0
  %4352 = vmatpush1.msra.mxu0 0.0
  %4353 = vmatprep.subr.mxu0 0.0
  %4354 = vmatpush1.msra.mxu0 0.0
  %4355 = vmatprep.subr.mxu0 0.0
  %4356 = vmatpush1.msra.mxu0 0.0
  %4357 = vmatprep.subr.mxu0 0.0
  %4358 = vmatpush1.msra.mxu0 0.0
  %4359 = vmatprep.subr.mxu0 0.0
  %4360 = vmatpush1.msra.mxu0 0.0
  %4361 = vmatprep.subr.mxu0 0.0
  %4362 = vmatpush1.msra.mxu0 0.0
  %4363 = vmatprep.subr.mxu0 0.0
  %4364 = vmatpush1.msra.mxu0 0.0
  %4365 = vmatprep.subr.mxu0 0.0
  %4366 = vmatpush1.msra.mxu0 0.0
  %4367 = vmatprep.subr.mxu0 0.0
  %4368 = vmatpush1.msra.mxu0 0.0
  %4369 = vmatprep.subr.mxu0 0.0
  %4370 = vmatpush1.msra.mxu0 0.0
  %4371 = vmatprep.subr.mxu0 0.0
  %4372 = vmatpush1.msra.mxu0 0.0
  %4373 = vmatprep.subr.mxu0 0.0
  %4374 = vmatpush1.msra.mxu0 0.0
  %4375 = vmatprep.subr.mxu0 0.0
  %4376 = vmatpush1.msra.mxu0 0.0
  %4377 = vmatprep.subr.mxu0 0.0
  %4378 = vmatpush1.msra.mxu0 0.0
  %4379 = vmatprep.mubr.f32.mxu0 0.0
  %4380 = vmatmul.mubr.f32.gmra.mrb[0].mxu0 %v4313
  %v4381 = vpop.f32.mrb[0].mxu0
  %v4382 = vadd.f32 0.0, %v4381
  %v4383 = vpop.f32.mrb[0].mxu0
  %v4384 = vadd.f32 0.0, %v4383
  %4385 = vdwg.mxu0
  %v4386 = vmul.f32 %v4382, %v1187
  %v4387 = vmul.f32 %v4384, %v1188
  %v4388 = vld [vmem:[%s14] sm:$0xff]
  %v4389 = vld [vmem:[%s14 + $0x8] sm:$0xff]
  %v4390 = vld [vmem:[%s14 + $0x10] sm:$0xff]
  %v4391 = vld [vmem:[%s14 + $0x18] sm:$0xff]
  %v4392 = vld [vmem:[%s14 + $0x20] sm:$0xff]
  %v4393 = vld [vmem:[%s14 + $0x28] sm:$0xff]
  %v4394 = vld [vmem:[%s14 + $0x30] sm:$0xff]
  %v4395 = vld [vmem:[%s14 + $0x38] sm:$0xff]
  %v4396 = vld [vmem:[%s14 + $0x40] sm:$0xff]
  %v4397 = vld [vmem:[%s14 + $0x48] sm:$0xff]
  %v4398 = vld [vmem:[%s14 + $0x50] sm:$0xff]
  %v4399 = vld [vmem:[%s14 + $0x58] sm:$0xff]
  %v4400 = vld [vmem:[%s14 + $0x60] sm:$0xff]
  %v4401 = vld [vmem:[%s14 + $0x68] sm:$0xff]
  %v4402 = vld [vmem:[%s14 + $0x70] sm:$0xff]
  %v4403 = vld [vmem:[%s14 + $0x78] sm:$0xff]
  %v4404 = vld [vmem:[%s14 + $0x80] sm:$0xff]
  %v4405 = vld [vmem:[%s14 + $0x88] sm:$0xff]
  %v4406 = vld [vmem:[%s14 + $0x90] sm:$0xff]
  %v4407 = vld [vmem:[%s14 + $0x98] sm:$0xff]
  %v4408 = vld [vmem:[%s14 + $0xa0] sm:$0xff]
  %v4409 = vld [vmem:[%s14 + $0xa8] sm:$0xff]
  %v4410 = vld [vmem:[%s14 + $0xb0] sm:$0xff]
  %v4411 = vld [vmem:[%s14 + $0xb8] sm:$0xff]
  %v4412 = vld [vmem:[%s14 + $0xc0] sm:$0xff]
  %v4413 = vld [vmem:[%s14 + $0xc8] sm:$0xff]
  %v4414 = vld [vmem:[%s14 + $0xd0] sm:$0xff]
  %v4415 = vld [vmem:[%s14 + $0xd8] sm:$0xff]
  %v4416 = vld [vmem:[%s14 + $0xe0] sm:$0xff]
  %v4417 = vld [vmem:[%s14 + $0xe8] sm:$0xff]
  %v4418 = vld [vmem:[%s14 + $0xf0] sm:$0xff]
  %v4419 = vld [vmem:[%s14 + $0xf8] sm:$0xff]
  %4420 = vmatprep.subr.mxu0 0.0
  %4421 = vmatpush1.msra.mxu0 %v4388
  %4422 = vmatprep.subr.mxu0 0.0
  %4423 = vmatpush1.msra.mxu0 %v4389
  %4424 = vmatprep.subr.mxu0 0.0
  %4425 = vmatpush1.msra.mxu0 %v4390
  %4426 = vmatprep.subr.mxu0 0.0
  %4427 = vmatpush1.msra.mxu0 %v4391
  %4428 = vmatprep.subr.mxu0 0.0
  %4429 = vmatpush1.msra.mxu0 %v4392
  %4430 = vmatprep.subr.mxu0 0.0
  %4431 = vmatpush1.msra.mxu0 %v4393
  %4432 = vmatprep.subr.mxu0 0.0
  %4433 = vmatpush1.msra.mxu0 %v4394
  %4434 = vmatprep.subr.mxu0 0.0
  %4435 = vmatpush1.msra.mxu0 %v4395
  %4436 = vmatprep.subr.mxu0 0.0
  %4437 = vmatpush1.msra.mxu0 %v4396
  %4438 = vmatprep.subr.mxu0 0.0
  %4439 = vmatpush1.msra.mxu0 %v4397
  %4440 = vmatprep.subr.mxu0 0.0
  %4441 = vmatpush1.msra.mxu0 %v4398
  %4442 = vmatprep.subr.mxu0 0.0
  %4443 = vmatpush1.msra.mxu0 %v4399
  %4444 = vmatprep.subr.mxu0 0.0
  %4445 = vmatpush1.msra.mxu0 %v4400
  %4446 = vmatprep.subr.mxu0 0.0
  %4447 = vmatpush1.msra.mxu0 %v4401
  %4448 = vmatprep.subr.mxu0 0.0
  %4449 = vmatpush1.msra.mxu0 %v4402
  %4450 = vmatprep.subr.mxu0 0.0
  %4451 = vmatpush1.msra.mxu0 %v4403
  %4452 = vmatprep.subr.mxu0 0.0
  %4453 = vmatpush1.msra.mxu0 %v4404
  %4454 = vmatprep.subr.mxu0 0.0
  %4455 = vmatpush1.msra.mxu0 %v4405
  %4456 = vmatprep.subr.mxu0 0.0
  %4457 = vmatpush1.msra.mxu0 %v4406
  %4458 = vmatprep.subr.mxu0 0.0
  %4459 = vmatpush1.msra.mxu0 %v4407
  %4460 = vmatprep.subr.mxu0 0.0
  %4461 = vmatpush1.msra.mxu0 %v4408
  %4462 = vmatprep.subr.mxu0 0.0
  %4463 = vmatpush1.msra.mxu0 %v4409
  %4464 = vmatprep.subr.mxu0 0.0
  %4465 = vmatpush1.msra.mxu0 %v4410
  %4466 = vmatprep.subr.mxu0 0.0
  %4467 = vmatpush1.msra.mxu0 %v4411
  %4468 = vmatprep.subr.mxu0 0.0
  %4469 = vmatpush1.msra.mxu0 %v4412
  %4470 = vmatprep.subr.mxu0 0.0
  %4471 = vmatpush1.msra.mxu0 %v4413
  %4472 = vmatprep.subr.mxu0 0.0
  %4473 = vmatpush1.msra.mxu0 %v4414
  %4474 = vmatprep.subr.mxu0 0.0
  %4475 = vmatpush1.msra.mxu0 %v4415
  %4476 = vmatprep.subr.mxu0 0.0
  %4477 = vmatpush1.msra.mxu0 %v4416
  %4478 = vmatprep.subr.mxu0 0.0
  %4479 = vmatpush1.msra.mxu0 %v4417
  %4480 = vmatprep.subr.mxu0 0.0
  %4481 = vmatpush1.msra.mxu0 %v4418
  %4482 = vmatprep.subr.mxu0 0.0
  %4483 = vmatpush1.msra.mxu0 %v4419
  %4484 = vmatprep.mubr.f32.mxu0 %v4387
  %4485 = vmatmul.mubr.f32.gmra.mrb[0].mxu0 %v4386
  %v4486 = vpop.f32.mrb[0].mxu0
  %v4487 = vadd.f32 0.0, %v4486
  %v4488 = vpop.f32.mrb[0].mxu0
  %4489 = vdwg.mxu0
  %v4490 = vld [vmem:[%s15] sm:$0xff]
  %v4491 = vld [vmem:[%s16] sm:$0xff]
  %v4492 = vld [vmem:[%s16 + $0x8] sm:$0xff]
  %v4493 = vld [vmem:[%s16 + $0x10] sm:$0xff]
  %v4494 = vld [vmem:[%s16 + $0x18] sm:$0xff]
  %v4496 = vsel %vm242, %v4487, 0
  %4498 = vmatprep.subr.mxu0 0.0
  %4499 = vmatpush1.msra.mxu0 %v4491
  %4500 = vmatprep.subr.mxu0 0.0
  %4501 = vmatpush1.msra.mxu0 %v4492
  %4502 = vmatprep.subr.mxu0 0.0
  %4503 = vmatpush1.msra.mxu0 %v4493
  %4504 = vmatprep.subr.mxu0 0.0
  %4505 = vmatpush1.msra.mxu0 %v4494
  %4506 = vmatprep.subr.mxu0 0.0
  %4507 = vmatpush1.msra.mxu0 0.0
  %4508 = vmatprep.subr.mxu0 0.0
  %4509 = vmatpush1.msra.mxu0 0.0
  %4510 = vmatprep.subr.mxu0 0.0
  %4511 = vmatpush1.msra.mxu0 0.0
  %4512 = vmatprep.subr.mxu0 0.0
  %4513 = vmatpush1.msra.mxu0 0.0
  %4514 = vmatprep.subr.mxu0 0.0
  %4515 = vmatpush1.msra.mxu0 0.0
  %4516 = vmatprep.subr.mxu0 0.0
  %4517 = vmatpush1.msra.mxu0 0.0
  %4518 = vmatprep.subr.mxu0 0.0
  %4519 = vmatpush1.msra.mxu0 0.0
  %4520 = vmatprep.subr.mxu0 0.0
  %4521 = vmatpush1.msra.mxu0 0.0
  %4522 = vmatprep.subr.mxu0 0.0
  %4523 = vmatpush1.msra.mxu0 0.0
  %4524 = vmatprep.subr.mxu0 0.0
  %4525 = vmatpush1.msra.mxu0 0.0
  %4526 = vmatprep.subr.mxu0 0.0
  %4527 = vmatpush1.msra.mxu0 0.0
  %4528 = vmatprep.subr.mxu0 0.0
  %4529 = vmatpush1.msra.mxu0 0.0
  %4530 = vmatprep.subr.mxu0 0.0
  %4531 = vmatpush1.msra.mxu0 0.0
  %4532 = vmatprep.subr.mxu0 0.0
  %4533 = vmatpush1.msra.mxu0 0.0
  %4534 = vmatprep.subr.mxu0 0.0
  %4535 = vmatpush1.msra.mxu0 0.0
  %4536 = vmatprep.subr.mxu0 0.0
  %4537 = vmatpush1.msra.mxu0 0.0
  %4538 = vmatprep.subr.mxu0 0.0
  %4539 = vmatpush1.msra.mxu0 0.0
  %4540 = vmatprep.subr.mxu0 0.0
  %4541 = vmatpush1.msra.mxu0 0.0
  %4542 = vmatprep.subr.mxu0 0.0
  %4543 = vmatpush1.msra.mxu0 0.0
  %4544 = vmatprep.subr.mxu0 0.0
  %4545 = vmatpush1.msra.mxu0 0.0
  %4546 = vmatprep.subr.mxu0 0.0
  %4547 = vmatpush1.msra.mxu0 0.0
  %4548 = vmatprep.subr.mxu0 0.0
  %4549 = vmatpush1.msra.mxu0 0.0
  %4550 = vmatprep.subr.mxu0 0.0
  %4551 = vmatpush1.msra.mxu0 0.0
  %4552 = vmatprep.subr.mxu0 0.0
  %4553 = vmatpush1.msra.mxu0 0.0
  %4554 = vmatprep.subr.mxu0 0.0
  %4555 = vmatpush1.msra.mxu0 0.0
  %4556 = vmatprep.subr.mxu0 0.0
  %4557 = vmatpush1.msra.mxu0 0.0
  %4558 = vmatprep.subr.mxu0 0.0
  %4559 = vmatpush1.msra.mxu0 0.0
  %4560 = vmatprep.subr.mxu0 0.0
  %4561 = vmatpush1.msra.mxu0 0.0
  %4562 = vmatprep.mubr.f32.mxu0 0.0
  %4563 = vmatmul.mubr.f32.gmra.mrb[0].mxu0 %v4496
  %v4564 = vpop.f32.mrb[0].mxu0
  %v4565 = vadd.f32 0.0, %v4564
  %v4566 = vpop.f32.mrb[0].mxu0
  %4567 = vdwg.mxu0
  %v4569 = vsel %vm1467, %v4138, 0
  %4571 = vmatprep.subr.mxu0 0.0
  %4572 = vmatpush1.msra.mxu0 %v4490
  %4573 = vmatprep.subr.mxu0 0.0
  %4574 = vmatpush1.msra.mxu0 0.0
  %4575 = vmatprep.subr.mxu0 0.0
  %4576 = vmatpush1.msra.mxu0 0.0
  %4577 = vmatprep.subr.mxu0 0.0
  %4578 = vmatpush1.msra.mxu0 0.0
  %4579 = vmatprep.subr.mxu0 0.0
  %4580 = vmatpush1.msra.mxu0 0.0
  %4581 = vmatprep.subr.mxu0 0.0
  %4582 = vmatpush1.msra.mxu0 0.0
  %4583 = vmatprep.subr.mxu0 0.0
  %4584 = vmatpush1.msra.mxu0 0.0
  %4585 = vmatprep.subr.mxu0 0.0
  %4586 = vmatpush1.msra.mxu0 0.0
  %4587 = vmatprep.subr.mxu0 0.0
  %4588 = vmatpush1.msra.mxu0 0.0
  %4589 = vmatprep.subr.mxu0 0.0
  %4590 = vmatpush1.msra.mxu0 0.0
  %4591 = vmatprep.subr.mxu0 0.0
  %4592 = vmatpush1.msra.mxu0 0.0
  %4593 = vmatprep.subr.mxu0 0.0
  %4594 = vmatpush1.msra.mxu0 0.0
  %4595 = vmatprep.subr.mxu0 0.0
  %4596 = vmatpush1.msra.mxu0 0.0
  %4597 = vmatprep.subr.mxu0 0.0
  %4598 = vmatpush1.msra.mxu0 0.0
  %4599 = vmatprep.subr.mxu0 0.0
  %4600 = vmatpush1.msra.mxu0 0.0
  %4601 = vmatprep.subr.mxu0 0.0
  %4602 = vmatpush1.msra.mxu0 0.0
  %4603 = vmatprep.subr.mxu0 0.0
  %4604 = vmatpush1.msra.mxu0 0.0
  %4605 = vmatprep.subr.mxu0 0.0
  %4606 = vmatpush1.msra.mxu0 0.0
  %4607 = vmatprep.subr.mxu0 0.0
  %4608 = vmatpush1.msra.mxu0 0.0
  %4609 = vmatprep.subr.mxu0 0.0
  %4610 = vmatpush1.msra.mxu0 0.0
  %4611 = vmatprep.subr.mxu0 0.0
  %4612 = vmatpush1.msra.mxu0 0.0
  %4613 = vmatprep.subr.mxu0 0.0
  %4614 = vmatpush1.msra.mxu0 0.0
  %4615 = vmatprep.subr.mxu0 0.0
  %4616 = vmatpush1.msra.mxu0 0.0
  %4617 = vmatprep.subr.mxu0 0.0
  %4618 = vmatpush1.msra.mxu0 0.0
  %4619 = vmatprep.subr.mxu0 0.0
  %4620 = vmatpush1.msra.mxu0 0.0
  %4621 = vmatprep.subr.mxu0 0.0
  %4622 = vmatpush1.msra.mxu0 0.0
  %4623 = vmatprep.subr.mxu0 0.0
  %4624 = vmatpush1.msra.mxu0 0.0
  %4625 = vmatprep.subr.mxu0 0.0
  %4626 = vmatpush1.msra.mxu0 0.0
  %4627 = vmatprep.subr.mxu0 0.0
  %4628 = vmatpush1.msra.mxu0 0.0
  %4629 = vmatprep.subr.mxu0 0.0
  %4630 = vmatpush1.msra.mxu0 0.0
  %4631 = vmatprep.subr.mxu0 0.0
  %4632 = vmatpush1.msra.mxu0 0.0
  %4633 = vmatprep.subr.mxu0 0.0
  %4634 = vmatpush1.msra.mxu0 0.0
  %4635 = vmatprep.mubr.f32.mxu0 0.0
  %4636 = vmatmul.mubr.f32.gmra.mrb[0].mxu0 %v4569
  %v4637 = vpop.f32.mrb[0].mxu0
  %v4638 = vadd.f32 %v4565, %v4637
  %v4639 = vpop.f32.mrb[0].mxu0
  %4640 = vdwg.mxu0
  %v4641 = vld [vmem:[%s18] sm:$0x1]
  %v4643 = vlaneseq
  %v4644 = vshrl.u32 %v4643, 7
  %v4645 = vsub.s32 0, %v4644
  %v4646 = vrot.slane %v4641, %v4645
  %v4648 = vadd.f32 %v4638, %v4646
  %v4649 = vld [vmem:[%s17] sm:$0xff]
  %v4650 = vld [vmem:[%s17 + $0x8] sm:$0xff]
  %v4651 = vld [vmem:[%s19] sm:$0x1]
  %v4653 = vlaneseq
  %v4654 = vshrl.u32 %v4653, 7
  %v4655 = vsub.s32 0, %v4654
  %v4656 = vrot.slane %v4651, %v4655
  %4658 = vmatprep.subr.mxu0 0.0
  %4659 = vmatpush1.msra.mxu0 %v4649
  %4660 = vmatprep.subr.mxu0 0.0
  %4661 = vmatpush1.msra.mxu0 %v4650
  %4662 = vmatprep.subr.mxu0 0.0
  %4663 = vmatpush1.msra.mxu0 0.0
  %4664 = vmatprep.subr.mxu0 0.0
  %4665 = vmatpush1.msra.mxu0 0.0
  %4666 = vmatprep.subr.mxu0 0.0
  %4667 = vmatpush1.msra.mxu0 0.0
  %4668 = vmatprep.subr.mxu0 0.0
  %4669 = vmatpush1.msra.mxu0 0.0
  %4670 = vmatprep.subr.mxu0 0.0
  %4671 = vmatpush1.msra.mxu0 0.0
  %4672 = vmatprep.subr.mxu0 0.0
  %4673 = vmatpush1.msra.mxu0 0.0
  %4674 = vmatprep.subr.mxu0 0.0
  %4675 = vmatpush1.msra.mxu0 0.0
  %4676 = vmatprep.subr.mxu0 0.0
  %4677 = vmatpush1.msra.mxu0 0.0
  %4678 = vmatprep.subr.mxu0 0.0
  %4679 = vmatpush1.msra.mxu0 0.0
  %4680 = vmatprep.subr.mxu0 0.0
  %4681 = vmatpush1.msra.mxu0 0.0
  %4682 = vmatprep.subr.mxu0 0.0
  %4683 = vmatpush1.msra.mxu0 0.0
  %4684 = vmatprep.subr.mxu0 0.0
  %4685 = vmatpush1.msra.mxu0 0.0
  %4686 = vmatprep.subr.mxu0 0.0
  %4687 = vmatpush1.msra.mxu0 0.0
  %4688 = vmatprep.subr.mxu0 0.0
  %4689 = vmatpush1.msra.mxu0 0.0
  %4690 = vmatprep.subr.mxu0 0.0
  %4691 = vmatpush1.msra.mxu0 0.0
  %4692 = vmatprep.subr.mxu0 0.0
  %4693 = vmatpush1.msra.mxu0 0.0
  %4694 = vmatprep.subr.mxu0 0.0
  %4695 = vmatpush1.msra.mxu0 0.0
  %4696 = vmatprep.subr.mxu0 0.0
  %4697 = vmatpush1.msra.mxu0 0.0
  %4698 = vmatprep.subr.mxu0 0.0
  %4699 = vmatpush1.msra.mxu0 0.0
  %4700 = vmatprep.subr.mxu0 0.0
  %4701 = vmatpush1.msra.mxu0 0.0
  %4702 = vmatprep.subr.mxu0 0.0
  %4703 = vmatpush1.msra.mxu0 0.0
  %4704 = vmatprep.subr.mxu0 0.0
  %4705 = vmatpush1.msra.mxu0 0.0
  %4706 = vmatprep.subr.mxu0 0.0
  %4707 = vmatpush1.msra.mxu0 0.0
  %4708 = vmatprep.subr.mxu0 0.0
  %4709 = vmatpush1.msra.mxu0 0.0
  %4710 = vmatprep.subr.mxu0 0.0
  %4711 = vmatpush1.msra.mxu0 0.0
  %4712 = vmatprep.subr.mxu0 0.0
  %4713 = vmatpush1.msra.mxu0 0.0
  %4714 = vmatprep.subr.mxu0 0.0
  %4715 = vmatpush1.msra.mxu0 0.0
  %4716 = vmatprep.subr.mxu0 0.0
  %4717 = vmatpush1.msra.mxu0 0.0
  %4718 = vmatprep.subr.mxu0 0.0
  %4719 = vmatpush1.msra.mxu0 0.0
  %4720 = vmatprep.subr.mxu0 0.0
  %4721 = vmatpush1.msra.mxu0 0.0
  %4722 = vmatprep.mubr.f32.mxu0 0.0
  %4723 = vmatmul.mubr.f32.gmra.mrb[0].mxu0 %v3890
  %v4724 = vpop.f32.mrb[0].mxu0
  %v4725 = vadd.f32 %v4656, %v4724
  %v4726 = vpop.f32.mrb[0].mxu0
  %4727 = vdwg.mxu0
  %v4728 = vadd.f32 %v4648, %v4725
  %v4729 = vxor.u32 %v4728, 2147483648
  %v4730 = vmul.f32 %v4729, 1.442695
  %v4731 = vpow.pop %v4730
  %v4732 = vadd.f32 %v4731, 1.0
  %v4733 = vrcp.pop %v4732
  %v4734 = vmul.f32 1.0, %v4733
  %4736 = vrot.lane.b32.xlu0 %v4725, 96
  %v4737 = vpop.permute.xlu0 %4736
  %v4739 = vmul.f32 %v4734, %v4737
  %4741 = vrot.lane.b32.xlu0 %v4739, 32
  %v4742 = vpop.permute.xlu0 %4741
  %v4744 = vadd.f32 %v4648, %v4742
  %v4745 = vtanh.pop %v4744
  %v4746 = vsub.f32 1.0, %v4734
  %4748 = vrot.lane.b32.xlu0 %v4745, 112
  %v4749 = vpop.permute.xlu0 %4748
  %v4751 = vmul.f32 %v4746, %v4749
  %v4752 = vmul.f32 %v4734, %v3810
  %v4753 = vadd.f32 %v4751, %v4752
  %v4754 = vld [vmem:[%s20] sm:$0xff]
  %v4755 = vld [vmem:[%s20 + $0x8] sm:$0xff]
  %v4756 = vld [vmem:[%s21] sm:$0xff]
  %v4757 = vld [vmem:[%s21 + $0x8] sm:$0xff]
  %v4758 = vld [vmem:[%s21 + $0x10] sm:$0xff]
  %v4759 = vld [vmem:[%s21 + $0x18] sm:$0xff]
  %4760 = vmatprep.subr.mxu0 0.0
  %4761 = vmatpush1.msra.mxu0 %v4756
  %4762 = vmatprep.subr.mxu0 0.0
  %4763 = vmatpush1.msra.mxu0 %v4757
  %4764 = vmatprep.subr.mxu0 0.0
  %4765 = vmatpush1.msra.mxu0 %v4758
  %4766 = vmatprep.subr.mxu0 0.0
  %4767 = vmatpush1.msra.mxu0 %v4759
  %4768 = vmatprep.subr.mxu0 0.0
  %4769 = vmatpush1.msra.mxu0 0.0
  %4770 = vmatprep.subr.mxu0 0.0
  %4771 = vmatpush1.msra.mxu0 0.0
  %4772 = vmatprep.subr.mxu0 0.0
  %4773 = vmatpush1.msra.mxu0 0.0
  %4774 = vmatprep.subr.mxu0 0.0
  %4775 = vmatpush1.msra.mxu0 0.0
  %4776 = vmatprep.subr.mxu0 0.0
  %4777 = vmatpush1.msra.mxu0 0.0
  %4778 = vmatprep.subr.mxu0 0.0
  %4779 = vmatpush1.msra.mxu0 0.0
  %4780 = vmatprep.subr.mxu0 0.0
  %4781 = vmatpush1.msra.mxu0 0.0
  %4782 = vmatprep.subr.mxu0 0.0
  %4783 = vmatpush1.msra.mxu0 0.0
  %4784 = vmatprep.subr.mxu0 0.0
  %4785 = vmatpush1.msra.mxu0 0.0
  %4786 = vmatprep.subr.mxu0 0.0
  %4787 = vmatpush1.msra.mxu0 0.0
  %4788 = vmatprep.subr.mxu0 0.0
  %4789 = vmatpush1.msra.mxu0 0.0
  %4790 = vmatprep.subr.mxu0 0.0
  %4791 = vmatpush1.msra.mxu0 0.0
  %4792 = vmatprep.subr.mxu0 0.0
  %4793 = vmatpush1.msra.mxu0 0.0
  %4794 = vmatprep.subr.mxu0 0.0
  %4795 = vmatpush1.msra.mxu0 0.0
  %4796 = vmatprep.subr.mxu0 0.0
  %4797 = vmatpush1.msra.mxu0 0.0
  %4798 = vmatprep.subr.mxu0 0.0
  %4799 = vmatpush1.msra.mxu0 0.0
  %4800 = vmatprep.subr.mxu0 0.0
  %4801 = vmatpush1.msra.mxu0 0.0
  %4802 = vmatprep.subr.mxu0 0.0
  %4803 = vmatpush1.msra.mxu0 0.0
  %4804 = vmatprep.subr.mxu0 0.0
  %4805 = vmatpush1.msra.mxu0 0.0
  %4806 = vmatprep.subr.mxu0 0.0
  %4807 = vmatpush1.msra.mxu0 0.0
  %4808 = vmatprep.subr.mxu0 0.0
  %4809 = vmatpush1.msra.mxu0 0.0
  %4810 = vmatprep.subr.mxu0 0.0
  %4811 = vmatpush1.msra.mxu0 0.0
  %4812 = vmatprep.subr.mxu0 0.0
  %4813 = vmatpush1.msra.mxu0 0.0
  %4814 = vmatprep.subr.mxu0 0.0
  %4815 = vmatpush1.msra.mxu0 0.0
  %4816 = vmatprep.subr.mxu0 0.0
  %4817 = vmatpush1.msra.mxu0 0.0
  %4818 = vmatprep.subr.mxu0 0.0
  %4819 = vmatpush1.msra.mxu0 0.0
  %4820 = vmatprep.subr.mxu0 0.0
  %4821 = vmatpush1.msra.mxu0 0.0
  %4822 = vmatprep.subr.mxu0 0.0
  %4823 = vmatpush1.msra.mxu0 0.0
  %4824 = vmatprep.mubr.f32.mxu0 0.0
  %4825 = vmatmul.mubr.f32.gmra.mrb[0].mxu0 %v4496
  %v4826 = vpop.f32.mrb[0].mxu0
  %v4827 = vadd.f32 0.0, %v4826
  %v4828 = vpop.f32.mrb[0].mxu0
  %4829 = vdwg.mxu0
  %4831 = vrot.lane.b32.xlu0 %v4753, 112
  %v4832 = vpop.permute.xlu0 %4831
  %v4833 = vsel %vm101, %v4832, 0
  %4835 = vmatprep.subr.mxu0 0.0
  %4836 = vmatpush1.msra.mxu0 %v4754
  %4837 = vmatprep.subr.mxu0 0.0
  %4838 = vmatpush1.msra.mxu0 %v4755
  %4839 = vmatprep.subr.mxu0 0.0
  %4840 = vmatpush1.msra.mxu0 0.0
  %4841 = vmatprep.subr.mxu0 0.0
  %4842 = vmatpush1.msra.mxu0 0.0
  %4843 = vmatprep.subr.mxu0 0.0
  %4844 = vmatpush1.msra.mxu0 0.0
  %4845 = vmatprep.subr.mxu0 0.0
  %4846 = vmatpush1.msra.mxu0 0.0
  %4847 = vmatprep.subr.mxu0 0.0
  %4848 = vmatpush1.msra.mxu0 0.0
  %4849 = vmatprep.subr.mxu0 0.0
  %4850 = vmatpush1.msra.mxu0 0.0
  %4851 = vmatprep.subr.mxu0 0.0
  %4852 = vmatpush1.msra.mxu0 0.0
  %4853 = vmatprep.subr.mxu0 0.0
  %4854 = vmatpush1.msra.mxu0 0.0
  %4855 = vmatprep.subr.mxu0 0.0
  %4856 = vmatpush1.msra.mxu0 0.0
  %4857 = vmatprep.subr.mxu0 0.0
  %4858 = vmatpush1.msra.mxu0 0.0
  %4859 = vmatprep.subr.mxu0 0.0
  %4860 = vmatpush1.msra.mxu0 0.0
  %4861 = vmatprep.subr.mxu0 0.0
  %4862 = vmatpush1.msra.mxu0 0.0
  %4863 = vmatprep.subr.mxu0 0.0
  %4864 = vmatpush1.msra.mxu0 0.0
  %4865 = vmatprep.subr.mxu0 0.0
  %4866 = vmatpush1.msra.mxu0 0.0
  %4867 = vmatprep.subr.mxu0 0.0
  %4868 = vmatpush1.msra.mxu0 0.0
  %4869 = vmatprep.subr.mxu0 0.0
  %4870 = vmatpush1.msra.mxu0 0.0
  %4871 = vmatprep.subr.mxu0 0.0
  %4872 = vmatpush1.msra.mxu0 0.0
  %4873 = vmatprep.subr.mxu0 0.0
  %4874 = vmatpush1.msra.mxu0 0.0
  %4875 = vmatprep.subr.mxu0 0.0
  %4876 = vmatpush1.msra.mxu0 0.0
  %4877 = vmatprep.subr.mxu0 0.0
  %4878 = vmatpush1.msra.mxu0 0.0
  %4879 = vmatprep.subr.mxu0 0.0
  %4880 = vmatpush1.msra.mxu0 0.0
  %4881 = vmatprep.subr.mxu0 0.0
  %4882 = vmatpush1.msra.mxu0 0.0
  %4883 = vmatprep.subr.mxu0 0.0
  %4884 = vmatpush1.msra.mxu0 0.0
  %4885 = vmatprep.subr.mxu0 0.0
  %4886 = vmatpush1.msra.mxu0 0.0
  %4887 = vmatprep.subr.mxu0 0.0
  %4888 = vmatpush1.msra.mxu0 0.0
  %4889 = vmatprep.subr.mxu0 0.0
  %4890 = vmatpush1.msra.mxu0 0.0
  %4891 = vmatprep.subr.mxu0 0.0
  %4892 = vmatpush1.msra.mxu0 0.0
  %4893 = vmatprep.subr.mxu0 0.0
  %4894 = vmatpush1.msra.mxu0 0.0
  %4895 = vmatprep.subr.mxu0 0.0
  %4896 = vmatpush1.msra.mxu0 0.0
  %4897 = vmatprep.subr.mxu0 0.0
  %4898 = vmatpush1.msra.mxu0 0.0
  %4899 = vmatprep.mubr.f32.mxu0 0.0
  %4900 = vmatmul.mubr.f32.gmra.mrb[0].mxu0 %v4833
  %v4901 = vpop.f32.mrb[0].mxu0
  %v4902 = vadd.f32 %v4827, %v4901
  %v4903 = vpop.f32.mrb[0].mxu0
  %4904 = vdwg.mxu0
  %v4905 = vld [vmem:[%s22] sm:$0xff]
  %4906 = vmatprep.subr.mxu0 0.0
  %4907 = vmatpush1.msra.mxu0 %v4905
  %4908 = vmatprep.subr.mxu0 0.0
  %4909 = vmatpush1.msra.mxu0 0.0
  %4910 = vmatprep.subr.mxu0 0.0
  %4911 = vmatpush1.msra.mxu0 0.0
  %4912 = vmatprep.subr.mxu0 0.0
  %4913 = vmatpush1.msra.mxu0 0.0
  %4914 = vmatprep.subr.mxu0 0.0
  %4915 = vmatpush1.msra.mxu0 0.0
  %4916 = vmatprep.subr.mxu0 0.0
  %4917 = vmatpush1.msra.mxu0 0.0
  %4918 = vmatprep.subr.mxu0 0.0
  %4919 = vmatpush1.msra.mxu0 0.0
  %4920 = vmatprep.subr.mxu0 0.0
  %4921 = vmatpush1.msra.mxu0 0.0
  %4922 = vmatprep.subr.mxu0 0.0
  %4923 = vmatpush1.msra.mxu0 0.0
  %4924 = vmatprep.subr.mxu0 0.0
  %4925 = vmatpush1.msra.mxu0 0.0
  %4926 = vmatprep.subr.mxu0 0.0
  %4927 = vmatpush1.msra.mxu0 0.0
  %4928 = vmatprep.subr.mxu0 0.0
  %4929 = vmatpush1.msra.mxu0 0.0
  %4930 = vmatprep.subr.mxu0 0.0
  %4931 = vmatpush1.msra.mxu0 0.0
  %4932 = vmatprep.subr.mxu0 0.0
  %4933 = vmatpush1.msra.mxu0 0.0
  %4934 = vmatprep.subr.mxu0 0.0
  %4935 = vmatpush1.msra.mxu0 0.0
  %4936 = vmatprep.subr.mxu0 0.0
  %4937 = vmatpush1.msra.mxu0 0.0
  %4938 = vmatprep.subr.mxu0 0.0
  %4939 = vmatpush1.msra.mxu0 0.0
  %4940 = vmatprep.subr.mxu0 0.0
  %4941 = vmatpush1.msra.mxu0 0.0
  %4942 = vmatprep.subr.mxu0 0.0
  %4943 = vmatpush1.msra.mxu0 0.0
  %4944 = vmatprep.subr.mxu0 0.0
  %4945 = vmatpush1.msra.mxu0 0.0
  %4946 = vmatprep.subr.mxu0 0.0
  %4947 = vmatpush1.msra.mxu0 0.0
  %4948 = vmatprep.subr.mxu0 0.0
  %4949 = vmatpush1.msra.mxu0 0.0
  %4950 = vmatprep.subr.mxu0 0.0
  %4951 = vmatpush1.msra.mxu0 0.0
  %4952 = vmatprep.subr.mxu0 0.0
  %4953 = vmatpush1.msra.mxu0 0.0
  %4954 = vmatprep.subr.mxu0 0.0
  %4955 = vmatpush1.msra.mxu0 0.0
  %4956 = vmatprep.subr.mxu0 0.0
  %4957 = vmatpush1.msra.mxu0 0.0
  %4958 = vmatprep.subr.mxu0 0.0
  %4959 = vmatpush1.msra.mxu0 0.0
  %4960 = vmatprep.subr.mxu0 0.0
  %4961 = vmatpush1.msra.mxu0 0.0
  %4962 = vmatprep.subr.mxu0 0.0
  %4963 = vmatpush1.msra.mxu0 0.0
  %4964 = vmatprep.subr.mxu0 0.0
  %4965 = vmatpush1.msra.mxu0 0.0
  %4966 = vmatprep.subr.mxu0 0.0
  %4967 = vmatpush1.msra.mxu0 0.0
  %4968 = vmatprep.subr.mxu0 0.0
  %4969 = vmatpush1.msra.mxu0 0.0
  %4970 = vmatprep.mubr.f32.mxu0 0.0
  %4971 = vmatmul.mubr.f32.gmra.mrb[0].mxu0 %v4569
  %v4972 = vpop.f32.mrb[0].mxu0
  %v4973 = vadd.f32 0.0, %v4972
  %v4974 = vpop.f32.mrb[0].mxu0
  %4975 = vdwg.mxu0
  %v4976 = vadd.f32 %v4902, %v4973
  %v4977 = vld [vmem:[%s23] sm:$0x1]
  %v4979 = vlaneseq
  %v4980 = vshrl.u32 %v4979, 7
  %v4981 = vsub.s32 0, %v4980
  %v4982 = vrot.slane %v4977, %v4981
  %v4984 = vadd.f32 %v4976, %v4982
  %s4985 = scalar_lea.vmem %s25, 24
  %4986 = vst.msk [vmem:[%s4985] sm:$0xff] %vm101, %v4984
  %v4987 = vsel %vm101, %v4984, -inf
  %4988 = vmax.xlane.f32.xlu0 %v4987
  %v4989 = vpop.xlane.xlu0 %4988
  %vm4990 = vcmp.ge.f32.partialorder %v4984, %v4989
  %v4991 = vsel %vm4990, %v1302, 16.0
  %v4992 = vsel %vm101, %v4991, inf
  %4993 = vmin.xlane.f32.xlu0 %v4992
  %v4994 = vpop.xlane.xlu0 %4993
  %vm4995 = vcmp.eq.f32.partialorder %v1302, %v4994
  %v4996 = vsel %vm4995, 1.0, 0.0
  %v4998 = vsel %vm101, %v4996, 0
  %5000 = vmatprep.subr.mxu0 0.0
  %5001 = vmatpush1.msra.mxu0 %v1298
  %5002 = vmatprep.subr.mxu0 0.0
  %5003 = vmatpush1.msra.mxu0 %v1299
  %5004 = vmatprep.subr.mxu0 0.0
  %5005 = vmatpush1.msra.mxu0 0.0
  %5006 = vmatprep.subr.mxu0 0.0
  %5007 = vmatpush1.msra.mxu0 0.0
  %5008 = vmatprep.subr.mxu0 0.0
  %5009 = vmatpush1.msra.mxu0 0.0
  %5010 = vmatprep.subr.mxu0 0.0
  %5011 = vmatpush1.msra.mxu0 0.0
  %5012 = vmatprep.subr.mxu0 0.0
  %5013 = vmatpush1.msra.mxu0 0.0
  %5014 = vmatprep.subr.mxu0 0.0
  %5015 = vmatpush1.msra.mxu0 0.0
  %5016 = vmatprep.subr.mxu0 0.0
  %5017 = vmatpush1.msra.mxu0 0.0
  %5018 = vmatprep.subr.mxu0 0.0
  %5019 = vmatpush1.msra.mxu0 0.0
  %5020 = vmatprep.subr.mxu0 0.0
  %5021 = vmatpush1.msra.mxu0 0.0
  %5022 = vmatprep.subr.mxu0 0.0
  %5023 = vmatpush1.msra.mxu0 0.0
  %5024 = vmatprep.subr.mxu0 0.0
  %5025 = vmatpush1.msra.mxu0 0.0
  %5026 = vmatprep.subr.mxu0 0.0
  %5027 = vmatpush1.msra.mxu0 0.0
  %5028 = vmatprep.subr.mxu0 0.0
  %5029 = vmatpush1.msra.mxu0 0.0
  %5030 = vmatprep.subr.mxu0 0.0
  %5031 = vmatpush1.msra.mxu0 0.0
  %5032 = vmatprep.subr.mxu0 0.0
  %5033 = vmatpush1.msra.mxu0 0.0
  %5034 = vmatprep.subr.mxu0 0.0
  %5035 = vmatpush1.msra.mxu0 0.0
  %5036 = vmatprep.subr.mxu0 0.0
  %5037 = vmatpush1.msra.mxu0 0.0
  %5038 = vmatprep.subr.mxu0 0.0
  %5039 = vmatpush1.msra.mxu0 0.0
  %5040 = vmatprep.subr.mxu0 0.0
  %5041 = vmatpush1.msra.mxu0 0.0
  %5042 = vmatprep.subr.mxu0 0.0
  %5043 = vmatpush1.msra.mxu0 0.0
  %5044 = vmatprep.subr.mxu0 0.0
  %5045 = vmatpush1.msra.mxu0 0.0
  %5046 = vmatprep.subr.mxu0 0.0
  %5047 = vmatpush1.msra.mxu0 0.0
  %5048 = vmatprep.subr.mxu0 0.0
  %5049 = vmatpush1.msra.mxu0 0.0
  %5050 = vmatprep.subr.mxu0 0.0
  %5051 = vmatpush1.msra.mxu0 0.0
  %5052 = vmatprep.subr.mxu0 0.0
  %5053 = vmatpush1.msra.mxu0 0.0
  %5054 = vmatprep.subr.mxu0 0.0
  %5055 = vmatpush1.msra.mxu0 0.0
  %5056 = vmatprep.subr.mxu0 0.0
  %5057 = vmatpush1.msra.mxu0 0.0
  %5058 = vmatprep.subr.mxu0 0.0
  %5059 = vmatpush1.msra.mxu0 0.0
  %5060 = vmatprep.subr.mxu0 0.0
  %5061 = vmatpush1.msra.mxu0 0.0
  %5062 = vmatprep.subr.mxu0 0.0
  %5063 = vmatpush1.msra.mxu0 0.0
  %5064 = vmatprep.mubr.f32.mxu0 0.0
  %5065 = vmatmul.mubr.f32.gmra.mrb[0].mxu0 %v4998
  %v5066 = vpop.f32.mrb[0].mxu0
  %v5067 = vadd.f32 0.0, %v5066
  %v5068 = vpop.f32.mrb[0].mxu0
  %5069 = vdwg.mxu0
  %s5070 = sld [smem:[#allocation4 + $0x4]]
  %p5071 = scmp.gt.s32.totalorder %s5070, 0
  %s5072 = scalar_select %p5071, 1, 0
  %s5073 = scvt.s32.f32 %s5072
  %s5074 = scalar_lea.vmem %s2, 32
  %v5075 = vld [vmem:[%s5074] sm:$0xff]
  %v5076 = vstv %s5073
  %v5077 = vmul.f32 %v5076, %v5075
  %s5078 = ssub.f32 1.0, %s5073
  %v5079 = vstv %s5078
  %v5080 = vmul.f32 %v5079, %v5067
  %v5081 = vadd.f32 %v5077, %v5080
  %v5082 = vld [vmem:[%s11] sm:$0xff]
  %v5083 = vld [vmem:[%s11 + $0x8] sm:$0xff]
  %5084 = vmatprep.subr.mxu0 0.0
  %5085 = vmatpush1.msra.mxu0 %v5082
  %5086 = vmatprep.subr.mxu0 0.0
  %5087 = vmatpush1.msra.mxu0 %v5083
  %5088 = vmatprep.subr.mxu0 0.0
  %5089 = vmatpush1.msra.mxu0 0.0
  %5090 = vmatprep.subr.mxu0 0.0
  %5091 = vmatpush1.msra.mxu0 0.0
  %5092 = vmatprep.subr.mxu0 0.0
  %5093 = vmatpush1.msra.mxu0 0.0
  %5094 = vmatprep.subr.mxu0 0.0
  %5095 = vmatpush1.msra.mxu0 0.0
  %5096 = vmatprep.subr.mxu0 0.0
  %5097 = vmatpush1.msra.mxu0 0.0
  %5098 = vmatprep.subr.mxu0 0.0
  %5099 = vmatpush1.msra.mxu0 0.0
  %5100 = vmatprep.subr.mxu0 0.0
  %5101 = vmatpush1.msra.mxu0 0.0
  %5102 = vmatprep.subr.mxu0 0.0
  %5103 = vmatpush1.msra.mxu0 0.0
  %5104 = vmatprep.subr.mxu0 0.0
  %5105 = vmatpush1.msra.mxu0 0.0
  %5106 = vmatprep.subr.mxu0 0.0
  %5107 = vmatpush1.msra.mxu0 0.0
  %5108 = vmatprep.subr.mxu0 0.0
  %5109 = vmatpush1.msra.mxu0 0.0
  %5110 = vmatprep.subr.mxu0 0.0
  %5111 = vmatpush1.msra.mxu0 0.0
  %5112 = vmatprep.subr.mxu0 0.0
  %5113 = vmatpush1.msra.mxu0 0.0
  %5114 = vmatprep.subr.mxu0 0.0
  %5115 = vmatpush1.msra.mxu0 0.0
  %5116 = vmatprep.subr.mxu0 0.0
  %5117 = vmatpush1.msra.mxu0 0.0
  %5118 = vmatprep.subr.mxu0 0.0
  %5119 = vmatpush1.msra.mxu0 0.0
  %5120 = vmatprep.subr.mxu0 0.0
  %5121 = vmatpush1.msra.mxu0 0.0
  %5122 = vmatprep.subr.mxu0 0.0
  %5123 = vmatpush1.msra.mxu0 0.0
  %5124 = vmatprep.subr.mxu0 0.0
  %5125 = vmatpush1.msra.mxu0 0.0
  %5126 = vmatprep.subr.mxu0 0.0
  %5127 = vmatpush1.msra.mxu0 0.0
  %5128 = vmatprep.subr.mxu0 0.0
  %5129 = vmatpush1.msra.mxu0 0.0
  %5130 = vmatprep.subr.mxu0 0.0
  %5131 = vmatpush1.msra.mxu0 0.0
  %5132 = vmatprep.subr.mxu0 0.0
  %5133 = vmatpush1.msra.mxu0 0.0
  %5134 = vmatprep.subr.mxu0 0.0
  %5135 = vmatpush1.msra.mxu0 0.0
  %5136 = vmatprep.subr.mxu0 0.0
  %5137 = vmatpush1.msra.mxu0 0.0
  %5138 = vmatprep.subr.mxu0 0.0
  %5139 = vmatpush1.msra.mxu0 0.0
  %5140 = vmatprep.subr.mxu0 0.0
  %5141 = vmatpush1.msra.mxu0 0.0
  %5142 = vmatprep.subr.mxu0 0.0
  %5143 = vmatpush1.msra.mxu0 0.0
  %5144 = vmatprep.subr.mxu0 0.0
  %5145 = vmatpush1.msra.mxu0 0.0
  %5146 = vmatprep.subr.mxu0 0.0
  %5147 = vmatpush1.msra.mxu0 0.0
  %5148 = vmatprep.mubr.f32.mxu0 0.0
  %5149 = vmatmul.mubr.f32.gmra.mrb[0].mxu0 %v4833
  %v5150 = vpop.f32.mrb[0].mxu0
  %v5151 = vadd.f32 0.0, %v5150
  %v5152 = vpop.f32.mrb[0].mxu0
  %5153 = vdwg.mxu0
  %v5154 = vadd.f32 %v1295, %v5151
  %v5155 = vtanh.pop %v5154
  %v5156 = vld [vmem:[%s12] sm:$0xff]
  %v5157 = vld [vmem:[%s12 + $0x8] sm:$0xff]
  %v5158 = vld [vmem:[%s12 + $0x10] sm:$0xff]
  %v5159 = vld [vmem:[%s12 + $0x18] sm:$0xff]
  %v5160 = vld [vmem:[%s12 + $0x20] sm:$0xff]
  %v5161 = vld [vmem:[%s12 + $0x28] sm:$0xff]
  %v5162 = vld [vmem:[%s12 + $0x30] sm:$0xff]
  %v5163 = vld [vmem:[%s12 + $0x38] sm:$0xff]
  %v5164 = vld [vmem:[%s12 + $0x40] sm:$0xff]
  %v5165 = vld [vmem:[%s12 + $0x48] sm:$0xff]
  %v5166 = vld [vmem:[%s12 + $0x50] sm:$0xff]
  %v5167 = vld [vmem:[%s12 + $0x58] sm:$0xff]
  %v5168 = vld [vmem:[%s12 + $0x60] sm:$0xff]
  %v5169 = vld [vmem:[%s12 + $0x68] sm:$0xff]
  %v5170 = vld [vmem:[%s12 + $0x70] sm:$0xff]
  %v5171 = vld [vmem:[%s12 + $0x78] sm:$0xff]
  %5172 = vmatprep.subr.mxu0 0.0
  %5173 = vmatpush1.msra.mxu0 %v5156
  %5174 = vmatprep.subr.mxu0 0.0
  %5175 = vmatpush1.msra.mxu0 %v5157
  %5176 = vmatprep.subr.mxu0 0.0
  %5177 = vmatpush1.msra.mxu0 %v5158
  %5178 = vmatprep.subr.mxu0 0.0
  %5179 = vmatpush1.msra.mxu0 %v5159
  %5180 = vmatprep.subr.mxu0 0.0
  %5181 = vmatpush1.msra.mxu0 %v5160
  %5182 = vmatprep.subr.mxu0 0.0
  %5183 = vmatpush1.msra.mxu0 %v5161
  %5184 = vmatprep.subr.mxu0 0.0
  %5185 = vmatpush1.msra.mxu0 %v5162
  %5186 = vmatprep.subr.mxu0 0.0
  %5187 = vmatpush1.msra.mxu0 %v5163
  %5188 = vmatprep.subr.mxu0 0.0
  %5189 = vmatpush1.msra.mxu0 %v5164
  %5190 = vmatprep.subr.mxu0 0.0
  %5191 = vmatpush1.msra.mxu0 %v5165
  %5192 = vmatprep.subr.mxu0 0.0
  %5193 = vmatpush1.msra.mxu0 %v5166
  %5194 = vmatprep.subr.mxu0 0.0
  %5195 = vmatpush1.msra.mxu0 %v5167
  %5196 = vmatprep.subr.mxu0 0.0
  %5197 = vmatpush1.msra.mxu0 %v5168
  %5198 = vmatprep.subr.mxu0 0.0
  %5199 = vmatpush1.msra.mxu0 %v5169
  %5200 = vmatprep.subr.mxu0 0.0
  %5201 = vmatpush1.msra.mxu0 %v5170
  %5202 = vmatprep.subr.mxu0 0.0
  %5203 = vmatpush1.msra.mxu0 %v5171
  %5204 = vmatprep.subr.mxu0 0.0
  %5205 = vmatpush1.msra.mxu0 0.0
  %5206 = vmatprep.subr.mxu0 0.0
  %5207 = vmatpush1.msra.mxu0 0.0
  %5208 = vmatprep.subr.mxu0 0.0
  %5209 = vmatpush1.msra.mxu0 0.0
  %5210 = vmatprep.subr.mxu0 0.0
  %5211 = vmatpush1.msra.mxu0 0.0
  %5212 = vmatprep.subr.mxu0 0.0
  %5213 = vmatpush1.msra.mxu0 0.0
  %5214 = vmatprep.subr.mxu0 0.0
  %5215 = vmatpush1.msra.mxu0 0.0
  %5216 = vmatprep.subr.mxu0 0.0
  %5217 = vmatpush1.msra.mxu0 0.0
  %5218 = vmatprep.subr.mxu0 0.0
  %5219 = vmatpush1.msra.mxu0 0.0
  %5220 = vmatprep.subr.mxu0 0.0
  %5221 = vmatpush1.msra.mxu0 0.0
  %5222 = vmatprep.subr.mxu0 0.0
  %5223 = vmatpush1.msra.mxu0 0.0
  %5224 = vmatprep.subr.mxu0 0.0
  %5225 = vmatpush1.msra.mxu0 0.0
  %5226 = vmatprep.subr.mxu0 0.0
  %5227 = vmatpush1.msra.mxu0 0.0
  %5228 = vmatprep.subr.mxu0 0.0
  %5229 = vmatpush1.msra.mxu0 0.0
  %5230 = vmatprep.subr.mxu0 0.0
  %5231 = vmatpush1.msra.mxu0 0.0
  %5232 = vmatprep.subr.mxu0 0.0
  %5233 = vmatpush1.msra.mxu0 0.0
  %5234 = vmatprep.subr.mxu0 0.0
  %5235 = vmatpush1.msra.mxu0 0.0
  %5236 = vmatprep.mubr.f32.mxu0 0.0
  %5237 = vmatmul.mubr.f32.gmra.mrb[0].mxu0 %v5155
  %v5238 = vpop.f32.mrb[0].mxu0
  %v5239 = vadd.f32 0.0, %v5238
  %v5240 = vpop.f32.mrb[0].mxu0
  %5241 = vdwg.mxu0
  %v5242 = vsel %vm1467, %v5239, -inf
  %5243 = vmax.xlane.f32.xlu0 %v5242
  %v5244 = vpop.xlane.xlu0 %5243
  %v5245 = vsub.f32 %v5239, %v5244
  %v5246 = vmul.f32 %v5245, 1.442695
  %v5247 = vpow.pop %v5246
  %v5248 = vsel %vm1467, %v5247, 0.0
  %5249 = vadd.xlane.f32.xlu0 %v5248
  %v5250 = vpop.xlane.xlu0 %5249
  %v5251 = vrcp.pop %v5250
  %v5252 = vmul.f32 %v5247, %v5251
  %v5253 = vld [vmem:[%s13] sm:$0xff]
  %v5254 = vld [vmem:[%s13 + $0x8] sm:$0xff]
  %v5256 = vsel %vm1467, %v5252, 0
  %5258 = vmatprep.subr.mxu0 %v5254
  %5259 = vmatpush1.msra.mxu0 %v5253
  %5260 = vmatprep.subr.mxu0 0.0
  %5261 = vmatpush1.msra.mxu0 0.0
  %5262 = vmatprep.subr.mxu0 0.0
  %5263 = vmatpush1.msra.mxu0 0.0
  %5264 = vmatprep.subr.mxu0 0.0
  %5265 = vmatpush1.msra.mxu0 0.0
  %5266 = vmatprep.subr.mxu0 0.0
  %5267 = vmatpush1.msra.mxu0 0.0
  %5268 = vmatprep.subr.mxu0 0.0
  %5269 = vmatpush1.msra.mxu0 0.0
  %5270 = vmatprep.subr.mxu0 0.0
  %5271 = vmatpush1.msra.mxu0 0.0
  %5272 = vmatprep.subr.mxu0 0.0
  %5273 = vmatpush1.msra.mxu0 0.0
  %5274 = vmatprep.subr.mxu0 0.0
  %5275 = vmatpush1.msra.mxu0 0.0
  %5276 = vmatprep.subr.mxu0 0.0
  %5277 = vmatpush1.msra.mxu0 0.0
  %5278 = vmatprep.subr.mxu0 0.0
  %5279 = vmatpush1.msra.mxu0 0.0
  %5280 = vmatprep.subr.mxu0 0.0
  %5281 = vmatpush1.msra.mxu0 0.0
  %5282 = vmatprep.subr.mxu0 0.0
  %5283 = vmatpush1.msra.mxu0 0.0
  %5284 = vmatprep.subr.mxu0 0.0
  %5285 = vmatpush1.msra.mxu0 0.0
  %5286 = vmatprep.subr.mxu0 0.0
  %5287 = vmatpush1.msra.mxu0 0.0
  %5288 = vmatprep.subr.mxu0 0.0
  %5289 = vmatpush1.msra.mxu0 0.0
  %5290 = vmatprep.subr.mxu0 0.0
  %5291 = vmatpush1.msra.mxu0 0.0
  %5292 = vmatprep.subr.mxu0 0.0
  %5293 = vmatpush1.msra.mxu0 0.0
  %5294 = vmatprep.subr.mxu0 0.0
  %5295 = vmatpush1.msra.mxu0 0.0
  %5296 = vmatprep.subr.mxu0 0.0
  %5297 = vmatpush1.msra.mxu0 0.0
  %5298 = vmatprep.subr.mxu0 0.0
  %5299 = vmatpush1.msra.mxu0 0.0
  %5300 = vmatprep.subr.mxu0 0.0
  %5301 = vmatpush1.msra.mxu0 0.0
  %5302 = vmatprep.subr.mxu0 0.0
  %5303 = vmatpush1.msra.mxu0 0.0
  %5304 = vmatprep.subr.mxu0 0.0
  %5305 = vmatpush1.msra.mxu0 0.0
  %5306 = vmatprep.subr.mxu0 0.0
  %5307 = vmatpush1.msra.mxu0 0.0
  %5308 = vmatprep.subr.mxu0 0.0
  %5309 = vmatpush1.msra.mxu0 0.0
  %5310 = vmatprep.subr.mxu0 0.0
  %5311 = vmatpush1.msra.mxu0 0.0
  %5312 = vmatprep.subr.mxu0 0.0
  %5313 = vmatpush1.msra.mxu0 0.0
  %5314 = vmatprep.subr.mxu0 0.0
  %5315 = vmatpush1.msra.mxu0 0.0
  %5316 = vmatprep.subr.mxu0 0.0
  %5317 = vmatpush1.msra.mxu0 0.0
  %5318 = vmatprep.subr.mxu0 0.0
  %5319 = vmatpush1.msra.mxu0 0.0
  %5320 = vmatprep.subr.mxu0 0.0
  %5321 = vmatpush1.msra.mxu0 0.0
  %5322 = vmatprep.mubr.f32.mxu0 0.0
  %5323 = vmatmul.mubr.f32.gmra.mrb[0].mxu0 %v5256
  %v5324 = vpop.f32.mrb[0].mxu0
  %v5325 = vadd.f32 0.0, %v5324
  %v5326 = vpop.f32.mrb[0].mxu0
  %v5327 = vadd.f32 0.0, %v5326
  %5328 = vdwg.mxu0
  %v5329 = vmul.f32 %v5325, %v1187
  %v5330 = vmul.f32 %v5327, %v1188
  %v5331 = vld [vmem:[%s14] sm:$0xff]
  %v5332 = vld [vmem:[%s14 + $0x8] sm:$0xff]
  %v5333 = vld [vmem:[%s14 + $0x10] sm:$0xff]
  %v5334 = vld [vmem:[%s14 + $0x18] sm:$0xff]
  %v5335 = vld [vmem:[%s14 + $0x20] sm:$0xff]
  %v5336 = vld [vmem:[%s14 + $0x28] sm:$0xff]
  %v5337 = vld [vmem:[%s14 + $0x30] sm:$0xff]
  %v5338 = vld [vmem:[%s14 + $0x38] sm:$0xff]
  %v5339 = vld [vmem:[%s14 + $0x40] sm:$0xff]
  %v5340 = vld [vmem:[%s14 + $0x48] sm:$0xff]
  %v5341 = vld [vmem:[%s14 + $0x50] sm:$0xff]
  %v5342 = vld [vmem:[%s14 + $0x58] sm:$0xff]
  %v5343 = vld [vmem:[%s14 + $0x60] sm:$0xff]
  %v5344 = vld [vmem:[%s14 + $0x68] sm:$0xff]
  %v5345 = vld [vmem:[%s14 + $0x70] sm:$0xff]
  %v5346 = vld [vmem:[%s14 + $0x78] sm:$0xff]
  %v5347 = vld [vmem:[%s14 + $0x80] sm:$0xff]
  %v5348 = vld [vmem:[%s14 + $0x88] sm:$0xff]
  %v5349 = vld [vmem:[%s14 + $0x90] sm:$0xff]
  %v5350 = vld [vmem:[%s14 + $0x98] sm:$0xff]
  %v5351 = vld [vmem:[%s14 + $0xa0] sm:$0xff]
  %v5352 = vld [vmem:[%s14 + $0xa8] sm:$0xff]
  %v5353 = vld [vmem:[%s14 + $0xb0] sm:$0xff]
  %v5354 = vld [vmem:[%s14 + $0xb8] sm:$0xff]
  %v5355 = vld [vmem:[%s14 + $0xc0] sm:$0xff]
  %v5356 = vld [vmem:[%s14 + $0xc8] sm:$0xff]
  %v5357 = vld [vmem:[%s14 + $0xd0] sm:$0xff]
  %v5358 = vld [vmem:[%s14 + $0xd8] sm:$0xff]
  %v5359 = vld [vmem:[%s14 + $0xe0] sm:$0xff]
  %v5360 = vld [vmem:[%s14 + $0xe8] sm:$0xff]
  %v5361 = vld [vmem:[%s14 + $0xf0] sm:$0xff]
  %v5362 = vld [vmem:[%s14 + $0xf8] sm:$0xff]
  %5363 = vmatprep.subr.mxu0 0.0
  %5364 = vmatpush1.msra.mxu0 %v5331
  %5365 = vmatprep.subr.mxu0 0.0
  %5366 = vmatpush1.msra.mxu0 %v5332
  %5367 = vmatprep.subr.mxu0 0.0
  %5368 = vmatpush1.msra.mxu0 %v5333
  %5369 = vmatprep.subr.mxu0 0.0
  %5370 = vmatpush1.msra.mxu0 %v5334
  %5371 = vmatprep.subr.mxu0 0.0
  %5372 = vmatpush1.msra.mxu0 %v5335
  %5373 = vmatprep.subr.mxu0 0.0
  %5374 = vmatpush1.msra.mxu0 %v5336
  %5375 = vmatprep.subr.mxu0 0.0
  %5376 = vmatpush1.msra.mxu0 %v5337
  %5377 = vmatprep.subr.mxu0 0.0
  %5378 = vmatpush1.msra.mxu0 %v5338
  %5379 = vmatprep.subr.mxu0 0.0
  %5380 = vmatpush1.msra.mxu0 %v5339
  %5381 = vmatprep.subr.mxu0 0.0
  %5382 = vmatpush1.msra.mxu0 %v5340
  %5383 = vmatprep.subr.mxu0 0.0
  %5384 = vmatpush1.msra.mxu0 %v5341
  %5385 = vmatprep.subr.mxu0 0.0
  %5386 = vmatpush1.msra.mxu0 %v5342
  %5387 = vmatprep.subr.mxu0 0.0
  %5388 = vmatpush1.msra.mxu0 %v5343
  %5389 = vmatprep.subr.mxu0 0.0
  %5390 = vmatpush1.msra.mxu0 %v5344
  %5391 = vmatprep.subr.mxu0 0.0
  %5392 = vmatpush1.msra.mxu0 %v5345
  %5393 = vmatprep.subr.mxu0 0.0
  %5394 = vmatpush1.msra.mxu0 %v5346
  %5395 = vmatprep.subr.mxu0 0.0
  %5396 = vmatpush1.msra.mxu0 %v5347
  %5397 = vmatprep.subr.mxu0 0.0
  %5398 = vmatpush1.msra.mxu0 %v5348
  %5399 = vmatprep.subr.mxu0 0.0
  %5400 = vmatpush1.msra.mxu0 %v5349
  %5401 = vmatprep.subr.mxu0 0.0
  %5402 = vmatpush1.msra.mxu0 %v5350
  %5403 = vmatprep.subr.mxu0 0.0
  %5404 = vmatpush1.msra.mxu0 %v5351
  %5405 = vmatprep.subr.mxu0 0.0
  %5406 = vmatpush1.msra.mxu0 %v5352
  %5407 = vmatprep.subr.mxu0 0.0
  %5408 = vmatpush1.msra.mxu0 %v5353
  %5409 = vmatprep.subr.mxu0 0.0
  %5410 = vmatpush1.msra.mxu0 %v5354
  %5411 = vmatprep.subr.mxu0 0.0
  %5412 = vmatpush1.msra.mxu0 %v5355
  %5413 = vmatprep.subr.mxu0 0.0
  %5414 = vmatpush1.msra.mxu0 %v5356
  %5415 = vmatprep.subr.mxu0 0.0
  %5416 = vmatpush1.msra.mxu0 %v5357
  %5417 = vmatprep.subr.mxu0 0.0
  %5418 = vmatpush1.msra.mxu0 %v5358
  %5419 = vmatprep.subr.mxu0 0.0
  %5420 = vmatpush1.msra.mxu0 %v5359
  %5421 = vmatprep.subr.mxu0 0.0
  %5422 = vmatpush1.msra.mxu0 %v5360
  %5423 = vmatprep.subr.mxu0 0.0
  %5424 = vmatpush1.msra.mxu0 %v5361
  %5425 = vmatprep.subr.mxu0 0.0
  %5426 = vmatpush1.msra.mxu0 %v5362
  %5427 = vmatprep.mubr.f32.mxu0 %v5330
  %5428 = vmatmul.mubr.f32.gmra.mrb[0].mxu0 %v5329
  %v5429 = vpop.f32.mrb[0].mxu0
  %v5430 = vadd.f32 0.0, %v5429
  %v5431 = vpop.f32.mrb[0].mxu0
  %5432 = vdwg.mxu0
  %v5433 = vld [vmem:[%s15] sm:$0xff]
  %v5434 = vld [vmem:[%s16] sm:$0xff]
  %v5435 = vld [vmem:[%s16 + $0x8] sm:$0xff]
  %v5436 = vld [vmem:[%s16 + $0x10] sm:$0xff]
  %v5437 = vld [vmem:[%s16 + $0x18] sm:$0xff]
  %v5439 = vsel %vm242, %v5430, 0
  %5441 = vmatprep.subr.mxu0 0.0
  %5442 = vmatpush1.msra.mxu0 %v5434
  %5443 = vmatprep.subr.mxu0 0.0
  %5444 = vmatpush1.msra.mxu0 %v5435
  %5445 = vmatprep.subr.mxu0 0.0
  %5446 = vmatpush1.msra.mxu0 %v5436
  %5447 = vmatprep.subr.mxu0 0.0
  %5448 = vmatpush1.msra.mxu0 %v5437
  %5449 = vmatprep.subr.mxu0 0.0
  %5450 = vmatpush1.msra.mxu0 0.0
  %5451 = vmatprep.subr.mxu0 0.0
  %5452 = vmatpush1.msra.mxu0 0.0
  %5453 = vmatprep.subr.mxu0 0.0
  %5454 = vmatpush1.msra.mxu0 0.0
  %5455 = vmatprep.subr.mxu0 0.0
  %5456 = vmatpush1.msra.mxu0 0.0
  %5457 = vmatprep.subr.mxu0 0.0
  %5458 = vmatpush1.msra.mxu0 0.0
  %5459 = vmatprep.subr.mxu0 0.0
  %5460 = vmatpush1.msra.mxu0 0.0
  %5461 = vmatprep.subr.mxu0 0.0
  %5462 = vmatpush1.msra.mxu0 0.0
  %5463 = vmatprep.subr.mxu0 0.0
  %5464 = vmatpush1.msra.mxu0 0.0
  %5465 = vmatprep.subr.mxu0 0.0
  %5466 = vmatpush1.msra.mxu0 0.0
  %5467 = vmatprep.subr.mxu0 0.0
  %5468 = vmatpush1.msra.mxu0 0.0
  %5469 = vmatprep.subr.mxu0 0.0
  %5470 = vmatpush1.msra.mxu0 0.0
  %5471 = vmatprep.subr.mxu0 0.0
  %5472 = vmatpush1.msra.mxu0 0.0
  %5473 = vmatprep.subr.mxu0 0.0
  %5474 = vmatpush1.msra.mxu0 0.0
  %5475 = vmatprep.subr.mxu0 0.0
  %5476 = vmatpush1.msra.mxu0 0.0
  %5477 = vmatprep.subr.mxu0 0.0
  %5478 = vmatpush1.msra.mxu0 0.0
  %5479 = vmatprep.subr.mxu0 0.0
  %5480 = vmatpush1.msra.mxu0 0.0
  %5481 = vmatprep.subr.mxu0 0.0
  %5482 = vmatpush1.msra.mxu0 0.0
  %5483 = vmatprep.subr.mxu0 0.0
  %5484 = vmatpush1.msra.mxu0 0.0
  %5485 = vmatprep.subr.mxu0 0.0
  %5486 = vmatpush1.msra.mxu0 0.0
  %5487 = vmatprep.subr.mxu0 0.0
  %5488 = vmatpush1.msra.mxu0 0.0
  %5489 = vmatprep.subr.mxu0 0.0
  %5490 = vmatpush1.msra.mxu0 0.0
  %5491 = vmatprep.subr.mxu0 0.0
  %5492 = vmatpush1.msra.mxu0 0.0
  %5493 = vmatprep.subr.mxu0 0.0
  %5494 = vmatpush1.msra.mxu0 0.0
  %5495 = vmatprep.subr.mxu0 0.0
  %5496 = vmatpush1.msra.mxu0 0.0
  %5497 = vmatprep.subr.mxu0 0.0
  %5498 = vmatpush1.msra.mxu0 0.0
  %5499 = vmatprep.subr.mxu0 0.0
  %5500 = vmatpush1.msra.mxu0 0.0
  %5501 = vmatprep.subr.mxu0 0.0
  %5502 = vmatpush1.msra.mxu0 0.0
  %5503 = vmatprep.subr.mxu0 0.0
  %5504 = vmatpush1.msra.mxu0 0.0
  %5505 = vmatprep.mubr.f32.mxu0 0.0
  %5506 = vmatmul.mubr.f32.gmra.mrb[0].mxu0 %v5439
  %v5507 = vpop.f32.mrb[0].mxu0
  %v5508 = vadd.f32 0.0, %v5507
  %v5509 = vpop.f32.mrb[0].mxu0
  %5510 = vdwg.mxu0
  %v5512 = vsel %vm1467, %v5081, 0
  %5514 = vmatprep.subr.mxu0 0.0
  %5515 = vmatpush1.msra.mxu0 %v5433
  %5516 = vmatprep.subr.mxu0 0.0
  %5517 = vmatpush1.msra.mxu0 0.0
  %5518 = vmatprep.subr.mxu0 0.0
  %5519 = vmatpush1.msra.mxu0 0.0
  %5520 = vmatprep.subr.mxu0 0.0
  %5521 = vmatpush1.msra.mxu0 0.0
  %5522 = vmatprep.subr.mxu0 0.0
  %5523 = vmatpush1.msra.mxu0 0.0
  %5524 = vmatprep.subr.mxu0 0.0
  %5525 = vmatpush1.msra.mxu0 0.0
  %5526 = vmatprep.subr.mxu0 0.0
  %5527 = vmatpush1.msra.mxu0 0.0
  %5528 = vmatprep.subr.mxu0 0.0
  %5529 = vmatpush1.msra.mxu0 0.0
  %5530 = vmatprep.subr.mxu0 0.0
  %5531 = vmatpush1.msra.mxu0 0.0
  %5532 = vmatprep.subr.mxu0 0.0
  %5533 = vmatpush1.msra.mxu0 0.0
  %5534 = vmatprep.subr.mxu0 0.0
  %5535 = vmatpush1.msra.mxu0 0.0
  %5536 = vmatprep.subr.mxu0 0.0
  %5537 = vmatpush1.msra.mxu0 0.0
  %5538 = vmatprep.subr.mxu0 0.0
  %5539 = vmatpush1.msra.mxu0 0.0
  %5540 = vmatprep.subr.mxu0 0.0
  %5541 = vmatpush1.msra.mxu0 0.0
  %5542 = vmatprep.subr.mxu0 0.0
  %5543 = vmatpush1.msra.mxu0 0.0
  %5544 = vmatprep.subr.mxu0 0.0
  %5545 = vmatpush1.msra.mxu0 0.0
  %5546 = vmatprep.subr.mxu0 0.0
  %5547 = vmatpush1.msra.mxu0 0.0
  %5548 = vmatprep.subr.mxu0 0.0
  %5549 = vmatpush1.msra.mxu0 0.0
  %5550 = vmatprep.subr.mxu0 0.0
  %5551 = vmatpush1.msra.mxu0 0.0
  %5552 = vmatprep.subr.mxu0 0.0
  %5553 = vmatpush1.msra.mxu0 0.0
  %5554 = vmatprep.subr.mxu0 0.0
  %5555 = vmatpush1.msra.mxu0 0.0
  %5556 = vmatprep.subr.mxu0 0.0
  %5557 = vmatpush1.msra.mxu0 0.0
  %5558 = vmatprep.subr.mxu0 0.0
  %5559 = vmatpush1.msra.mxu0 0.0
  %5560 = vmatprep.subr.mxu0 0.0
  %5561 = vmatpush1.msra.mxu0 0.0
  %5562 = vmatprep.subr.mxu0 0.0
  %5563 = vmatpush1.msra.mxu0 0.0
  %5564 = vmatprep.subr.mxu0 0.0
  %5565 = vmatpush1.msra.mxu0 0.0
  %5566 = vmatprep.subr.mxu0 0.0
  %5567 = vmatpush1.msra.mxu0 0.0
  %5568 = vmatprep.subr.mxu0 0.0
  %5569 = vmatpush1.msra.mxu0 0.0
  %5570 = vmatprep.subr.mxu0 0.0
  %5571 = vmatpush1.msra.mxu0 0.0
  %5572 = vmatprep.subr.mxu0 0.0
  %5573 = vmatpush1.msra.mxu0 0.0
  %5574 = vmatprep.subr.mxu0 0.0
  %5575 = vmatpush1.msra.mxu0 0.0
  %5576 = vmatprep.subr.mxu0 0.0
  %5577 = vmatpush1.msra.mxu0 0.0
  %5578 = vmatprep.mubr.f32.mxu0 0.0
  %5579 = vmatmul.mubr.f32.gmra.mrb[0].mxu0 %v5512
  %v5580 = vpop.f32.mrb[0].mxu0
  %v5581 = vadd.f32 %v5508, %v5580
  %v5582 = vpop.f32.mrb[0].mxu0
  %5583 = vdwg.mxu0
  %v5584 = vld [vmem:[%s18] sm:$0x1]
  %v5586 = vlaneseq
  %v5587 = vshrl.u32 %v5586, 7
  %v5588 = vsub.s32 0, %v5587
  %v5589 = vrot.slane %v5584, %v5588
  %v5591 = vadd.f32 %v5581, %v5589
  %v5592 = vld [vmem:[%s17] sm:$0xff]
  %v5593 = vld [vmem:[%s17 + $0x8] sm:$0xff]
  %v5594 = vld [vmem:[%s19] sm:$0x1]
  %v5596 = vlaneseq
  %v5597 = vshrl.u32 %v5596, 7
  %v5598 = vsub.s32 0, %v5597
  %v5599 = vrot.slane %v5594, %v5598
  %5601 = vmatprep.subr.mxu0 0.0
  %5602 = vmatpush1.msra.mxu0 %v5592
  %5603 = vmatprep.subr.mxu0 0.0
  %5604 = vmatpush1.msra.mxu0 %v5593
  %5605 = vmatprep.subr.mxu0 0.0
  %5606 = vmatpush1.msra.mxu0 0.0
  %5607 = vmatprep.subr.mxu0 0.0
  %5608 = vmatpush1.msra.mxu0 0.0
  %5609 = vmatprep.subr.mxu0 0.0
  %5610 = vmatpush1.msra.mxu0 0.0
  %5611 = vmatprep.subr.mxu0 0.0
  %5612 = vmatpush1.msra.mxu0 0.0
  %5613 = vmatprep.subr.mxu0 0.0
  %5614 = vmatpush1.msra.mxu0 0.0
  %5615 = vmatprep.subr.mxu0 0.0
  %5616 = vmatpush1.msra.mxu0 0.0
  %5617 = vmatprep.subr.mxu0 0.0
  %5618 = vmatpush1.msra.mxu0 0.0
  %5619 = vmatprep.subr.mxu0 0.0
  %5620 = vmatpush1.msra.mxu0 0.0
  %5621 = vmatprep.subr.mxu0 0.0
  %5622 = vmatpush1.msra.mxu0 0.0
  %5623 = vmatprep.subr.mxu0 0.0
  %5624 = vmatpush1.msra.mxu0 0.0
  %5625 = vmatprep.subr.mxu0 0.0
  %5626 = vmatpush1.msra.mxu0 0.0
  %5627 = vmatprep.subr.mxu0 0.0
  %5628 = vmatpush1.msra.mxu0 0.0
  %5629 = vmatprep.subr.mxu0 0.0
  %5630 = vmatpush1.msra.mxu0 0.0
  %5631 = vmatprep.subr.mxu0 0.0
  %5632 = vmatpush1.msra.mxu0 0.0
  %5633 = vmatprep.subr.mxu0 0.0
  %5634 = vmatpush1.msra.mxu0 0.0
  %5635 = vmatprep.subr.mxu0 0.0
  %5636 = vmatpush1.msra.mxu0 0.0
  %5637 = vmatprep.subr.mxu0 0.0
  %5638 = vmatpush1.msra.mxu0 0.0
  %5639 = vmatprep.subr.mxu0 0.0
  %5640 = vmatpush1.msra.mxu0 0.0
  %5641 = vmatprep.subr.mxu0 0.0
  %5642 = vmatpush1.msra.mxu0 0.0
  %5643 = vmatprep.subr.mxu0 0.0
  %5644 = vmatpush1.msra.mxu0 0.0
  %5645 = vmatprep.subr.mxu0 0.0
  %5646 = vmatpush1.msra.mxu0 0.0
  %5647 = vmatprep.subr.mxu0 0.0
  %5648 = vmatpush1.msra.mxu0 0.0
  %5649 = vmatprep.subr.mxu0 0.0
  %5650 = vmatpush1.msra.mxu0 0.0
  %5651 = vmatprep.subr.mxu0 0.0
  %5652 = vmatpush1.msra.mxu0 0.0
  %5653 = vmatprep.subr.mxu0 0.0
  %5654 = vmatpush1.msra.mxu0 0.0
  %5655 = vmatprep.subr.mxu0 0.0
  %5656 = vmatpush1.msra.mxu0 0.0
  %5657 = vmatprep.subr.mxu0 0.0
  %5658 = vmatpush1.msra.mxu0 0.0
  %5659 = vmatprep.subr.mxu0 0.0
  %5660 = vmatpush1.msra.mxu0 0.0
  %5661 = vmatprep.subr.mxu0 0.0
  %5662 = vmatpush1.msra.mxu0 0.0
  %5663 = vmatprep.subr.mxu0 0.0
  %5664 = vmatpush1.msra.mxu0 0.0
  %5665 = vmatprep.mubr.f32.mxu0 0.0
  %5666 = vmatmul.mubr.f32.gmra.mrb[0].mxu0 %v4833
  %v5667 = vpop.f32.mrb[0].mxu0
  %v5668 = vadd.f32 %v5599, %v5667
  %v5669 = vpop.f32.mrb[0].mxu0
  %5670 = vdwg.mxu0
  %v5671 = vadd.f32 %v5591, %v5668
  %v5672 = vxor.u32 %v5671, 2147483648
  %v5673 = vmul.f32 %v5672, 1.442695
  %v5674 = vpow.pop %v5673
  %v5675 = vadd.f32 %v5674, 1.0
  %v5676 = vrcp.pop %v5675
  %v5677 = vmul.f32 1.0, %v5676
  %5679 = vrot.lane.b32.xlu0 %v5668, 96
  %v5680 = vpop.permute.xlu0 %5679
  %v5682 = vmul.f32 %v5677, %v5680
  %5684 = vrot.lane.b32.xlu0 %v5682, 32
  %v5685 = vpop.permute.xlu0 %5684
  %v5687 = vadd.f32 %v5591, %v5685
  %v5688 = vtanh.pop %v5687
  %v5689 = vsub.f32 1.0, %v5677
  %5691 = vrot.lane.b32.xlu0 %v5688, 112
  %v5692 = vpop.permute.xlu0 %5691
  %v5694 = vmul.f32 %v5689, %v5692
  %v5695 = vmul.f32 %v5677, %v4753
  %v5696 = vadd.f32 %v5694, %v5695
  %v5697 = vld [vmem:[%s20] sm:$0xff]
  %v5698 = vld [vmem:[%s20 + $0x8] sm:$0xff]
  %v5699 = vld [vmem:[%s21] sm:$0xff]
  %v5700 = vld [vmem:[%s21 + $0x8] sm:$0xff]
  %v5701 = vld [vmem:[%s21 + $0x10] sm:$0xff]
  %v5702 = vld [vmem:[%s21 + $0x18] sm:$0xff]
  %5703 = vmatprep.subr.mxu0 0.0
  %5704 = vmatpush1.msra.mxu0 %v5699
  %5705 = vmatprep.subr.mxu0 0.0
  %5706 = vmatpush1.msra.mxu0 %v5700
  %5707 = vmatprep.subr.mxu0 0.0
  %5708 = vmatpush1.msra.mxu0 %v5701
  %5709 = vmatprep.subr.mxu0 0.0
  %5710 = vmatpush1.msra.mxu0 %v5702
  %5711 = vmatprep.subr.mxu0 0.0
  %5712 = vmatpush1.msra.mxu0 0.0
  %5713 = vmatprep.subr.mxu0 0.0
  %5714 = vmatpush1.msra.mxu0 0.0
  %5715 = vmatprep.subr.mxu0 0.0
  %5716 = vmatpush1.msra.mxu0 0.0
  %5717 = vmatprep.subr.mxu0 0.0
  %5718 = vmatpush1.msra.mxu0 0.0
  %5719 = vmatprep.subr.mxu0 0.0
  %5720 = vmatpush1.msra.mxu0 0.0
  %5721 = vmatprep.subr.mxu0 0.0
  %5722 = vmatpush1.msra.mxu0 0.0
  %5723 = vmatprep.subr.mxu0 0.0
  %5724 = vmatpush1.msra.mxu0 0.0
  %5725 = vmatprep.subr.mxu0 0.0
  %5726 = vmatpush1.msra.mxu0 0.0
  %5727 = vmatprep.subr.mxu0 0.0
  %5728 = vmatpush1.msra.mxu0 0.0
  %5729 = vmatprep.subr.mxu0 0.0
  %5730 = vmatpush1.msra.mxu0 0.0
  %5731 = vmatprep.subr.mxu0 0.0
  %5732 = vmatpush1.msra.mxu0 0.0
  %5733 = vmatprep.subr.mxu0 0.0
  %5734 = vmatpush1.msra.mxu0 0.0
  %5735 = vmatprep.subr.mxu0 0.0
  %5736 = vmatpush1.msra.mxu0 0.0
  %5737 = vmatprep.subr.mxu0 0.0
  %5738 = vmatpush1.msra.mxu0 0.0
  %5739 = vmatprep.subr.mxu0 0.0
  %5740 = vmatpush1.msra.mxu0 0.0
  %5741 = vmatprep.subr.mxu0 0.0
  %5742 = vmatpush1.msra.mxu0 0.0
  %5743 = vmatprep.subr.mxu0 0.0
  %5744 = vmatpush1.msra.mxu0 0.0
  %5745 = vmatprep.subr.mxu0 0.0
  %5746 = vmatpush1.msra.mxu0 0.0
  %5747 = vmatprep.subr.mxu0 0.0
  %5748 = vmatpush1.msra.mxu0 0.0
  %5749 = vmatprep.subr.mxu0 0.0
  %5750 = vmatpush1.msra.mxu0 0.0
  %5751 = vmatprep.subr.mxu0 0.0
  %5752 = vmatpush1.msra.mxu0 0.0
  %5753 = vmatprep.subr.mxu0 0.0
  %5754 = vmatpush1.msra.mxu0 0.0
  %5755 = vmatprep.subr.mxu0 0.0
  %5756 = vmatpush1.msra.mxu0 0.0
  %5757 = vmatprep.subr.mxu0 0.0
  %5758 = vmatpush1.msra.mxu0 0.0
  %5759 = vmatprep.subr.mxu0 0.0
  %5760 = vmatpush1.msra.mxu0 0.0
  %5761 = vmatprep.subr.mxu0 0.0
  %5762 = vmatpush1.msra.mxu0 0.0
  %5763 = vmatprep.subr.mxu0 0.0
  %5764 = vmatpush1.msra.mxu0 0.0
  %5765 = vmatprep.subr.mxu0 0.0
  %5766 = vmatpush1.msra.mxu0 0.0
  %5767 = vmatprep.mubr.f32.mxu0 0.0
  %5768 = vmatmul.mubr.f32.gmra.mrb[0].mxu0 %v5439
  %v5769 = vpop.f32.mrb[0].mxu0
  %v5770 = vadd.f32 0.0, %v5769
  %v5771 = vpop.f32.mrb[0].mxu0
  %5772 = vdwg.mxu0
  %5774 = vrot.lane.b32.xlu0 %v5696, 112
  %v5775 = vpop.permute.xlu0 %5774
  %v5776 = vsel %vm101, %v5775, 0
  %5778 = vmatprep.subr.mxu0 0.0
  %5779 = vmatpush1.msra.mxu0 %v5697
  %5780 = vmatprep.subr.mxu0 0.0
  %5781 = vmatpush1.msra.mxu0 %v5698
  %5782 = vmatprep.subr.mxu0 0.0
  %5783 = vmatpush1.msra.mxu0 0.0
  %5784 = vmatprep.subr.mxu0 0.0
  %5785 = vmatpush1.msra.mxu0 0.0
  %5786 = vmatprep.subr.mxu0 0.0
  %5787 = vmatpush1.msra.mxu0 0.0
  %5788 = vmatprep.subr.mxu0 0.0
  %5789 = vmatpush1.msra.mxu0 0.0
  %5790 = vmatprep.subr.mxu0 0.0
  %5791 = vmatpush1.msra.mxu0 0.0
  %5792 = vmatprep.subr.mxu0 0.0
  %5793 = vmatpush1.msra.mxu0 0.0
  %5794 = vmatprep.subr.mxu0 0.0
  %5795 = vmatpush1.msra.mxu0 0.0
  %5796 = vmatprep.subr.mxu0 0.0
  %5797 = vmatpush1.msra.mxu0 0.0
  %5798 = vmatprep.subr.mxu0 0.0
  %5799 = vmatpush1.msra.mxu0 0.0
  %5800 = vmatprep.subr.mxu0 0.0
  %5801 = vmatpush1.msra.mxu0 0.0
  %5802 = vmatprep.subr.mxu0 0.0
  %5803 = vmatpush1.msra.mxu0 0.0
  %5804 = vmatprep.subr.mxu0 0.0
  %5805 = vmatpush1.msra.mxu0 0.0
  %5806 = vmatprep.subr.mxu0 0.0
  %5807 = vmatpush1.msra.mxu0 0.0
  %5808 = vmatprep.subr.mxu0 0.0
  %5809 = vmatpush1.msra.mxu0 0.0
  %5810 = vmatprep.subr.mxu0 0.0
  %5811 = vmatpush1.msra.mxu0 0.0
  %5812 = vmatprep.subr.mxu0 0.0
  %5813 = vmatpush1.msra.mxu0 0.0
  %5814 = vmatprep.subr.mxu0 0.0
  %5815 = vmatpush1.msra.mxu0 0.0
  %5816 = vmatprep.subr.mxu0 0.0
  %5817 = vmatpush1.msra.mxu0 0.0
  %5818 = vmatprep.subr.mxu0 0.0
  %5819 = vmatpush1.msra.mxu0 0.0
  %5820 = vmatprep.subr.mxu0 0.0
  %5821 = vmatpush1.msra.mxu0 0.0
  %5822 = vmatprep.subr.mxu0 0.0
  %5823 = vmatpush1.msra.mxu0 0.0
  %5824 = vmatprep.subr.mxu0 0.0
  %5825 = vmatpush1.msra.mxu0 0.0
  %5826 = vmatprep.subr.mxu0 0.0
  %5827 = vmatpush1.msra.mxu0 0.0
  %5828 = vmatprep.subr.mxu0 0.0
  %5829 = vmatpush1.msra.mxu0 0.0
  %5830 = vmatprep.subr.mxu0 0.0
  %5831 = vmatpush1.msra.mxu0 0.0
  %5832 = vmatprep.subr.mxu0 0.0
  %5833 = vmatpush1.msra.mxu0 0.0
  %5834 = vmatprep.subr.mxu0 0.0
  %5835 = vmatpush1.msra.mxu0 0.0
  %5836 = vmatprep.subr.mxu0 0.0
  %5837 = vmatpush1.msra.mxu0 0.0
  %5838 = vmatprep.subr.mxu0 0.0
  %5839 = vmatpush1.msra.mxu0 0.0
  %5840 = vmatprep.subr.mxu0 0.0
  %5841 = vmatpush1.msra.mxu0 0.0
  %5842 = vmatprep.mubr.f32.mxu0 0.0
  %5843 = vmatmul.mubr.f32.gmra.mrb[0].mxu0 %v5776
  %v5844 = vpop.f32.mrb[0].mxu0
  %v5845 = vadd.f32 %v5770, %v5844
  %v5846 = vpop.f32.mrb[0].mxu0
  %5847 = vdwg.mxu0
  %v5848 = vld [vmem:[%s22] sm:$0xff]
  %5849 = vmatprep.subr.mxu0 0.0
  %5850 = vmatpush1.msra.mxu0 %v5848
  %5851 = vmatprep.subr.mxu0 0.0
  %5852 = vmatpush1.msra.mxu0 0.0
  %5853 = vmatprep.subr.mxu0 0.0
  %5854 = vmatpush1.msra.mxu0 0.0
  %5855 = vmatprep.subr.mxu0 0.0
  %5856 = vmatpush1.msra.mxu0 0.0
  %5857 = vmatprep.subr.mxu0 0.0
  %5858 = vmatpush1.msra.mxu0 0.0
  %5859 = vmatprep.subr.mxu0 0.0
  %5860 = vmatpush1.msra.mxu0 0.0
  %5861 = vmatprep.subr.mxu0 0.0
  %5862 = vmatpush1.msra.mxu0 0.0
  %5863 = vmatprep.subr.mxu0 0.0
  %5864 = vmatpush1.msra.mxu0 0.0
  %5865 = vmatprep.subr.mxu0 0.0
  %5866 = vmatpush1.msra.mxu0 0.0
  %5867 = vmatprep.subr.mxu0 0.0
  %5868 = vmatpush1.msra.mxu0 0.0
  %5869 = vmatprep.subr.mxu0 0.0
  %5870 = vmatpush1.msra.mxu0 0.0
  %5871 = vmatprep.subr.mxu0 0.0
  %5872 = vmatpush1.msra.mxu0 0.0
  %5873 = vmatprep.subr.mxu0 0.0
  %5874 = vmatpush1.msra.mxu0 0.0
  %5875 = vmatprep.subr.mxu0 0.0
  %5876 = vmatpush1.msra.mxu0 0.0
  %5877 = vmatprep.subr.mxu0 0.0
  %5878 = vmatpush1.msra.mxu0 0.0
  %5879 = vmatprep.subr.mxu0 0.0
  %5880 = vmatpush1.msra.mxu0 0.0
  %5881 = vmatprep.subr.mxu0 0.0
  %5882 = vmatpush1.msra.mxu0 0.0
  %5883 = vmatprep.subr.mxu0 0.0
  %5884 = vmatpush1.msra.mxu0 0.0
  %5885 = vmatprep.subr.mxu0 0.0
  %5886 = vmatpush1.msra.mxu0 0.0
  %5887 = vmatprep.subr.mxu0 0.0
  %5888 = vmatpush1.msra.mxu0 0.0
  %5889 = vmatprep.subr.mxu0 0.0
  %5890 = vmatpush1.msra.mxu0 0.0
  %5891 = vmatprep.subr.mxu0 0.0
  %5892 = vmatpush1.msra.mxu0 0.0
  %5893 = vmatprep.subr.mxu0 0.0
  %5894 = vmatpush1.msra.mxu0 0.0
  %5895 = vmatprep.subr.mxu0 0.0
  %5896 = vmatpush1.msra.mxu0 0.0
  %5897 = vmatprep.subr.mxu0 0.0
  %5898 = vmatpush1.msra.mxu0 0.0
  %5899 = vmatprep.subr.mxu0 0.0
  %5900 = vmatpush1.msra.mxu0 0.0
  %5901 = vmatprep.subr.mxu0 0.0
  %5902 = vmatpush1.msra.mxu0 0.0
  %5903 = vmatprep.subr.mxu0 0.0
  %5904 = vmatpush1.msra.mxu0 0.0
  %5905 = vmatprep.subr.mxu0 0.0
  %5906 = vmatpush1.msra.mxu0 0.0
  %5907 = vmatprep.subr.mxu0 0.0
  %5908 = vmatpush1.msra.mxu0 0.0
  %5909 = vmatprep.subr.mxu0 0.0
  %5910 = vmatpush1.msra.mxu0 0.0
  %5911 = vmatprep.subr.mxu0 0.0
  %5912 = vmatpush1.msra.mxu0 0.0
  %5913 = vmatprep.mubr.f32.mxu0 0.0
  %5914 = vmatmul.mubr.f32.gmra.mrb[0].mxu0 %v5512
  %v5915 = vpop.f32.mrb[0].mxu0
  %v5916 = vadd.f32 0.0, %v5915
  %v5917 = vpop.f32.mrb[0].mxu0
  %5918 = vdwg.mxu0
  %v5919 = vadd.f32 %v5845, %v5916
  %v5920 = vld [vmem:[%s23] sm:$0x1]
  %v5922 = vlaneseq
  %v5923 = vshrl.u32 %v5922, 7
  %v5924 = vsub.s32 0, %v5923
  %v5925 = vrot.slane %v5920, %v5924
  %v5927 = vadd.f32 %v5919, %v5925
  %s5928 = scalar_lea.vmem %s25, 32
  %5929 = vst.msk [vmem:[%s5928] sm:$0xff] %vm101, %v5927
  // Predicated region
  $region98: #{_forward.1} parent=0 // pred_check
    _
  $region99: #{_forward.1} parent=0 // pred_check_branch
    %5931 = sbr.rel (0) target = $region101
  $region100: #{_forward.1} parent=0 // pred_region
    _
  $region101: #{_forward.1} parent=0 // pred_fallthru
    _
  // Predicated region
  $region102: #{_forward.1} parent=0 // pred_check
    _
  $region103: #{_forward.1} parent=0 // pred_check_branch
    %5933 = sbr.rel (0) target = $region105
  $region104: #{_forward.1} parent=0 // pred_region
    _
  $region105: #{_forward.1} parent=0 // pred_fallthru
    _

</llo_original>
